<compile_context>
chip_gen: v6e
topology: v6e:2x2x1
jax: 0.10.0
libtpu: 0.0.40
codegen_flags: <defaults>
</compile_context>

<pallas_src>
import functools

import jax
import jax.numpy as jnp
from jax.experimental import pallas as pl
from jax.experimental.pallas import tpu as pltpu

DIFF_AMP = 2.0
ROW_TILE = 1024         # rows (output voxels) per grid step


# ----------------------------------------------------------------------------
# Glue: im2col for 3D convs.
#   _im2col_3d     : NCDHW input, feature order (c, kd, kh, kw)  — matches
#                    PyTorch weight.reshape(out_ch, -1).
#   _im2col_3d_cl  : NDHWC (channels-last) input, feature order (kd, kh, kw, c)
#                    — lets us consume Kernel A's pooled output without a
#                    transpose; the conv2 weight is reordered to match.
# ----------------------------------------------------------------------------
def _im2col_3d(x, ksize, stride, pad):
    """x: (N, C, D, H, W) -> ((N*Do*Ho*Wo, C*ksize**3), (Do, Ho, Wo))."""
    N, C, D, H, W = x.shape
    xp = jnp.pad(x, ((0, 0), (0, 0), (pad, pad), (pad, pad), (pad, pad)))
    Do = (D + 2 * pad - ksize) // stride + 1
    Ho = (H + 2 * pad - ksize) // stride + 1
    Wo = (W + 2 * pad - ksize) // stride + 1
    cols = []
    for kd in range(ksize):
        for kh in range(ksize):
            for kw in range(ksize):
                patch = xp[:, :,
                           kd:kd + stride * Do:stride,
                           kh:kh + stride * Ho:stride,
                           kw:kw + stride * Wo:stride]
                cols.append(patch)                      # (N, C, Do, Ho, Wo)
    cols = jnp.stack(cols, axis=2)                      # (N, C, k^3, Do, Ho, Wo)
    cols = jnp.transpose(cols, (0, 3, 4, 5, 1, 2))      # (N, Do, Ho, Wo, C, k^3)
    return cols.reshape(N * Do * Ho * Wo, C * ksize ** 3), (Do, Ho, Wo)


def _im2col_3d_cl(x, ksize, stride, pad):
    """x: (N, D, H, W, C) -> ((N*Do*Ho*Wo, ksize**3 * C), (Do, Ho, Wo))."""
    N, D, H, W, C = x.shape
    xp = jnp.pad(x, ((0, 0), (pad, pad), (pad, pad), (pad, pad), (0, 0)))
    Do = (D + 2 * pad - ksize) // stride + 1
    Ho = (H + 2 * pad - ksize) // stride + 1
    Wo = (W + 2 * pad - ksize) // stride + 1
    cols = []
    for kd in range(ksize):
        for kh in range(ksize):
            for kw in range(ksize):
                patch = xp[:,
                           kd:kd + stride * Do:stride,
                           kh:kh + stride * Ho:stride,
                           kw:kw + stride * Wo:stride, :]
                cols.append(patch)                      # (N, Do, Ho, Wo, C)
    cols = jnp.stack(cols, axis=-2)                     # (N, Do, Ho, Wo, k^3, C)
    return cols.reshape(N * Do * Ho * Wo, ksize ** 3 * C), (Do, Ho, Wo)


# ----------------------------------------------------------------------------
# Kernel A: fused conv1 (both modalities, block-diagonal weight, one matmul)
# + amplified diff + channel max/avg pool.
# Outputs: lane-dense (TP, 2*C) bf16 feature slab [ft2 | ffl], (TP, 2) pooled.
# ----------------------------------------------------------------------------
def _conv1_pool_kernel(pcat_ref, w1_ref, feat_ref, pooled_ref,
                       *, base_ch, diff_amp):
    # (TP, 2*K1h) x (2*K1h, 2*C) block-diagonal -> (TP, 2*C), f32 MXU acc.
    acc = jnp.dot(pcat_ref[...], w1_ref[...],
                  preferred_element_type=jnp.float32)
    ft2 = acc[:, :base_ch]
    ffl = acc[:, base_ch:]
    diff = (ft2 - ffl) * diff_amp                       # f32, pre-rounding
    fmax = jnp.max(diff, axis=-1, keepdims=True)        # channel max pool
    favg = jnp.mean(diff, axis=-1, keepdims=True)       # channel avg pool
    feat_ref[...] = acc.astype(feat_ref.dtype)          # bf16 lane-dense store
    pooled_ref[...] = jnp.concatenate([fmax, favg], axis=-1)   # (TP, 2) f32


# ----------------------------------------------------------------------------
# Kernel B: conv2 (lane contraction over 2*27 patch features) + ReLU + sigmoid
# + attention augmentation of the fused feature slab (bf16 in, f32 out).
# ----------------------------------------------------------------------------
def _attn_aug_kernel(ap_ref, w2_ref, feat_ref, out_ref):
    # (TP, K2) * (1, K2) -> lane reduce -> (TP, 1); f32 throughout.
    attn_raw = jnp.sum(ap_ref[...] * w2_ref[...], axis=-1, keepdims=True)
    attn = jax.nn.sigmoid(jnp.maximum(attn_raw, 0.0))
    out_ref[...] = feat_ref[...].astype(jnp.float32) * (1.0 + attn)  # x + attn*x


# ----------------------------------------------------------------------------
# Wrapper (PyTorch NCDHW in / NCDHW out)
# ----------------------------------------------------------------------------
@functools.partial(jax.jit, static_argnames=("diff_amp", "row_tile"))
def t2flair_3dfea(t2_3d, flair_3d, w_t2, w_fl, w2,
                  diff_amp=DIFF_AMP, row_tile=ROW_TILE):
    N, in_ch = t2_3d.shape[0], t2_3d.shape[1]
    base_ch = w_t2.shape[0]

    # Cast to bf16 BEFORE im2col so the 343x-inflated patch slab is written
    # and re-read at half width; stack both modalities along channels so a
    # single im2col pass produces one (P, 2*in_ch*343) patch stream.
    x_cat = jnp.concatenate([t2_3d.astype(jnp.bfloat16),
                             flair_3d.astype(jnp.bfloat16)], axis=1)
    pcat, (Do, Ho, Wo) = _im2col_3d(x_cat, ksize=7, stride=2, pad=3)
    P, K1 = pcat.shape
    K1h = K1 // 2                                       # per-modality features

    # Block-diagonal weight: diag(w_t2, w_fl) -> one N=128 MXU matmul.
    wt2_m = w_t2.reshape(base_ch, K1h).T                # (K1h, C)
    wfl_m = w_fl.reshape(base_ch, K1h).T
    w1 = jnp.zeros((K1, 2 * base_ch), jnp.float32)
    w1 = w1.at[:K1h, :base_ch].set(wt2_m)
    w1 = w1.at[K1h:, base_ch:].set(wfl_m)
    w1 = w1.astype(jnp.bfloat16)                        # resident in VMEM

    # Tile sized for the smallest VMEM budget (v7x 64 MiB physical / v5e
    # 16 MiB default scoped): ~1-2K rows keeps the double-buffered working
    # set at a few MB.  "parallel" shards the P grid across v7x TensorCores.
    tp = min(row_tile, P)
    grid = (pl.cdiv(P, tp),)
    cparams = pltpu.CompilerParams(
        dimension_semantics=("parallel",),
        vmem_limit_bytes=32 * 1024 * 1024)

    kern_a = functools.partial(_conv1_pool_kernel,
                               base_ch=base_ch, diff_amp=diff_amp)
    feat_cat, pooled = pl.pallas_call(
        kern_a,
        grid=grid,
        in_specs=[
            pl.BlockSpec((tp, K1), lambda i: (i, 0)),
            pl.BlockSpec((K1, 2 * base_ch), lambda i: (0, 0)),   # weight resident
        ],
        out_specs=[
            pl.BlockSpec((tp, 2 * base_ch), lambda i: (i, 0)),
            pl.BlockSpec((tp, 2), lambda i: (i, 0)),
        ],
        out_shape=(
            jax.ShapeDtypeStruct((P, 2 * base_ch), jnp.bfloat16),
            jax.ShapeDtypeStruct((P, 2), jnp.float32),
        ),
        compiler_params=cparams,
    )(pcat, w1)

    # conv2 operates on the pooled 2-channel map.  The pooled slab is already
    # in NDHWC row order, so build the 3x3x3 patches channels-last (no NCDHW
    # transpose) and reorder the weight to match.  Kept f32 (tiny array).
    pooled_cl = pooled.reshape(N, Do, Ho, Wo, 2)
    ap, _ = _im2col_3d_cl(pooled_cl, ksize=3, stride=1, pad=1)   # (P, 54) f32
    K2 = ap.shape[1]
    w2_row = jnp.transpose(w2, (0, 2, 3, 4, 1)).reshape(1, K2).astype(jnp.float32)

    out_cat = pl.pallas_call(
        _attn_aug_kernel,
        grid=grid,
        in_specs=[
            pl.BlockSpec((tp, K2), lambda i: (i, 0)),
            pl.BlockSpec((1, K2), lambda i: (0, 0)),
            pl.BlockSpec((tp, 2 * base_ch), lambda i: (i, 0)),
        ],
        out_specs=pl.BlockSpec((tp, 2 * base_ch), lambda i: (i, 0)),
        out_shape=jax.ShapeDtypeStruct((P, 2 * base_ch), jnp.float32),
        compiler_params=cparams,
    )(ap, w2_row, feat_cat)

    # One reshape + one transpose; channel split folded on top (cheap slices).
    out_ncdhw = jnp.transpose(out_cat.reshape(N, Do, Ho, Wo, 2 * base_ch),
                              (0, 4, 1, 2, 3))
    return out_ncdhw[:, :base_ch], out_ncdhw[:, base_ch:]


# ----------------------------------------------------------------------------
# Pure-JAX reference (mirrors the PyTorch forward) for a sanity check.
# ----------------------------------------------------------------------------
def _reference(t2, fl, w_t2, w_fl, w2, diff_amp):
    dn = jax.lax.conv_dimension_numbers(t2.shape, w_t2.shape,
                                        ("NCDHW", "OIDHW", "NCDHW"))
    conv = functools.partial(jax.lax.conv_general_dilated,
                             dimension_numbers=dn,
                             precision=jax.lax.Precision.HIGHEST)
    ft2 = conv(t2, w_t2, (2, 2, 2), [(3, 3)] * 3)
    ffl = conv(fl, w_fl, (2, 2, 2), [(3, 3)] * 3)
    diff = (ft2 - ffl) * diff_amp
    feat_cat = jnp.concatenate(
        [jnp.max(diff, axis=1, keepdims=True),
         jnp.mean(diff, axis=1, keepdims=True)], axis=1)
    dn2 = jax.lax.conv_dimension_numbers(feat_cat.shape, w2.shape,
                                         ("NCDHW", "OIDHW", "NCDHW"))
    attn = jax.lax.conv_general_dilated(feat_cat, w2, (1, 1, 1), [(1, 1)] * 3,
                                        dimension_numbers=dn2,
                                        precision=jax.lax.Precision.HIGHEST)
    attn = jax.nn.sigmoid(jnp.maximum(attn, 0.0))
    return ft2 + attn * ft2, ffl + attn * ffl


if __name__ == "__main__":
    # Small shapes: N=2, in_ch=1, D=H=W=16; base_ch must be 64 because the
    # channel pooling window is hard-coded to 64 in the module.
    N, IN_CH, D, H, W = 2, 1, 16, 16, 16
    BASE_CH = 64

    key = jax.random.PRNGKey(0)
    k_t2, k_fl, kw1, kw2, kw3 = jax.random.split(key, 5)

    t2_3d = jax.random.normal(k_t2, (N, IN_CH, D, H, W), jnp.float32)
    flair_3d = jax.random.normal(k_fl, (N, IN_CH, D, H, W), jnp.float32)

    # Deterministic kaiming_normal_-style init (std = sqrt(2 / fan_in)).
    fan1 = IN_CH * 7 * 7 * 7
    w_t2 = jax.random.normal(kw1, (BASE_CH, IN_CH, 7, 7, 7), jnp.float32) * (2.0 / fan1) ** 0.5
    w_fl = jax.random.normal(kw2, (BASE_CH, IN_CH, 7, 7, 7), jnp.float32) * (2.0 / fan1) ** 0.5
    fan2 = 2 * 3 * 3 * 3
    w2 = jax.random.normal(kw3, (1, 2, 3, 3, 3), jnp.float32) * (2.0 / fan2) ** 0.5

    out_t2, out_fl = t2flair_3dfea(t2_3d, flair_3d, w_t2, w_fl, w2)
    jax.block_until_ready((out_t2, out_fl))

    ref_t2, ref_fl = _reference(t2_3d, flair_3d, w_t2, w_fl, w2, DIFF_AMP)
    assert out_t2.shape == ref_t2.shape == (N, BASE_CH, 8, 8, 8)
    # bf16 patches/weights + bf16 feature intermediate, f32 accumulation and
    # f32 attention path: small deviation vs the f32-HIGHEST reference.
    assert jnp.allclose(out_t2, ref_t2, atol=3e-2, rtol=3e-2)
    assert jnp.allclose(out_fl, ref_fl, atol=3e-2, rtol=3e-2)

    print("KERNEL_OK")
</pallas_src>

<mosaic_0001>
module attributes {stable_mosaic.version = 11 : i64} {
  func.func @_conv1_pool_kernel(%arg0: i32, %arg1: memref<1024x686xbf16, #tpu.memory_space<vmem>>, %arg2: memref<686x128xbf16, #tpu.memory_space<vmem>>, %arg3: memref<1024x128xbf16, #tpu.memory_space<vmem>>, %arg4: memref<1024x2xf32, #tpu.memory_space<vmem>>) attributes {dimension_semantics = [#tpu.dimension_semantics<parallel>], iteration_bounds = array<i64: 1>, scalar_prefetch = 0 : i64, scratch_operands = 0 : i64, tpu.core_type = #tpu.core_type<tc>, window_params = [{transform_indices = @transform_0, window_bounds = array<i64: 1024, 686>}, {pipeline_mode = #tpu.pipeline_mode<synchronous>, transform_indices = @transform_1, window_bounds = array<i64: 686, 128>}, {transform_indices = @transform_2, window_bounds = array<i64: 1024, 128>}, {transform_indices = @transform_3, window_bounds = array<i64: 1024, 2>}]} {
    %c0 = arith.constant 0 : index
    %c0_0 = arith.constant 0 : index
    %0 = vector.load %arg1[%c0, %c0_0] : memref<1024x686xbf16, #tpu.memory_space<vmem>>, vector<1024x686xbf16>
    %c0_1 = arith.constant 0 : index
    %c0_2 = arith.constant 0 : index
    %1 = vector.load %arg2[%c0_1, %c0_2] : memref<686x128xbf16, #tpu.memory_space<vmem>>, vector<686x128xbf16>
    %cst = arith.constant dense<0.000000e+00> : vector<1024x128xf32>
    %2 = tpu.matmul %0, %1, %cst {dimension_numbers = #tpu.dot_dimension_numbers<[1], [0], [0], [1], [0, 0, 1, 1], [], []>} : vector<1024x686xbf16>, vector<686x128xbf16>, vector<1024x128xf32> -> vector<1024x128xf32>
    %3 = vector.extract_strided_slice %2 {offsets = [0, 0], sizes = [1024, 64], strides = [1, 1]} : vector<1024x128xf32> to vector<1024x64xf32>
    %4 = vector.extract_strided_slice %2 {offsets = [0, 64], sizes = [1024, 64], strides = [1, 1]} : vector<1024x128xf32> to vector<1024x64xf32>
    %5 = arith.subf %3, %4 : vector<1024x64xf32>
    %cst_3 = arith.constant 2.000000e+00 : f32
    %6 = vector.broadcast %cst_3 : f32 to vector<1024x64xf32>
    %7 = arith.mulf %5, %6 : vector<1024x64xf32>
    %cst_4 = arith.constant dense<0xFF800000> : vector<1024xf32>
    %8 = vector.multi_reduction <maximumf>, %7, %cst_4 [1] : vector<1024x64xf32> to vector<1024xf32>
    %9 = vector.shape_cast %8 : vector<1024xf32> to vector<1024x1xf32>
    %cst_5 = arith.constant dense<0.000000e+00> : vector<1024xf32>
    %10 = vector.multi_reduction <add>, %7, %cst_5 [1] : vector<1024x64xf32> to vector<1024xf32>
    %11 = vector.shape_cast %10 : vector<1024xf32> to vector<1024x1xf32>
    %cst_6 = arith.constant 6.400000e+01 : f32
    %12 = vector.broadcast %cst_6 : f32 to vector<1024x1xf32>
    %13 = arith.divf %11, %12 : vector<1024x1xf32>
    %14 = arith.truncf %2 : vector<1024x128xf32> to vector<1024x128xbf16>
    %c0_7 = arith.constant 0 : index
    %c0_8 = arith.constant 0 : index
    %15 = vector.load %arg3[%c0_7, %c0_8] : memref<1024x128xbf16, #tpu.memory_space<vmem>>, vector<1024x128xbf16>
    tpu.vector_store %arg3[%c0_7, %c0_8], %14 {strides = array<i32>} : memref<1024x128xbf16, #tpu.memory_space<vmem>>, vector<1024x128xbf16>,
    %16 = tpu.concatenate %9, %13 in 1 : vector<1024x1xf32>, vector<1024x1xf32> -> vector<1024x2xf32>
    %c0_9 = arith.constant 0 : index
    %c0_10 = arith.constant 0 : index
    %17 = vector.load %arg4[%c0_9, %c0_10] : memref<1024x2xf32, #tpu.memory_space<vmem>>, vector<1024x2xf32>
    tpu.vector_store %arg4[%c0_9, %c0_10], %16 {strides = array<i32>} : memref<1024x2xf32, #tpu.memory_space<vmem>>, vector<1024x2xf32>,
    return
  }
  func.func @transform_0(%arg0: i32) -> (i32, i32) {
    %c0_i32 = arith.constant 0 : i32
    %c0_i32_0 = arith.constant 0 : i32
    return %arg0, %c0_i32 : i32, i32
  }
  func.func @transform_1(%arg0: i32) -> (i32, i32) {
    %c0_i32 = arith.constant 0 : i32
    %c0_i32_0 = arith.constant 0 : i32
    %c0_i32_1 = arith.constant 0 : i32
    return %c0_i32, %c0_i32_0 : i32, i32
  }
  func.func @transform_2(%arg0: i32) -> (i32, i32) {
    %c0_i32 = arith.constant 0 : i32
    %c0_i32_0 = arith.constant 0 : i32
    return %arg0, %c0_i32 : i32, i32
  }
  func.func @transform_3(%arg0: i32) -> (i32, i32) {
    %c0_i32 = arith.constant 0 : i32
    %c0_i32_0 = arith.constant 0 : i32
    return %arg0, %c0_i32 : i32, i32
  }
}

module attributes {stable_mosaic.version = 11 : i64} {
  func.func @_attn_aug_kernel(%arg0: i32, %arg1: memref<1024x54xf32, #tpu.memory_space<vmem>>, %arg2: memref<1x54xf32, #tpu.memory_space<vmem>>, %arg3: memref<1024x128xbf16, #tpu.memory_space<vmem>>, %arg4: memref<1024x128xf32, #tpu.memory_space<vmem>>) attributes {dimension_semantics = [#tpu.dimension_semantics<parallel>], iteration_bounds = array<i64: 1>, scalar_prefetch = 0 : i64, scratch_operands = 0 : i64, tpu.core_type = #tpu.core_type<tc>, window_params = [{transform_indices = @transform_0, window_bounds = array<i64: 1024, 54>}, {pipeline_mode = #tpu.pipeline_mode<synchronous>, transform_indices = @transform_1, window_bounds = array<i64: 1, 54>}, {transform_indices = @transform_2, window_bounds = array<i64: 1024, 128>}, {transform_indices = @transform_3, window_bounds = array<i64: 1024, 128>}]} {
    %c0 = arith.constant 0 : index
    %c0_0 = arith.constant 0 : index
    %0 = vector.load %arg1[%c0, %c0_0] : memref<1024x54xf32, #tpu.memory_space<vmem>>, vector<1024x54xf32>
    %c0_1 = arith.constant 0 : index
    %c0_2 = arith.constant 0 : index
    %1 = vector.load %arg2[%c0_1, %c0_2] : memref<1x54xf32, #tpu.memory_space<vmem>>, vector<1x54xf32>
    %2 = vector.broadcast %1 : vector<1x54xf32> to vector<1024x54xf32>
    %3 = arith.mulf %0, %2 : vector<1024x54xf32>
    %cst = arith.constant dense<0.000000e+00> : vector<1024xf32>
    %4 = vector.multi_reduction <add>, %3, %cst [1] : vector<1024x54xf32> to vector<1024xf32>
    %5 = vector.shape_cast %4 : vector<1024xf32> to vector<1024x1xf32>
    %cst_3 = arith.constant 0.000000e+00 : f32
    %6 = vector.broadcast %cst_3 : f32 to vector<1024x1xf32>
    %7 = arith.maximumf %5, %6 : vector<1024x1xf32>
    %8 = arith.negf %7 : vector<1024x1xf32>
    %9 = math.exp %8 : vector<1024x1xf32>
    %cst_4 = arith.constant 1.000000e+00 : f32
    %10 = vector.broadcast %cst_4 : f32 to vector<1024x1xf32>
    %11 = arith.addf %10, %9 : vector<1024x1xf32>
    %12 = arith.divf %10, %11 : vector<1024x1xf32>
    %c0_5 = arith.constant 0 : index
    %c0_6 = arith.constant 0 : index
    %13 = vector.load %arg3[%c0_5, %c0_6] : memref<1024x128xbf16, #tpu.memory_space<vmem>>, vector<1024x128xbf16>
    %14 = arith.extf %13 : vector<1024x128xbf16> to vector<1024x128xf32>
    %cst_7 = arith.constant 1.000000e+00 : f32
    %15 = vector.broadcast %cst_7 : f32 to vector<1024x1xf32>
    %16 = arith.addf %15, %12 : vector<1024x1xf32>
    %17 = vector.broadcast %16 : vector<1024x1xf32> to vector<1024x128xf32>
    %18 = arith.mulf %14, %17 : vector<1024x128xf32>
    %c0_8 = arith.constant 0 : index
    %c0_9 = arith.constant 0 : index
    %19 = vector.load %arg4[%c0_8, %c0_9] : memref<1024x128xf32, #tpu.memory_space<vmem>>, vector<1024x128xf32>
    tpu.vector_store %arg4[%c0_8, %c0_9], %18 {strides = array<i32>} : memref<1024x128xf32, #tpu.memory_space<vmem>>, vector<1024x128xf32>,
    return
  }
  func.func @transform_0(%arg0: i32) -> (i32, i32) {
    %c0_i32 = arith.constant 0 : i32
    %c0_i32_0 = arith.constant 0 : i32
    return %arg0, %c0_i32 : i32, i32
  }
  func.func @transform_1(%arg0: i32) -> (i32, i32) {
    %c0_i32 = arith.constant 0 : i32
    %c0_i32_0 = arith.constant 0 : i32
    %c0_i32_1 = arith.constant 0 : i32
    return %c0_i32, %c0_i32_0 : i32, i32
  }
  func.func @transform_2(%arg0: i32) -> (i32, i32) {
    %c0_i32 = arith.constant 0 : i32
    %c0_i32_0 = arith.constant 0 : i32
    return %arg0, %c0_i32 : i32, i32
  }
  func.func @transform_3(%arg0: i32) -> (i32, i32) {
    %c0_i32 = arith.constant 0 : i32
    %c0_i32_0 = arith.constant 0 : i32
    return %arg0, %c0_i32 : i32, i32
  }
}

</mosaic_0001>

<llo_original>
// kernel: t2flair_3dfea.2
$region0: #{t2flair_3dfea.2}
  #allocation0 [shape = 'u32[]', space=smem, size = 0x4, offset = 0x4, fixed_abs, tag = 'smem constant byte address 0x4 - core index']
  #allocation1 [shape = 'u32[144,128]{1,0:T(1,128)}', space=vmem, size = 0x12000, scoped, tag = 'internal scratch']
  %s0 = inlined_call_operand.vmem [shape: bf16[1024,686], index: 0, kind: input, shape index: {}]
  %s1 = inlined_call_operand.vmem [shape: bf16[686,128], index: 1, kind: input, shape index: {}]
  %s2 = inlined_call_operand.vmem [shape: bf16[1024,128], index: 2, kind: output, shape index: {0}]
  %s3 = inlined_call_operand.vmem [shape: f32[1024,2], index: 3, kind: output, shape index: {1}]
  %4 = xla_tuple %s2, %s3
  %s5 = sld [smem:[#allocation0]]
  $region26: #{t2flair_3dfea.2} parent=0
    _
  %s7 = ssub.s32 1, %s5
  %s8 = scalar_select 0, %s7, %s5
  // Predicated region
  $region2: #{t2flair_3dfea.2} parent=0 // pred_check
    _
  $region3: #{t2flair_3dfea.2} parent=0 // pred_check_branch
    %10 = sbr.rel (0) target = $region5
  $region4: #{t2flair_3dfea.2} parent=0 // pred_region
    _
  $region5: #{t2flair_3dfea.2} parent=0 // pred_fallthru
    _
  // Predicated region
  $region6: #{t2flair_3dfea.2} parent=0 // pred_check
    _
  $region7: #{t2flair_3dfea.2} parent=0 // pred_check_branch
    %12 = sbr.rel (0) target = $region9
  $region8: #{t2flair_3dfea.2} parent=0 // pred_region
    _
  $region9: #{t2flair_3dfea.2} parent=0 // pred_fallthru
    _
  %v14 = vld [vmem:[%s0] sm:$0xff]
  %v15 = vld [vmem:[%s0 + $0x8] sm:$0xff]
  %v16 = vld [vmem:[%s0 + $0x10] sm:$0xff]
  %v17 = vld [vmem:[%s0 + $0x18] sm:$0xff]
  %v18 = vld [vmem:[%s0 + $0x20] sm:$0xff]
  %v19 = vld [vmem:[%s0 + $0x28] sm:$0xff]
  %v20 = vld [vmem:[%s0 + $0x30] sm:$0xff]
  %v21 = vld [vmem:[%s0 + $0x38] sm:$0xff]
  %v22 = vld [vmem:[%s0 + $0x40] sm:$0xff]
  %v23 = vld [vmem:[%s0 + $0x48] sm:$0xff]
  %v24 = vld [vmem:[%s0 + $0x50] sm:$0xff]
  %v25 = vld [vmem:[%s0 + $0x58] sm:$0xff]
  %v26 = vld [vmem:[%s0 + $0x60] sm:$0xff]
  %v27 = vld [vmem:[%s0 + $0x68] sm:$0xff]
  %v28 = vld [vmem:[%s0 + $0x70] sm:$0xff]
  %v29 = vld [vmem:[%s0 + $0x78] sm:$0xff]
  %v30 = vld [vmem:[%s0 + $0x80] sm:$0xff]
  %v31 = vld [vmem:[%s0 + $0x88] sm:$0xff]
  %v32 = vld [vmem:[%s0 + $0x90] sm:$0xff]
  %v33 = vld [vmem:[%s0 + $0x98] sm:$0xff]
  %v34 = vld [vmem:[%s0 + $0xa0] sm:$0xff]
  %v35 = vld [vmem:[%s0 + $0xa8] sm:$0xff]
  %v36 = vld [vmem:[%s0 + $0xb0] sm:$0xff]
  %v37 = vld [vmem:[%s0 + $0xb8] sm:$0xff]
  %v38 = vld [vmem:[%s0 + $0xc0] sm:$0xff]
  %v39 = vld [vmem:[%s0 + $0xc8] sm:$0xff]
  %v40 = vld [vmem:[%s0 + $0xd0] sm:$0xff]
  %v41 = vld [vmem:[%s0 + $0xd8] sm:$0xff]
  %v42 = vld [vmem:[%s0 + $0xe0] sm:$0xff]
  %v43 = vld [vmem:[%s0 + $0xe8] sm:$0xff]
  %v44 = vld [vmem:[%s0 + $0xf0] sm:$0xff]
  %v45 = vld [vmem:[%s0 + $0xf8] sm:$0xff]
  %v46 = vld [vmem:[%s0 + $0x100] sm:$0xff]
  %v47 = vld [vmem:[%s0 + $0x108] sm:$0xff]
  %v48 = vld [vmem:[%s0 + $0x110] sm:$0xff]
  %v49 = vld [vmem:[%s0 + $0x118] sm:$0xff]
  %v50 = vld [vmem:[%s0 + $0x120] sm:$0xff]
  %v51 = vld [vmem:[%s0 + $0x128] sm:$0xff]
  %v52 = vld [vmem:[%s0 + $0x130] sm:$0xff]
  %v53 = vld [vmem:[%s0 + $0x138] sm:$0xff]
  %v54 = vld [vmem:[%s0 + $0x140] sm:$0xff]
  %v55 = vld [vmem:[%s0 + $0x148] sm:$0xff]
  %v56 = vld [vmem:[%s0 + $0x150] sm:$0xff]
  %v57 = vld [vmem:[%s0 + $0x158] sm:$0xff]
  %v58 = vld [vmem:[%s0 + $0x160] sm:$0xff]
  %v59 = vld [vmem:[%s0 + $0x168] sm:$0xff]
  %v60 = vld [vmem:[%s0 + $0x170] sm:$0xff]
  %v61 = vld [vmem:[%s0 + $0x178] sm:$0xff]
  %v62 = vld [vmem:[%s0 + $0x180] sm:$0xff]
  %v63 = vld [vmem:[%s0 + $0x188] sm:$0xff]
  %v64 = vld [vmem:[%s0 + $0x190] sm:$0xff]
  %v65 = vld [vmem:[%s0 + $0x198] sm:$0xff]
  %v66 = vld [vmem:[%s0 + $0x1a0] sm:$0xff]
  %v67 = vld [vmem:[%s0 + $0x1a8] sm:$0xff]
  %v68 = vld [vmem:[%s0 + $0x1b0] sm:$0xff]
  %v69 = vld [vmem:[%s0 + $0x1b8] sm:$0xff]
  %v70 = vld [vmem:[%s0 + $0x1c0] sm:$0xff]
  %v71 = vld [vmem:[%s0 + $0x1c8] sm:$0xff]
  %v72 = vld [vmem:[%s0 + $0x1d0] sm:$0xff]
  %v73 = vld [vmem:[%s0 + $0x1d8] sm:$0xff]
  %v74 = vld [vmem:[%s0 + $0x1e0] sm:$0xff]
  %v75 = vld [vmem:[%s0 + $0x1e8] sm:$0xff]
  %v76 = vld [vmem:[%s0 + $0x1f0] sm:$0xff]
  %v77 = vld [vmem:[%s0 + $0x1f8] sm:$0xff]
  %v78 = vld [vmem:[%s0 + $0x200] sm:$0xff]
  %v79 = vld [vmem:[%s0 + $0x208] sm:$0xff]
  %v80 = vld [vmem:[%s0 + $0x210] sm:$0xff]
  %v81 = vld [vmem:[%s0 + $0x218] sm:$0xff]
  %v82 = vld [vmem:[%s0 + $0x220] sm:$0xff]
  %v83 = vld [vmem:[%s0 + $0x228] sm:$0xff]
  %v84 = vld [vmem:[%s0 + $0x230] sm:$0xff]
  %v85 = vld [vmem:[%s0 + $0x238] sm:$0xff]
  %v86 = vld [vmem:[%s0 + $0x240] sm:$0xff]
  %v87 = vld [vmem:[%s0 + $0x248] sm:$0xff]
  %v88 = vld [vmem:[%s0 + $0x250] sm:$0xff]
  %v89 = vld [vmem:[%s0 + $0x258] sm:$0xff]
  %v90 = vld [vmem:[%s0 + $0x260] sm:$0xff]
  %v91 = vld [vmem:[%s0 + $0x268] sm:$0xff]
  %v92 = vld [vmem:[%s0 + $0x270] sm:$0xff]
  %v93 = vld [vmem:[%s0 + $0x278] sm:$0xff]
  %v94 = vld [vmem:[%s0 + $0x280] sm:$0xff]
  %v95 = vld [vmem:[%s0 + $0x288] sm:$0xff]
  %v96 = vld [vmem:[%s0 + $0x290] sm:$0xff]
  %v97 = vld [vmem:[%s0 + $0x298] sm:$0xff]
  %v98 = vld [vmem:[%s0 + $0x2a0] sm:$0xff]
  %v99 = vld [vmem:[%s0 + $0x2a8] sm:$0xff]
  %v100 = vld [vmem:[%s0 + $0x2b0] sm:$0xff]
  %v101 = vld [vmem:[%s0 + $0x2b8] sm:$0xff]
  %v102 = vld [vmem:[%s0 + $0x2c0] sm:$0xff]
  %v103 = vld [vmem:[%s0 + $0x2c8] sm:$0xff]
  %v104 = vld [vmem:[%s0 + $0x2d0] sm:$0xff]
  %v105 = vld [vmem:[%s0 + $0x2d8] sm:$0xff]
  %v106 = vld [vmem:[%s0 + $0x2e0] sm:$0xff]
  %v107 = vld [vmem:[%s0 + $0x2e8] sm:$0xff]
  %v108 = vld [vmem:[%s0 + $0x2f0] sm:$0xff]
  %v109 = vld [vmem:[%s0 + $0x2f8] sm:$0xff]
  %v110 = vld [vmem:[%s0 + $0x300] sm:$0xff]
  %v111 = vld [vmem:[%s0 + $0x308] sm:$0xff]
  %v112 = vld [vmem:[%s0 + $0x310] sm:$0xff]
  %v113 = vld [vmem:[%s0 + $0x318] sm:$0xff]
  %v114 = vld [vmem:[%s0 + $0x320] sm:$0xff]
  %v115 = vld [vmem:[%s0 + $0x328] sm:$0xff]
  %v116 = vld [vmem:[%s0 + $0x330] sm:$0xff]
  %v117 = vld [vmem:[%s0 + $0x338] sm:$0xff]
  %v118 = vld [vmem:[%s0 + $0x340] sm:$0xff]
  %v119 = vld [vmem:[%s0 + $0x348] sm:$0xff]
  %v120 = vld [vmem:[%s0 + $0x350] sm:$0xff]
  %v121 = vld [vmem:[%s0 + $0x358] sm:$0xff]
  %v122 = vld [vmem:[%s0 + $0x360] sm:$0xff]
  %v123 = vld [vmem:[%s0 + $0x368] sm:$0xff]
  %v124 = vld [vmem:[%s0 + $0x370] sm:$0xff]
  %v125 = vld [vmem:[%s0 + $0x378] sm:$0xff]
  %v126 = vld [vmem:[%s0 + $0x380] sm:$0xff]
  %v127 = vld [vmem:[%s0 + $0x388] sm:$0xff]
  %v128 = vld [vmem:[%s0 + $0x390] sm:$0xff]
  %v129 = vld [vmem:[%s0 + $0x398] sm:$0xff]
  %v130 = vld [vmem:[%s0 + $0x3a0] sm:$0xff]
  %v131 = vld [vmem:[%s0 + $0x3a8] sm:$0xff]
  %v132 = vld [vmem:[%s0 + $0x3b0] sm:$0xff]
  %v133 = vld [vmem:[%s0 + $0x3b8] sm:$0xff]
  %v134 = vld [vmem:[%s0 + $0x3c0] sm:$0xff]
  %v135 = vld [vmem:[%s0 + $0x3c8] sm:$0xff]
  %v136 = vld [vmem:[%s0 + $0x3d0] sm:$0xff]
  %v137 = vld [vmem:[%s0 + $0x3d8] sm:$0xff]
  %v138 = vld [vmem:[%s0 + $0x3e0] sm:$0xff]
  %v139 = vld [vmem:[%s0 + $0x3e8] sm:$0xff]
  %v140 = vld [vmem:[%s0 + $0x3f0] sm:$0xff]
  %v141 = vld [vmem:[%s0 + $0x3f8] sm:$0xff]
  %v142 = vld [vmem:[%s0 + $0x400] sm:$0xff]
  %v143 = vld [vmem:[%s0 + $0x408] sm:$0xff]
  %v144 = vld [vmem:[%s0 + $0x410] sm:$0xff]
  %v145 = vld [vmem:[%s0 + $0x418] sm:$0xff]
  %v146 = vld [vmem:[%s0 + $0x420] sm:$0xff]
  %v147 = vld [vmem:[%s0 + $0x428] sm:$0xff]
  %v148 = vld [vmem:[%s0 + $0x430] sm:$0xff]
  %v149 = vld [vmem:[%s0 + $0x438] sm:$0xff]
  %v150 = vld [vmem:[%s0 + $0x440] sm:$0xff]
  %v151 = vld [vmem:[%s0 + $0x448] sm:$0xff]
  %v152 = vld [vmem:[%s0 + $0x450] sm:$0xff]
  %v153 = vld [vmem:[%s0 + $0x458] sm:$0xff]
  %v154 = vld [vmem:[%s0 + $0x460] sm:$0xff]
  %v155 = vld [vmem:[%s0 + $0x468] sm:$0xff]
  %v156 = vld [vmem:[%s0 + $0x470] sm:$0xff]
  %v157 = vld [vmem:[%s0 + $0x478] sm:$0xff]
  %v158 = vld [vmem:[%s0 + $0x480] sm:$0xff]
  %v159 = vld [vmem:[%s0 + $0x488] sm:$0xff]
  %v160 = vld [vmem:[%s0 + $0x490] sm:$0xff]
  %v161 = vld [vmem:[%s0 + $0x498] sm:$0xff]
  %v162 = vld [vmem:[%s0 + $0x4a0] sm:$0xff]
  %v163 = vld [vmem:[%s0 + $0x4a8] sm:$0xff]
  %v164 = vld [vmem:[%s0 + $0x4b0] sm:$0xff]
  %v165 = vld [vmem:[%s0 + $0x4b8] sm:$0xff]
  %v166 = vld [vmem:[%s0 + $0x4c0] sm:$0xff]
  %v167 = vld [vmem:[%s0 + $0x4c8] sm:$0xff]
  %v168 = vld [vmem:[%s0 + $0x4d0] sm:$0xff]
  %v169 = vld [vmem:[%s0 + $0x4d8] sm:$0xff]
  %v170 = vld [vmem:[%s0 + $0x4e0] sm:$0xff]
  %v171 = vld [vmem:[%s0 + $0x4e8] sm:$0xff]
  %v172 = vld [vmem:[%s0 + $0x4f0] sm:$0xff]
  %v173 = vld [vmem:[%s0 + $0x4f8] sm:$0xff]
  %v174 = vld [vmem:[%s0 + $0x500] sm:$0xff]
  %v175 = vld [vmem:[%s0 + $0x508] sm:$0xff]
  %v176 = vld [vmem:[%s0 + $0x510] sm:$0xff]
  %v177 = vld [vmem:[%s0 + $0x518] sm:$0xff]
  %v178 = vld [vmem:[%s0 + $0x520] sm:$0xff]
  %v179 = vld [vmem:[%s0 + $0x528] sm:$0xff]
  %v180 = vld [vmem:[%s0 + $0x530] sm:$0xff]
  %v181 = vld [vmem:[%s0 + $0x538] sm:$0xff]
  %v182 = vld [vmem:[%s0 + $0x540] sm:$0xff]
  %v183 = vld [vmem:[%s0 + $0x548] sm:$0xff]
  %v184 = vld [vmem:[%s0 + $0x550] sm:$0xff]
  %v185 = vld [vmem:[%s0 + $0x558] sm:$0xff]
  %v186 = vld [vmem:[%s0 + $0x560] sm:$0xff]
  %v187 = vld [vmem:[%s0 + $0x568] sm:$0xff]
  %v188 = vld [vmem:[%s0 + $0x570] sm:$0xff]
  %v189 = vld [vmem:[%s0 + $0x578] sm:$0xff]
  %v190 = vld [vmem:[%s0 + $0x580] sm:$0xff]
  %v191 = vld [vmem:[%s0 + $0x588] sm:$0xff]
  %v192 = vld [vmem:[%s0 + $0x590] sm:$0xff]
  %v193 = vld [vmem:[%s0 + $0x598] sm:$0xff]
  %v194 = vld [vmem:[%s0 + $0x5a0] sm:$0xff]
  %v195 = vld [vmem:[%s0 + $0x5a8] sm:$0xff]
  %v196 = vld [vmem:[%s0 + $0x5b0] sm:$0xff]
  %v197 = vld [vmem:[%s0 + $0x5b8] sm:$0xff]
  %v198 = vld [vmem:[%s0 + $0x5c0] sm:$0xff]
  %v199 = vld [vmem:[%s0 + $0x5c8] sm:$0xff]
  %v200 = vld [vmem:[%s0 + $0x5d0] sm:$0xff]
  %v201 = vld [vmem:[%s0 + $0x5d8] sm:$0xff]
  %v202 = vld [vmem:[%s0 + $0x5e0] sm:$0xff]
  %v203 = vld [vmem:[%s0 + $0x5e8] sm:$0xff]
  %v204 = vld [vmem:[%s0 + $0x5f0] sm:$0xff]
  %v205 = vld [vmem:[%s0 + $0x5f8] sm:$0xff]
  %v206 = vld [vmem:[%s0 + $0x600] sm:$0xff]
  %v207 = vld [vmem:[%s0 + $0x608] sm:$0xff]
  %v208 = vld [vmem:[%s0 + $0x610] sm:$0xff]
  %v209 = vld [vmem:[%s0 + $0x618] sm:$0xff]
  %v210 = vld [vmem:[%s0 + $0x620] sm:$0xff]
  %v211 = vld [vmem:[%s0 + $0x628] sm:$0xff]
  %v212 = vld [vmem:[%s0 + $0x630] sm:$0xff]
  %v213 = vld [vmem:[%s0 + $0x638] sm:$0xff]
  %v214 = vld [vmem:[%s0 + $0x640] sm:$0xff]
  %v215 = vld [vmem:[%s0 + $0x648] sm:$0xff]
  %v216 = vld [vmem:[%s0 + $0x650] sm:$0xff]
  %v217 = vld [vmem:[%s0 + $0x658] sm:$0xff]
  %v218 = vld [vmem:[%s0 + $0x660] sm:$0xff]
  %v219 = vld [vmem:[%s0 + $0x668] sm:$0xff]
  %v220 = vld [vmem:[%s0 + $0x670] sm:$0xff]
  %v221 = vld [vmem:[%s0 + $0x678] sm:$0xff]
  %v222 = vld [vmem:[%s0 + $0x680] sm:$0xff]
  %v223 = vld [vmem:[%s0 + $0x688] sm:$0xff]
  %v224 = vld [vmem:[%s0 + $0x690] sm:$0xff]
  %v225 = vld [vmem:[%s0 + $0x698] sm:$0xff]
  %v226 = vld [vmem:[%s0 + $0x6a0] sm:$0xff]
  %v227 = vld [vmem:[%s0 + $0x6a8] sm:$0xff]
  %v228 = vld [vmem:[%s0 + $0x6b0] sm:$0xff]
  %v229 = vld [vmem:[%s0 + $0x6b8] sm:$0xff]
  %v230 = vld [vmem:[%s0 + $0x6c0] sm:$0xff]
  %v231 = vld [vmem:[%s0 + $0x6c8] sm:$0xff]
  %v232 = vld [vmem:[%s0 + $0x6d0] sm:$0xff]
  %v233 = vld [vmem:[%s0 + $0x6d8] sm:$0xff]
  %v234 = vld [vmem:[%s0 + $0x6e0] sm:$0xff]
  %v235 = vld [vmem:[%s0 + $0x6e8] sm:$0xff]
  %v236 = vld [vmem:[%s0 + $0x6f0] sm:$0xff]
  %v237 = vld [vmem:[%s0 + $0x6f8] sm:$0xff]
  %v238 = vld [vmem:[%s0 + $0x700] sm:$0xff]
  %v239 = vld [vmem:[%s0 + $0x708] sm:$0xff]
  %v240 = vld [vmem:[%s0 + $0x710] sm:$0xff]
  %v241 = vld [vmem:[%s0 + $0x718] sm:$0xff]
  %v242 = vld [vmem:[%s0 + $0x720] sm:$0xff]
  %v243 = vld [vmem:[%s0 + $0x728] sm:$0xff]
  %v244 = vld [vmem:[%s0 + $0x730] sm:$0xff]
  %v245 = vld [vmem:[%s0 + $0x738] sm:$0xff]
  %v246 = vld [vmem:[%s0 + $0x740] sm:$0xff]
  %v247 = vld [vmem:[%s0 + $0x748] sm:$0xff]
  %v248 = vld [vmem:[%s0 + $0x750] sm:$0xff]
  %v249 = vld [vmem:[%s0 + $0x758] sm:$0xff]
  %v250 = vld [vmem:[%s0 + $0x760] sm:$0xff]
  %v251 = vld [vmem:[%s0 + $0x768] sm:$0xff]
  %v252 = vld [vmem:[%s0 + $0x770] sm:$0xff]
  %v253 = vld [vmem:[%s0 + $0x778] sm:$0xff]
  %v254 = vld [vmem:[%s0 + $0x780] sm:$0xff]
  %v255 = vld [vmem:[%s0 + $0x788] sm:$0xff]
  %v256 = vld [vmem:[%s0 + $0x790] sm:$0xff]
  %v257 = vld [vmem:[%s0 + $0x798] sm:$0xff]
  %v258 = vld [vmem:[%s0 + $0x7a0] sm:$0xff]
  %v259 = vld [vmem:[%s0 + $0x7a8] sm:$0xff]
  %v260 = vld [vmem:[%s0 + $0x7b0] sm:$0xff]
  %v261 = vld [vmem:[%s0 + $0x7b8] sm:$0xff]
  %v262 = vld [vmem:[%s0 + $0x7c0] sm:$0xff]
  %v263 = vld [vmem:[%s0 + $0x7c8] sm:$0xff]
  %v264 = vld [vmem:[%s0 + $0x7d0] sm:$0xff]
  %v265 = vld [vmem:[%s0 + $0x7d8] sm:$0xff]
  %v266 = vld [vmem:[%s0 + $0x7e0] sm:$0xff]
  %v267 = vld [vmem:[%s0 + $0x7e8] sm:$0xff]
  %v268 = vld [vmem:[%s0 + $0x7f0] sm:$0xff]
  %v269 = vld [vmem:[%s0 + $0x7f8] sm:$0xff]
  %v270 = vld [vmem:[%s0 + $0x800] sm:$0xff]
  %v271 = vld [vmem:[%s0 + $0x808] sm:$0xff]
  %v272 = vld [vmem:[%s0 + $0x810] sm:$0xff]
  %v273 = vld [vmem:[%s0 + $0x818] sm:$0xff]
  %v274 = vld [vmem:[%s0 + $0x820] sm:$0xff]
  %v275 = vld [vmem:[%s0 + $0x828] sm:$0xff]
  %v276 = vld [vmem:[%s0 + $0x830] sm:$0xff]
  %v277 = vld [vmem:[%s0 + $0x838] sm:$0xff]
  %v278 = vld [vmem:[%s0 + $0x840] sm:$0xff]
  %v279 = vld [vmem:[%s0 + $0x848] sm:$0xff]
  %v280 = vld [vmem:[%s0 + $0x850] sm:$0xff]
  %v281 = vld [vmem:[%s0 + $0x858] sm:$0xff]
  %v282 = vld [vmem:[%s0 + $0x860] sm:$0xff]
  %v283 = vld [vmem:[%s0 + $0x868] sm:$0xff]
  %v284 = vld [vmem:[%s0 + $0x870] sm:$0xff]
  %v285 = vld [vmem:[%s0 + $0x878] sm:$0xff]
  %v286 = vld [vmem:[%s0 + $0x880] sm:$0xff]
  %v287 = vld [vmem:[%s0 + $0x888] sm:$0xff]
  %v288 = vld [vmem:[%s0 + $0x890] sm:$0xff]
  %v289 = vld [vmem:[%s0 + $0x898] sm:$0xff]
  %v290 = vld [vmem:[%s0 + $0x8a0] sm:$0xff]
  %v291 = vld [vmem:[%s0 + $0x8a8] sm:$0xff]
  %v292 = vld [vmem:[%s0 + $0x8b0] sm:$0xff]
  %v293 = vld [vmem:[%s0 + $0x8b8] sm:$0xff]
  %v294 = vld [vmem:[%s0 + $0x8c0] sm:$0xff]
  %v295 = vld [vmem:[%s0 + $0x8c8] sm:$0xff]
  %v296 = vld [vmem:[%s0 + $0x8d0] sm:$0xff]
  %v297 = vld [vmem:[%s0 + $0x8d8] sm:$0xff]
  %v298 = vld [vmem:[%s0 + $0x8e0] sm:$0xff]
  %v299 = vld [vmem:[%s0 + $0x8e8] sm:$0xff]
  %v300 = vld [vmem:[%s0 + $0x8f0] sm:$0xff]
  %v301 = vld [vmem:[%s0 + $0x8f8] sm:$0xff]
  %v302 = vld [vmem:[%s0 + $0x900] sm:$0xff]
  %v303 = vld [vmem:[%s0 + $0x908] sm:$0xff]
  %v304 = vld [vmem:[%s0 + $0x910] sm:$0xff]
  %v305 = vld [vmem:[%s0 + $0x918] sm:$0xff]
  %v306 = vld [vmem:[%s0 + $0x920] sm:$0xff]
  %v307 = vld [vmem:[%s0 + $0x928] sm:$0xff]
  %v308 = vld [vmem:[%s0 + $0x930] sm:$0xff]
  %v309 = vld [vmem:[%s0 + $0x938] sm:$0xff]
  %v310 = vld [vmem:[%s0 + $0x940] sm:$0xff]
  %v311 = vld [vmem:[%s0 + $0x948] sm:$0xff]
  %v312 = vld [vmem:[%s0 + $0x950] sm:$0xff]
  %v313 = vld [vmem:[%s0 + $0x958] sm:$0xff]
  %v314 = vld [vmem:[%s0 + $0x960] sm:$0xff]
  %v315 = vld [vmem:[%s0 + $0x968] sm:$0xff]
  %v316 = vld [vmem:[%s0 + $0x970] sm:$0xff]
  %v317 = vld [vmem:[%s0 + $0x978] sm:$0xff]
  %v318 = vld [vmem:[%s0 + $0x980] sm:$0xff]
  %v319 = vld [vmem:[%s0 + $0x988] sm:$0xff]
  %v320 = vld [vmem:[%s0 + $0x990] sm:$0xff]
  %v321 = vld [vmem:[%s0 + $0x998] sm:$0xff]
  %v322 = vld [vmem:[%s0 + $0x9a0] sm:$0xff]
  %v323 = vld [vmem:[%s0 + $0x9a8] sm:$0xff]
  %v324 = vld [vmem:[%s0 + $0x9b0] sm:$0xff]
  %v325 = vld [vmem:[%s0 + $0x9b8] sm:$0xff]
  %v326 = vld [vmem:[%s0 + $0x9c0] sm:$0xff]
  %v327 = vld [vmem:[%s0 + $0x9c8] sm:$0xff]
  %v328 = vld [vmem:[%s0 + $0x9d0] sm:$0xff]
  %v329 = vld [vmem:[%s0 + $0x9d8] sm:$0xff]
  %v330 = vld [vmem:[%s0 + $0x9e0] sm:$0xff]
  %v331 = vld [vmem:[%s0 + $0x9e8] sm:$0xff]
  %v332 = vld [vmem:[%s0 + $0x9f0] sm:$0xff]
  %v333 = vld [vmem:[%s0 + $0x9f8] sm:$0xff]
  %v334 = vld [vmem:[%s0 + $0xa00] sm:$0xff]
  %v335 = vld [vmem:[%s0 + $0xa08] sm:$0xff]
  %v336 = vld [vmem:[%s0 + $0xa10] sm:$0xff]
  %v337 = vld [vmem:[%s0 + $0xa18] sm:$0xff]
  %v338 = vld [vmem:[%s0 + $0xa20] sm:$0xff]
  %v339 = vld [vmem:[%s0 + $0xa28] sm:$0xff]
  %v340 = vld [vmem:[%s0 + $0xa30] sm:$0xff]
  %v341 = vld [vmem:[%s0 + $0xa38] sm:$0xff]
  %v342 = vld [vmem:[%s0 + $0xa40] sm:$0xff]
  %v343 = vld [vmem:[%s0 + $0xa48] sm:$0xff]
  %v344 = vld [vmem:[%s0 + $0xa50] sm:$0xff]
  %v345 = vld [vmem:[%s0 + $0xa58] sm:$0xff]
  %v346 = vld [vmem:[%s0 + $0xa60] sm:$0xff]
  %v347 = vld [vmem:[%s0 + $0xa68] sm:$0xff]
  %v348 = vld [vmem:[%s0 + $0xa70] sm:$0xff]
  %v349 = vld [vmem:[%s0 + $0xa78] sm:$0xff]
  %v350 = vld [vmem:[%s0 + $0xa80] sm:$0xff]
  %v351 = vld [vmem:[%s0 + $0xa88] sm:$0xff]
  %v352 = vld [vmem:[%s0 + $0xa90] sm:$0xff]
  %v353 = vld [vmem:[%s0 + $0xa98] sm:$0xff]
  %v354 = vld [vmem:[%s0 + $0xaa0] sm:$0xff]
  %v355 = vld [vmem:[%s0 + $0xaa8] sm:$0xff]
  %v356 = vld [vmem:[%s0 + $0xab0] sm:$0xff]
  %v357 = vld [vmem:[%s0 + $0xab8] sm:$0xff]
  %v358 = vld [vmem:[%s0 + $0xac0] sm:$0xff]
  %v359 = vld [vmem:[%s0 + $0xac8] sm:$0xff]
  %v360 = vld [vmem:[%s0 + $0xad0] sm:$0xff]
  %v361 = vld [vmem:[%s0 + $0xad8] sm:$0xff]
  %v362 = vld [vmem:[%s0 + $0xae0] sm:$0xff]
  %v363 = vld [vmem:[%s0 + $0xae8] sm:$0xff]
  %v364 = vld [vmem:[%s0 + $0xaf0] sm:$0xff]
  %v365 = vld [vmem:[%s0 + $0xaf8] sm:$0xff]
  %v366 = vld [vmem:[%s0 + $0xb00] sm:$0xff]
  %v367 = vld [vmem:[%s0 + $0xb08] sm:$0xff]
  %v368 = vld [vmem:[%s0 + $0xb10] sm:$0xff]
  %v369 = vld [vmem:[%s0 + $0xb18] sm:$0xff]
  %v370 = vld [vmem:[%s0 + $0xb20] sm:$0xff]
  %v371 = vld [vmem:[%s0 + $0xb28] sm:$0xff]
  %v372 = vld [vmem:[%s0 + $0xb30] sm:$0xff]
  %v373 = vld [vmem:[%s0 + $0xb38] sm:$0xff]
  %v374 = vld [vmem:[%s0 + $0xb40] sm:$0xff]
  %v375 = vld [vmem:[%s0 + $0xb48] sm:$0xff]
  %v376 = vld [vmem:[%s0 + $0xb50] sm:$0xff]
  %v377 = vld [vmem:[%s0 + $0xb58] sm:$0xff]
  %v378 = vld [vmem:[%s0 + $0xb60] sm:$0xff]
  %v379 = vld [vmem:[%s0 + $0xb68] sm:$0xff]
  %v380 = vld [vmem:[%s0 + $0xb70] sm:$0xff]
  %v381 = vld [vmem:[%s0 + $0xb78] sm:$0xff]
  %v382 = vld [vmem:[%s0 + $0xb80] sm:$0xff]
  %v383 = vld [vmem:[%s0 + $0xb88] sm:$0xff]
  %v384 = vld [vmem:[%s0 + $0xb90] sm:$0xff]
  %v385 = vld [vmem:[%s0 + $0xb98] sm:$0xff]
  %v386 = vld [vmem:[%s0 + $0xba0] sm:$0xff]
  %v387 = vld [vmem:[%s0 + $0xba8] sm:$0xff]
  %v388 = vld [vmem:[%s0 + $0xbb0] sm:$0xff]
  %v389 = vld [vmem:[%s0 + $0xbb8] sm:$0xff]
  %v390 = vld [vmem:[%s0 + $0xbc0] sm:$0xff]
  %v391 = vld [vmem:[%s0 + $0xbc8] sm:$0xff]
  %v392 = vld [vmem:[%s0 + $0xbd0] sm:$0xff]
  %v393 = vld [vmem:[%s0 + $0xbd8] sm:$0xff]
  %v394 = vld [vmem:[%s0 + $0xbe0] sm:$0xff]
  %v395 = vld [vmem:[%s0 + $0xbe8] sm:$0xff]
  %v396 = vld [vmem:[%s0 + $0xbf0] sm:$0xff]
  %v397 = vld [vmem:[%s0 + $0xbf8] sm:$0xff]
  %v398 = vld [vmem:[%s1] sm:$0xf]
  %v399 = vld [vmem:[%s1 + $0x4] sm:$0xf]
  %v400 = vld [vmem:[%s1 + $0x8] sm:$0xf]
  %v401 = vld [vmem:[%s1 + $0xc] sm:$0xf]
  %v402 = vld [vmem:[%s1 + $0x10] sm:$0xf]
  %v403 = vld [vmem:[%s1 + $0x14] sm:$0xf]
  %v404 = vld [vmem:[%s1 + $0x18] sm:$0xf]
  %v405 = vld [vmem:[%s1 + $0x1c] sm:$0xf]
  %v406 = vld [vmem:[%s1 + $0x20] sm:$0xf]
  %v407 = vld [vmem:[%s1 + $0x24] sm:$0xf]
  %v408 = vld [vmem:[%s1 + $0x28] sm:$0xf]
  %v409 = vld [vmem:[%s1 + $0x2c] sm:$0xf]
  %v410 = vld [vmem:[%s1 + $0x30] sm:$0xf]
  %v411 = vld [vmem:[%s1 + $0x34] sm:$0xf]
  %v412 = vld [vmem:[%s1 + $0x38] sm:$0xf]
  %v413 = vld [vmem:[%s1 + $0x3c] sm:$0xf]
  %v414 = vld [vmem:[%s1 + $0x40] sm:$0xf]
  %v415 = vld [vmem:[%s1 + $0x44] sm:$0xf]
  %v416 = vld [vmem:[%s1 + $0x48] sm:$0xf]
  %v417 = vld [vmem:[%s1 + $0x4c] sm:$0xf]
  %v418 = vld [vmem:[%s1 + $0x50] sm:$0xf]
  %v419 = vld [vmem:[%s1 + $0x54] sm:$0xf]
  %v420 = vld [vmem:[%s1 + $0x58] sm:$0xf]
  %v421 = vld [vmem:[%s1 + $0x5c] sm:$0xf]
  %v422 = vld [vmem:[%s1 + $0x60] sm:$0xf]
  %v423 = vld [vmem:[%s1 + $0x64] sm:$0xf]
  %v424 = vld [vmem:[%s1 + $0x68] sm:$0xf]
  %v425 = vld [vmem:[%s1 + $0x6c] sm:$0xf]
  %v426 = vld [vmem:[%s1 + $0x70] sm:$0xf]
  %v427 = vld [vmem:[%s1 + $0x74] sm:$0xf]
  %v428 = vld [vmem:[%s1 + $0x78] sm:$0xf]
  %v429 = vld [vmem:[%s1 + $0x7c] sm:$0xf]
  %v430 = vld [vmem:[%s1 + $0x80] sm:$0xf]
  %v431 = vld [vmem:[%s1 + $0x84] sm:$0xf]
  %v432 = vld [vmem:[%s1 + $0x88] sm:$0xf]
  %v433 = vld [vmem:[%s1 + $0x8c] sm:$0xf]
  %v434 = vld [vmem:[%s1 + $0x90] sm:$0xf]
  %v435 = vld [vmem:[%s1 + $0x94] sm:$0xf]
  %v436 = vld [vmem:[%s1 + $0x98] sm:$0xf]
  %v437 = vld [vmem:[%s1 + $0x9c] sm:$0xf]
  %v438 = vld [vmem:[%s1 + $0xa0] sm:$0xf]
  %v439 = vld [vmem:[%s1 + $0xa4] sm:$0xf]
  %v440 = vld [vmem:[%s1 + $0xa8] sm:$0xf]
  %v441 = vld [vmem:[%s1 + $0xac] sm:$0xf]
  %v442 = vld [vmem:[%s1 + $0xb0] sm:$0xf]
  %v443 = vld [vmem:[%s1 + $0xb4] sm:$0xf]
  %v444 = vld [vmem:[%s1 + $0xb8] sm:$0xf]
  %v445 = vld [vmem:[%s1 + $0xbc] sm:$0xf]
  %v446 = vld [vmem:[%s1 + $0xc0] sm:$0xf]
  %v447 = vld [vmem:[%s1 + $0xc4] sm:$0xf]
  %v448 = vld [vmem:[%s1 + $0xc8] sm:$0xf]
  %v449 = vld [vmem:[%s1 + $0xcc] sm:$0xf]
  %v450 = vld [vmem:[%s1 + $0xd0] sm:$0xf]
  %v451 = vld [vmem:[%s1 + $0xd4] sm:$0xf]
  %v452 = vld [vmem:[%s1 + $0xd8] sm:$0xf]
  %v453 = vld [vmem:[%s1 + $0xdc] sm:$0xf]
  %v454 = vld [vmem:[%s1 + $0xe0] sm:$0xf]
  %v455 = vld [vmem:[%s1 + $0xe4] sm:$0xf]
  %v456 = vld [vmem:[%s1 + $0xe8] sm:$0xf]
  %v457 = vld [vmem:[%s1 + $0xec] sm:$0xf]
  %v458 = vld [vmem:[%s1 + $0xf0] sm:$0xf]
  %v459 = vld [vmem:[%s1 + $0xf4] sm:$0xf]
  %v460 = vld [vmem:[%s1 + $0xf8] sm:$0xf]
  %v461 = vld [vmem:[%s1 + $0xfc] sm:$0xf]
  %v462 = vld [vmem:[%s1 + $0x100] sm:$0xf]
  %v463 = vld [vmem:[%s1 + $0x104] sm:$0xf]
  %v464 = vld [vmem:[%s1 + $0x108] sm:$0xf]
  %v465 = vld [vmem:[%s1 + $0x10c] sm:$0xf]
  %v466 = vld [vmem:[%s1 + $0x110] sm:$0xf]
  %v467 = vld [vmem:[%s1 + $0x114] sm:$0xf]
  %v468 = vld [vmem:[%s1 + $0x118] sm:$0xf]
  %v469 = vld [vmem:[%s1 + $0x11c] sm:$0xf]
  %v470 = vld [vmem:[%s1 + $0x120] sm:$0xf]
  %v471 = vld [vmem:[%s1 + $0x124] sm:$0xf]
  %v472 = vld [vmem:[%s1 + $0x128] sm:$0xf]
  %v473 = vld [vmem:[%s1 + $0x12c] sm:$0xf]
  %v474 = vld [vmem:[%s1 + $0x130] sm:$0xf]
  %v475 = vld [vmem:[%s1 + $0x134] sm:$0xf]
  %v476 = vld [vmem:[%s1 + $0x138] sm:$0xf]
  %v477 = vld [vmem:[%s1 + $0x13c] sm:$0xf]
  %v478 = vld [vmem:[%s1 + $0x140] sm:$0xf]
  %v479 = vld [vmem:[%s1 + $0x144] sm:$0xf]
  %v480 = vld [vmem:[%s1 + $0x148] sm:$0xf]
  %v481 = vld [vmem:[%s1 + $0x14c] sm:$0xf]
  %v482 = vld [vmem:[%s1 + $0x150] sm:$0xf]
  %v483 = vld [vmem:[%s1 + $0x154] sm:$0x7]
  %v868 = vunpack.c.l.b16 %v14
  %v869 = vunpack.c.h.b16 %v14
  %v870 = vunpack.c.l.b16 %v15
  %v871 = vunpack.c.h.b16 %v15
  %v872 = vunpack.c.l.b16 %v16
  %v873 = vunpack.c.h.b16 %v16
  %v874 = vunpack.c.l.b16 %v17
  %v875 = vunpack.c.h.b16 %v17
  %v876 = vunpack.c.l.b16 %v18
  %v877 = vunpack.c.h.b16 %v18
  %v878 = vunpack.c.l.b16 %v19
  %v879 = vunpack.c.h.b16 %v19
  %v880 = vunpack.c.l.b16 %v20
  %v881 = vunpack.c.h.b16 %v20
  %v882 = vunpack.c.l.b16 %v21
  %v883 = vunpack.c.h.b16 %v21
  %v884 = vunpack.c.l.b16 %v22
  %v885 = vunpack.c.h.b16 %v22
  %v886 = vunpack.c.l.b16 %v23
  %v887 = vunpack.c.h.b16 %v23
  %v888 = vunpack.c.l.b16 %v24
  %v889 = vunpack.c.h.b16 %v24
  %v890 = vunpack.c.l.b16 %v25
  %v891 = vunpack.c.h.b16 %v25
  %v892 = vunpack.c.l.b16 %v26
  %v893 = vunpack.c.h.b16 %v26
  %v894 = vunpack.c.l.b16 %v27
  %v895 = vunpack.c.h.b16 %v27
  %v896 = vunpack.c.l.b16 %v28
  %v897 = vunpack.c.h.b16 %v28
  %v898 = vunpack.c.l.b16 %v29
  %v899 = vunpack.c.h.b16 %v29
  %v900 = vunpack.c.l.b16 %v30
  %v901 = vunpack.c.h.b16 %v30
  %v902 = vunpack.c.l.b16 %v31
  %v903 = vunpack.c.h.b16 %v31
  %v904 = vunpack.c.l.b16 %v32
  %v905 = vunpack.c.h.b16 %v32
  %v906 = vunpack.c.l.b16 %v33
  %v907 = vunpack.c.h.b16 %v33
  %v908 = vunpack.c.l.b16 %v34
  %v909 = vunpack.c.h.b16 %v34
  %v910 = vunpack.c.l.b16 %v35
  %v911 = vunpack.c.h.b16 %v35
  %v912 = vunpack.c.l.b16 %v36
  %v913 = vunpack.c.h.b16 %v36
  %v914 = vunpack.c.l.b16 %v37
  %v915 = vunpack.c.h.b16 %v37
  %v916 = vunpack.c.l.b16 %v38
  %v917 = vunpack.c.h.b16 %v38
  %v918 = vunpack.c.l.b16 %v39
  %v919 = vunpack.c.h.b16 %v39
  %v920 = vunpack.c.l.b16 %v40
  %v921 = vunpack.c.h.b16 %v40
  %v922 = vunpack.c.l.b16 %v41
  %v923 = vunpack.c.h.b16 %v41
  %v924 = vunpack.c.l.b16 %v42
  %v925 = vunpack.c.h.b16 %v42
  %v926 = vunpack.c.l.b16 %v43
  %v927 = vunpack.c.h.b16 %v43
  %v928 = vunpack.c.l.b16 %v44
  %v929 = vunpack.c.h.b16 %v44
  %v930 = vunpack.c.l.b16 %v45
  %v931 = vunpack.c.h.b16 %v45
  %v932 = vunpack.c.l.b16 %v46
  %v933 = vunpack.c.h.b16 %v46
  %v934 = vunpack.c.l.b16 %v47
  %v935 = vunpack.c.h.b16 %v47
  %v936 = vunpack.c.l.b16 %v48
  %v937 = vunpack.c.h.b16 %v48
  %v938 = vunpack.c.l.b16 %v49
  %v939 = vunpack.c.h.b16 %v49
  %v940 = vunpack.c.l.b16 %v50
  %v941 = vunpack.c.h.b16 %v50
  %v942 = vunpack.c.l.b16 %v51
  %v943 = vunpack.c.h.b16 %v51
  %v944 = vunpack.c.l.b16 %v52
  %v945 = vunpack.c.h.b16 %v52
  %v946 = vunpack.c.l.b16 %v53
  %v947 = vunpack.c.h.b16 %v53
  %v948 = vunpack.c.l.b16 %v54
  %v949 = vunpack.c.h.b16 %v54
  %v950 = vunpack.c.l.b16 %v55
  %v951 = vunpack.c.h.b16 %v55
  %v952 = vunpack.c.l.b16 %v56
  %v953 = vunpack.c.h.b16 %v56
  %v954 = vunpack.c.l.b16 %v57
  %v955 = vunpack.c.h.b16 %v57
  %v956 = vunpack.c.l.b16 %v58
  %v957 = vunpack.c.h.b16 %v58
  %v958 = vunpack.c.l.b16 %v59
  %v959 = vunpack.c.h.b16 %v59
  %v960 = vunpack.c.l.b16 %v60
  %v961 = vunpack.c.h.b16 %v60
  %v962 = vunpack.c.l.b16 %v61
  %v963 = vunpack.c.h.b16 %v61
  %v964 = vunpack.c.l.b16 %v62
  %v965 = vunpack.c.h.b16 %v62
  %v966 = vunpack.c.l.b16 %v63
  %v967 = vunpack.c.h.b16 %v63
  %v968 = vunpack.c.l.b16 %v64
  %v969 = vunpack.c.h.b16 %v64
  %v970 = vunpack.c.l.b16 %v65
  %v971 = vunpack.c.h.b16 %v65
  %v972 = vunpack.c.l.b16 %v66
  %v973 = vunpack.c.h.b16 %v66
  %v974 = vunpack.c.l.b16 %v67
  %v975 = vunpack.c.h.b16 %v67
  %v976 = vunpack.c.l.b16 %v68
  %v977 = vunpack.c.h.b16 %v68
  %v978 = vunpack.c.l.b16 %v69
  %v979 = vunpack.c.h.b16 %v69
  %v980 = vunpack.c.l.b16 %v70
  %v981 = vunpack.c.h.b16 %v70
  %v982 = vunpack.c.l.b16 %v71
  %v983 = vunpack.c.h.b16 %v71
  %v984 = vunpack.c.l.b16 %v72
  %v985 = vunpack.c.h.b16 %v72
  %v986 = vunpack.c.l.b16 %v73
  %v987 = vunpack.c.h.b16 %v73
  %v988 = vunpack.c.l.b16 %v74
  %v989 = vunpack.c.h.b16 %v74
  %v990 = vunpack.c.l.b16 %v75
  %v991 = vunpack.c.h.b16 %v75
  %v992 = vunpack.c.l.b16 %v76
  %v993 = vunpack.c.h.b16 %v76
  %v994 = vunpack.c.l.b16 %v77
  %v995 = vunpack.c.h.b16 %v77
  %v996 = vunpack.c.l.b16 %v78
  %v997 = vunpack.c.h.b16 %v78
  %v998 = vunpack.c.l.b16 %v79
  %v999 = vunpack.c.h.b16 %v79
  %v1000 = vunpack.c.l.b16 %v80
  %v1001 = vunpack.c.h.b16 %v80
  %v1002 = vunpack.c.l.b16 %v81
  %v1003 = vunpack.c.h.b16 %v81
  %v1004 = vunpack.c.l.b16 %v82
  %v1005 = vunpack.c.h.b16 %v82
  %v1006 = vunpack.c.l.b16 %v83
  %v1007 = vunpack.c.h.b16 %v83
  %v1008 = vunpack.c.l.b16 %v84
  %v1009 = vunpack.c.h.b16 %v84
  %v1010 = vunpack.c.l.b16 %v85
  %v1011 = vunpack.c.h.b16 %v85
  %v1012 = vunpack.c.l.b16 %v86
  %v1013 = vunpack.c.h.b16 %v86
  %v1014 = vunpack.c.l.b16 %v87
  %v1015 = vunpack.c.h.b16 %v87
  %v1016 = vunpack.c.l.b16 %v88
  %v1017 = vunpack.c.h.b16 %v88
  %v1018 = vunpack.c.l.b16 %v89
  %v1019 = vunpack.c.h.b16 %v89
  %v1020 = vunpack.c.l.b16 %v90
  %v1021 = vunpack.c.h.b16 %v90
  %v1022 = vunpack.c.l.b16 %v91
  %v1023 = vunpack.c.h.b16 %v91
  %v1024 = vunpack.c.l.b16 %v92
  %v1025 = vunpack.c.h.b16 %v92
  %v1026 = vunpack.c.l.b16 %v93
  %v1027 = vunpack.c.h.b16 %v93
  %v1028 = vunpack.c.l.b16 %v94
  %v1029 = vunpack.c.h.b16 %v94
  %v1030 = vunpack.c.l.b16 %v95
  %v1031 = vunpack.c.h.b16 %v95
  %v1032 = vunpack.c.l.b16 %v96
  %v1033 = vunpack.c.h.b16 %v96
  %v1034 = vunpack.c.l.b16 %v97
  %v1035 = vunpack.c.h.b16 %v97
  %v1036 = vunpack.c.l.b16 %v98
  %v1037 = vunpack.c.h.b16 %v98
  %v1038 = vunpack.c.l.b16 %v99
  %v1039 = vunpack.c.h.b16 %v99
  %v1040 = vunpack.c.l.b16 %v100
  %v1041 = vunpack.c.h.b16 %v100
  %v1042 = vunpack.c.l.b16 %v101
  %v1043 = vunpack.c.h.b16 %v101
  %v1044 = vunpack.c.l.b16 %v102
  %v1045 = vunpack.c.h.b16 %v102
  %v1046 = vunpack.c.l.b16 %v103
  %v1047 = vunpack.c.h.b16 %v103
  %v1048 = vunpack.c.l.b16 %v104
  %v1049 = vunpack.c.h.b16 %v104
  %v1050 = vunpack.c.l.b16 %v105
  %v1051 = vunpack.c.h.b16 %v105
  %v1052 = vunpack.c.l.b16 %v106
  %v1053 = vunpack.c.h.b16 %v106
  %v1054 = vunpack.c.l.b16 %v107
  %v1055 = vunpack.c.h.b16 %v107
  %v1056 = vunpack.c.l.b16 %v108
  %v1057 = vunpack.c.h.b16 %v108
  %v1058 = vunpack.c.l.b16 %v109
  %v1059 = vunpack.c.h.b16 %v109
  %v1060 = vunpack.c.l.b16 %v110
  %v1061 = vunpack.c.h.b16 %v110
  %v1062 = vunpack.c.l.b16 %v111
  %v1063 = vunpack.c.h.b16 %v111
  %v1064 = vunpack.c.l.b16 %v112
  %v1065 = vunpack.c.h.b16 %v112
  %v1066 = vunpack.c.l.b16 %v113
  %v1067 = vunpack.c.h.b16 %v113
  %v1068 = vunpack.c.l.b16 %v114
  %v1069 = vunpack.c.h.b16 %v114
  %v1070 = vunpack.c.l.b16 %v115
  %v1071 = vunpack.c.h.b16 %v115
  %v1072 = vunpack.c.l.b16 %v116
  %v1073 = vunpack.c.h.b16 %v116
  %v1074 = vunpack.c.l.b16 %v117
  %v1075 = vunpack.c.h.b16 %v117
  %v1076 = vunpack.c.l.b16 %v118
  %v1077 = vunpack.c.h.b16 %v118
  %v1078 = vunpack.c.l.b16 %v119
  %v1079 = vunpack.c.h.b16 %v119
  %v1080 = vunpack.c.l.b16 %v120
  %v1081 = vunpack.c.h.b16 %v120
  %v1082 = vunpack.c.l.b16 %v121
  %v1083 = vunpack.c.h.b16 %v121
  %v1084 = vunpack.c.l.b16 %v122
  %v1085 = vunpack.c.h.b16 %v122
  %v1086 = vunpack.c.l.b16 %v123
  %v1087 = vunpack.c.h.b16 %v123
  %v1088 = vunpack.c.l.b16 %v124
  %v1089 = vunpack.c.h.b16 %v124
  %v1090 = vunpack.c.l.b16 %v125
  %v1091 = vunpack.c.h.b16 %v125
  %v1092 = vunpack.c.l.b16 %v126
  %v1093 = vunpack.c.h.b16 %v126
  %v1094 = vunpack.c.l.b16 %v127
  %v1095 = vunpack.c.h.b16 %v127
  %v1096 = vunpack.c.l.b16 %v128
  %v1097 = vunpack.c.h.b16 %v128
  %v1098 = vunpack.c.l.b16 %v129
  %v1099 = vunpack.c.h.b16 %v129
  %v1100 = vunpack.c.l.b16 %v130
  %v1101 = vunpack.c.h.b16 %v130
  %v1102 = vunpack.c.l.b16 %v131
  %v1103 = vunpack.c.h.b16 %v131
  %v1104 = vunpack.c.l.b16 %v132
  %v1105 = vunpack.c.h.b16 %v132
  %v1106 = vunpack.c.l.b16 %v133
  %v1107 = vunpack.c.h.b16 %v133
  %v1108 = vunpack.c.l.b16 %v134
  %v1109 = vunpack.c.h.b16 %v134
  %v1110 = vunpack.c.l.b16 %v135
  %v1111 = vunpack.c.h.b16 %v135
  %v1112 = vunpack.c.l.b16 %v136
  %v1113 = vunpack.c.h.b16 %v136
  %v1114 = vunpack.c.l.b16 %v137
  %v1115 = vunpack.c.h.b16 %v137
  %v1116 = vunpack.c.l.b16 %v138
  %v1117 = vunpack.c.h.b16 %v138
  %v1118 = vunpack.c.l.b16 %v139
  %v1119 = vunpack.c.h.b16 %v139
  %v1120 = vunpack.c.l.b16 %v140
  %v1121 = vunpack.c.h.b16 %v140
  %v1122 = vunpack.c.l.b16 %v141
  %v1123 = vunpack.c.h.b16 %v141
  %v1124 = vunpack.c.l.b16 %v142
  %v1125 = vunpack.c.h.b16 %v142
  %v1126 = vunpack.c.l.b16 %v143
  %v1127 = vunpack.c.h.b16 %v143
  %v1128 = vunpack.c.l.b16 %v144
  %v1129 = vunpack.c.h.b16 %v144
  %v1130 = vunpack.c.l.b16 %v145
  %v1131 = vunpack.c.h.b16 %v145
  %v1132 = vunpack.c.l.b16 %v146
  %v1133 = vunpack.c.h.b16 %v146
  %v1134 = vunpack.c.l.b16 %v147
  %v1135 = vunpack.c.h.b16 %v147
  %v1136 = vunpack.c.l.b16 %v148
  %v1137 = vunpack.c.h.b16 %v148
  %v1138 = vunpack.c.l.b16 %v149
  %v1139 = vunpack.c.h.b16 %v149
  %v1140 = vunpack.c.l.b16 %v150
  %v1141 = vunpack.c.h.b16 %v150
  %v1142 = vunpack.c.l.b16 %v151
  %v1143 = vunpack.c.h.b16 %v151
  %v1144 = vunpack.c.l.b16 %v152
  %v1145 = vunpack.c.h.b16 %v152
  %v1146 = vunpack.c.l.b16 %v153
  %v1147 = vunpack.c.h.b16 %v153
  %v1148 = vunpack.c.l.b16 %v154
  %v1149 = vunpack.c.h.b16 %v154
  %v1150 = vunpack.c.l.b16 %v155
  %v1151 = vunpack.c.h.b16 %v155
  %v1152 = vunpack.c.l.b16 %v156
  %v1153 = vunpack.c.h.b16 %v156
  %v1154 = vunpack.c.l.b16 %v157
  %v1155 = vunpack.c.h.b16 %v157
  %v1156 = vunpack.c.l.b16 %v158
  %v1157 = vunpack.c.h.b16 %v158
  %v1158 = vunpack.c.l.b16 %v159
  %v1159 = vunpack.c.h.b16 %v159
  %v1160 = vunpack.c.l.b16 %v160
  %v1161 = vunpack.c.h.b16 %v160
  %v1162 = vunpack.c.l.b16 %v161
  %v1163 = vunpack.c.h.b16 %v161
  %v1164 = vunpack.c.l.b16 %v162
  %v1165 = vunpack.c.h.b16 %v162
  %v1166 = vunpack.c.l.b16 %v163
  %v1167 = vunpack.c.h.b16 %v163
  %v1168 = vunpack.c.l.b16 %v164
  %v1169 = vunpack.c.h.b16 %v164
  %v1170 = vunpack.c.l.b16 %v165
  %v1171 = vunpack.c.h.b16 %v165
  %v1172 = vunpack.c.l.b16 %v166
  %v1173 = vunpack.c.h.b16 %v166
  %v1174 = vunpack.c.l.b16 %v167
  %v1175 = vunpack.c.h.b16 %v167
  %v1176 = vunpack.c.l.b16 %v168
  %v1177 = vunpack.c.h.b16 %v168
  %v1178 = vunpack.c.l.b16 %v169
  %v1179 = vunpack.c.h.b16 %v169
  %v1180 = vunpack.c.l.b16 %v170
  %v1181 = vunpack.c.h.b16 %v170
  %v1182 = vunpack.c.l.b16 %v171
  %v1183 = vunpack.c.h.b16 %v171
  %v1184 = vunpack.c.l.b16 %v172
  %v1185 = vunpack.c.h.b16 %v172
  %v1186 = vunpack.c.l.b16 %v173
  %v1187 = vunpack.c.h.b16 %v173
  %v1188 = vunpack.c.l.b16 %v174
  %v1189 = vunpack.c.h.b16 %v174
  %v1190 = vunpack.c.l.b16 %v175
  %v1191 = vunpack.c.h.b16 %v175
  %v1192 = vunpack.c.l.b16 %v176
  %v1193 = vunpack.c.h.b16 %v176
  %v1194 = vunpack.c.l.b16 %v177
  %v1195 = vunpack.c.h.b16 %v177
  %v1196 = vunpack.c.l.b16 %v178
  %v1197 = vunpack.c.h.b16 %v178
  %v1198 = vunpack.c.l.b16 %v179
  %v1199 = vunpack.c.h.b16 %v179
  %v1200 = vunpack.c.l.b16 %v180
  %v1201 = vunpack.c.h.b16 %v180
  %v1202 = vunpack.c.l.b16 %v181
  %v1203 = vunpack.c.h.b16 %v181
  %v1204 = vunpack.c.l.b16 %v182
  %v1205 = vunpack.c.h.b16 %v182
  %v1206 = vunpack.c.l.b16 %v183
  %v1207 = vunpack.c.h.b16 %v183
  %v1208 = vunpack.c.l.b16 %v184
  %v1209 = vunpack.c.h.b16 %v184
  %v1210 = vunpack.c.l.b16 %v185
  %v1211 = vunpack.c.h.b16 %v185
  %v1212 = vunpack.c.l.b16 %v186
  %v1213 = vunpack.c.h.b16 %v186
  %v1214 = vunpack.c.l.b16 %v187
  %v1215 = vunpack.c.h.b16 %v187
  %v1216 = vunpack.c.l.b16 %v188
  %v1217 = vunpack.c.h.b16 %v188
  %v1218 = vunpack.c.l.b16 %v189
  %v1219 = vunpack.c.h.b16 %v189
  %v1220 = vunpack.c.l.b16 %v190
  %v1221 = vunpack.c.h.b16 %v190
  %v1222 = vunpack.c.l.b16 %v191
  %v1223 = vunpack.c.h.b16 %v191
  %v1224 = vunpack.c.l.b16 %v192
  %v1225 = vunpack.c.h.b16 %v192
  %v1226 = vunpack.c.l.b16 %v193
  %v1227 = vunpack.c.h.b16 %v193
  %v1228 = vunpack.c.l.b16 %v194
  %v1229 = vunpack.c.h.b16 %v194
  %v1230 = vunpack.c.l.b16 %v195
  %v1231 = vunpack.c.h.b16 %v195
  %v1232 = vunpack.c.l.b16 %v196
  %v1233 = vunpack.c.h.b16 %v196
  %v1234 = vunpack.c.l.b16 %v197
  %v1235 = vunpack.c.h.b16 %v197
  %v1236 = vunpack.c.l.b16 %v198
  %v1237 = vunpack.c.h.b16 %v198
  %v1238 = vunpack.c.l.b16 %v199
  %v1239 = vunpack.c.h.b16 %v199
  %v1240 = vunpack.c.l.b16 %v200
  %v1241 = vunpack.c.h.b16 %v200
  %v1242 = vunpack.c.l.b16 %v201
  %v1243 = vunpack.c.h.b16 %v201
  %v1244 = vunpack.c.l.b16 %v202
  %v1245 = vunpack.c.h.b16 %v202
  %v1246 = vunpack.c.l.b16 %v203
  %v1247 = vunpack.c.h.b16 %v203
  %v1248 = vunpack.c.l.b16 %v204
  %v1249 = vunpack.c.h.b16 %v204
  %v1250 = vunpack.c.l.b16 %v205
  %v1251 = vunpack.c.h.b16 %v205
  %v1252 = vunpack.c.l.b16 %v206
  %v1253 = vunpack.c.h.b16 %v206
  %v1254 = vunpack.c.l.b16 %v207
  %v1255 = vunpack.c.h.b16 %v207
  %v1256 = vunpack.c.l.b16 %v208
  %v1257 = vunpack.c.h.b16 %v208
  %v1258 = vunpack.c.l.b16 %v209
  %v1259 = vunpack.c.h.b16 %v209
  %v1260 = vunpack.c.l.b16 %v210
  %v1261 = vunpack.c.h.b16 %v210
  %v1262 = vunpack.c.l.b16 %v211
  %v1263 = vunpack.c.h.b16 %v211
  %v1264 = vunpack.c.l.b16 %v212
  %v1265 = vunpack.c.h.b16 %v212
  %v1266 = vunpack.c.l.b16 %v213
  %v1267 = vunpack.c.h.b16 %v213
  %v1268 = vunpack.c.l.b16 %v214
  %v1269 = vunpack.c.h.b16 %v214
  %v1270 = vunpack.c.l.b16 %v215
  %v1271 = vunpack.c.h.b16 %v215
  %v1272 = vunpack.c.l.b16 %v216
  %v1273 = vunpack.c.h.b16 %v216
  %v1274 = vunpack.c.l.b16 %v217
  %v1275 = vunpack.c.h.b16 %v217
  %v1276 = vunpack.c.l.b16 %v218
  %v1277 = vunpack.c.h.b16 %v218
  %v1278 = vunpack.c.l.b16 %v219
  %v1279 = vunpack.c.h.b16 %v219
  %v1280 = vunpack.c.l.b16 %v220
  %v1281 = vunpack.c.h.b16 %v220
  %v1282 = vunpack.c.l.b16 %v221
  %v1283 = vunpack.c.h.b16 %v221
  %v1284 = vunpack.c.l.b16 %v222
  %v1285 = vunpack.c.h.b16 %v222
  %v1286 = vunpack.c.l.b16 %v223
  %v1287 = vunpack.c.h.b16 %v223
  %v1288 = vunpack.c.l.b16 %v224
  %v1289 = vunpack.c.h.b16 %v224
  %v1290 = vunpack.c.l.b16 %v225
  %v1291 = vunpack.c.h.b16 %v225
  %v1292 = vunpack.c.l.b16 %v226
  %v1293 = vunpack.c.h.b16 %v226
  %v1294 = vunpack.c.l.b16 %v227
  %v1295 = vunpack.c.h.b16 %v227
  %v1296 = vunpack.c.l.b16 %v228
  %v1297 = vunpack.c.h.b16 %v228
  %v1298 = vunpack.c.l.b16 %v229
  %v1299 = vunpack.c.h.b16 %v229
  %v1300 = vunpack.c.l.b16 %v230
  %v1301 = vunpack.c.h.b16 %v230
  %v1302 = vunpack.c.l.b16 %v231
  %v1303 = vunpack.c.h.b16 %v231
  %v1304 = vunpack.c.l.b16 %v232
  %v1305 = vunpack.c.h.b16 %v232
  %v1306 = vunpack.c.l.b16 %v233
  %v1307 = vunpack.c.h.b16 %v233
  %v1308 = vunpack.c.l.b16 %v234
  %v1309 = vunpack.c.h.b16 %v234
  %v1310 = vunpack.c.l.b16 %v235
  %v1311 = vunpack.c.h.b16 %v235
  %v1312 = vunpack.c.l.b16 %v236
  %v1313 = vunpack.c.h.b16 %v236
  %v1314 = vunpack.c.l.b16 %v237
  %v1315 = vunpack.c.h.b16 %v237
  %v1316 = vunpack.c.l.b16 %v238
  %v1317 = vunpack.c.h.b16 %v238
  %v1318 = vunpack.c.l.b16 %v239
  %v1319 = vunpack.c.h.b16 %v239
  %v1320 = vunpack.c.l.b16 %v240
  %v1321 = vunpack.c.h.b16 %v240
  %v1322 = vunpack.c.l.b16 %v241
  %v1323 = vunpack.c.h.b16 %v241
  %v1324 = vunpack.c.l.b16 %v242
  %v1325 = vunpack.c.h.b16 %v242
  %v1326 = vunpack.c.l.b16 %v243
  %v1327 = vunpack.c.h.b16 %v243
  %v1328 = vunpack.c.l.b16 %v244
  %v1329 = vunpack.c.h.b16 %v244
  %v1330 = vunpack.c.l.b16 %v245
  %v1331 = vunpack.c.h.b16 %v245
  %v1332 = vunpack.c.l.b16 %v246
  %v1333 = vunpack.c.h.b16 %v246
  %v1334 = vunpack.c.l.b16 %v247
  %v1335 = vunpack.c.h.b16 %v247
  %v1336 = vunpack.c.l.b16 %v248
  %v1337 = vunpack.c.h.b16 %v248
  %v1338 = vunpack.c.l.b16 %v249
  %v1339 = vunpack.c.h.b16 %v249
  %v1340 = vunpack.c.l.b16 %v250
  %v1341 = vunpack.c.h.b16 %v250
  %v1342 = vunpack.c.l.b16 %v251
  %v1343 = vunpack.c.h.b16 %v251
  %v1344 = vunpack.c.l.b16 %v252
  %v1345 = vunpack.c.h.b16 %v252
  %v1346 = vunpack.c.l.b16 %v253
  %v1347 = vunpack.c.h.b16 %v253
  %v1348 = vunpack.c.l.b16 %v254
  %v1349 = vunpack.c.h.b16 %v254
  %v1350 = vunpack.c.l.b16 %v255
  %v1351 = vunpack.c.h.b16 %v255
  %v1352 = vunpack.c.l.b16 %v256
  %v1353 = vunpack.c.h.b16 %v256
  %v1354 = vunpack.c.l.b16 %v257
  %v1355 = vunpack.c.h.b16 %v257
  %v1356 = vunpack.c.l.b16 %v258
  %v1357 = vunpack.c.h.b16 %v258
  %v1358 = vunpack.c.l.b16 %v259
  %v1359 = vunpack.c.h.b16 %v259
  %v1360 = vunpack.c.l.b16 %v260
  %v1361 = vunpack.c.h.b16 %v260
  %v1362 = vunpack.c.l.b16 %v261
  %v1363 = vunpack.c.h.b16 %v261
  %v1364 = vunpack.c.l.b16 %v262
  %v1365 = vunpack.c.h.b16 %v262
  %v1366 = vunpack.c.l.b16 %v263
  %v1367 = vunpack.c.h.b16 %v263
  %v1368 = vunpack.c.l.b16 %v264
  %v1369 = vunpack.c.h.b16 %v264
  %v1370 = vunpack.c.l.b16 %v265
  %v1371 = vunpack.c.h.b16 %v265
  %v1372 = vunpack.c.l.b16 %v266
  %v1373 = vunpack.c.h.b16 %v266
  %v1374 = vunpack.c.l.b16 %v267
  %v1375 = vunpack.c.h.b16 %v267
  %v1376 = vunpack.c.l.b16 %v268
  %v1377 = vunpack.c.h.b16 %v268
  %v1378 = vunpack.c.l.b16 %v269
  %v1379 = vunpack.c.h.b16 %v269
  %v1380 = vunpack.c.l.b16 %v270
  %v1381 = vunpack.c.h.b16 %v270
  %v1382 = vunpack.c.l.b16 %v271
  %v1383 = vunpack.c.h.b16 %v271
  %v1384 = vunpack.c.l.b16 %v272
  %v1385 = vunpack.c.h.b16 %v272
  %v1386 = vunpack.c.l.b16 %v273
  %v1387 = vunpack.c.h.b16 %v273
  %v1388 = vunpack.c.l.b16 %v274
  %v1389 = vunpack.c.h.b16 %v274
  %v1390 = vunpack.c.l.b16 %v275
  %v1391 = vunpack.c.h.b16 %v275
  %v1392 = vunpack.c.l.b16 %v276
  %v1393 = vunpack.c.h.b16 %v276
  %v1394 = vunpack.c.l.b16 %v277
  %v1395 = vunpack.c.h.b16 %v277
  %v1396 = vunpack.c.l.b16 %v278
  %v1397 = vunpack.c.h.b16 %v278
  %v1398 = vunpack.c.l.b16 %v279
  %v1399 = vunpack.c.h.b16 %v279
  %v1400 = vunpack.c.l.b16 %v280
  %v1401 = vunpack.c.h.b16 %v280
  %v1402 = vunpack.c.l.b16 %v281
  %v1403 = vunpack.c.h.b16 %v281
  %v1404 = vunpack.c.l.b16 %v282
  %v1405 = vunpack.c.h.b16 %v282
  %v1406 = vunpack.c.l.b16 %v283
  %v1407 = vunpack.c.h.b16 %v283
  %v1408 = vunpack.c.l.b16 %v284
  %v1409 = vunpack.c.h.b16 %v284
  %v1410 = vunpack.c.l.b16 %v285
  %v1411 = vunpack.c.h.b16 %v285
  %v1412 = vunpack.c.l.b16 %v286
  %v1413 = vunpack.c.h.b16 %v286
  %v1414 = vunpack.c.l.b16 %v287
  %v1415 = vunpack.c.h.b16 %v287
  %v1416 = vunpack.c.l.b16 %v288
  %v1417 = vunpack.c.h.b16 %v288
  %v1418 = vunpack.c.l.b16 %v289
  %v1419 = vunpack.c.h.b16 %v289
  %v1420 = vunpack.c.l.b16 %v290
  %v1421 = vunpack.c.h.b16 %v290
  %v1422 = vunpack.c.l.b16 %v291
  %v1423 = vunpack.c.h.b16 %v291
  %v1424 = vunpack.c.l.b16 %v292
  %v1425 = vunpack.c.h.b16 %v292
  %v1426 = vunpack.c.l.b16 %v293
  %v1427 = vunpack.c.h.b16 %v293
  %v1428 = vunpack.c.l.b16 %v294
  %v1429 = vunpack.c.h.b16 %v294
  %v1430 = vunpack.c.l.b16 %v295
  %v1431 = vunpack.c.h.b16 %v295
  %v1432 = vunpack.c.l.b16 %v296
  %v1433 = vunpack.c.h.b16 %v296
  %v1434 = vunpack.c.l.b16 %v297
  %v1435 = vunpack.c.h.b16 %v297
  %v1436 = vunpack.c.l.b16 %v298
  %v1437 = vunpack.c.h.b16 %v298
  %v1438 = vunpack.c.l.b16 %v299
  %v1439 = vunpack.c.h.b16 %v299
  %v1440 = vunpack.c.l.b16 %v300
  %v1441 = vunpack.c.h.b16 %v300
  %v1442 = vunpack.c.l.b16 %v301
  %v1443 = vunpack.c.h.b16 %v301
  %v1444 = vunpack.c.l.b16 %v302
  %v1445 = vunpack.c.h.b16 %v302
  %v1446 = vunpack.c.l.b16 %v303
  %v1447 = vunpack.c.h.b16 %v303
  %v1448 = vunpack.c.l.b16 %v304
  %v1449 = vunpack.c.h.b16 %v304
  %v1450 = vunpack.c.l.b16 %v305
  %v1451 = vunpack.c.h.b16 %v305
  %v1452 = vunpack.c.l.b16 %v306
  %v1453 = vunpack.c.h.b16 %v306
  %v1454 = vunpack.c.l.b16 %v307
  %v1455 = vunpack.c.h.b16 %v307
  %v1456 = vunpack.c.l.b16 %v308
  %v1457 = vunpack.c.h.b16 %v308
  %v1458 = vunpack.c.l.b16 %v309
  %v1459 = vunpack.c.h.b16 %v309
  %v1460 = vunpack.c.l.b16 %v310
  %v1461 = vunpack.c.h.b16 %v310
  %v1462 = vunpack.c.l.b16 %v311
  %v1463 = vunpack.c.h.b16 %v311
  %v1464 = vunpack.c.l.b16 %v312
  %v1465 = vunpack.c.h.b16 %v312
  %v1466 = vunpack.c.l.b16 %v313
  %v1467 = vunpack.c.h.b16 %v313
  %v1468 = vunpack.c.l.b16 %v314
  %v1469 = vunpack.c.h.b16 %v314
  %v1470 = vunpack.c.l.b16 %v315
  %v1471 = vunpack.c.h.b16 %v315
  %v1472 = vunpack.c.l.b16 %v316
  %v1473 = vunpack.c.h.b16 %v316
  %v1474 = vunpack.c.l.b16 %v317
  %v1475 = vunpack.c.h.b16 %v317
  %v1476 = vunpack.c.l.b16 %v318
  %v1477 = vunpack.c.h.b16 %v318
  %v1478 = vunpack.c.l.b16 %v319
  %v1479 = vunpack.c.h.b16 %v319
  %v1480 = vunpack.c.l.b16 %v320
  %v1481 = vunpack.c.h.b16 %v320
  %v1482 = vunpack.c.l.b16 %v321
  %v1483 = vunpack.c.h.b16 %v321
  %v1484 = vunpack.c.l.b16 %v322
  %v1485 = vunpack.c.h.b16 %v322
  %v1486 = vunpack.c.l.b16 %v323
  %v1487 = vunpack.c.h.b16 %v323
  %v1488 = vunpack.c.l.b16 %v324
  %v1489 = vunpack.c.h.b16 %v324
  %v1490 = vunpack.c.l.b16 %v325
  %v1491 = vunpack.c.h.b16 %v325
  %v1492 = vunpack.c.l.b16 %v326
  %v1493 = vunpack.c.h.b16 %v326
  %v1494 = vunpack.c.l.b16 %v327
  %v1495 = vunpack.c.h.b16 %v327
  %v1496 = vunpack.c.l.b16 %v328
  %v1497 = vunpack.c.h.b16 %v328
  %v1498 = vunpack.c.l.b16 %v329
  %v1499 = vunpack.c.h.b16 %v329
  %v1500 = vunpack.c.l.b16 %v330
  %v1501 = vunpack.c.h.b16 %v330
  %v1502 = vunpack.c.l.b16 %v331
  %v1503 = vunpack.c.h.b16 %v331
  %v1504 = vunpack.c.l.b16 %v332
  %v1505 = vunpack.c.h.b16 %v332
  %v1506 = vunpack.c.l.b16 %v333
  %v1507 = vunpack.c.h.b16 %v333
  %v1508 = vunpack.c.l.b16 %v334
  %v1509 = vunpack.c.h.b16 %v334
  %v1510 = vunpack.c.l.b16 %v335
  %v1511 = vunpack.c.h.b16 %v335
  %v1512 = vunpack.c.l.b16 %v336
  %v1513 = vunpack.c.h.b16 %v336
  %v1514 = vunpack.c.l.b16 %v337
  %v1515 = vunpack.c.h.b16 %v337
  %v1516 = vunpack.c.l.b16 %v338
  %v1517 = vunpack.c.h.b16 %v338
  %v1518 = vunpack.c.l.b16 %v339
  %v1519 = vunpack.c.h.b16 %v339
  %v1520 = vunpack.c.l.b16 %v340
  %v1521 = vunpack.c.h.b16 %v340
  %v1522 = vunpack.c.l.b16 %v341
  %v1523 = vunpack.c.h.b16 %v341
  %v1524 = vunpack.c.l.b16 %v342
  %v1525 = vunpack.c.h.b16 %v342
  %v1526 = vunpack.c.l.b16 %v343
  %v1527 = vunpack.c.h.b16 %v343
  %v1528 = vunpack.c.l.b16 %v344
  %v1529 = vunpack.c.h.b16 %v344
  %v1530 = vunpack.c.l.b16 %v345
  %v1531 = vunpack.c.h.b16 %v345
  %v1532 = vunpack.c.l.b16 %v346
  %v1533 = vunpack.c.h.b16 %v346
  %v1534 = vunpack.c.l.b16 %v347
  %v1535 = vunpack.c.h.b16 %v347
  %v1536 = vunpack.c.l.b16 %v348
  %v1537 = vunpack.c.h.b16 %v348
  %v1538 = vunpack.c.l.b16 %v349
  %v1539 = vunpack.c.h.b16 %v349
  %v1540 = vunpack.c.l.b16 %v350
  %v1541 = vunpack.c.h.b16 %v350
  %v1542 = vunpack.c.l.b16 %v351
  %v1543 = vunpack.c.h.b16 %v351
  %v1544 = vunpack.c.l.b16 %v352
  %v1545 = vunpack.c.h.b16 %v352
  %v1546 = vunpack.c.l.b16 %v353
  %v1547 = vunpack.c.h.b16 %v353
  %v1548 = vunpack.c.l.b16 %v354
  %v1549 = vunpack.c.h.b16 %v354
  %v1550 = vunpack.c.l.b16 %v355
  %v1551 = vunpack.c.h.b16 %v355
  %v1552 = vunpack.c.l.b16 %v356
  %v1553 = vunpack.c.h.b16 %v356
  %v1554 = vunpack.c.l.b16 %v357
  %v1555 = vunpack.c.h.b16 %v357
  %v1556 = vunpack.c.l.b16 %v358
  %v1557 = vunpack.c.h.b16 %v358
  %v1558 = vunpack.c.l.b16 %v359
  %v1559 = vunpack.c.h.b16 %v359
  %v1560 = vunpack.c.l.b16 %v360
  %v1561 = vunpack.c.h.b16 %v360
  %v1562 = vunpack.c.l.b16 %v361
  %v1563 = vunpack.c.h.b16 %v361
  %v1564 = vunpack.c.l.b16 %v362
  %v1565 = vunpack.c.h.b16 %v362
  %v1566 = vunpack.c.l.b16 %v363
  %v1567 = vunpack.c.h.b16 %v363
  %v1568 = vunpack.c.l.b16 %v364
  %v1569 = vunpack.c.h.b16 %v364
  %v1570 = vunpack.c.l.b16 %v365
  %v1571 = vunpack.c.h.b16 %v365
  %v1572 = vunpack.c.l.b16 %v366
  %v1573 = vunpack.c.h.b16 %v366
  %v1574 = vunpack.c.l.b16 %v367
  %v1575 = vunpack.c.h.b16 %v367
  %v1576 = vunpack.c.l.b16 %v368
  %v1577 = vunpack.c.h.b16 %v368
  %v1578 = vunpack.c.l.b16 %v369
  %v1579 = vunpack.c.h.b16 %v369
  %v1580 = vunpack.c.l.b16 %v370
  %v1581 = vunpack.c.h.b16 %v370
  %v1582 = vunpack.c.l.b16 %v371
  %v1583 = vunpack.c.h.b16 %v371
  %v1584 = vunpack.c.l.b16 %v372
  %v1585 = vunpack.c.h.b16 %v372
  %v1586 = vunpack.c.l.b16 %v373
  %v1587 = vunpack.c.h.b16 %v373
  %v1588 = vunpack.c.l.b16 %v374
  %v1589 = vunpack.c.h.b16 %v374
  %v1590 = vunpack.c.l.b16 %v375
  %v1591 = vunpack.c.h.b16 %v375
  %v1592 = vunpack.c.l.b16 %v376
  %v1593 = vunpack.c.h.b16 %v376
  %v1594 = vunpack.c.l.b16 %v377
  %v1595 = vunpack.c.h.b16 %v377
  %v1596 = vunpack.c.l.b16 %v378
  %v1597 = vunpack.c.h.b16 %v378
  %v1598 = vunpack.c.l.b16 %v379
  %v1599 = vunpack.c.h.b16 %v379
  %v1600 = vunpack.c.l.b16 %v380
  %v1601 = vunpack.c.h.b16 %v380
  %v1602 = vunpack.c.l.b16 %v381
  %v1603 = vunpack.c.h.b16 %v381
  %v1604 = vunpack.c.l.b16 %v382
  %v1605 = vunpack.c.h.b16 %v382
  %v1606 = vunpack.c.l.b16 %v383
  %v1607 = vunpack.c.h.b16 %v383
  %v1608 = vunpack.c.l.b16 %v384
  %v1609 = vunpack.c.h.b16 %v384
  %v1610 = vunpack.c.l.b16 %v385
  %v1611 = vunpack.c.h.b16 %v385
  %v1612 = vunpack.c.l.b16 %v386
  %v1613 = vunpack.c.h.b16 %v386
  %v1614 = vunpack.c.l.b16 %v387
  %v1615 = vunpack.c.h.b16 %v387
  %v1616 = vunpack.c.l.b16 %v388
  %v1617 = vunpack.c.h.b16 %v388
  %v1618 = vunpack.c.l.b16 %v389
  %v1619 = vunpack.c.h.b16 %v389
  %v1620 = vunpack.c.l.b16 %v390
  %v1621 = vunpack.c.h.b16 %v390
  %v1622 = vunpack.c.l.b16 %v391
  %v1623 = vunpack.c.h.b16 %v391
  %v1624 = vunpack.c.l.b16 %v392
  %v1625 = vunpack.c.h.b16 %v392
  %v1626 = vunpack.c.l.b16 %v393
  %v1627 = vunpack.c.h.b16 %v393
  %v1628 = vunpack.c.l.b16 %v394
  %v1629 = vunpack.c.h.b16 %v394
  %v1630 = vunpack.c.l.b16 %v395
  %v1631 = vunpack.c.h.b16 %v395
  %v1632 = vunpack.c.l.b16 %v396
  %v1633 = vunpack.c.h.b16 %v396
  %v1634 = vunpack.c.l.b16 %v397
  %v1635 = vunpack.c.h.b16 %v397
  %v1636 = vpack.c.b16 %v874, %v868
  %v1637 = vpack.c.b16 %v875, %v869
  %v1638 = vpack.c.b16 %v876, %v870
  %v1639 = vpack.c.b16 %v877, %v871
  %v1640 = vpack.c.b16 %v878, %v872
  %v1641 = vpack.c.b16 %v879, %v873
  %v1642 = vpack.c.b16 %v886, %v880
  %v1643 = vpack.c.b16 %v887, %v881
  %v1644 = vpack.c.b16 %v888, %v882
  %v1645 = vpack.c.b16 %v889, %v883
  %v1646 = vpack.c.b16 %v890, %v884
  %v1647 = vpack.c.b16 %v891, %v885
  %v1648 = vpack.c.b16 %v898, %v892
  %v1649 = vpack.c.b16 %v899, %v893
  %v1650 = vpack.c.b16 %v900, %v894
  %v1651 = vpack.c.b16 %v901, %v895
  %v1652 = vpack.c.b16 %v902, %v896
  %v1653 = vpack.c.b16 %v903, %v897
  %v1654 = vpack.c.b16 %v910, %v904
  %v1655 = vpack.c.b16 %v911, %v905
  %v1656 = vpack.c.b16 %v912, %v906
  %v1657 = vpack.c.b16 %v913, %v907
  %v1658 = vpack.c.b16 %v914, %v908
  %v1659 = vpack.c.b16 %v915, %v909
  %v1660 = vpack.c.b16 %v922, %v916
  %v1661 = vpack.c.b16 %v923, %v917
  %v1662 = vpack.c.b16 %v924, %v918
  %v1663 = vpack.c.b16 %v925, %v919
  %v1664 = vpack.c.b16 %v926, %v920
  %v1665 = vpack.c.b16 %v927, %v921
  %v1666 = vpack.c.b16 %v934, %v928
  %v1667 = vpack.c.b16 %v935, %v929
  %v1668 = vpack.c.b16 %v936, %v930
  %v1669 = vpack.c.b16 %v937, %v931
  %v1670 = vpack.c.b16 %v938, %v932
  %v1671 = vpack.c.b16 %v939, %v933
  %v1672 = vpack.c.b16 %v946, %v940
  %v1673 = vpack.c.b16 %v947, %v941
  %v1674 = vpack.c.b16 %v948, %v942
  %v1675 = vpack.c.b16 %v949, %v943
  %v1676 = vpack.c.b16 %v950, %v944
  %v1677 = vpack.c.b16 %v951, %v945
  %v1678 = vpack.c.b16 %v958, %v952
  %v1679 = vpack.c.b16 %v959, %v953
  %v1680 = vpack.c.b16 %v960, %v954
  %v1681 = vpack.c.b16 %v961, %v955
  %v1682 = vpack.c.b16 %v962, %v956
  %v1683 = vpack.c.b16 %v963, %v957
  %v1684 = vpack.c.b16 %v970, %v964
  %v1685 = vpack.c.b16 %v971, %v965
  %v1686 = vpack.c.b16 %v972, %v966
  %v1687 = vpack.c.b16 %v973, %v967
  %v1688 = vpack.c.b16 %v974, %v968
  %v1689 = vpack.c.b16 %v975, %v969
  %v1690 = vpack.c.b16 %v982, %v976
  %v1691 = vpack.c.b16 %v983, %v977
  %v1692 = vpack.c.b16 %v984, %v978
  %v1693 = vpack.c.b16 %v985, %v979
  %v1694 = vpack.c.b16 %v986, %v980
  %v1695 = vpack.c.b16 %v987, %v981
  %v1696 = vpack.c.b16 %v994, %v988
  %v1697 = vpack.c.b16 %v995, %v989
  %v1698 = vpack.c.b16 %v996, %v990
  %v1699 = vpack.c.b16 %v997, %v991
  %v1700 = vpack.c.b16 %v998, %v992
  %v1701 = vpack.c.b16 %v999, %v993
  %v1702 = vpack.c.b16 %v1006, %v1000
  %v1703 = vpack.c.b16 %v1007, %v1001
  %v1704 = vpack.c.b16 %v1008, %v1002
  %v1705 = vpack.c.b16 %v1009, %v1003
  %v1706 = vpack.c.b16 %v1010, %v1004
  %v1707 = vpack.c.b16 %v1011, %v1005
  %v1708 = vpack.c.b16 %v1018, %v1012
  %v1709 = vpack.c.b16 %v1019, %v1013
  %v1710 = vpack.c.b16 %v1020, %v1014
  %v1711 = vpack.c.b16 %v1021, %v1015
  %v1712 = vpack.c.b16 %v1022, %v1016
  %v1713 = vpack.c.b16 %v1023, %v1017
  %v1714 = vpack.c.b16 %v1030, %v1024
  %v1715 = vpack.c.b16 %v1031, %v1025
  %v1716 = vpack.c.b16 %v1032, %v1026
  %v1717 = vpack.c.b16 %v1033, %v1027
  %v1718 = vpack.c.b16 %v1034, %v1028
  %v1719 = vpack.c.b16 %v1035, %v1029
  %v1720 = vpack.c.b16 %v1042, %v1036
  %v1721 = vpack.c.b16 %v1043, %v1037
  %v1722 = vpack.c.b16 %v1044, %v1038
  %v1723 = vpack.c.b16 %v1045, %v1039
  %v1724 = vpack.c.b16 %v1046, %v1040
  %v1725 = vpack.c.b16 %v1047, %v1041
  %v1726 = vpack.c.b16 %v1054, %v1048
  %v1727 = vpack.c.b16 %v1055, %v1049
  %v1728 = vpack.c.b16 %v1056, %v1050
  %v1729 = vpack.c.b16 %v1057, %v1051
  %v1730 = vpack.c.b16 %v1058, %v1052
  %v1731 = vpack.c.b16 %v1059, %v1053
  %v1732 = vpack.c.b16 %v1066, %v1060
  %v1733 = vpack.c.b16 %v1067, %v1061
  %v1734 = vpack.c.b16 %v1068, %v1062
  %v1735 = vpack.c.b16 %v1069, %v1063
  %v1736 = vpack.c.b16 %v1070, %v1064
  %v1737 = vpack.c.b16 %v1071, %v1065
  %v1738 = vpack.c.b16 %v1078, %v1072
  %v1739 = vpack.c.b16 %v1079, %v1073
  %v1740 = vpack.c.b16 %v1080, %v1074
  %v1741 = vpack.c.b16 %v1081, %v1075
  %v1742 = vpack.c.b16 %v1082, %v1076
  %v1743 = vpack.c.b16 %v1083, %v1077
  %v1744 = vpack.c.b16 %v1090, %v1084
  %v1745 = vpack.c.b16 %v1091, %v1085
  %v1746 = vpack.c.b16 %v1092, %v1086
  %v1747 = vpack.c.b16 %v1093, %v1087
  %v1748 = vpack.c.b16 %v1094, %v1088
  %v1749 = vpack.c.b16 %v1095, %v1089
  %v1750 = vpack.c.b16 %v1102, %v1096
  %v1751 = vpack.c.b16 %v1103, %v1097
  %v1752 = vpack.c.b16 %v1104, %v1098
  %v1753 = vpack.c.b16 %v1105, %v1099
  %v1754 = vpack.c.b16 %v1106, %v1100
  %v1755 = vpack.c.b16 %v1107, %v1101
  %v1756 = vpack.c.b16 %v1114, %v1108
  %v1757 = vpack.c.b16 %v1115, %v1109
  %v1758 = vpack.c.b16 %v1116, %v1110
  %v1759 = vpack.c.b16 %v1117, %v1111
  %v1760 = vpack.c.b16 %v1118, %v1112
  %v1761 = vpack.c.b16 %v1119, %v1113
  %v1762 = vpack.c.b16 %v1126, %v1120
  %v1763 = vpack.c.b16 %v1127, %v1121
  %v1764 = vpack.c.b16 %v1128, %v1122
  %v1765 = vpack.c.b16 %v1129, %v1123
  %v1766 = vpack.c.b16 %v1130, %v1124
  %v1767 = vpack.c.b16 %v1131, %v1125
  %v1768 = vpack.c.b16 %v1138, %v1132
  %v1769 = vpack.c.b16 %v1139, %v1133
  %v1770 = vpack.c.b16 %v1140, %v1134
  %v1771 = vpack.c.b16 %v1141, %v1135
  %v1772 = vpack.c.b16 %v1142, %v1136
  %v1773 = vpack.c.b16 %v1143, %v1137
  %v1774 = vpack.c.b16 %v1150, %v1144
  %v1775 = vpack.c.b16 %v1151, %v1145
  %v1776 = vpack.c.b16 %v1152, %v1146
  %v1777 = vpack.c.b16 %v1153, %v1147
  %v1778 = vpack.c.b16 %v1154, %v1148
  %v1779 = vpack.c.b16 %v1155, %v1149
  %v1780 = vpack.c.b16 %v1162, %v1156
  %v1781 = vpack.c.b16 %v1163, %v1157
  %v1782 = vpack.c.b16 %v1164, %v1158
  %v1783 = vpack.c.b16 %v1165, %v1159
  %v1784 = vpack.c.b16 %v1166, %v1160
  %v1785 = vpack.c.b16 %v1167, %v1161
  %v1786 = vpack.c.b16 %v1174, %v1168
  %v1787 = vpack.c.b16 %v1175, %v1169
  %v1788 = vpack.c.b16 %v1176, %v1170
  %v1789 = vpack.c.b16 %v1177, %v1171
  %v1790 = vpack.c.b16 %v1178, %v1172
  %v1791 = vpack.c.b16 %v1179, %v1173
  %v1792 = vpack.c.b16 %v1186, %v1180
  %v1793 = vpack.c.b16 %v1187, %v1181
  %v1794 = vpack.c.b16 %v1188, %v1182
  %v1795 = vpack.c.b16 %v1189, %v1183
  %v1796 = vpack.c.b16 %v1190, %v1184
  %v1797 = vpack.c.b16 %v1191, %v1185
  %v1798 = vpack.c.b16 %v1198, %v1192
  %v1799 = vpack.c.b16 %v1199, %v1193
  %v1800 = vpack.c.b16 %v1200, %v1194
  %v1801 = vpack.c.b16 %v1201, %v1195
  %v1802 = vpack.c.b16 %v1202, %v1196
  %v1803 = vpack.c.b16 %v1203, %v1197
  %v1804 = vpack.c.b16 %v1210, %v1204
  %v1805 = vpack.c.b16 %v1211, %v1205
  %v1806 = vpack.c.b16 %v1212, %v1206
  %v1807 = vpack.c.b16 %v1213, %v1207
  %v1808 = vpack.c.b16 %v1214, %v1208
  %v1809 = vpack.c.b16 %v1215, %v1209
  %v1810 = vpack.c.b16 %v1222, %v1216
  %v1811 = vpack.c.b16 %v1223, %v1217
  %v1812 = vpack.c.b16 %v1224, %v1218
  %v1813 = vpack.c.b16 %v1225, %v1219
  %v1814 = vpack.c.b16 %v1226, %v1220
  %v1815 = vpack.c.b16 %v1227, %v1221
  %v1816 = vpack.c.b16 %v1234, %v1228
  %v1817 = vpack.c.b16 %v1235, %v1229
  %v1818 = vpack.c.b16 %v1236, %v1230
  %v1819 = vpack.c.b16 %v1237, %v1231
  %v1820 = vpack.c.b16 %v1238, %v1232
  %v1821 = vpack.c.b16 %v1239, %v1233
  %v1822 = vpack.c.b16 %v1246, %v1240
  %v1823 = vpack.c.b16 %v1247, %v1241
  %v1824 = vpack.c.b16 %v1248, %v1242
  %v1825 = vpack.c.b16 %v1249, %v1243
  %v1826 = vpack.c.b16 %v1250, %v1244
  %v1827 = vpack.c.b16 %v1251, %v1245
  %v1828 = vpack.c.b16 %v1258, %v1252
  %v1829 = vpack.c.b16 %v1259, %v1253
  %v1830 = vpack.c.b16 %v1260, %v1254
  %v1831 = vpack.c.b16 %v1261, %v1255
  %v1832 = vpack.c.b16 %v1262, %v1256
  %v1833 = vpack.c.b16 %v1263, %v1257
  %v1834 = vpack.c.b16 %v1270, %v1264
  %v1835 = vpack.c.b16 %v1271, %v1265
  %v1836 = vpack.c.b16 %v1272, %v1266
  %v1837 = vpack.c.b16 %v1273, %v1267
  %v1838 = vpack.c.b16 %v1274, %v1268
  %v1839 = vpack.c.b16 %v1275, %v1269
  %v1840 = vpack.c.b16 %v1282, %v1276
  %v1841 = vpack.c.b16 %v1283, %v1277
  %v1842 = vpack.c.b16 %v1284, %v1278
  %v1843 = vpack.c.b16 %v1285, %v1279
  %v1844 = vpack.c.b16 %v1286, %v1280
  %v1845 = vpack.c.b16 %v1287, %v1281
  %v1846 = vpack.c.b16 %v1294, %v1288
  %v1847 = vpack.c.b16 %v1295, %v1289
  %v1848 = vpack.c.b16 %v1296, %v1290
  %v1849 = vpack.c.b16 %v1297, %v1291
  %v1850 = vpack.c.b16 %v1298, %v1292
  %v1851 = vpack.c.b16 %v1299, %v1293
  %v1852 = vpack.c.b16 %v1306, %v1300
  %v1853 = vpack.c.b16 %v1307, %v1301
  %v1854 = vpack.c.b16 %v1308, %v1302
  %v1855 = vpack.c.b16 %v1309, %v1303
  %v1856 = vpack.c.b16 %v1310, %v1304
  %v1857 = vpack.c.b16 %v1311, %v1305
  %v1858 = vpack.c.b16 %v1318, %v1312
  %v1859 = vpack.c.b16 %v1319, %v1313
  %v1860 = vpack.c.b16 %v1320, %v1314
  %v1861 = vpack.c.b16 %v1321, %v1315
  %v1862 = vpack.c.b16 %v1322, %v1316
  %v1863 = vpack.c.b16 %v1323, %v1317
  %v1864 = vpack.c.b16 %v1330, %v1324
  %v1865 = vpack.c.b16 %v1331, %v1325
  %v1866 = vpack.c.b16 %v1332, %v1326
  %v1867 = vpack.c.b16 %v1333, %v1327
  %v1868 = vpack.c.b16 %v1334, %v1328
  %v1869 = vpack.c.b16 %v1335, %v1329
  %v1870 = vpack.c.b16 %v1342, %v1336
  %v1871 = vpack.c.b16 %v1343, %v1337
  %v1872 = vpack.c.b16 %v1344, %v1338
  %v1873 = vpack.c.b16 %v1345, %v1339
  %v1874 = vpack.c.b16 %v1346, %v1340
  %v1875 = vpack.c.b16 %v1347, %v1341
  %v1876 = vpack.c.b16 %v1354, %v1348
  %v1877 = vpack.c.b16 %v1355, %v1349
  %v1878 = vpack.c.b16 %v1356, %v1350
  %v1879 = vpack.c.b16 %v1357, %v1351
  %v1880 = vpack.c.b16 %v1358, %v1352
  %v1881 = vpack.c.b16 %v1359, %v1353
  %v1882 = vpack.c.b16 %v1366, %v1360
  %v1883 = vpack.c.b16 %v1367, %v1361
  %v1884 = vpack.c.b16 %v1368, %v1362
  %v1885 = vpack.c.b16 %v1369, %v1363
  %v1886 = vpack.c.b16 %v1370, %v1364
  %v1887 = vpack.c.b16 %v1371, %v1365
  %v1888 = vpack.c.b16 %v1378, %v1372
  %v1889 = vpack.c.b16 %v1379, %v1373
  %v1890 = vpack.c.b16 %v1380, %v1374
  %v1891 = vpack.c.b16 %v1381, %v1375
  %v1892 = vpack.c.b16 %v1382, %v1376
  %v1893 = vpack.c.b16 %v1383, %v1377
  %v1894 = vpack.c.b16 %v1390, %v1384
  %v1895 = vpack.c.b16 %v1391, %v1385
  %v1896 = vpack.c.b16 %v1392, %v1386
  %v1897 = vpack.c.b16 %v1393, %v1387
  %v1898 = vpack.c.b16 %v1394, %v1388
  %v1899 = vpack.c.b16 %v1395, %v1389
  %v1900 = vpack.c.b16 %v1402, %v1396
  %v1901 = vpack.c.b16 %v1403, %v1397
  %v1902 = vpack.c.b16 %v1404, %v1398
  %v1903 = vpack.c.b16 %v1405, %v1399
  %v1904 = vpack.c.b16 %v1406, %v1400
  %v1905 = vpack.c.b16 %v1407, %v1401
  %v1906 = vpack.c.b16 %v1414, %v1408
  %v1907 = vpack.c.b16 %v1415, %v1409
  %v1908 = vpack.c.b16 %v1416, %v1410
  %v1909 = vpack.c.b16 %v1417, %v1411
  %v1910 = vpack.c.b16 %v1418, %v1412
  %v1911 = vpack.c.b16 %v1419, %v1413
  %v1912 = vpack.c.b16 %v1426, %v1420
  %v1913 = vpack.c.b16 %v1427, %v1421
  %v1914 = vpack.c.b16 %v1428, %v1422
  %v1915 = vpack.c.b16 %v1429, %v1423
  %v1916 = vpack.c.b16 %v1430, %v1424
  %v1917 = vpack.c.b16 %v1431, %v1425
  %v1918 = vpack.c.b16 %v1438, %v1432
  %v1919 = vpack.c.b16 %v1439, %v1433
  %v1920 = vpack.c.b16 %v1440, %v1434
  %v1921 = vpack.c.b16 %v1441, %v1435
  %v1922 = vpack.c.b16 %v1442, %v1436
  %v1923 = vpack.c.b16 %v1443, %v1437
  %v1924 = vpack.c.b16 %v1450, %v1444
  %v1925 = vpack.c.b16 %v1451, %v1445
  %v1926 = vpack.c.b16 %v1452, %v1446
  %v1927 = vpack.c.b16 %v1453, %v1447
  %v1928 = vpack.c.b16 %v1454, %v1448
  %v1929 = vpack.c.b16 %v1455, %v1449
  %v1930 = vpack.c.b16 %v1462, %v1456
  %v1931 = vpack.c.b16 %v1463, %v1457
  %v1932 = vpack.c.b16 %v1464, %v1458
  %v1933 = vpack.c.b16 %v1465, %v1459
  %v1934 = vpack.c.b16 %v1466, %v1460
  %v1935 = vpack.c.b16 %v1467, %v1461
  %v1936 = vpack.c.b16 %v1474, %v1468
  %v1937 = vpack.c.b16 %v1475, %v1469
  %v1938 = vpack.c.b16 %v1476, %v1470
  %v1939 = vpack.c.b16 %v1477, %v1471
  %v1940 = vpack.c.b16 %v1478, %v1472
  %v1941 = vpack.c.b16 %v1479, %v1473
  %v1942 = vpack.c.b16 %v1486, %v1480
  %v1943 = vpack.c.b16 %v1487, %v1481
  %v1944 = vpack.c.b16 %v1488, %v1482
  %v1945 = vpack.c.b16 %v1489, %v1483
  %v1946 = vpack.c.b16 %v1490, %v1484
  %v1947 = vpack.c.b16 %v1491, %v1485
  %v1948 = vpack.c.b16 %v1498, %v1492
  %v1949 = vpack.c.b16 %v1499, %v1493
  %v1950 = vpack.c.b16 %v1500, %v1494
  %v1951 = vpack.c.b16 %v1501, %v1495
  %v1952 = vpack.c.b16 %v1502, %v1496
  %v1953 = vpack.c.b16 %v1503, %v1497
  %v1954 = vpack.c.b16 %v1510, %v1504
  %v1955 = vpack.c.b16 %v1511, %v1505
  %v1956 = vpack.c.b16 %v1512, %v1506
  %v1957 = vpack.c.b16 %v1513, %v1507
  %v1958 = vpack.c.b16 %v1514, %v1508
  %v1959 = vpack.c.b16 %v1515, %v1509
  %v1960 = vpack.c.b16 %v1522, %v1516
  %v1961 = vpack.c.b16 %v1523, %v1517
  %v1962 = vpack.c.b16 %v1524, %v1518
  %v1963 = vpack.c.b16 %v1525, %v1519
  %v1964 = vpack.c.b16 %v1526, %v1520
  %v1965 = vpack.c.b16 %v1527, %v1521
  %v1966 = vpack.c.b16 %v1534, %v1528
  %v1967 = vpack.c.b16 %v1535, %v1529
  %v1968 = vpack.c.b16 %v1536, %v1530
  %v1969 = vpack.c.b16 %v1537, %v1531
  %v1970 = vpack.c.b16 %v1538, %v1532
  %v1971 = vpack.c.b16 %v1539, %v1533
  %v1972 = vpack.c.b16 %v1546, %v1540
  %v1973 = vpack.c.b16 %v1547, %v1541
  %v1974 = vpack.c.b16 %v1548, %v1542
  %v1975 = vpack.c.b16 %v1549, %v1543
  %v1976 = vpack.c.b16 %v1550, %v1544
  %v1977 = vpack.c.b16 %v1551, %v1545
  %v1978 = vpack.c.b16 %v1558, %v1552
  %v1979 = vpack.c.b16 %v1559, %v1553
  %v1980 = vpack.c.b16 %v1560, %v1554
  %v1981 = vpack.c.b16 %v1561, %v1555
  %v1982 = vpack.c.b16 %v1562, %v1556
  %v1983 = vpack.c.b16 %v1563, %v1557
  %v1984 = vpack.c.b16 %v1570, %v1564
  %v1985 = vpack.c.b16 %v1571, %v1565
  %v1986 = vpack.c.b16 %v1572, %v1566
  %v1987 = vpack.c.b16 %v1573, %v1567
  %v1988 = vpack.c.b16 %v1574, %v1568
  %v1989 = vpack.c.b16 %v1575, %v1569
  %v1990 = vpack.c.b16 %v1582, %v1576
  %v1991 = vpack.c.b16 %v1583, %v1577
  %v1992 = vpack.c.b16 %v1584, %v1578
  %v1993 = vpack.c.b16 %v1585, %v1579
  %v1994 = vpack.c.b16 %v1586, %v1580
  %v1995 = vpack.c.b16 %v1587, %v1581
  %v1996 = vpack.c.b16 %v1594, %v1588
  %v1997 = vpack.c.b16 %v1595, %v1589
  %v1998 = vpack.c.b16 %v1596, %v1590
  %v1999 = vpack.c.b16 %v1597, %v1591
  %v2000 = vpack.c.b16 %v1598, %v1592
  %v2001 = vpack.c.b16 %v1599, %v1593
  %v2002 = vpack.c.b16 %v1606, %v1600
  %v2003 = vpack.c.b16 %v1607, %v1601
  %v2004 = vpack.c.b16 %v1608, %v1602
  %v2005 = vpack.c.b16 %v1609, %v1603
  %v2006 = vpack.c.b16 %v1610, %v1604
  %v2007 = vpack.c.b16 %v1611, %v1605
  %v2008 = vpack.c.b16 %v1618, %v1612
  %v2009 = vpack.c.b16 %v1619, %v1613
  %v2010 = vpack.c.b16 %v1620, %v1614
  %v2011 = vpack.c.b16 %v1621, %v1615
  %v2012 = vpack.c.b16 %v1622, %v1616
  %v2013 = vpack.c.b16 %v1623, %v1617
  %v2014 = vpack.c.b16 %v1630, %v1624
  %v2015 = vpack.c.b16 %v1631, %v1625
  %v2016 = vpack.c.b16 %v1632, %v1626
  %v2017 = vpack.c.b16 %v1633, %v1627
  %v2018 = vpack.c.b16 %v1634, %v1628
  %v2019 = vpack.c.b16 %v1635, %v1629
  %v2426 = vunpack.c.l.b16 %v398
  %v2427 = vunpack.c.l.b16 %v399
  %v2428 = vunpack.c.l.b16 %v400
  %v2429 = vunpack.c.l.b16 %v401
  %v2430 = vunpack.c.l.b16 %v402
  %v2431 = vunpack.c.l.b16 %v403
  %v2432 = vunpack.c.l.b16 %v404
  %v2433 = vunpack.c.l.b16 %v405
  %v2434 = vunpack.c.l.b16 %v406
  %v2435 = vunpack.c.l.b16 %v407
  %v2436 = vunpack.c.l.b16 %v408
  %v2437 = vunpack.c.l.b16 %v409
  %v2438 = vunpack.c.l.b16 %v410
  %v2439 = vunpack.c.l.b16 %v411
  %v2440 = vunpack.c.l.b16 %v412
  %v2441 = vunpack.c.l.b16 %v413
  %v2442 = vunpack.c.l.b16 %v414
  %v2443 = vunpack.c.l.b16 %v415
  %v2444 = vunpack.c.l.b16 %v416
  %v2445 = vunpack.c.l.b16 %v417
  %v2446 = vunpack.c.l.b16 %v418
  %v2447 = vunpack.c.l.b16 %v419
  %v2448 = vunpack.c.l.b16 %v420
  %v2449 = vunpack.c.l.b16 %v421
  %v2450 = vunpack.c.l.b16 %v422
  %v2451 = vunpack.c.l.b16 %v423
  %v2452 = vunpack.c.l.b16 %v424
  %v2453 = vunpack.c.l.b16 %v425
  %v2454 = vunpack.c.l.b16 %v426
  %v2455 = vunpack.c.l.b16 %v427
  %v2456 = vunpack.c.l.b16 %v428
  %v2457 = vunpack.c.l.b16 %v429
  %v2458 = vunpack.c.l.b16 %v430
  %v2459 = vunpack.c.l.b16 %v431
  %v2460 = vunpack.c.l.b16 %v432
  %v2461 = vunpack.c.l.b16 %v433
  %v2462 = vunpack.c.l.b16 %v434
  %v2463 = vunpack.c.l.b16 %v435
  %v2464 = vunpack.c.l.b16 %v436
  %v2465 = vunpack.c.l.b16 %v437
  %v2466 = vunpack.c.l.b16 %v438
  %v2467 = vunpack.c.l.b16 %v439
  %v2468 = vunpack.c.l.b16 %v440
  %v2469 = vunpack.c.l.b16 %v441
  %v2470 = vunpack.c.l.b16 %v442
  %v2471 = vunpack.c.l.b16 %v443
  %v2472 = vunpack.c.l.b16 %v444
  %v2473 = vunpack.c.l.b16 %v445
  %v2474 = vunpack.c.l.b16 %v446
  %v2475 = vunpack.c.l.b16 %v447
  %v2476 = vunpack.c.l.b16 %v448
  %v2477 = vunpack.c.l.b16 %v449
  %v2478 = vunpack.c.l.b16 %v450
  %v2479 = vunpack.c.l.b16 %v451
  %v2480 = vunpack.c.l.b16 %v452
  %v2481 = vunpack.c.l.b16 %v453
  %v2482 = vunpack.c.l.b16 %v454
  %v2483 = vunpack.c.l.b16 %v455
  %v2484 = vunpack.c.l.b16 %v456
  %v2485 = vunpack.c.l.b16 %v457
  %v2486 = vunpack.c.l.b16 %v458
  %v2487 = vunpack.c.l.b16 %v459
  %v2488 = vunpack.c.l.b16 %v460
  %v2489 = vunpack.c.l.b16 %v461
  %v2490 = vunpack.c.l.b16 %v462
  %v2491 = vunpack.c.l.b16 %v463
  %v2492 = vunpack.c.l.b16 %v464
  %v2493 = vunpack.c.l.b16 %v465
  %v2494 = vunpack.c.l.b16 %v466
  %v2495 = vunpack.c.l.b16 %v467
  %v2496 = vunpack.c.l.b16 %v468
  %v2497 = vunpack.c.l.b16 %v469
  %v2498 = vunpack.c.l.b16 %v470
  %v2499 = vunpack.c.l.b16 %v471
  %v2500 = vunpack.c.l.b16 %v472
  %v2501 = vunpack.c.l.b16 %v473
  %v2502 = vunpack.c.l.b16 %v474
  %v2503 = vunpack.c.l.b16 %v475
  %v2504 = vunpack.c.l.b16 %v476
  %v2505 = vunpack.c.l.b16 %v477
  %v2506 = vunpack.c.l.b16 %v478
  %v2507 = vunpack.c.l.b16 %v479
  %v2508 = vunpack.c.l.b16 %v480
  %v2509 = vunpack.c.l.b16 %v481
  %v2510 = vunpack.c.l.b16 %v482
  %v2511 = vunpack.c.l.b16 %v483
  %v2512 = vpack.c.b16 %v2427, %v2426
  %v2513 = vpack.c.b16 %v2429, %v2428
  %v2514 = vpack.c.b16 %v2431, %v2430
  %v2515 = vpack.c.b16 %v2433, %v2432
  %v2516 = vpack.c.b16 %v2435, %v2434
  %v2517 = vpack.c.b16 %v2437, %v2436
  %v2518 = vpack.c.b16 %v2439, %v2438
  %v2519 = vpack.c.b16 %v2441, %v2440
  %v2520 = vpack.c.b16 %v2443, %v2442
  %v2521 = vpack.c.b16 %v2445, %v2444
  %v2522 = vpack.c.b16 %v2447, %v2446
  %v2523 = vpack.c.b16 %v2449, %v2448
  %v2524 = vpack.c.b16 %v2451, %v2450
  %v2525 = vpack.c.b16 %v2453, %v2452
  %v2526 = vpack.c.b16 %v2455, %v2454
  %v2527 = vpack.c.b16 %v2457, %v2456
  %v2528 = vpack.c.b16 %v2459, %v2458
  %v2529 = vpack.c.b16 %v2461, %v2460
  %v2530 = vpack.c.b16 %v2463, %v2462
  %v2531 = vpack.c.b16 %v2465, %v2464
  %v2532 = vpack.c.b16 %v2467, %v2466
  %v2533 = vpack.c.b16 %v2469, %v2468
  %v2534 = vpack.c.b16 %v2471, %v2470
  %v2535 = vpack.c.b16 %v2473, %v2472
  %v2536 = vpack.c.b16 %v2475, %v2474
  %v2537 = vpack.c.b16 %v2477, %v2476
  %v2538 = vpack.c.b16 %v2479, %v2478
  %v2539 = vpack.c.b16 %v2481, %v2480
  %v2540 = vpack.c.b16 %v2483, %v2482
  %v2541 = vpack.c.b16 %v2485, %v2484
  %v2542 = vpack.c.b16 %v2487, %v2486
  %v2543 = vpack.c.b16 %v2489, %v2488
  %v2544 = vpack.c.b16 %v2491, %v2490
  %v2545 = vpack.c.b16 %v2493, %v2492
  %v2546 = vpack.c.b16 %v2495, %v2494
  %v2547 = vpack.c.b16 %v2497, %v2496
  %v2548 = vpack.c.b16 %v2499, %v2498
  %v2549 = vpack.c.b16 %v2501, %v2500
  %v2550 = vpack.c.b16 %v2503, %v2502
  %v2551 = vpack.c.b16 %v2505, %v2504
  %v2552 = vpack.c.b16 %v2507, %v2506
  %v2553 = vpack.c.b16 %v2509, %v2508
  %v2554 = vpack.c.b16 %v2511, %v2510
  %vm2597 = vcmask 375808
  %v2599 = vsel %vm2597, %v1641, 0
  %v2602 = vsel %vm2597, %v1647, 0
  %v2605 = vsel %vm2597, %v1653, 0
  %v2608 = vsel %vm2597, %v1659, 0
  %v2611 = vsel %vm2597, %v1665, 0
  %v2614 = vsel %vm2597, %v1671, 0
  %v2617 = vsel %vm2597, %v1677, 0
  %v2620 = vsel %vm2597, %v1683, 0
  %v2623 = vsel %vm2597, %v1689, 0
  %v2626 = vsel %vm2597, %v1695, 0
  %v2629 = vsel %vm2597, %v1701, 0
  %v2632 = vsel %vm2597, %v1707, 0
  %v2635 = vsel %vm2597, %v1713, 0
  %v2638 = vsel %vm2597, %v1719, 0
  %v2641 = vsel %vm2597, %v1725, 0
  %v2644 = vsel %vm2597, %v1731, 0
  %v2647 = vsel %vm2597, %v1737, 0
  %v2650 = vsel %vm2597, %v1743, 0
  %v2653 = vsel %vm2597, %v1749, 0
  %v2656 = vsel %vm2597, %v1755, 0
  %v2659 = vsel %vm2597, %v1761, 0
  %v2662 = vsel %vm2597, %v1767, 0
  %v2665 = vsel %vm2597, %v1773, 0
  %v2668 = vsel %vm2597, %v1779, 0
  %v2671 = vsel %vm2597, %v1785, 0
  %v2674 = vsel %vm2597, %v1791, 0
  %v2677 = vsel %vm2597, %v1797, 0
  %v2680 = vsel %vm2597, %v1803, 0
  %v2683 = vsel %vm2597, %v1809, 0
  %v2686 = vsel %vm2597, %v1815, 0
  %v2689 = vsel %vm2597, %v1821, 0
  %v2692 = vsel %vm2597, %v1827, 0
  %v2695 = vsel %vm2597, %v1833, 0
  %v2698 = vsel %vm2597, %v1839, 0
  %v2701 = vsel %vm2597, %v1845, 0
  %v2704 = vsel %vm2597, %v1851, 0
  %v2707 = vsel %vm2597, %v1857, 0
  %v2710 = vsel %vm2597, %v1863, 0
  %v2713 = vsel %vm2597, %v1869, 0
  %v2716 = vsel %vm2597, %v1875, 0
  %v2719 = vsel %vm2597, %v1881, 0
  %v2722 = vsel %vm2597, %v1887, 0
  %v2725 = vsel %vm2597, %v1893, 0
  %v2728 = vsel %vm2597, %v1899, 0
  %v2731 = vsel %vm2597, %v1905, 0
  %v2734 = vsel %vm2597, %v1911, 0
  %v2737 = vsel %vm2597, %v1917, 0
  %v2740 = vsel %vm2597, %v1923, 0
  %v2743 = vsel %vm2597, %v1929, 0
  %v2746 = vsel %vm2597, %v1935, 0
  %v2749 = vsel %vm2597, %v1941, 0
  %v2752 = vsel %vm2597, %v1947, 0
  %v2755 = vsel %vm2597, %v1953, 0
  %v2758 = vsel %vm2597, %v1959, 0
  %v2761 = vsel %vm2597, %v1965, 0
  %v2764 = vsel %vm2597, %v1971, 0
  %v2767 = vsel %vm2597, %v1977, 0
  %v2770 = vsel %vm2597, %v1983, 0
  %v2773 = vsel %vm2597, %v1989, 0
  %v2776 = vsel %vm2597, %v1995, 0
  %v2779 = vsel %vm2597, %v2001, 0
  %v2782 = vsel %vm2597, %v2007, 0
  %v2785 = vsel %vm2597, %v2013, 0
  %v2788 = vsel %vm2597, %v2019, 0
  %vm2790 = vcmask 1046528
  %v2792 = vsel %vm2790, %v2554, 0
  %2794 = vmatprep.subr.bf16.mxu0 0
  %2795 = vmatpush1.bf16.msra.mxu0 %v2519
  %2796 = vmatprep.subr.bf16.mxu0 0
  %2797 = vmatpush1.bf16.msra.mxu0 %v2518
  %2798 = vmatprep.subr.bf16.mxu0 0
  %2799 = vmatpush1.bf16.msra.mxu0 %v2517
  %2800 = vmatprep.subr.bf16.mxu0 0
  %2801 = vmatpush1.bf16.msra.mxu0 %v2516
  %2802 = vmatprep.subr.bf16.mxu0 0
  %2803 = vmatpush1.bf16.msra.mxu0 %v2515
  %2804 = vmatprep.subr.bf16.mxu0 0
  %2805 = vmatpush1.bf16.msra.mxu0 %v2514
  %2806 = vmatprep.subr.bf16.mxu0 0
  %2807 = vmatpush1.bf16.msra.mxu0 %v2513
  %2808 = vmatprep.subr.bf16.mxu0 0
  %2809 = vmatpush1.bf16.msra.mxu0 %v2512
  %2810 = vmatprep.subr.bf16.mxu0 0
  %2811 = vmatpush2.bf16.msra.mxu0 %v2527
  %2812 = vmatprep.subr.bf16.mxu0 0
  %2813 = vmatpush2.bf16.msra.mxu0 %v2526
  %2814 = vmatprep.subr.bf16.mxu0 0
  %2815 = vmatpush2.bf16.msra.mxu0 %v2525
  %2816 = vmatprep.subr.bf16.mxu0 0
  %2817 = vmatpush2.bf16.msra.mxu0 %v2524
  %2818 = vmatprep.subr.bf16.mxu0 0
  %2819 = vmatpush2.bf16.msra.mxu0 %v2523
  %2820 = vmatprep.subr.bf16.mxu0 0
  %2821 = vmatpush2.bf16.msra.mxu0 %v2522
  %2822 = vmatprep.subr.bf16.mxu0 0
  %2823 = vmatpush2.bf16.msra.mxu0 %v2521
  %2824 = vmatprep.subr.bf16.mxu0 0
  %2825 = vmatpush2.bf16.msra.mxu0 %v2520
  %2826 = vmatprep.mubr.bf16.mxu0 %v1637
  %2827 = vmatmul.mubr.bf16.gmra.mxu0 %v1636
  %v2828 = vpop.f32.mrf.mxu0
  %v2829 = vadd.f32 0.0, %v2828
  %v2830 = vpop.f32.mrf.mxu0
  %v2831 = vpop.f32.mrf.mxu0
  %v2832 = vadd.f32 0.0, %v2831
  %v2833 = vpop.f32.mrf.mxu0
  %2834 = vmatprep.mubr.bf16.mxu0 %v1643
  %2835 = vmatmul.mubr.bf16.gmra.mxu0 %v1642
  %v2836 = vpop.f32.mrf.mxu0
  %v2837 = vadd.f32 0.0, %v2836
  %v2838 = vpop.f32.mrf.mxu0
  %v2839 = vpop.f32.mrf.mxu0
  %v2840 = vadd.f32 0.0, %v2839
  %v2841 = vpop.f32.mrf.mxu0
  %2842 = vmatprep.mubr.bf16.mxu0 %v1649
  %2843 = vmatmul.mubr.bf16.gmra.mxu0 %v1648
  %v2844 = vpop.f32.mrf.mxu0
  %v2845 = vadd.f32 0.0, %v2844
  %v2846 = vpop.f32.mrf.mxu0
  %v2847 = vpop.f32.mrf.mxu0
  %v2848 = vadd.f32 0.0, %v2847
  %v2849 = vpop.f32.mrf.mxu0
  %2850 = vmatprep.mubr.bf16.mxu0 %v1655
  %2851 = vmatmul.mubr.bf16.gmra.mxu0 %v1654
  %v2852 = vpop.f32.mrf.mxu0
  %v2853 = vadd.f32 0.0, %v2852
  %v2854 = vpop.f32.mrf.mxu0
  %v2855 = vpop.f32.mrf.mxu0
  %v2856 = vadd.f32 0.0, %v2855
  %v2857 = vpop.f32.mrf.mxu0
  %2858 = vmatprep.mubr.bf16.mxu0 %v1661
  %2859 = vmatmul.mubr.bf16.gmra.mxu0 %v1660
  %v2860 = vpop.f32.mrf.mxu0
  %v2861 = vadd.f32 0.0, %v2860
  %v2862 = vpop.f32.mrf.mxu0
  %v2863 = vpop.f32.mrf.mxu0
  %v2864 = vadd.f32 0.0, %v2863
  %v2865 = vpop.f32.mrf.mxu0
  %2866 = vmatprep.mubr.bf16.mxu0 %v1667
  %2867 = vmatmul.mubr.bf16.gmra.mxu0 %v1666
  %v2868 = vpop.f32.mrf.mxu0
  %v2869 = vadd.f32 0.0, %v2868
  %v2870 = vpop.f32.mrf.mxu0
  %v2871 = vpop.f32.mrf.mxu0
  %v2872 = vadd.f32 0.0, %v2871
  %v2873 = vpop.f32.mrf.mxu0
  %2874 = vmatprep.mubr.bf16.mxu0 %v1673
  %2875 = vmatmul.mubr.bf16.gmra.mxu0 %v1672
  %v2876 = vpop.f32.mrf.mxu0
  %v2877 = vadd.f32 0.0, %v2876
  %v2878 = vpop.f32.mrf.mxu0
  %v2879 = vpop.f32.mrf.mxu0
  %v2880 = vadd.f32 0.0, %v2879
  %v2881 = vpop.f32.mrf.mxu0
  %2882 = vmatprep.mubr.bf16.mxu0 %v1679
  %2883 = vmatmul.mubr.bf16.gmra.mxu0 %v1678
  %v2884 = vpop.f32.mrf.mxu0
  %v2885 = vadd.f32 0.0, %v2884
  %v2886 = vpop.f32.mrf.mxu0
  %v2887 = vpop.f32.mrf.mxu0
  %v2888 = vadd.f32 0.0, %v2887
  %v2889 = vpop.f32.mrf.mxu0
  %2890 = vmatprep.mubr.bf16.mxu0 %v1685
  %2891 = vmatmul.mubr.bf16.gmra.mxu0 %v1684
  %v2892 = vpop.f32.mrf.mxu0
  %v2893 = vadd.f32 0.0, %v2892
  %v2894 = vpop.f32.mrf.mxu0
  %v2895 = vpop.f32.mrf.mxu0
  %v2896 = vadd.f32 0.0, %v2895
  %v2897 = vpop.f32.mrf.mxu0
  %2898 = vmatprep.mubr.bf16.mxu0 %v1691
  %2899 = vmatmul.mubr.bf16.gmra.mxu0 %v1690
  %v2900 = vpop.f32.mrf.mxu0
  %v2901 = vadd.f32 0.0, %v2900
  %v2902 = vpop.f32.mrf.mxu0
  %v2903 = vpop.f32.mrf.mxu0
  %v2904 = vadd.f32 0.0, %v2903
  %v2905 = vpop.f32.mrf.mxu0
  %2906 = vmatprep.mubr.bf16.mxu0 %v1697
  %2907 = vmatmul.mubr.bf16.gmra.mxu0 %v1696
  %v2908 = vpop.f32.mrf.mxu0
  %v2909 = vadd.f32 0.0, %v2908
  %v2910 = vpop.f32.mrf.mxu0
  %v2911 = vpop.f32.mrf.mxu0
  %v2912 = vadd.f32 0.0, %v2911
  %v2913 = vpop.f32.mrf.mxu0
  %2914 = vmatprep.mubr.bf16.mxu0 %v1703
  %2915 = vmatmul.mubr.bf16.gmra.mxu0 %v1702
  %v2916 = vpop.f32.mrf.mxu0
  %v2917 = vadd.f32 0.0, %v2916
  %v2918 = vpop.f32.mrf.mxu0
  %v2919 = vpop.f32.mrf.mxu0
  %v2920 = vadd.f32 0.0, %v2919
  %v2921 = vpop.f32.mrf.mxu0
  %2922 = vmatprep.mubr.bf16.mxu0 %v1709
  %2923 = vmatmul.mubr.bf16.gmra.mxu0 %v1708
  %v2924 = vpop.f32.mrf.mxu0
  %v2925 = vadd.f32 0.0, %v2924
  %v2926 = vpop.f32.mrf.mxu0
  %v2927 = vpop.f32.mrf.mxu0
  %v2928 = vadd.f32 0.0, %v2927
  %v2929 = vpop.f32.mrf.mxu0
  %2930 = vmatprep.mubr.bf16.mxu0 %v1715
  %2931 = vmatmul.mubr.bf16.gmra.mxu0 %v1714
  %v2932 = vpop.f32.mrf.mxu0
  %v2933 = vadd.f32 0.0, %v2932
  %v2934 = vpop.f32.mrf.mxu0
  %v2935 = vpop.f32.mrf.mxu0
  %v2936 = vadd.f32 0.0, %v2935
  %v2937 = vpop.f32.mrf.mxu0
  %2938 = vmatprep.mubr.bf16.mxu0 %v1721
  %2939 = vmatmul.mubr.bf16.gmra.mxu0 %v1720
  %v2940 = vpop.f32.mrf.mxu0
  %v2941 = vadd.f32 0.0, %v2940
  %v2942 = vpop.f32.mrf.mxu0
  %v2943 = vpop.f32.mrf.mxu0
  %v2944 = vadd.f32 0.0, %v2943
  %v2945 = vpop.f32.mrf.mxu0
  %2946 = vmatprep.mubr.bf16.mxu0 %v1727
  %2947 = vmatmul.mubr.bf16.gmra.mxu0 %v1726
  %v2948 = vpop.f32.mrf.mxu0
  %v2949 = vadd.f32 0.0, %v2948
  %v2950 = vpop.f32.mrf.mxu0
  %v2951 = vpop.f32.mrf.mxu0
  %v2952 = vadd.f32 0.0, %v2951
  %v2953 = vpop.f32.mrf.mxu0
  %2954 = vmatprep.mubr.bf16.mxu0 %v1733
  %2955 = vmatmul.mubr.bf16.gmra.mxu0 %v1732
  %v2956 = vpop.f32.mrf.mxu0
  %v2957 = vadd.f32 0.0, %v2956
  %v2958 = vpop.f32.mrf.mxu0
  %v2959 = vpop.f32.mrf.mxu0
  %v2960 = vadd.f32 0.0, %v2959
  %v2961 = vpop.f32.mrf.mxu0
  %2962 = vmatprep.mubr.bf16.mxu0 %v1739
  %2963 = vmatmul.mubr.bf16.gmra.mxu0 %v1738
  %v2964 = vpop.f32.mrf.mxu0
  %v2965 = vadd.f32 0.0, %v2964
  %v2966 = vpop.f32.mrf.mxu0
  %v2967 = vpop.f32.mrf.mxu0
  %v2968 = vadd.f32 0.0, %v2967
  %v2969 = vpop.f32.mrf.mxu0
  %2970 = vmatprep.mubr.bf16.mxu0 %v1745
  %2971 = vmatmul.mubr.bf16.gmra.mxu0 %v1744
  %v2972 = vpop.f32.mrf.mxu0
  %v2973 = vadd.f32 0.0, %v2972
  %v2974 = vpop.f32.mrf.mxu0
  %v2975 = vpop.f32.mrf.mxu0
  %v2976 = vadd.f32 0.0, %v2975
  %v2977 = vpop.f32.mrf.mxu0
  %2978 = vmatprep.mubr.bf16.mxu0 %v1751
  %2979 = vmatmul.mubr.bf16.gmra.mxu0 %v1750
  %v2980 = vpop.f32.mrf.mxu0
  %v2981 = vadd.f32 0.0, %v2980
  %v2982 = vpop.f32.mrf.mxu0
  %v2983 = vpop.f32.mrf.mxu0
  %v2984 = vadd.f32 0.0, %v2983
  %v2985 = vpop.f32.mrf.mxu0
  %2986 = vmatprep.mubr.bf16.mxu0 %v1757
  %2987 = vmatmul.mubr.bf16.gmra.mxu0 %v1756
  %v2988 = vpop.f32.mrf.mxu0
  %v2989 = vadd.f32 0.0, %v2988
  %v2990 = vpop.f32.mrf.mxu0
  %v2991 = vpop.f32.mrf.mxu0
  %v2992 = vadd.f32 0.0, %v2991
  %v2993 = vpop.f32.mrf.mxu0
  %2994 = vmatprep.mubr.bf16.mxu0 %v1763
  %2995 = vmatmul.mubr.bf16.gmra.mxu0 %v1762
  %v2996 = vpop.f32.mrf.mxu0
  %v2997 = vadd.f32 0.0, %v2996
  %v2998 = vpop.f32.mrf.mxu0
  %v2999 = vpop.f32.mrf.mxu0
  %v3000 = vadd.f32 0.0, %v2999
  %v3001 = vpop.f32.mrf.mxu0
  %3002 = vmatprep.mubr.bf16.mxu0 %v1769
  %3003 = vmatmul.mubr.bf16.gmra.mxu0 %v1768
  %v3004 = vpop.f32.mrf.mxu0
  %v3005 = vadd.f32 0.0, %v3004
  %v3006 = vpop.f32.mrf.mxu0
  %v3007 = vpop.f32.mrf.mxu0
  %v3008 = vadd.f32 0.0, %v3007
  %v3009 = vpop.f32.mrf.mxu0
  %3010 = vmatprep.mubr.bf16.mxu0 %v1775
  %3011 = vmatmul.mubr.bf16.gmra.mxu0 %v1774
  %v3012 = vpop.f32.mrf.mxu0
  %v3013 = vadd.f32 0.0, %v3012
  %v3014 = vpop.f32.mrf.mxu0
  %v3015 = vpop.f32.mrf.mxu0
  %v3016 = vadd.f32 0.0, %v3015
  %v3017 = vpop.f32.mrf.mxu0
  %3018 = vmatprep.mubr.bf16.mxu0 %v1781
  %3019 = vmatmul.mubr.bf16.gmra.mxu0 %v1780
  %v3020 = vpop.f32.mrf.mxu0
  %v3021 = vadd.f32 0.0, %v3020
  %v3022 = vpop.f32.mrf.mxu0
  %v3023 = vpop.f32.mrf.mxu0
  %v3024 = vadd.f32 0.0, %v3023
  %v3025 = vpop.f32.mrf.mxu0
  %3026 = vmatprep.mubr.bf16.mxu0 %v1787
  %3027 = vmatmul.mubr.bf16.gmra.mxu0 %v1786
  %v3028 = vpop.f32.mrf.mxu0
  %v3029 = vadd.f32 0.0, %v3028
  %v3030 = vpop.f32.mrf.mxu0
  %v3031 = vpop.f32.mrf.mxu0
  %v3032 = vadd.f32 0.0, %v3031
  %v3033 = vpop.f32.mrf.mxu0
  %3034 = vmatprep.mubr.bf16.mxu0 %v1793
  %3035 = vmatmul.mubr.bf16.gmra.mxu0 %v1792
  %v3036 = vpop.f32.mrf.mxu0
  %v3037 = vadd.f32 0.0, %v3036
  %v3038 = vpop.f32.mrf.mxu0
  %v3039 = vpop.f32.mrf.mxu0
  %v3040 = vadd.f32 0.0, %v3039
  %v3041 = vpop.f32.mrf.mxu0
  %3042 = vmatprep.mubr.bf16.mxu0 %v1799
  %3043 = vmatmul.mubr.bf16.gmra.mxu0 %v1798
  %v3044 = vpop.f32.mrf.mxu0
  %v3045 = vadd.f32 0.0, %v3044
  %v3046 = vpop.f32.mrf.mxu0
  %v3047 = vpop.f32.mrf.mxu0
  %v3048 = vadd.f32 0.0, %v3047
  %v3049 = vpop.f32.mrf.mxu0
  %3050 = vmatprep.mubr.bf16.mxu0 %v1805
  %3051 = vmatmul.mubr.bf16.gmra.mxu0 %v1804
  %v3052 = vpop.f32.mrf.mxu0
  %v3053 = vadd.f32 0.0, %v3052
  %v3054 = vpop.f32.mrf.mxu0
  %v3055 = vpop.f32.mrf.mxu0
  %v3056 = vadd.f32 0.0, %v3055
  %v3057 = vpop.f32.mrf.mxu0
  %3058 = vmatprep.mubr.bf16.mxu0 %v1811
  %3059 = vmatmul.mubr.bf16.gmra.mxu0 %v1810
  %v3060 = vpop.f32.mrf.mxu0
  %v3061 = vadd.f32 0.0, %v3060
  %v3062 = vpop.f32.mrf.mxu0
  %v3063 = vpop.f32.mrf.mxu0
  %v3064 = vadd.f32 0.0, %v3063
  %v3065 = vpop.f32.mrf.mxu0
  %3066 = vmatprep.mubr.bf16.mxu0 %v1817
  %3067 = vmatmul.mubr.bf16.gmra.mxu0 %v1816
  %v3068 = vpop.f32.mrf.mxu0
  %v3069 = vadd.f32 0.0, %v3068
  %v3070 = vpop.f32.mrf.mxu0
  %v3071 = vpop.f32.mrf.mxu0
  %v3072 = vadd.f32 0.0, %v3071
  %v3073 = vpop.f32.mrf.mxu0
  %3074 = vmatprep.mubr.bf16.mxu0 %v1823
  %3075 = vmatmul.mubr.bf16.gmra.mxu0 %v1822
  %v3076 = vpop.f32.mrf.mxu0
  %v3077 = vadd.f32 0.0, %v3076
  %v3078 = vpop.f32.mrf.mxu0
  %v3079 = vpop.f32.mrf.mxu0
  %v3080 = vadd.f32 0.0, %v3079
  %v3081 = vpop.f32.mrf.mxu0
  %3082 = vmatprep.mubr.bf16.mxu0 %v1829
  %3083 = vmatmul.mubr.bf16.gmra.mxu0 %v1828
  %v3084 = vpop.f32.mrf.mxu0
  %v3085 = vadd.f32 0.0, %v3084
  %v3086 = vpop.f32.mrf.mxu0
  %v3087 = vpop.f32.mrf.mxu0
  %v3088 = vadd.f32 0.0, %v3087
  %v3089 = vpop.f32.mrf.mxu0
  %3090 = vmatprep.mubr.bf16.mxu0 %v1835
  %3091 = vmatmul.mubr.bf16.gmra.mxu0 %v1834
  %v3092 = vpop.f32.mrf.mxu0
  %v3093 = vadd.f32 0.0, %v3092
  %v3094 = vpop.f32.mrf.mxu0
  %v3095 = vpop.f32.mrf.mxu0
  %v3096 = vadd.f32 0.0, %v3095
  %v3097 = vpop.f32.mrf.mxu0
  %3098 = vmatprep.mubr.bf16.mxu0 %v1841
  %3099 = vmatmul.mubr.bf16.gmra.mxu0 %v1840
  %v3100 = vpop.f32.mrf.mxu0
  %v3101 = vadd.f32 0.0, %v3100
  %v3102 = vpop.f32.mrf.mxu0
  %v3103 = vpop.f32.mrf.mxu0
  %v3104 = vadd.f32 0.0, %v3103
  %v3105 = vpop.f32.mrf.mxu0
  %3106 = vmatprep.mubr.bf16.mxu0 %v1847
  %3107 = vmatmul.mubr.bf16.gmra.mxu0 %v1846
  %v3108 = vpop.f32.mrf.mxu0
  %v3109 = vadd.f32 0.0, %v3108
  %v3110 = vpop.f32.mrf.mxu0
  %v3111 = vpop.f32.mrf.mxu0
  %v3112 = vadd.f32 0.0, %v3111
  %v3113 = vpop.f32.mrf.mxu0
  %3114 = vmatprep.mubr.bf16.mxu0 %v1853
  %3115 = vmatmul.mubr.bf16.gmra.mxu0 %v1852
  %v3116 = vpop.f32.mrf.mxu0
  %v3117 = vadd.f32 0.0, %v3116
  %v3118 = vpop.f32.mrf.mxu0
  %v3119 = vpop.f32.mrf.mxu0
  %v3120 = vadd.f32 0.0, %v3119
  %v3121 = vpop.f32.mrf.mxu0
  %3122 = vmatprep.mubr.bf16.mxu0 %v1859
  %3123 = vmatmul.mubr.bf16.gmra.mxu0 %v1858
  %v3124 = vpop.f32.mrf.mxu0
  %v3125 = vadd.f32 0.0, %v3124
  %v3126 = vpop.f32.mrf.mxu0
  %v3127 = vpop.f32.mrf.mxu0
  %v3128 = vadd.f32 0.0, %v3127
  %v3129 = vpop.f32.mrf.mxu0
  %3130 = vmatprep.mubr.bf16.mxu0 %v1865
  %3131 = vmatmul.mubr.bf16.gmra.mxu0 %v1864
  %v3132 = vpop.f32.mrf.mxu0
  %v3133 = vadd.f32 0.0, %v3132
  %v3134 = vpop.f32.mrf.mxu0
  %v3135 = vpop.f32.mrf.mxu0
  %v3136 = vadd.f32 0.0, %v3135
  %v3137 = vpop.f32.mrf.mxu0
  %3138 = vmatprep.mubr.bf16.mxu0 %v1871
  %3139 = vmatmul.mubr.bf16.gmra.mxu0 %v1870
  %v3140 = vpop.f32.mrf.mxu0
  %v3141 = vadd.f32 0.0, %v3140
  %v3142 = vpop.f32.mrf.mxu0
  %v3143 = vpop.f32.mrf.mxu0
  %v3144 = vadd.f32 0.0, %v3143
  %v3145 = vpop.f32.mrf.mxu0
  %3146 = vmatprep.mubr.bf16.mxu0 %v1877
  %3147 = vmatmul.mubr.bf16.gmra.mxu0 %v1876
  %v3148 = vpop.f32.mrf.mxu0
  %v3149 = vadd.f32 0.0, %v3148
  %v3150 = vpop.f32.mrf.mxu0
  %v3151 = vpop.f32.mrf.mxu0
  %v3152 = vadd.f32 0.0, %v3151
  %v3153 = vpop.f32.mrf.mxu0
  %3154 = vmatprep.mubr.bf16.mxu0 %v1883
  %3155 = vmatmul.mubr.bf16.gmra.mxu0 %v1882
  %v3156 = vpop.f32.mrf.mxu0
  %v3157 = vadd.f32 0.0, %v3156
  %v3158 = vpop.f32.mrf.mxu0
  %v3159 = vpop.f32.mrf.mxu0
  %v3160 = vadd.f32 0.0, %v3159
  %v3161 = vpop.f32.mrf.mxu0
  %3162 = vmatprep.mubr.bf16.mxu0 %v1889
  %3163 = vmatmul.mubr.bf16.gmra.mxu0 %v1888
  %v3164 = vpop.f32.mrf.mxu0
  %v3165 = vadd.f32 0.0, %v3164
  %v3166 = vpop.f32.mrf.mxu0
  %v3167 = vpop.f32.mrf.mxu0
  %v3168 = vadd.f32 0.0, %v3167
  %v3169 = vpop.f32.mrf.mxu0
  %3170 = vmatprep.mubr.bf16.mxu0 %v1895
  %3171 = vmatmul.mubr.bf16.gmra.mxu0 %v1894
  %v3172 = vpop.f32.mrf.mxu0
  %v3173 = vadd.f32 0.0, %v3172
  %v3174 = vpop.f32.mrf.mxu0
  %v3175 = vpop.f32.mrf.mxu0
  %v3176 = vadd.f32 0.0, %v3175
  %v3177 = vpop.f32.mrf.mxu0
  %3178 = vmatprep.mubr.bf16.mxu0 %v1901
  %3179 = vmatmul.mubr.bf16.gmra.mxu0 %v1900
  %v3180 = vpop.f32.mrf.mxu0
  %v3181 = vadd.f32 0.0, %v3180
  %v3182 = vpop.f32.mrf.mxu0
  %v3183 = vpop.f32.mrf.mxu0
  %v3184 = vadd.f32 0.0, %v3183
  %v3185 = vpop.f32.mrf.mxu0
  %3186 = vmatprep.mubr.bf16.mxu0 %v1907
  %3187 = vmatmul.mubr.bf16.gmra.mxu0 %v1906
  %v3188 = vpop.f32.mrf.mxu0
  %v3189 = vadd.f32 0.0, %v3188
  %v3190 = vpop.f32.mrf.mxu0
  %v3191 = vpop.f32.mrf.mxu0
  %v3192 = vadd.f32 0.0, %v3191
  %v3193 = vpop.f32.mrf.mxu0
  %3194 = vmatprep.mubr.bf16.mxu0 %v1913
  %3195 = vmatmul.mubr.bf16.gmra.mxu0 %v1912
  %v3196 = vpop.f32.mrf.mxu0
  %v3197 = vadd.f32 0.0, %v3196
  %v3198 = vpop.f32.mrf.mxu0
  %v3199 = vpop.f32.mrf.mxu0
  %v3200 = vadd.f32 0.0, %v3199
  %v3201 = vpop.f32.mrf.mxu0
  %3202 = vmatprep.mubr.bf16.mxu0 %v1919
  %3203 = vmatmul.mubr.bf16.gmra.mxu0 %v1918
  %v3204 = vpop.f32.mrf.mxu0
  %v3205 = vadd.f32 0.0, %v3204
  %v3206 = vpop.f32.mrf.mxu0
  %v3207 = vpop.f32.mrf.mxu0
  %v3208 = vadd.f32 0.0, %v3207
  %v3209 = vpop.f32.mrf.mxu0
  %3210 = vmatprep.mubr.bf16.mxu0 %v1925
  %3211 = vmatmul.mubr.bf16.gmra.mxu0 %v1924
  %v3212 = vpop.f32.mrf.mxu0
  %v3213 = vadd.f32 0.0, %v3212
  %v3214 = vpop.f32.mrf.mxu0
  %v3215 = vpop.f32.mrf.mxu0
  %v3216 = vadd.f32 0.0, %v3215
  %v3217 = vpop.f32.mrf.mxu0
  %3218 = vmatprep.mubr.bf16.mxu0 %v1931
  %3219 = vmatmul.mubr.bf16.gmra.mxu0 %v1930
  %v3220 = vpop.f32.mrf.mxu0
  %v3221 = vadd.f32 0.0, %v3220
  %v3222 = vpop.f32.mrf.mxu0
  %v3223 = vpop.f32.mrf.mxu0
  %v3224 = vadd.f32 0.0, %v3223
  %v3225 = vpop.f32.mrf.mxu0
  %3226 = vmatprep.mubr.bf16.mxu0 %v1937
  %3227 = vmatmul.mubr.bf16.gmra.mxu0 %v1936
  %v3228 = vpop.f32.mrf.mxu0
  %v3229 = vadd.f32 0.0, %v3228
  %v3230 = vpop.f32.mrf.mxu0
  %v3231 = vpop.f32.mrf.mxu0
  %v3232 = vadd.f32 0.0, %v3231
  %v3233 = vpop.f32.mrf.mxu0
  %3234 = vmatprep.mubr.bf16.mxu0 %v1943
  %3235 = vmatmul.mubr.bf16.gmra.mxu0 %v1942
  %v3236 = vpop.f32.mrf.mxu0
  %v3237 = vadd.f32 0.0, %v3236
  %v3238 = vpop.f32.mrf.mxu0
  %v3239 = vpop.f32.mrf.mxu0
  %v3240 = vadd.f32 0.0, %v3239
  %v3241 = vpop.f32.mrf.mxu0
  %3242 = vmatprep.mubr.bf16.mxu0 %v1949
  %3243 = vmatmul.mubr.bf16.gmra.mxu0 %v1948
  %v3244 = vpop.f32.mrf.mxu0
  %v3245 = vadd.f32 0.0, %v3244
  %v3246 = vpop.f32.mrf.mxu0
  %v3247 = vpop.f32.mrf.mxu0
  %v3248 = vadd.f32 0.0, %v3247
  %v3249 = vpop.f32.mrf.mxu0
  %3250 = vmatprep.mubr.bf16.mxu0 %v1955
  %3251 = vmatmul.mubr.bf16.gmra.mxu0 %v1954
  %v3252 = vpop.f32.mrf.mxu0
  %v3253 = vadd.f32 0.0, %v3252
  %v3254 = vpop.f32.mrf.mxu0
  %v3255 = vpop.f32.mrf.mxu0
  %v3256 = vadd.f32 0.0, %v3255
  %v3257 = vpop.f32.mrf.mxu0
  %3258 = vmatprep.mubr.bf16.mxu0 %v1961
  %3259 = vmatmul.mubr.bf16.gmra.mxu0 %v1960
  %v3260 = vpop.f32.mrf.mxu0
  %v3261 = vadd.f32 0.0, %v3260
  %v3262 = vpop.f32.mrf.mxu0
  %v3263 = vpop.f32.mrf.mxu0
  %v3264 = vadd.f32 0.0, %v3263
  %v3265 = vpop.f32.mrf.mxu0
  %3266 = vmatprep.mubr.bf16.mxu0 %v1967
  %3267 = vmatmul.mubr.bf16.gmra.mxu0 %v1966
  %v3268 = vpop.f32.mrf.mxu0
  %v3269 = vadd.f32 0.0, %v3268
  %v3270 = vpop.f32.mrf.mxu0
  %v3271 = vpop.f32.mrf.mxu0
  %v3272 = vadd.f32 0.0, %v3271
  %v3273 = vpop.f32.mrf.mxu0
  %3274 = vmatprep.mubr.bf16.mxu0 %v1973
  %3275 = vmatmul.mubr.bf16.gmra.mxu0 %v1972
  %v3276 = vpop.f32.mrf.mxu0
  %v3277 = vadd.f32 0.0, %v3276
  %v3278 = vpop.f32.mrf.mxu0
  %v3279 = vpop.f32.mrf.mxu0
  %v3280 = vadd.f32 0.0, %v3279
  %v3281 = vpop.f32.mrf.mxu0
  %3282 = vmatprep.mubr.bf16.mxu0 %v1979
  %3283 = vmatmul.mubr.bf16.gmra.mxu0 %v1978
  %v3284 = vpop.f32.mrf.mxu0
  %v3285 = vadd.f32 0.0, %v3284
  %v3286 = vpop.f32.mrf.mxu0
  %v3287 = vpop.f32.mrf.mxu0
  %v3288 = vadd.f32 0.0, %v3287
  %v3289 = vpop.f32.mrf.mxu0
  %3290 = vmatprep.mubr.bf16.mxu0 %v1985
  %3291 = vmatmul.mubr.bf16.gmra.mxu0 %v1984
  %v3292 = vpop.f32.mrf.mxu0
  %v3293 = vadd.f32 0.0, %v3292
  %v3294 = vpop.f32.mrf.mxu0
  %v3295 = vpop.f32.mrf.mxu0
  %v3296 = vadd.f32 0.0, %v3295
  %v3297 = vpop.f32.mrf.mxu0
  %3298 = vmatprep.mubr.bf16.mxu0 %v1991
  %3299 = vmatmul.mubr.bf16.gmra.mxu0 %v1990
  %v3300 = vpop.f32.mrf.mxu0
  %v3301 = vadd.f32 0.0, %v3300
  %v3302 = vpop.f32.mrf.mxu0
  %v3303 = vpop.f32.mrf.mxu0
  %v3304 = vadd.f32 0.0, %v3303
  %v3305 = vpop.f32.mrf.mxu0
  %3306 = vmatprep.mubr.bf16.mxu0 %v1997
  %3307 = vmatmul.mubr.bf16.gmra.mxu0 %v1996
  %v3308 = vpop.f32.mrf.mxu0
  %v3309 = vadd.f32 0.0, %v3308
  %v3310 = vpop.f32.mrf.mxu0
  %v3311 = vpop.f32.mrf.mxu0
  %v3312 = vadd.f32 0.0, %v3311
  %v3313 = vpop.f32.mrf.mxu0
  %3314 = vmatprep.mubr.bf16.mxu0 %v2003
  %3315 = vmatmul.mubr.bf16.gmra.mxu0 %v2002
  %v3316 = vpop.f32.mrf.mxu0
  %v3317 = vadd.f32 0.0, %v3316
  %v3318 = vpop.f32.mrf.mxu0
  %v3319 = vpop.f32.mrf.mxu0
  %v3320 = vadd.f32 0.0, %v3319
  %v3321 = vpop.f32.mrf.mxu0
  %3322 = vmatprep.mubr.bf16.mxu0 %v2009
  %3323 = vmatmul.mubr.bf16.gmra.mxu0 %v2008
  %v3324 = vpop.f32.mrf.mxu0
  %v3325 = vadd.f32 0.0, %v3324
  %v3326 = vpop.f32.mrf.mxu0
  %v3327 = vpop.f32.mrf.mxu0
  %v3328 = vadd.f32 0.0, %v3327
  %v3329 = vpop.f32.mrf.mxu0
  %3330 = vmatprep.mubr.bf16.mxu0 %v2015
  %3331 = vmatmul.mubr.bf16.gmra.mxu0 %v2014
  %v3332 = vpop.f32.mrf.mxu0
  %v3333 = vadd.f32 0.0, %v3332
  %v3334 = vpop.f32.mrf.mxu0
  %v3335 = vpop.f32.mrf.mxu0
  %v3336 = vadd.f32 0.0, %v3335
  %v3337 = vpop.f32.mrf.mxu0
  %3338 = vdwg.mxu0
  %3339 = vmatprep.subr.bf16.mxu0 0
  %3340 = vmatpush1.bf16.msra.mxu0 %v2535
  %3341 = vmatprep.subr.bf16.mxu0 0
  %3342 = vmatpush1.bf16.msra.mxu0 %v2534
  %3343 = vmatprep.subr.bf16.mxu0 0
  %3344 = vmatpush1.bf16.msra.mxu0 %v2533
  %3345 = vmatprep.subr.bf16.mxu0 0
  %3346 = vmatpush1.bf16.msra.mxu0 %v2532
  %3347 = vmatprep.subr.bf16.mxu0 0
  %3348 = vmatpush1.bf16.msra.mxu0 %v2531
  %3349 = vmatprep.subr.bf16.mxu0 0
  %3350 = vmatpush1.bf16.msra.mxu0 %v2530
  %3351 = vmatprep.subr.bf16.mxu0 0
  %3352 = vmatpush1.bf16.msra.mxu0 %v2529
  %3353 = vmatprep.subr.bf16.mxu0 0
  %3354 = vmatpush1.bf16.msra.mxu0 %v2528
  %3355 = vmatprep.subr.bf16.mxu0 0
  %3356 = vmatpush2.bf16.msra.mxu0 %v2543
  %3357 = vmatprep.subr.bf16.mxu0 0
  %3358 = vmatpush2.bf16.msra.mxu0 %v2542
  %3359 = vmatprep.subr.bf16.mxu0 0
  %3360 = vmatpush2.bf16.msra.mxu0 %v2541
  %3361 = vmatprep.subr.bf16.mxu0 0
  %3362 = vmatpush2.bf16.msra.mxu0 %v2540
  %3363 = vmatprep.subr.bf16.mxu0 0
  %3364 = vmatpush2.bf16.msra.mxu0 %v2539
  %3365 = vmatprep.subr.bf16.mxu0 0
  %3366 = vmatpush2.bf16.msra.mxu0 %v2538
  %3367 = vmatprep.subr.bf16.mxu0 0
  %3368 = vmatpush2.bf16.msra.mxu0 %v2537
  %3369 = vmatprep.subr.bf16.mxu0 0
  %3370 = vmatpush2.bf16.msra.mxu0 %v2536
  %3371 = vmatprep.mubr.bf16.mxu0 %v1639
  %3372 = vmatmul.mubr.bf16.gmra.mxu0 %v1638
  %v3373 = vpop.f32.mrf.mxu0
  %v3374 = vadd.f32 %v2829, %v3373
  %v3375 = vpop.f32.mrf.mxu0
  %v3376 = vpop.f32.mrf.mxu0
  %v3377 = vadd.f32 %v2832, %v3376
  %v3378 = vpop.f32.mrf.mxu0
  %3379 = vmatprep.mubr.bf16.mxu0 %v1645
  %3380 = vmatmul.mubr.bf16.gmra.mxu0 %v1644
  %v3381 = vpop.f32.mrf.mxu0
  %v3382 = vadd.f32 %v2837, %v3381
  %v3383 = vpop.f32.mrf.mxu0
  %v3384 = vpop.f32.mrf.mxu0
  %v3385 = vadd.f32 %v2840, %v3384
  %v3386 = vpop.f32.mrf.mxu0
  %3387 = vmatprep.mubr.bf16.mxu0 %v1651
  %3388 = vmatmul.mubr.bf16.gmra.mxu0 %v1650
  %v3389 = vpop.f32.mrf.mxu0
  %v3390 = vadd.f32 %v2845, %v3389
  %v3391 = vpop.f32.mrf.mxu0
  %v3392 = vpop.f32.mrf.mxu0
  %v3393 = vadd.f32 %v2848, %v3392
  %v3394 = vpop.f32.mrf.mxu0
  %3395 = vmatprep.mubr.bf16.mxu0 %v1657
  %3396 = vmatmul.mubr.bf16.gmra.mxu0 %v1656
  %v3397 = vpop.f32.mrf.mxu0
  %v3398 = vadd.f32 %v2853, %v3397
  %v3399 = vpop.f32.mrf.mxu0
  %v3400 = vpop.f32.mrf.mxu0
  %v3401 = vadd.f32 %v2856, %v3400
  %v3402 = vpop.f32.mrf.mxu0
  %3403 = vmatprep.mubr.bf16.mxu0 %v1663
  %3404 = vmatmul.mubr.bf16.gmra.mxu0 %v1662
  %v3405 = vpop.f32.mrf.mxu0
  %v3406 = vadd.f32 %v2861, %v3405
  %v3407 = vpop.f32.mrf.mxu0
  %v3408 = vpop.f32.mrf.mxu0
  %v3409 = vadd.f32 %v2864, %v3408
  %v3410 = vpop.f32.mrf.mxu0
  %3411 = vmatprep.mubr.bf16.mxu0 %v1669
  %3412 = vmatmul.mubr.bf16.gmra.mxu0 %v1668
  %v3413 = vpop.f32.mrf.mxu0
  %v3414 = vadd.f32 %v2869, %v3413
  %v3415 = vpop.f32.mrf.mxu0
  %v3416 = vpop.f32.mrf.mxu0
  %v3417 = vadd.f32 %v2872, %v3416
  %v3418 = vpop.f32.mrf.mxu0
  %3419 = vmatprep.mubr.bf16.mxu0 %v1675
  %3420 = vmatmul.mubr.bf16.gmra.mxu0 %v1674
  %v3421 = vpop.f32.mrf.mxu0
  %v3422 = vadd.f32 %v2877, %v3421
  %v3423 = vpop.f32.mrf.mxu0
  %v3424 = vpop.f32.mrf.mxu0
  %v3425 = vadd.f32 %v2880, %v3424
  %v3426 = vpop.f32.mrf.mxu0
  %3427 = vmatprep.mubr.bf16.mxu0 %v1681
  %3428 = vmatmul.mubr.bf16.gmra.mxu0 %v1680
  %v3429 = vpop.f32.mrf.mxu0
  %v3430 = vadd.f32 %v2885, %v3429
  %v3431 = vpop.f32.mrf.mxu0
  %v3432 = vpop.f32.mrf.mxu0
  %v3433 = vadd.f32 %v2888, %v3432
  %v3434 = vpop.f32.mrf.mxu0
  %3435 = vmatprep.mubr.bf16.mxu0 %v1687
  %3436 = vmatmul.mubr.bf16.gmra.mxu0 %v1686
  %v3437 = vpop.f32.mrf.mxu0
  %v3438 = vadd.f32 %v2893, %v3437
  %v3439 = vpop.f32.mrf.mxu0
  %v3440 = vpop.f32.mrf.mxu0
  %v3441 = vadd.f32 %v2896, %v3440
  %v3442 = vpop.f32.mrf.mxu0
  %3443 = vmatprep.mubr.bf16.mxu0 %v1693
  %3444 = vmatmul.mubr.bf16.gmra.mxu0 %v1692
  %v3445 = vpop.f32.mrf.mxu0
  %v3446 = vadd.f32 %v2901, %v3445
  %v3447 = vpop.f32.mrf.mxu0
  %v3448 = vpop.f32.mrf.mxu0
  %v3449 = vadd.f32 %v2904, %v3448
  %v3450 = vpop.f32.mrf.mxu0
  %3451 = vmatprep.mubr.bf16.mxu0 %v1699
  %3452 = vmatmul.mubr.bf16.gmra.mxu0 %v1698
  %v3453 = vpop.f32.mrf.mxu0
  %v3454 = vadd.f32 %v2909, %v3453
  %v3455 = vpop.f32.mrf.mxu0
  %v3456 = vpop.f32.mrf.mxu0
  %v3457 = vadd.f32 %v2912, %v3456
  %v3458 = vpop.f32.mrf.mxu0
  %3459 = vmatprep.mubr.bf16.mxu0 %v1705
  %3460 = vmatmul.mubr.bf16.gmra.mxu0 %v1704
  %v3461 = vpop.f32.mrf.mxu0
  %v3462 = vadd.f32 %v2917, %v3461
  %v3463 = vpop.f32.mrf.mxu0
  %v3464 = vpop.f32.mrf.mxu0
  %v3465 = vadd.f32 %v2920, %v3464
  %v3466 = vpop.f32.mrf.mxu0
  %3467 = vmatprep.mubr.bf16.mxu0 %v1711
  %3468 = vmatmul.mubr.bf16.gmra.mxu0 %v1710
  %v3469 = vpop.f32.mrf.mxu0
  %v3470 = vadd.f32 %v2925, %v3469
  %v3471 = vpop.f32.mrf.mxu0
  %v3472 = vpop.f32.mrf.mxu0
  %v3473 = vadd.f32 %v2928, %v3472
  %v3474 = vpop.f32.mrf.mxu0
  %3475 = vmatprep.mubr.bf16.mxu0 %v1717
  %3476 = vmatmul.mubr.bf16.gmra.mxu0 %v1716
  %v3477 = vpop.f32.mrf.mxu0
  %v3478 = vadd.f32 %v2933, %v3477
  %v3479 = vpop.f32.mrf.mxu0
  %v3480 = vpop.f32.mrf.mxu0
  %v3481 = vadd.f32 %v2936, %v3480
  %v3482 = vpop.f32.mrf.mxu0
  %3483 = vmatprep.mubr.bf16.mxu0 %v1723
  %3484 = vmatmul.mubr.bf16.gmra.mxu0 %v1722
  %v3485 = vpop.f32.mrf.mxu0
  %v3486 = vadd.f32 %v2941, %v3485
  %v3487 = vpop.f32.mrf.mxu0
  %v3488 = vpop.f32.mrf.mxu0
  %v3489 = vadd.f32 %v2944, %v3488
  %v3490 = vpop.f32.mrf.mxu0
  %3491 = vmatprep.mubr.bf16.mxu0 %v1729
  %3492 = vmatmul.mubr.bf16.gmra.mxu0 %v1728
  %v3493 = vpop.f32.mrf.mxu0
  %v3494 = vadd.f32 %v2949, %v3493
  %v3495 = vpop.f32.mrf.mxu0
  %v3496 = vpop.f32.mrf.mxu0
  %v3497 = vadd.f32 %v2952, %v3496
  %v3498 = vpop.f32.mrf.mxu0
  %3499 = vmatprep.mubr.bf16.mxu0 %v1735
  %3500 = vmatmul.mubr.bf16.gmra.mxu0 %v1734
  %v3501 = vpop.f32.mrf.mxu0
  %v3502 = vadd.f32 %v2957, %v3501
  %v3503 = vpop.f32.mrf.mxu0
  %v3504 = vpop.f32.mrf.mxu0
  %v3505 = vadd.f32 %v2960, %v3504
  %v3506 = vpop.f32.mrf.mxu0
  %3507 = vmatprep.mubr.bf16.mxu0 %v1741
  %3508 = vmatmul.mubr.bf16.gmra.mxu0 %v1740
  %v3509 = vpop.f32.mrf.mxu0
  %v3510 = vadd.f32 %v2965, %v3509
  %v3511 = vpop.f32.mrf.mxu0
  %v3512 = vpop.f32.mrf.mxu0
  %v3513 = vadd.f32 %v2968, %v3512
  %v3514 = vpop.f32.mrf.mxu0
  %3515 = vmatprep.mubr.bf16.mxu0 %v1747
  %3516 = vmatmul.mubr.bf16.gmra.mxu0 %v1746
  %v3517 = vpop.f32.mrf.mxu0
  %v3518 = vadd.f32 %v2973, %v3517
  %v3519 = vpop.f32.mrf.mxu0
  %v3520 = vpop.f32.mrf.mxu0
  %v3521 = vadd.f32 %v2976, %v3520
  %v3522 = vpop.f32.mrf.mxu0
  %3523 = vmatprep.mubr.bf16.mxu0 %v1753
  %3524 = vmatmul.mubr.bf16.gmra.mxu0 %v1752
  %v3525 = vpop.f32.mrf.mxu0
  %v3526 = vadd.f32 %v2981, %v3525
  %v3527 = vpop.f32.mrf.mxu0
  %v3528 = vpop.f32.mrf.mxu0
  %v3529 = vadd.f32 %v2984, %v3528
  %v3530 = vpop.f32.mrf.mxu0
  %3531 = vmatprep.mubr.bf16.mxu0 %v1759
  %3532 = vmatmul.mubr.bf16.gmra.mxu0 %v1758
  %v3533 = vpop.f32.mrf.mxu0
  %v3534 = vadd.f32 %v2989, %v3533
  %v3535 = vpop.f32.mrf.mxu0
  %v3536 = vpop.f32.mrf.mxu0
  %v3537 = vadd.f32 %v2992, %v3536
  %v3538 = vpop.f32.mrf.mxu0
  %3539 = vmatprep.mubr.bf16.mxu0 %v1765
  %3540 = vmatmul.mubr.bf16.gmra.mxu0 %v1764
  %v3541 = vpop.f32.mrf.mxu0
  %v3542 = vadd.f32 %v2997, %v3541
  %v3543 = vpop.f32.mrf.mxu0
  %v3544 = vpop.f32.mrf.mxu0
  %v3545 = vadd.f32 %v3000, %v3544
  %v3546 = vpop.f32.mrf.mxu0
  %3547 = vmatprep.mubr.bf16.mxu0 %v1771
  %3548 = vmatmul.mubr.bf16.gmra.mxu0 %v1770
  %v3549 = vpop.f32.mrf.mxu0
  %v3550 = vadd.f32 %v3005, %v3549
  %v3551 = vpop.f32.mrf.mxu0
  %v3552 = vpop.f32.mrf.mxu0
  %v3553 = vadd.f32 %v3008, %v3552
  %v3554 = vpop.f32.mrf.mxu0
  %3555 = vmatprep.mubr.bf16.mxu0 %v1777
  %3556 = vmatmul.mubr.bf16.gmra.mxu0 %v1776
  %v3557 = vpop.f32.mrf.mxu0
  %v3558 = vadd.f32 %v3013, %v3557
  %v3559 = vpop.f32.mrf.mxu0
  %v3560 = vpop.f32.mrf.mxu0
  %v3561 = vadd.f32 %v3016, %v3560
  %v3562 = vpop.f32.mrf.mxu0
  %3563 = vmatprep.mubr.bf16.mxu0 %v1783
  %3564 = vmatmul.mubr.bf16.gmra.mxu0 %v1782
  %v3565 = vpop.f32.mrf.mxu0
  %v3566 = vadd.f32 %v3021, %v3565
  %v3567 = vpop.f32.mrf.mxu0
  %v3568 = vpop.f32.mrf.mxu0
  %v3569 = vadd.f32 %v3024, %v3568
  %v3570 = vpop.f32.mrf.mxu0
  %3571 = vmatprep.mubr.bf16.mxu0 %v1789
  %3572 = vmatmul.mubr.bf16.gmra.mxu0 %v1788
  %v3573 = vpop.f32.mrf.mxu0
  %v3574 = vadd.f32 %v3029, %v3573
  %v3575 = vpop.f32.mrf.mxu0
  %v3576 = vpop.f32.mrf.mxu0
  %v3577 = vadd.f32 %v3032, %v3576
  %v3578 = vpop.f32.mrf.mxu0
  %3579 = vmatprep.mubr.bf16.mxu0 %v1795
  %3580 = vmatmul.mubr.bf16.gmra.mxu0 %v1794
  %v3581 = vpop.f32.mrf.mxu0
  %v3582 = vadd.f32 %v3037, %v3581
  %v3583 = vpop.f32.mrf.mxu0
  %v3584 = vpop.f32.mrf.mxu0
  %v3585 = vadd.f32 %v3040, %v3584
  %v3586 = vpop.f32.mrf.mxu0
  %3587 = vmatprep.mubr.bf16.mxu0 %v1801
  %3588 = vmatmul.mubr.bf16.gmra.mxu0 %v1800
  %v3589 = vpop.f32.mrf.mxu0
  %v3590 = vadd.f32 %v3045, %v3589
  %v3591 = vpop.f32.mrf.mxu0
  %v3592 = vpop.f32.mrf.mxu0
  %v3593 = vadd.f32 %v3048, %v3592
  %v3594 = vpop.f32.mrf.mxu0
  %3595 = vmatprep.mubr.bf16.mxu0 %v1807
  %3596 = vmatmul.mubr.bf16.gmra.mxu0 %v1806
  %v3597 = vpop.f32.mrf.mxu0
  %v3598 = vadd.f32 %v3053, %v3597
  %v3599 = vpop.f32.mrf.mxu0
  %v3600 = vpop.f32.mrf.mxu0
  %v3601 = vadd.f32 %v3056, %v3600
  %v3602 = vpop.f32.mrf.mxu0
  %3603 = vmatprep.mubr.bf16.mxu0 %v1813
  %3604 = vmatmul.mubr.bf16.gmra.mxu0 %v1812
  %v3605 = vpop.f32.mrf.mxu0
  %v3606 = vadd.f32 %v3061, %v3605
  %v3607 = vpop.f32.mrf.mxu0
  %v3608 = vpop.f32.mrf.mxu0
  %v3609 = vadd.f32 %v3064, %v3608
  %v3610 = vpop.f32.mrf.mxu0
  %3611 = vmatprep.mubr.bf16.mxu0 %v1819
  %3612 = vmatmul.mubr.bf16.gmra.mxu0 %v1818
  %v3613 = vpop.f32.mrf.mxu0
  %v3614 = vadd.f32 %v3069, %v3613
  %v3615 = vpop.f32.mrf.mxu0
  %v3616 = vpop.f32.mrf.mxu0
  %v3617 = vadd.f32 %v3072, %v3616
  %v3618 = vpop.f32.mrf.mxu0
  %3619 = vmatprep.mubr.bf16.mxu0 %v1825
  %3620 = vmatmul.mubr.bf16.gmra.mxu0 %v1824
  %v3621 = vpop.f32.mrf.mxu0
  %v3622 = vadd.f32 %v3077, %v3621
  %v3623 = vpop.f32.mrf.mxu0
  %v3624 = vpop.f32.mrf.mxu0
  %v3625 = vadd.f32 %v3080, %v3624
  %v3626 = vpop.f32.mrf.mxu0
  %3627 = vmatprep.mubr.bf16.mxu0 %v1831
  %3628 = vmatmul.mubr.bf16.gmra.mxu0 %v1830
  %v3629 = vpop.f32.mrf.mxu0
  %v3630 = vadd.f32 %v3085, %v3629
  %v3631 = vpop.f32.mrf.mxu0
  %v3632 = vpop.f32.mrf.mxu0
  %v3633 = vadd.f32 %v3088, %v3632
  %v3634 = vpop.f32.mrf.mxu0
  %3635 = vmatprep.mubr.bf16.mxu0 %v1837
  %3636 = vmatmul.mubr.bf16.gmra.mxu0 %v1836
  %v3637 = vpop.f32.mrf.mxu0
  %v3638 = vadd.f32 %v3093, %v3637
  %v3639 = vpop.f32.mrf.mxu0
  %v3640 = vpop.f32.mrf.mxu0
  %v3641 = vadd.f32 %v3096, %v3640
  %v3642 = vpop.f32.mrf.mxu0
  %3643 = vmatprep.mubr.bf16.mxu0 %v1843
  %3644 = vmatmul.mubr.bf16.gmra.mxu0 %v1842
  %v3645 = vpop.f32.mrf.mxu0
  %v3646 = vadd.f32 %v3101, %v3645
  %v3647 = vpop.f32.mrf.mxu0
  %v3648 = vpop.f32.mrf.mxu0
  %v3649 = vadd.f32 %v3104, %v3648
  %v3650 = vpop.f32.mrf.mxu0
  %3651 = vmatprep.mubr.bf16.mxu0 %v1849
  %3652 = vmatmul.mubr.bf16.gmra.mxu0 %v1848
  %v3653 = vpop.f32.mrf.mxu0
  %v3654 = vadd.f32 %v3109, %v3653
  %v3655 = vpop.f32.mrf.mxu0
  %v3656 = vpop.f32.mrf.mxu0
  %v3657 = vadd.f32 %v3112, %v3656
  %v3658 = vpop.f32.mrf.mxu0
  %3659 = vmatprep.mubr.bf16.mxu0 %v1855
  %3660 = vmatmul.mubr.bf16.gmra.mxu0 %v1854
  %v3661 = vpop.f32.mrf.mxu0
  %v3662 = vadd.f32 %v3117, %v3661
  %v3663 = vpop.f32.mrf.mxu0
  %v3664 = vpop.f32.mrf.mxu0
  %v3665 = vadd.f32 %v3120, %v3664
  %v3666 = vpop.f32.mrf.mxu0
  %3667 = vmatprep.mubr.bf16.mxu0 %v1861
  %3668 = vmatmul.mubr.bf16.gmra.mxu0 %v1860
  %v3669 = vpop.f32.mrf.mxu0
  %v3670 = vadd.f32 %v3125, %v3669
  %v3671 = vpop.f32.mrf.mxu0
  %v3672 = vpop.f32.mrf.mxu0
  %v3673 = vadd.f32 %v3128, %v3672
  %v3674 = vpop.f32.mrf.mxu0
  %3675 = vmatprep.mubr.bf16.mxu0 %v1867
  %3676 = vmatmul.mubr.bf16.gmra.mxu0 %v1866
  %v3677 = vpop.f32.mrf.mxu0
  %v3678 = vadd.f32 %v3133, %v3677
  %v3679 = vpop.f32.mrf.mxu0
  %v3680 = vpop.f32.mrf.mxu0
  %v3681 = vadd.f32 %v3136, %v3680
  %v3682 = vpop.f32.mrf.mxu0
  %3683 = vmatprep.mubr.bf16.mxu0 %v1873
  %3684 = vmatmul.mubr.bf16.gmra.mxu0 %v1872
  %v3685 = vpop.f32.mrf.mxu0
  %v3686 = vadd.f32 %v3141, %v3685
  %v3687 = vpop.f32.mrf.mxu0
  %v3688 = vpop.f32.mrf.mxu0
  %v3689 = vadd.f32 %v3144, %v3688
  %v3690 = vpop.f32.mrf.mxu0
  %3691 = vmatprep.mubr.bf16.mxu0 %v1879
  %3692 = vmatmul.mubr.bf16.gmra.mxu0 %v1878
  %v3693 = vpop.f32.mrf.mxu0
  %v3694 = vadd.f32 %v3149, %v3693
  %v3695 = vpop.f32.mrf.mxu0
  %v3696 = vpop.f32.mrf.mxu0
  %v3697 = vadd.f32 %v3152, %v3696
  %v3698 = vpop.f32.mrf.mxu0
  %3699 = vmatprep.mubr.bf16.mxu0 %v1885
  %3700 = vmatmul.mubr.bf16.gmra.mxu0 %v1884
  %v3701 = vpop.f32.mrf.mxu0
  %v3702 = vadd.f32 %v3157, %v3701
  %v3703 = vpop.f32.mrf.mxu0
  %v3704 = vpop.f32.mrf.mxu0
  %v3705 = vadd.f32 %v3160, %v3704
  %v3706 = vpop.f32.mrf.mxu0
  %3707 = vmatprep.mubr.bf16.mxu0 %v1891
  %3708 = vmatmul.mubr.bf16.gmra.mxu0 %v1890
  %v3709 = vpop.f32.mrf.mxu0
  %v3710 = vadd.f32 %v3165, %v3709
  %v3711 = vpop.f32.mrf.mxu0
  %v3712 = vpop.f32.mrf.mxu0
  %v3713 = vadd.f32 %v3168, %v3712
  %v3714 = vpop.f32.mrf.mxu0
  %3715 = vmatprep.mubr.bf16.mxu0 %v1897
  %3716 = vmatmul.mubr.bf16.gmra.mxu0 %v1896
  %v3717 = vpop.f32.mrf.mxu0
  %v3718 = vadd.f32 %v3173, %v3717
  %v3719 = vpop.f32.mrf.mxu0
  %v3720 = vpop.f32.mrf.mxu0
  %v3721 = vadd.f32 %v3176, %v3720
  %v3722 = vpop.f32.mrf.mxu0
  %3723 = vmatprep.mubr.bf16.mxu0 %v1903
  %3724 = vmatmul.mubr.bf16.gmra.mxu0 %v1902
  %v3725 = vpop.f32.mrf.mxu0
  %v3726 = vadd.f32 %v3181, %v3725
  %v3727 = vpop.f32.mrf.mxu0
  %v3728 = vpop.f32.mrf.mxu0
  %v3729 = vadd.f32 %v3184, %v3728
  %v3730 = vpop.f32.mrf.mxu0
  %3731 = vmatprep.mubr.bf16.mxu0 %v1909
  %3732 = vmatmul.mubr.bf16.gmra.mxu0 %v1908
  %v3733 = vpop.f32.mrf.mxu0
  %v3734 = vadd.f32 %v3189, %v3733
  %v3735 = vpop.f32.mrf.mxu0
  %v3736 = vpop.f32.mrf.mxu0
  %v3737 = vadd.f32 %v3192, %v3736
  %v3738 = vpop.f32.mrf.mxu0
  %3739 = vmatprep.mubr.bf16.mxu0 %v1915
  %3740 = vmatmul.mubr.bf16.gmra.mxu0 %v1914
  %v3741 = vpop.f32.mrf.mxu0
  %v3742 = vadd.f32 %v3197, %v3741
  %v3743 = vpop.f32.mrf.mxu0
  %v3744 = vpop.f32.mrf.mxu0
  %v3745 = vadd.f32 %v3200, %v3744
  %v3746 = vpop.f32.mrf.mxu0
  %3747 = vmatprep.mubr.bf16.mxu0 %v1921
  %3748 = vmatmul.mubr.bf16.gmra.mxu0 %v1920
  %v3749 = vpop.f32.mrf.mxu0
  %v3750 = vadd.f32 %v3205, %v3749
  %v3751 = vpop.f32.mrf.mxu0
  %v3752 = vpop.f32.mrf.mxu0
  %v3753 = vadd.f32 %v3208, %v3752
  %v3754 = vpop.f32.mrf.mxu0
  %3755 = vmatprep.mubr.bf16.mxu0 %v1927
  %3756 = vmatmul.mubr.bf16.gmra.mxu0 %v1926
  %v3757 = vpop.f32.mrf.mxu0
  %v3758 = vadd.f32 %v3213, %v3757
  %v3759 = vpop.f32.mrf.mxu0
  %v3760 = vpop.f32.mrf.mxu0
  %v3761 = vadd.f32 %v3216, %v3760
  %v3762 = vpop.f32.mrf.mxu0
  %3763 = vmatprep.mubr.bf16.mxu0 %v1933
  %3764 = vmatmul.mubr.bf16.gmra.mxu0 %v1932
  %v3765 = vpop.f32.mrf.mxu0
  %v3766 = vadd.f32 %v3221, %v3765
  %v3767 = vpop.f32.mrf.mxu0
  %v3768 = vpop.f32.mrf.mxu0
  %v3769 = vadd.f32 %v3224, %v3768
  %v3770 = vpop.f32.mrf.mxu0
  %3771 = vmatprep.mubr.bf16.mxu0 %v1939
  %3772 = vmatmul.mubr.bf16.gmra.mxu0 %v1938
  %v3773 = vpop.f32.mrf.mxu0
  %v3774 = vadd.f32 %v3229, %v3773
  %v3775 = vpop.f32.mrf.mxu0
  %v3776 = vpop.f32.mrf.mxu0
  %v3777 = vadd.f32 %v3232, %v3776
  %v3778 = vpop.f32.mrf.mxu0
  %3779 = vmatprep.mubr.bf16.mxu0 %v1945
  %3780 = vmatmul.mubr.bf16.gmra.mxu0 %v1944
  %v3781 = vpop.f32.mrf.mxu0
  %v3782 = vadd.f32 %v3237, %v3781
  %v3783 = vpop.f32.mrf.mxu0
  %v3784 = vpop.f32.mrf.mxu0
  %v3785 = vadd.f32 %v3240, %v3784
  %v3786 = vpop.f32.mrf.mxu0
  %3787 = vmatprep.mubr.bf16.mxu0 %v1951
  %3788 = vmatmul.mubr.bf16.gmra.mxu0 %v1950
  %v3789 = vpop.f32.mrf.mxu0
  %v3790 = vadd.f32 %v3245, %v3789
  %v3791 = vpop.f32.mrf.mxu0
  %v3792 = vpop.f32.mrf.mxu0
  %v3793 = vadd.f32 %v3248, %v3792
  %v3794 = vpop.f32.mrf.mxu0
  %3795 = vmatprep.mubr.bf16.mxu0 %v1957
  %3796 = vmatmul.mubr.bf16.gmra.mxu0 %v1956
  %v3797 = vpop.f32.mrf.mxu0
  %v3798 = vadd.f32 %v3253, %v3797
  %v3799 = vpop.f32.mrf.mxu0
  %v3800 = vpop.f32.mrf.mxu0
  %v3801 = vadd.f32 %v3256, %v3800
  %v3802 = vpop.f32.mrf.mxu0
  %3803 = vmatprep.mubr.bf16.mxu0 %v1963
  %3804 = vmatmul.mubr.bf16.gmra.mxu0 %v1962
  %v3805 = vpop.f32.mrf.mxu0
  %v3806 = vadd.f32 %v3261, %v3805
  %v3807 = vpop.f32.mrf.mxu0
  %v3808 = vpop.f32.mrf.mxu0
  %v3809 = vadd.f32 %v3264, %v3808
  %v3810 = vpop.f32.mrf.mxu0
  %3811 = vmatprep.mubr.bf16.mxu0 %v1969
  %3812 = vmatmul.mubr.bf16.gmra.mxu0 %v1968
  %v3813 = vpop.f32.mrf.mxu0
  %v3814 = vadd.f32 %v3269, %v3813
  %v3815 = vpop.f32.mrf.mxu0
  %v3816 = vpop.f32.mrf.mxu0
  %v3817 = vadd.f32 %v3272, %v3816
  %v3818 = vpop.f32.mrf.mxu0
  %3819 = vmatprep.mubr.bf16.mxu0 %v1975
  %3820 = vmatmul.mubr.bf16.gmra.mxu0 %v1974
  %v3821 = vpop.f32.mrf.mxu0
  %v3822 = vadd.f32 %v3277, %v3821
  %v3823 = vpop.f32.mrf.mxu0
  %v3824 = vpop.f32.mrf.mxu0
  %v3825 = vadd.f32 %v3280, %v3824
  %v3826 = vpop.f32.mrf.mxu0
  %3827 = vmatprep.mubr.bf16.mxu0 %v1981
  %3828 = vmatmul.mubr.bf16.gmra.mxu0 %v1980
  %v3829 = vpop.f32.mrf.mxu0
  %v3830 = vadd.f32 %v3285, %v3829
  %v3831 = vpop.f32.mrf.mxu0
  %v3832 = vpop.f32.mrf.mxu0
  %v3833 = vadd.f32 %v3288, %v3832
  %v3834 = vpop.f32.mrf.mxu0
  %3835 = vmatprep.mubr.bf16.mxu0 %v1987
  %3836 = vmatmul.mubr.bf16.gmra.mxu0 %v1986
  %v3837 = vpop.f32.mrf.mxu0
  %v3838 = vadd.f32 %v3293, %v3837
  %v3839 = vpop.f32.mrf.mxu0
  %v3840 = vpop.f32.mrf.mxu0
  %v3841 = vadd.f32 %v3296, %v3840
  %v3842 = vpop.f32.mrf.mxu0
  %3843 = vmatprep.mubr.bf16.mxu0 %v1993
  %3844 = vmatmul.mubr.bf16.gmra.mxu0 %v1992
  %v3845 = vpop.f32.mrf.mxu0
  %v3846 = vadd.f32 %v3301, %v3845
  %v3847 = vpop.f32.mrf.mxu0
  %v3848 = vpop.f32.mrf.mxu0
  %v3849 = vadd.f32 %v3304, %v3848
  %v3850 = vpop.f32.mrf.mxu0
  %3851 = vmatprep.mubr.bf16.mxu0 %v1999
  %3852 = vmatmul.mubr.bf16.gmra.mxu0 %v1998
  %v3853 = vpop.f32.mrf.mxu0
  %v3854 = vadd.f32 %v3309, %v3853
  %v3855 = vpop.f32.mrf.mxu0
  %v3856 = vpop.f32.mrf.mxu0
  %v3857 = vadd.f32 %v3312, %v3856
  %v3858 = vpop.f32.mrf.mxu0
  %3859 = vmatprep.mubr.bf16.mxu0 %v2005
  %3860 = vmatmul.mubr.bf16.gmra.mxu0 %v2004
  %v3861 = vpop.f32.mrf.mxu0
  %v3862 = vadd.f32 %v3317, %v3861
  %v3863 = vpop.f32.mrf.mxu0
  %v3864 = vpop.f32.mrf.mxu0
  %v3865 = vadd.f32 %v3320, %v3864
  %v3866 = vpop.f32.mrf.mxu0
  %3867 = vmatprep.mubr.bf16.mxu0 %v2011
  %3868 = vmatmul.mubr.bf16.gmra.mxu0 %v2010
  %v3869 = vpop.f32.mrf.mxu0
  %v3870 = vadd.f32 %v3325, %v3869
  %v3871 = vpop.f32.mrf.mxu0
  %v3872 = vpop.f32.mrf.mxu0
  %v3873 = vadd.f32 %v3328, %v3872
  %v3874 = vpop.f32.mrf.mxu0
  %3875 = vmatprep.mubr.bf16.mxu0 %v2017
  %3876 = vmatmul.mubr.bf16.gmra.mxu0 %v2016
  %v3877 = vpop.f32.mrf.mxu0
  %v3878 = vadd.f32 %v3333, %v3877
  %v3879 = vpop.f32.mrf.mxu0
  %v3880 = vpop.f32.mrf.mxu0
  %v3881 = vadd.f32 %v3336, %v3880
  %v3882 = vpop.f32.mrf.mxu0
  %3883 = vdwg.mxu0
  %3884 = vmatprep.subr.bf16.mxu0 0
  %3885 = vmatpush1.bf16.msra.mxu0 %v2551
  %3886 = vmatprep.subr.bf16.mxu0 0
  %3887 = vmatpush1.bf16.msra.mxu0 %v2550
  %3888 = vmatprep.subr.bf16.mxu0 0
  %3889 = vmatpush1.bf16.msra.mxu0 %v2549
  %3890 = vmatprep.subr.bf16.mxu0 0
  %3891 = vmatpush1.bf16.msra.mxu0 %v2548
  %3892 = vmatprep.subr.bf16.mxu0 0
  %3893 = vmatpush1.bf16.msra.mxu0 %v2547
  %3894 = vmatprep.subr.bf16.mxu0 0
  %3895 = vmatpush1.bf16.msra.mxu0 %v2546
  %3896 = vmatprep.subr.bf16.mxu0 0
  %3897 = vmatpush1.bf16.msra.mxu0 %v2545
  %3898 = vmatprep.subr.bf16.mxu0 0
  %3899 = vmatpush1.bf16.msra.mxu0 %v2544
  %3900 = vmatprep.subr.bf16.mxu0 0
  %3901 = vmatpush2.bf16.msra.mxu0 0
  %3902 = vmatprep.subr.bf16.mxu0 0
  %3903 = vmatpush2.bf16.msra.mxu0 0
  %3904 = vmatprep.subr.bf16.mxu0 0
  %3905 = vmatpush2.bf16.msra.mxu0 0
  %3906 = vmatprep.subr.bf16.mxu0 0
  %3907 = vmatpush2.bf16.msra.mxu0 0
  %3908 = vmatprep.subr.bf16.mxu0 0
  %3909 = vmatpush2.bf16.msra.mxu0 0
  %3910 = vmatprep.subr.bf16.mxu0 0
  %3911 = vmatpush2.bf16.msra.mxu0 %v2792
  %3912 = vmatprep.subr.bf16.mxu0 0
  %3913 = vmatpush2.bf16.msra.mxu0 %v2553
  %3914 = vmatprep.subr.bf16.mxu0 0
  %3915 = vmatpush2.bf16.msra.mxu0 %v2552
  %3916 = vmatprep.mubr.bf16.mxu0 %v2599
  %3917 = vmatmul.mubr.bf16.gmra.mxu0 %v1640
  %v3918 = vpop.f32.mrf.mxu0
  %v3919 = vadd.f32 %v3374, %v3918
  %v3920 = vpop.f32.mrf.mxu0
  %v3921 = vpop.f32.mrf.mxu0
  %v3922 = vadd.f32 %v3377, %v3921
  %v3923 = vpop.f32.mrf.mxu0
  %3924 = vmatprep.mubr.bf16.mxu0 %v2602
  %3925 = vmatmul.mubr.bf16.gmra.mxu0 %v1646
  %v3926 = vpop.f32.mrf.mxu0
  %v3927 = vadd.f32 %v3382, %v3926
  %v3928 = vpop.f32.mrf.mxu0
  %v3929 = vpop.f32.mrf.mxu0
  %v3930 = vadd.f32 %v3385, %v3929
  %v3931 = vpop.f32.mrf.mxu0
  %3932 = vmatprep.mubr.bf16.mxu0 %v2605
  %3933 = vmatmul.mubr.bf16.gmra.mxu0 %v1652
  %v3934 = vpop.f32.mrf.mxu0
  %v3935 = vadd.f32 %v3390, %v3934
  %v3936 = vpop.f32.mrf.mxu0
  %v3937 = vpop.f32.mrf.mxu0
  %v3938 = vadd.f32 %v3393, %v3937
  %v3939 = vpop.f32.mrf.mxu0
  %3940 = vmatprep.mubr.bf16.mxu0 %v2608
  %3941 = vmatmul.mubr.bf16.gmra.mxu0 %v1658
  %v3942 = vpop.f32.mrf.mxu0
  %v3943 = vadd.f32 %v3398, %v3942
  %v3944 = vpop.f32.mrf.mxu0
  %v3945 = vpop.f32.mrf.mxu0
  %v3946 = vadd.f32 %v3401, %v3945
  %v3947 = vpop.f32.mrf.mxu0
  %3948 = vmatprep.mubr.bf16.mxu0 %v2611
  %3949 = vmatmul.mubr.bf16.gmra.mxu0 %v1664
  %v3950 = vpop.f32.mrf.mxu0
  %v3951 = vadd.f32 %v3406, %v3950
  %v3952 = vpop.f32.mrf.mxu0
  %v3953 = vpop.f32.mrf.mxu0
  %v3954 = vadd.f32 %v3409, %v3953
  %v3955 = vpop.f32.mrf.mxu0
  %3956 = vmatprep.mubr.bf16.mxu0 %v2614
  %3957 = vmatmul.mubr.bf16.gmra.mxu0 %v1670
  %v3958 = vpop.f32.mrf.mxu0
  %v3959 = vadd.f32 %v3414, %v3958
  %v3960 = vpop.f32.mrf.mxu0
  %v3961 = vpop.f32.mrf.mxu0
  %v3962 = vadd.f32 %v3417, %v3961
  %v3963 = vpop.f32.mrf.mxu0
  %3964 = vmatprep.mubr.bf16.mxu0 %v2617
  %3965 = vmatmul.mubr.bf16.gmra.mxu0 %v1676
  %v3966 = vpop.f32.mrf.mxu0
  %v3967 = vadd.f32 %v3422, %v3966
  %v3968 = vpop.f32.mrf.mxu0
  %v3969 = vpop.f32.mrf.mxu0
  %v3970 = vadd.f32 %v3425, %v3969
  %v3971 = vpop.f32.mrf.mxu0
  %3972 = vmatprep.mubr.bf16.mxu0 %v2620
  %3973 = vmatmul.mubr.bf16.gmra.mxu0 %v1682
  %v3974 = vpop.f32.mrf.mxu0
  %v3975 = vadd.f32 %v3430, %v3974
  %v3976 = vpop.f32.mrf.mxu0
  %v3977 = vpop.f32.mrf.mxu0
  %v3978 = vadd.f32 %v3433, %v3977
  %v3979 = vpop.f32.mrf.mxu0
  %3980 = vmatprep.mubr.bf16.mxu0 %v2623
  %3981 = vmatmul.mubr.bf16.gmra.mxu0 %v1688
  %v3982 = vpop.f32.mrf.mxu0
  %v3983 = vadd.f32 %v3438, %v3982
  %v3984 = vpop.f32.mrf.mxu0
  %v3985 = vpop.f32.mrf.mxu0
  %v3986 = vadd.f32 %v3441, %v3985
  %v3987 = vpop.f32.mrf.mxu0
  %3988 = vmatprep.mubr.bf16.mxu0 %v2626
  %3989 = vmatmul.mubr.bf16.gmra.mxu0 %v1694
  %v3990 = vpop.f32.mrf.mxu0
  %v3991 = vadd.f32 %v3446, %v3990
  %v3992 = vpop.f32.mrf.mxu0
  %v3993 = vpop.f32.mrf.mxu0
  %v3994 = vadd.f32 %v3449, %v3993
  %v3995 = vpop.f32.mrf.mxu0
  %3996 = vmatprep.mubr.bf16.mxu0 %v2629
  %3997 = vmatmul.mubr.bf16.gmra.mxu0 %v1700
  %v3998 = vpop.f32.mrf.mxu0
  %v3999 = vadd.f32 %v3454, %v3998
  %v4000 = vpop.f32.mrf.mxu0
  %v4001 = vpop.f32.mrf.mxu0
  %v4002 = vadd.f32 %v3457, %v4001
  %v4003 = vpop.f32.mrf.mxu0
  %4004 = vmatprep.mubr.bf16.mxu0 %v2632
  %4005 = vmatmul.mubr.bf16.gmra.mxu0 %v1706
  %v4006 = vpop.f32.mrf.mxu0
  %v4007 = vadd.f32 %v3462, %v4006
  %v4008 = vpop.f32.mrf.mxu0
  %v4009 = vpop.f32.mrf.mxu0
  %v4010 = vadd.f32 %v3465, %v4009
  %v4011 = vpop.f32.mrf.mxu0
  %4012 = vmatprep.mubr.bf16.mxu0 %v2635
  %4013 = vmatmul.mubr.bf16.gmra.mxu0 %v1712
  %v4014 = vpop.f32.mrf.mxu0
  %v4015 = vadd.f32 %v3470, %v4014
  %v4016 = vpop.f32.mrf.mxu0
  %v4017 = vpop.f32.mrf.mxu0
  %v4018 = vadd.f32 %v3473, %v4017
  %v4019 = vpop.f32.mrf.mxu0
  %4020 = vmatprep.mubr.bf16.mxu0 %v2638
  %4021 = vmatmul.mubr.bf16.gmra.mxu0 %v1718
  %v4022 = vpop.f32.mrf.mxu0
  %v4023 = vadd.f32 %v3478, %v4022
  %v4024 = vpop.f32.mrf.mxu0
  %v4025 = vpop.f32.mrf.mxu0
  %v4026 = vadd.f32 %v3481, %v4025
  %v4027 = vpop.f32.mrf.mxu0
  %4028 = vmatprep.mubr.bf16.mxu0 %v2641
  %4029 = vmatmul.mubr.bf16.gmra.mxu0 %v1724
  %v4030 = vpop.f32.mrf.mxu0
  %v4031 = vadd.f32 %v3486, %v4030
  %v4032 = vpop.f32.mrf.mxu0
  %v4033 = vpop.f32.mrf.mxu0
  %v4034 = vadd.f32 %v3489, %v4033
  %v4035 = vpop.f32.mrf.mxu0
  %4036 = vmatprep.mubr.bf16.mxu0 %v2644
  %4037 = vmatmul.mubr.bf16.gmra.mxu0 %v1730
  %v4038 = vpop.f32.mrf.mxu0
  %v4039 = vadd.f32 %v3494, %v4038
  %v4040 = vpop.f32.mrf.mxu0
  %v4041 = vpop.f32.mrf.mxu0
  %v4042 = vadd.f32 %v3497, %v4041
  %v4043 = vpop.f32.mrf.mxu0
  %4044 = vmatprep.mubr.bf16.mxu0 %v2647
  %4045 = vmatmul.mubr.bf16.gmra.mxu0 %v1736
  %v4046 = vpop.f32.mrf.mxu0
  %v4047 = vadd.f32 %v3502, %v4046
  %v4048 = vpop.f32.mrf.mxu0
  %v4049 = vpop.f32.mrf.mxu0
  %v4050 = vadd.f32 %v3505, %v4049
  %v4051 = vpop.f32.mrf.mxu0
  %4052 = vmatprep.mubr.bf16.mxu0 %v2650
  %4053 = vmatmul.mubr.bf16.gmra.mxu0 %v1742
  %v4054 = vpop.f32.mrf.mxu0
  %v4055 = vadd.f32 %v3510, %v4054
  %v4056 = vpop.f32.mrf.mxu0
  %v4057 = vpop.f32.mrf.mxu0
  %v4058 = vadd.f32 %v3513, %v4057
  %v4059 = vpop.f32.mrf.mxu0
  %4060 = vmatprep.mubr.bf16.mxu0 %v2653
  %4061 = vmatmul.mubr.bf16.gmra.mxu0 %v1748
  %v4062 = vpop.f32.mrf.mxu0
  %v4063 = vadd.f32 %v3518, %v4062
  %v4064 = vpop.f32.mrf.mxu0
  %v4065 = vpop.f32.mrf.mxu0
  %v4066 = vadd.f32 %v3521, %v4065
  %v4067 = vpop.f32.mrf.mxu0
  %4068 = vmatprep.mubr.bf16.mxu0 %v2656
  %4069 = vmatmul.mubr.bf16.gmra.mxu0 %v1754
  %v4070 = vpop.f32.mrf.mxu0
  %v4071 = vadd.f32 %v3526, %v4070
  %v4072 = vpop.f32.mrf.mxu0
  %v4073 = vpop.f32.mrf.mxu0
  %v4074 = vadd.f32 %v3529, %v4073
  %v4075 = vpop.f32.mrf.mxu0
  %4076 = vmatprep.mubr.bf16.mxu0 %v2659
  %4077 = vmatmul.mubr.bf16.gmra.mxu0 %v1760
  %v4078 = vpop.f32.mrf.mxu0
  %v4079 = vadd.f32 %v3534, %v4078
  %v4080 = vpop.f32.mrf.mxu0
  %v4081 = vpop.f32.mrf.mxu0
  %v4082 = vadd.f32 %v3537, %v4081
  %v4083 = vpop.f32.mrf.mxu0
  %4084 = vmatprep.mubr.bf16.mxu0 %v2662
  %4085 = vmatmul.mubr.bf16.gmra.mxu0 %v1766
  %v4086 = vpop.f32.mrf.mxu0
  %v4087 = vadd.f32 %v3542, %v4086
  %v4088 = vpop.f32.mrf.mxu0
  %v4089 = vpop.f32.mrf.mxu0
  %v4090 = vadd.f32 %v3545, %v4089
  %v4091 = vpop.f32.mrf.mxu0
  %4092 = vmatprep.mubr.bf16.mxu0 %v2665
  %4093 = vmatmul.mubr.bf16.gmra.mxu0 %v1772
  %v4094 = vpop.f32.mrf.mxu0
  %v4095 = vadd.f32 %v3550, %v4094
  %v4096 = vpop.f32.mrf.mxu0
  %v4097 = vpop.f32.mrf.mxu0
  %v4098 = vadd.f32 %v3553, %v4097
  %v4099 = vpop.f32.mrf.mxu0
  %4100 = vmatprep.mubr.bf16.mxu0 %v2668
  %4101 = vmatmul.mubr.bf16.gmra.mxu0 %v1778
  %v4102 = vpop.f32.mrf.mxu0
  %v4103 = vadd.f32 %v3558, %v4102
  %v4104 = vpop.f32.mrf.mxu0
  %v4105 = vpop.f32.mrf.mxu0
  %v4106 = vadd.f32 %v3561, %v4105
  %v4107 = vpop.f32.mrf.mxu0
  %4108 = vmatprep.mubr.bf16.mxu0 %v2671
  %4109 = vmatmul.mubr.bf16.gmra.mxu0 %v1784
  %v4110 = vpop.f32.mrf.mxu0
  %v4111 = vadd.f32 %v3566, %v4110
  %v4112 = vpop.f32.mrf.mxu0
  %v4113 = vpop.f32.mrf.mxu0
  %v4114 = vadd.f32 %v3569, %v4113
  %v4115 = vpop.f32.mrf.mxu0
  %4116 = vmatprep.mubr.bf16.mxu0 %v2674
  %4117 = vmatmul.mubr.bf16.gmra.mxu0 %v1790
  %v4118 = vpop.f32.mrf.mxu0
  %v4119 = vadd.f32 %v3574, %v4118
  %v4120 = vpop.f32.mrf.mxu0
  %v4121 = vpop.f32.mrf.mxu0
  %v4122 = vadd.f32 %v3577, %v4121
  %v4123 = vpop.f32.mrf.mxu0
  %4124 = vmatprep.mubr.bf16.mxu0 %v2677
  %4125 = vmatmul.mubr.bf16.gmra.mxu0 %v1796
  %v4126 = vpop.f32.mrf.mxu0
  %v4127 = vadd.f32 %v3582, %v4126
  %v4128 = vpop.f32.mrf.mxu0
  %v4129 = vpop.f32.mrf.mxu0
  %v4130 = vadd.f32 %v3585, %v4129
  %v4131 = vpop.f32.mrf.mxu0
  %4132 = vmatprep.mubr.bf16.mxu0 %v2680
  %4133 = vmatmul.mubr.bf16.gmra.mxu0 %v1802
  %v4134 = vpop.f32.mrf.mxu0
  %v4135 = vadd.f32 %v3590, %v4134
  %v4136 = vpop.f32.mrf.mxu0
  %v4137 = vpop.f32.mrf.mxu0
  %v4138 = vadd.f32 %v3593, %v4137
  %v4139 = vpop.f32.mrf.mxu0
  %4140 = vmatprep.mubr.bf16.mxu0 %v2683
  %4141 = vmatmul.mubr.bf16.gmra.mxu0 %v1808
  %v4142 = vpop.f32.mrf.mxu0
  %v4143 = vadd.f32 %v3598, %v4142
  %v4144 = vpop.f32.mrf.mxu0
  %v4145 = vpop.f32.mrf.mxu0
  %v4146 = vadd.f32 %v3601, %v4145
  %v4147 = vpop.f32.mrf.mxu0
  %4148 = vmatprep.mubr.bf16.mxu0 %v2686
  %4149 = vmatmul.mubr.bf16.gmra.mxu0 %v1814
  %v4150 = vpop.f32.mrf.mxu0
  %v4151 = vadd.f32 %v3606, %v4150
  %v4152 = vpop.f32.mrf.mxu0
  %v4153 = vpop.f32.mrf.mxu0
  %v4154 = vadd.f32 %v3609, %v4153
  %v4155 = vpop.f32.mrf.mxu0
  %4156 = vmatprep.mubr.bf16.mxu0 %v2689
  %4157 = vmatmul.mubr.bf16.gmra.mxu0 %v1820
  %v4158 = vpop.f32.mrf.mxu0
  %v4159 = vadd.f32 %v3614, %v4158
  %v4160 = vpop.f32.mrf.mxu0
  %v4161 = vpop.f32.mrf.mxu0
  %v4162 = vadd.f32 %v3617, %v4161
  %v4163 = vpop.f32.mrf.mxu0
  %4164 = vmatprep.mubr.bf16.mxu0 %v2692
  %4165 = vmatmul.mubr.bf16.gmra.mxu0 %v1826
  %v4166 = vpop.f32.mrf.mxu0
  %v4167 = vadd.f32 %v3622, %v4166
  %v4168 = vpop.f32.mrf.mxu0
  %v4169 = vpop.f32.mrf.mxu0
  %v4170 = vadd.f32 %v3625, %v4169
  %v4171 = vpop.f32.mrf.mxu0
  %4172 = vmatprep.mubr.bf16.mxu0 %v2695
  %4173 = vmatmul.mubr.bf16.gmra.mxu0 %v1832
  %v4174 = vpop.f32.mrf.mxu0
  %v4175 = vadd.f32 %v3630, %v4174
  %v4176 = vpop.f32.mrf.mxu0
  %v4177 = vpop.f32.mrf.mxu0
  %v4178 = vadd.f32 %v3633, %v4177
  %v4179 = vpop.f32.mrf.mxu0
  %4180 = vmatprep.mubr.bf16.mxu0 %v2698
  %4181 = vmatmul.mubr.bf16.gmra.mxu0 %v1838
  %v4182 = vpop.f32.mrf.mxu0
  %v4183 = vadd.f32 %v3638, %v4182
  %v4184 = vpop.f32.mrf.mxu0
  %v4185 = vpop.f32.mrf.mxu0
  %v4186 = vadd.f32 %v3641, %v4185
  %v4187 = vpop.f32.mrf.mxu0
  %4188 = vmatprep.mubr.bf16.mxu0 %v2701
  %4189 = vmatmul.mubr.bf16.gmra.mxu0 %v1844
  %v4190 = vpop.f32.mrf.mxu0
  %v4191 = vadd.f32 %v3646, %v4190
  %v4192 = vpop.f32.mrf.mxu0
  %v4193 = vpop.f32.mrf.mxu0
  %v4194 = vadd.f32 %v3649, %v4193
  %v4195 = vpop.f32.mrf.mxu0
  %4196 = vmatprep.mubr.bf16.mxu0 %v2704
  %4197 = vmatmul.mubr.bf16.gmra.mxu0 %v1850
  %v4198 = vpop.f32.mrf.mxu0
  %v4199 = vadd.f32 %v3654, %v4198
  %v4200 = vpop.f32.mrf.mxu0
  %v4201 = vpop.f32.mrf.mxu0
  %v4202 = vadd.f32 %v3657, %v4201
  %v4203 = vpop.f32.mrf.mxu0
  %4204 = vmatprep.mubr.bf16.mxu0 %v2707
  %4205 = vmatmul.mubr.bf16.gmra.mxu0 %v1856
  %v4206 = vpop.f32.mrf.mxu0
  %v4207 = vadd.f32 %v3662, %v4206
  %v4208 = vpop.f32.mrf.mxu0
  %v4209 = vpop.f32.mrf.mxu0
  %v4210 = vadd.f32 %v3665, %v4209
  %v4211 = vpop.f32.mrf.mxu0
  %4212 = vmatprep.mubr.bf16.mxu0 %v2710
  %4213 = vmatmul.mubr.bf16.gmra.mxu0 %v1862
  %v4214 = vpop.f32.mrf.mxu0
  %v4215 = vadd.f32 %v3670, %v4214
  %v4216 = vpop.f32.mrf.mxu0
  %v4217 = vpop.f32.mrf.mxu0
  %v4218 = vadd.f32 %v3673, %v4217
  %v4219 = vpop.f32.mrf.mxu0
  %4220 = vmatprep.mubr.bf16.mxu0 %v2713
  %4221 = vmatmul.mubr.bf16.gmra.mxu0 %v1868
  %v4222 = vpop.f32.mrf.mxu0
  %v4223 = vadd.f32 %v3678, %v4222
  %v4224 = vpop.f32.mrf.mxu0
  %v4225 = vpop.f32.mrf.mxu0
  %v4226 = vadd.f32 %v3681, %v4225
  %v4227 = vpop.f32.mrf.mxu0
  %4228 = vmatprep.mubr.bf16.mxu0 %v2716
  %4229 = vmatmul.mubr.bf16.gmra.mxu0 %v1874
  %v4230 = vpop.f32.mrf.mxu0
  %v4231 = vadd.f32 %v3686, %v4230
  %v4232 = vpop.f32.mrf.mxu0
  %v4233 = vpop.f32.mrf.mxu0
  %v4234 = vadd.f32 %v3689, %v4233
  %v4235 = vpop.f32.mrf.mxu0
  %4236 = vmatprep.mubr.bf16.mxu0 %v2719
  %4237 = vmatmul.mubr.bf16.gmra.mxu0 %v1880
  %v4238 = vpop.f32.mrf.mxu0
  %v4239 = vadd.f32 %v3694, %v4238
  %v4240 = vpop.f32.mrf.mxu0
  %v4241 = vpop.f32.mrf.mxu0
  %v4242 = vadd.f32 %v3697, %v4241
  %v4243 = vpop.f32.mrf.mxu0
  %4244 = vmatprep.mubr.bf16.mxu0 %v2722
  %4245 = vmatmul.mubr.bf16.gmra.mxu0 %v1886
  %v4246 = vpop.f32.mrf.mxu0
  %v4247 = vadd.f32 %v3702, %v4246
  %v4248 = vpop.f32.mrf.mxu0
  %v4249 = vpop.f32.mrf.mxu0
  %v4250 = vadd.f32 %v3705, %v4249
  %v4251 = vpop.f32.mrf.mxu0
  %4252 = vmatprep.mubr.bf16.mxu0 %v2725
  %4253 = vmatmul.mubr.bf16.gmra.mxu0 %v1892
  %v4254 = vpop.f32.mrf.mxu0
  %v4255 = vadd.f32 %v3710, %v4254
  %v4256 = vpop.f32.mrf.mxu0
  %v4257 = vpop.f32.mrf.mxu0
  %v4258 = vadd.f32 %v3713, %v4257
  %v4259 = vpop.f32.mrf.mxu0
  %4260 = vmatprep.mubr.bf16.mxu0 %v2728
  %4261 = vmatmul.mubr.bf16.gmra.mxu0 %v1898
  %v4262 = vpop.f32.mrf.mxu0
  %v4263 = vadd.f32 %v3718, %v4262
  %v4264 = vpop.f32.mrf.mxu0
  %v4265 = vpop.f32.mrf.mxu0
  %v4266 = vadd.f32 %v3721, %v4265
  %v4267 = vpop.f32.mrf.mxu0
  %4268 = vmatprep.mubr.bf16.mxu0 %v2731
  %4269 = vmatmul.mubr.bf16.gmra.mxu0 %v1904
  %v4270 = vpop.f32.mrf.mxu0
  %v4271 = vadd.f32 %v3726, %v4270
  %v4272 = vpop.f32.mrf.mxu0
  %v4273 = vpop.f32.mrf.mxu0
  %v4274 = vadd.f32 %v3729, %v4273
  %v4275 = vpop.f32.mrf.mxu0
  %4276 = vmatprep.mubr.bf16.mxu0 %v2734
  %4277 = vmatmul.mubr.bf16.gmra.mxu0 %v1910
  %v4278 = vpop.f32.mrf.mxu0
  %v4279 = vadd.f32 %v3734, %v4278
  %v4280 = vpop.f32.mrf.mxu0
  %v4281 = vpop.f32.mrf.mxu0
  %v4282 = vadd.f32 %v3737, %v4281
  %v4283 = vpop.f32.mrf.mxu0
  %4284 = vmatprep.mubr.bf16.mxu0 %v2737
  %4285 = vmatmul.mubr.bf16.gmra.mxu0 %v1916
  %v4286 = vpop.f32.mrf.mxu0
  %v4287 = vadd.f32 %v3742, %v4286
  %v4288 = vpop.f32.mrf.mxu0
  %v4289 = vpop.f32.mrf.mxu0
  %v4290 = vadd.f32 %v3745, %v4289
  %v4291 = vpop.f32.mrf.mxu0
  %4292 = vmatprep.mubr.bf16.mxu0 %v2740
  %4293 = vmatmul.mubr.bf16.gmra.mxu0 %v1922
  %v4294 = vpop.f32.mrf.mxu0
  %v4295 = vadd.f32 %v3750, %v4294
  %v4296 = vpop.f32.mrf.mxu0
  %v4297 = vpop.f32.mrf.mxu0
  %v4298 = vadd.f32 %v3753, %v4297
  %v4299 = vpop.f32.mrf.mxu0
  %4300 = vmatprep.mubr.bf16.mxu0 %v2743
  %4301 = vmatmul.mubr.bf16.gmra.mxu0 %v1928
  %v4302 = vpop.f32.mrf.mxu0
  %v4303 = vadd.f32 %v3758, %v4302
  %v4304 = vpop.f32.mrf.mxu0
  %v4305 = vpop.f32.mrf.mxu0
  %v4306 = vadd.f32 %v3761, %v4305
  %v4307 = vpop.f32.mrf.mxu0
  %4308 = vmatprep.mubr.bf16.mxu0 %v2746
  %4309 = vmatmul.mubr.bf16.gmra.mxu0 %v1934
  %v4310 = vpop.f32.mrf.mxu0
  %v4311 = vadd.f32 %v3766, %v4310
  %v4312 = vpop.f32.mrf.mxu0
  %v4313 = vpop.f32.mrf.mxu0
  %v4314 = vadd.f32 %v3769, %v4313
  %v4315 = vpop.f32.mrf.mxu0
  %4316 = vmatprep.mubr.bf16.mxu0 %v2749
  %4317 = vmatmul.mubr.bf16.gmra.mxu0 %v1940
  %v4318 = vpop.f32.mrf.mxu0
  %v4319 = vadd.f32 %v3774, %v4318
  %v4320 = vpop.f32.mrf.mxu0
  %v4321 = vpop.f32.mrf.mxu0
  %v4322 = vadd.f32 %v3777, %v4321
  %v4323 = vpop.f32.mrf.mxu0
  %4324 = vmatprep.mubr.bf16.mxu0 %v2752
  %4325 = vmatmul.mubr.bf16.gmra.mxu0 %v1946
  %v4326 = vpop.f32.mrf.mxu0
  %v4327 = vadd.f32 %v3782, %v4326
  %v4328 = vpop.f32.mrf.mxu0
  %v4329 = vpop.f32.mrf.mxu0
  %v4330 = vadd.f32 %v3785, %v4329
  %v4331 = vpop.f32.mrf.mxu0
  %4332 = vmatprep.mubr.bf16.mxu0 %v2755
  %4333 = vmatmul.mubr.bf16.gmra.mxu0 %v1952
  %v4334 = vpop.f32.mrf.mxu0
  %v4335 = vadd.f32 %v3790, %v4334
  %v4336 = vpop.f32.mrf.mxu0
  %v4337 = vpop.f32.mrf.mxu0
  %v4338 = vadd.f32 %v3793, %v4337
  %v4339 = vpop.f32.mrf.mxu0
  %4340 = vmatprep.mubr.bf16.mxu0 %v2758
  %4341 = vmatmul.mubr.bf16.gmra.mxu0 %v1958
  %v4342 = vpop.f32.mrf.mxu0
  %v4343 = vadd.f32 %v3798, %v4342
  %v4344 = vpop.f32.mrf.mxu0
  %v4345 = vpop.f32.mrf.mxu0
  %v4346 = vadd.f32 %v3801, %v4345
  %v4347 = vpop.f32.mrf.mxu0
  %4348 = vmatprep.mubr.bf16.mxu0 %v2761
  %4349 = vmatmul.mubr.bf16.gmra.mxu0 %v1964
  %v4350 = vpop.f32.mrf.mxu0
  %v4351 = vadd.f32 %v3806, %v4350
  %v4352 = vpop.f32.mrf.mxu0
  %v4353 = vpop.f32.mrf.mxu0
  %v4354 = vadd.f32 %v3809, %v4353
  %v4355 = vpop.f32.mrf.mxu0
  %4356 = vmatprep.mubr.bf16.mxu0 %v2764
  %4357 = vmatmul.mubr.bf16.gmra.mxu0 %v1970
  %v4358 = vpop.f32.mrf.mxu0
  %v4359 = vadd.f32 %v3814, %v4358
  %v4360 = vpop.f32.mrf.mxu0
  %v4361 = vpop.f32.mrf.mxu0
  %v4362 = vadd.f32 %v3817, %v4361
  %v4363 = vpop.f32.mrf.mxu0
  %4364 = vmatprep.mubr.bf16.mxu0 %v2767
  %4365 = vmatmul.mubr.bf16.gmra.mxu0 %v1976
  %v4366 = vpop.f32.mrf.mxu0
  %v4367 = vadd.f32 %v3822, %v4366
  %v4368 = vpop.f32.mrf.mxu0
  %v4369 = vpop.f32.mrf.mxu0
  %v4370 = vadd.f32 %v3825, %v4369
  %v4371 = vpop.f32.mrf.mxu0
  %4372 = vmatprep.mubr.bf16.mxu0 %v2770
  %4373 = vmatmul.mubr.bf16.gmra.mxu0 %v1982
  %v4374 = vpop.f32.mrf.mxu0
  %v4375 = vadd.f32 %v3830, %v4374
  %v4376 = vpop.f32.mrf.mxu0
  %v4377 = vpop.f32.mrf.mxu0
  %v4378 = vadd.f32 %v3833, %v4377
  %v4379 = vpop.f32.mrf.mxu0
  %4380 = vmatprep.mubr.bf16.mxu0 %v2773
  %4381 = vmatmul.mubr.bf16.gmra.mxu0 %v1988
  %v4382 = vpop.f32.mrf.mxu0
  %v4383 = vadd.f32 %v3838, %v4382
  %v4384 = vpop.f32.mrf.mxu0
  %v4385 = vpop.f32.mrf.mxu0
  %v4386 = vadd.f32 %v3841, %v4385
  %v4387 = vpop.f32.mrf.mxu0
  %4388 = vmatprep.mubr.bf16.mxu0 %v2776
  %4389 = vmatmul.mubr.bf16.gmra.mxu0 %v1994
  %v4390 = vpop.f32.mrf.mxu0
  %v4391 = vadd.f32 %v3846, %v4390
  %v4392 = vpop.f32.mrf.mxu0
  %v4393 = vpop.f32.mrf.mxu0
  %v4394 = vadd.f32 %v3849, %v4393
  %v4395 = vpop.f32.mrf.mxu0
  %4396 = vmatprep.mubr.bf16.mxu0 %v2779
  %4397 = vmatmul.mubr.bf16.gmra.mxu0 %v2000
  %v4398 = vpop.f32.mrf.mxu0
  %v4399 = vadd.f32 %v3854, %v4398
  %v4400 = vpop.f32.mrf.mxu0
  %v4401 = vpop.f32.mrf.mxu0
  %v4402 = vadd.f32 %v3857, %v4401
  %v4403 = vpop.f32.mrf.mxu0
  %4404 = vmatprep.mubr.bf16.mxu0 %v2782
  %4405 = vmatmul.mubr.bf16.gmra.mxu0 %v2006
  %v4406 = vpop.f32.mrf.mxu0
  %v4407 = vadd.f32 %v3862, %v4406
  %v4408 = vpop.f32.mrf.mxu0
  %v4409 = vpop.f32.mrf.mxu0
  %v4410 = vadd.f32 %v3865, %v4409
  %v4411 = vpop.f32.mrf.mxu0
  %4412 = vmatprep.mubr.bf16.mxu0 %v2785
  %4413 = vmatmul.mubr.bf16.gmra.mxu0 %v2012
  %v4414 = vpop.f32.mrf.mxu0
  %v4415 = vadd.f32 %v3870, %v4414
  %v4416 = vpop.f32.mrf.mxu0
  %v4417 = vpop.f32.mrf.mxu0
  %v4418 = vadd.f32 %v3873, %v4417
  %v4419 = vpop.f32.mrf.mxu0
  %4420 = vmatprep.mubr.bf16.mxu0 %v2788
  %4421 = vmatmul.mubr.bf16.gmra.mxu0 %v2018
  %v4422 = vpop.f32.mrf.mxu0
  %v4423 = vadd.f32 %v3878, %v4422
  %v4424 = vpop.f32.mrf.mxu0
  %v4425 = vpop.f32.mrf.mxu0
  %v4426 = vadd.f32 %v3881, %v4425
  %v4427 = vpop.f32.mrf.mxu0
  %4428 = vdwg.mxu0
  %4557 = vrot.lane.b32.xlu0 %v3919, 64
  %v4558 = vpop.permute.xlu0 %4557
  %4559 = vrot.lane.b32.xlu0 %v3922, 64
  %v4560 = vpop.permute.xlu0 %4559
  %4561 = vrot.lane.b32.xlu0 %v3927, 64
  %v4562 = vpop.permute.xlu0 %4561
  %4563 = vrot.lane.b32.xlu0 %v3930, 64
  %v4564 = vpop.permute.xlu0 %4563
  %4565 = vrot.lane.b32.xlu0 %v3935, 64
  %v4566 = vpop.permute.xlu0 %4565
  %4567 = vrot.lane.b32.xlu0 %v3938, 64
  %v4568 = vpop.permute.xlu0 %4567
  %4569 = vrot.lane.b32.xlu0 %v3943, 64
  %v4570 = vpop.permute.xlu0 %4569
  %4571 = vrot.lane.b32.xlu0 %v3946, 64
  %v4572 = vpop.permute.xlu0 %4571
  %4573 = vrot.lane.b32.xlu0 %v3951, 64
  %v4574 = vpop.permute.xlu0 %4573
  %4575 = vrot.lane.b32.xlu0 %v3954, 64
  %v4576 = vpop.permute.xlu0 %4575
  %4577 = vrot.lane.b32.xlu0 %v3959, 64
  %v4578 = vpop.permute.xlu0 %4577
  %4579 = vrot.lane.b32.xlu0 %v3962, 64
  %v4580 = vpop.permute.xlu0 %4579
  %4581 = vrot.lane.b32.xlu0 %v3967, 64
  %v4582 = vpop.permute.xlu0 %4581
  %4583 = vrot.lane.b32.xlu0 %v3970, 64
  %v4584 = vpop.permute.xlu0 %4583
  %4585 = vrot.lane.b32.xlu0 %v3975, 64
  %v4586 = vpop.permute.xlu0 %4585
  %4587 = vrot.lane.b32.xlu0 %v3978, 64
  %v4588 = vpop.permute.xlu0 %4587
  %4589 = vrot.lane.b32.xlu0 %v3983, 64
  %v4590 = vpop.permute.xlu0 %4589
  %4591 = vrot.lane.b32.xlu0 %v3986, 64
  %v4592 = vpop.permute.xlu0 %4591
  %4593 = vrot.lane.b32.xlu0 %v3991, 64
  %v4594 = vpop.permute.xlu0 %4593
  %4595 = vrot.lane.b32.xlu0 %v3994, 64
  %v4596 = vpop.permute.xlu0 %4595
  %4597 = vrot.lane.b32.xlu0 %v3999, 64
  %v4598 = vpop.permute.xlu0 %4597
  %4599 = vrot.lane.b32.xlu0 %v4002, 64
  %v4600 = vpop.permute.xlu0 %4599
  %4601 = vrot.lane.b32.xlu0 %v4007, 64
  %v4602 = vpop.permute.xlu0 %4601
  %4603 = vrot.lane.b32.xlu0 %v4010, 64
  %v4604 = vpop.permute.xlu0 %4603
  %4605 = vrot.lane.b32.xlu0 %v4015, 64
  %v4606 = vpop.permute.xlu0 %4605
  %4607 = vrot.lane.b32.xlu0 %v4018, 64
  %v4608 = vpop.permute.xlu0 %4607
  %4609 = vrot.lane.b32.xlu0 %v4023, 64
  %v4610 = vpop.permute.xlu0 %4609
  %4611 = vrot.lane.b32.xlu0 %v4026, 64
  %v4612 = vpop.permute.xlu0 %4611
  %4613 = vrot.lane.b32.xlu0 %v4031, 64
  %v4614 = vpop.permute.xlu0 %4613
  %4615 = vrot.lane.b32.xlu0 %v4034, 64
  %v4616 = vpop.permute.xlu0 %4615
  %4617 = vrot.lane.b32.xlu0 %v4039, 64
  %v4618 = vpop.permute.xlu0 %4617
  %4619 = vrot.lane.b32.xlu0 %v4042, 64
  %v4620 = vpop.permute.xlu0 %4619
  %4621 = vrot.lane.b32.xlu0 %v4047, 64
  %v4622 = vpop.permute.xlu0 %4621
  %4623 = vrot.lane.b32.xlu0 %v4050, 64
  %v4624 = vpop.permute.xlu0 %4623
  %4625 = vrot.lane.b32.xlu0 %v4055, 64
  %v4626 = vpop.permute.xlu0 %4625
  %4627 = vrot.lane.b32.xlu0 %v4058, 64
  %v4628 = vpop.permute.xlu0 %4627
  %4629 = vrot.lane.b32.xlu0 %v4063, 64
  %v4630 = vpop.permute.xlu0 %4629
  %4631 = vrot.lane.b32.xlu0 %v4066, 64
  %v4632 = vpop.permute.xlu0 %4631
  %4633 = vrot.lane.b32.xlu0 %v4071, 64
  %v4634 = vpop.permute.xlu0 %4633
  %4635 = vrot.lane.b32.xlu0 %v4074, 64
  %v4636 = vpop.permute.xlu0 %4635
  %4637 = vrot.lane.b32.xlu0 %v4079, 64
  %v4638 = vpop.permute.xlu0 %4637
  %4639 = vrot.lane.b32.xlu0 %v4082, 64
  %v4640 = vpop.permute.xlu0 %4639
  %4641 = vrot.lane.b32.xlu0 %v4087, 64
  %v4642 = vpop.permute.xlu0 %4641
  %4643 = vrot.lane.b32.xlu0 %v4090, 64
  %v4644 = vpop.permute.xlu0 %4643
  %4645 = vrot.lane.b32.xlu0 %v4095, 64
  %v4646 = vpop.permute.xlu0 %4645
  %4647 = vrot.lane.b32.xlu0 %v4098, 64
  %v4648 = vpop.permute.xlu0 %4647
  %4649 = vrot.lane.b32.xlu0 %v4103, 64
  %v4650 = vpop.permute.xlu0 %4649
  %4651 = vrot.lane.b32.xlu0 %v4106, 64
  %v4652 = vpop.permute.xlu0 %4651
  %4653 = vrot.lane.b32.xlu0 %v4111, 64
  %v4654 = vpop.permute.xlu0 %4653
  %4655 = vrot.lane.b32.xlu0 %v4114, 64
  %v4656 = vpop.permute.xlu0 %4655
  %4657 = vrot.lane.b32.xlu0 %v4119, 64
  %v4658 = vpop.permute.xlu0 %4657
  %4659 = vrot.lane.b32.xlu0 %v4122, 64
  %v4660 = vpop.permute.xlu0 %4659
  %4661 = vrot.lane.b32.xlu0 %v4127, 64
  %v4662 = vpop.permute.xlu0 %4661
  %4663 = vrot.lane.b32.xlu0 %v4130, 64
  %v4664 = vpop.permute.xlu0 %4663
  %4665 = vrot.lane.b32.xlu0 %v4135, 64
  %v4666 = vpop.permute.xlu0 %4665
  %4667 = vrot.lane.b32.xlu0 %v4138, 64
  %v4668 = vpop.permute.xlu0 %4667
  %4669 = vrot.lane.b32.xlu0 %v4143, 64
  %v4670 = vpop.permute.xlu0 %4669
  %4671 = vrot.lane.b32.xlu0 %v4146, 64
  %v4672 = vpop.permute.xlu0 %4671
  %4673 = vrot.lane.b32.xlu0 %v4151, 64
  %v4674 = vpop.permute.xlu0 %4673
  %4675 = vrot.lane.b32.xlu0 %v4154, 64
  %v4676 = vpop.permute.xlu0 %4675
  %4677 = vrot.lane.b32.xlu0 %v4159, 64
  %v4678 = vpop.permute.xlu0 %4677
  %4679 = vrot.lane.b32.xlu0 %v4162, 64
  %v4680 = vpop.permute.xlu0 %4679
  %4681 = vrot.lane.b32.xlu0 %v4167, 64
  %v4682 = vpop.permute.xlu0 %4681
  %4683 = vrot.lane.b32.xlu0 %v4170, 64
  %v4684 = vpop.permute.xlu0 %4683
  %4685 = vrot.lane.b32.xlu0 %v4175, 64
  %v4686 = vpop.permute.xlu0 %4685
  %4687 = vrot.lane.b32.xlu0 %v4178, 64
  %v4688 = vpop.permute.xlu0 %4687
  %4689 = vrot.lane.b32.xlu0 %v4183, 64
  %v4690 = vpop.permute.xlu0 %4689
  %4691 = vrot.lane.b32.xlu0 %v4186, 64
  %v4692 = vpop.permute.xlu0 %4691
  %4693 = vrot.lane.b32.xlu0 %v4191, 64
  %v4694 = vpop.permute.xlu0 %4693
  %4695 = vrot.lane.b32.xlu0 %v4194, 64
  %v4696 = vpop.permute.xlu0 %4695
  %4697 = vrot.lane.b32.xlu0 %v4199, 64
  %v4698 = vpop.permute.xlu0 %4697
  %4699 = vrot.lane.b32.xlu0 %v4202, 64
  %v4700 = vpop.permute.xlu0 %4699
  %4701 = vrot.lane.b32.xlu0 %v4207, 64
  %v4702 = vpop.permute.xlu0 %4701
  %4703 = vrot.lane.b32.xlu0 %v4210, 64
  %v4704 = vpop.permute.xlu0 %4703
  %4705 = vrot.lane.b32.xlu0 %v4215, 64
  %v4706 = vpop.permute.xlu0 %4705
  %4707 = vrot.lane.b32.xlu0 %v4218, 64
  %v4708 = vpop.permute.xlu0 %4707
  %4709 = vrot.lane.b32.xlu0 %v4223, 64
  %v4710 = vpop.permute.xlu0 %4709
  %4711 = vrot.lane.b32.xlu0 %v4226, 64
  %v4712 = vpop.permute.xlu0 %4711
  %4713 = vrot.lane.b32.xlu0 %v4231, 64
  %v4714 = vpop.permute.xlu0 %4713
  %4715 = vrot.lane.b32.xlu0 %v4234, 64
  %v4716 = vpop.permute.xlu0 %4715
  %4717 = vrot.lane.b32.xlu0 %v4239, 64
  %v4718 = vpop.permute.xlu0 %4717
  %4719 = vrot.lane.b32.xlu0 %v4242, 64
  %v4720 = vpop.permute.xlu0 %4719
  %4721 = vrot.lane.b32.xlu0 %v4247, 64
  %v4722 = vpop.permute.xlu0 %4721
  %4723 = vrot.lane.b32.xlu0 %v4250, 64
  %v4724 = vpop.permute.xlu0 %4723
  %4725 = vrot.lane.b32.xlu0 %v4255, 64
  %v4726 = vpop.permute.xlu0 %4725
  %4727 = vrot.lane.b32.xlu0 %v4258, 64
  %v4728 = vpop.permute.xlu0 %4727
  %4729 = vrot.lane.b32.xlu0 %v4263, 64
  %v4730 = vpop.permute.xlu0 %4729
  %4731 = vrot.lane.b32.xlu0 %v4266, 64
  %v4732 = vpop.permute.xlu0 %4731
  %4733 = vrot.lane.b32.xlu0 %v4271, 64
  %v4734 = vpop.permute.xlu0 %4733
  %4735 = vrot.lane.b32.xlu0 %v4274, 64
  %v4736 = vpop.permute.xlu0 %4735
  %4737 = vrot.lane.b32.xlu0 %v4279, 64
  %v4738 = vpop.permute.xlu0 %4737
  %4739 = vrot.lane.b32.xlu0 %v4282, 64
  %v4740 = vpop.permute.xlu0 %4739
  %4741 = vrot.lane.b32.xlu0 %v4287, 64
  %v4742 = vpop.permute.xlu0 %4741
  %4743 = vrot.lane.b32.xlu0 %v4290, 64
  %v4744 = vpop.permute.xlu0 %4743
  %4745 = vrot.lane.b32.xlu0 %v4295, 64
  %v4746 = vpop.permute.xlu0 %4745
  %4747 = vrot.lane.b32.xlu0 %v4298, 64
  %v4748 = vpop.permute.xlu0 %4747
  %4749 = vrot.lane.b32.xlu0 %v4303, 64
  %v4750 = vpop.permute.xlu0 %4749
  %4751 = vrot.lane.b32.xlu0 %v4306, 64
  %v4752 = vpop.permute.xlu0 %4751
  %4753 = vrot.lane.b32.xlu0 %v4311, 64
  %v4754 = vpop.permute.xlu0 %4753
  %4755 = vrot.lane.b32.xlu0 %v4314, 64
  %v4756 = vpop.permute.xlu0 %4755
  %4757 = vrot.lane.b32.xlu0 %v4319, 64
  %v4758 = vpop.permute.xlu0 %4757
  %4759 = vrot.lane.b32.xlu0 %v4322, 64
  %v4760 = vpop.permute.xlu0 %4759
  %4761 = vrot.lane.b32.xlu0 %v4327, 64
  %v4762 = vpop.permute.xlu0 %4761
  %4763 = vrot.lane.b32.xlu0 %v4330, 64
  %v4764 = vpop.permute.xlu0 %4763
  %4765 = vrot.lane.b32.xlu0 %v4335, 64
  %v4766 = vpop.permute.xlu0 %4765
  %4767 = vrot.lane.b32.xlu0 %v4338, 64
  %v4768 = vpop.permute.xlu0 %4767
  %4769 = vrot.lane.b32.xlu0 %v4343, 64
  %v4770 = vpop.permute.xlu0 %4769
  %4771 = vrot.lane.b32.xlu0 %v4346, 64
  %v4772 = vpop.permute.xlu0 %4771
  %4773 = vrot.lane.b32.xlu0 %v4351, 64
  %v4774 = vpop.permute.xlu0 %4773
  %4775 = vrot.lane.b32.xlu0 %v4354, 64
  %v4776 = vpop.permute.xlu0 %4775
  %4777 = vrot.lane.b32.xlu0 %v4359, 64
  %v4778 = vpop.permute.xlu0 %4777
  %4779 = vrot.lane.b32.xlu0 %v4362, 64
  %v4780 = vpop.permute.xlu0 %4779
  %4781 = vrot.lane.b32.xlu0 %v4367, 64
  %v4782 = vpop.permute.xlu0 %4781
  %4783 = vrot.lane.b32.xlu0 %v4370, 64
  %v4784 = vpop.permute.xlu0 %4783
  %4785 = vrot.lane.b32.xlu0 %v4375, 64
  %v4786 = vpop.permute.xlu0 %4785
  %4787 = vrot.lane.b32.xlu0 %v4378, 64
  %v4788 = vpop.permute.xlu0 %4787
  %4789 = vrot.lane.b32.xlu0 %v4383, 64
  %v4790 = vpop.permute.xlu0 %4789
  %4791 = vrot.lane.b32.xlu0 %v4386, 64
  %v4792 = vpop.permute.xlu0 %4791
  %4793 = vrot.lane.b32.xlu0 %v4391, 64
  %v4794 = vpop.permute.xlu0 %4793
  %4795 = vrot.lane.b32.xlu0 %v4394, 64
  %v4796 = vpop.permute.xlu0 %4795
  %4797 = vrot.lane.b32.xlu0 %v4399, 64
  %v4798 = vpop.permute.xlu0 %4797
  %4799 = vrot.lane.b32.xlu0 %v4402, 64
  %v4800 = vpop.permute.xlu0 %4799
  %4801 = vrot.lane.b32.xlu0 %v4407, 64
  %v4802 = vpop.permute.xlu0 %4801
  %4803 = vrot.lane.b32.xlu0 %v4410, 64
  %v4804 = vpop.permute.xlu0 %4803
  %4805 = vrot.lane.b32.xlu0 %v4415, 64
  %v4806 = vpop.permute.xlu0 %4805
  %4807 = vrot.lane.b32.xlu0 %v4418, 64
  %v4808 = vpop.permute.xlu0 %4807
  %4809 = vrot.lane.b32.xlu0 %v4423, 64
  %v4810 = vpop.permute.xlu0 %4809
  %4811 = vrot.lane.b32.xlu0 %v4426, 64
  %v4812 = vpop.permute.xlu0 %4811
  %v4941 = vsub.f32 %v3919, %v4558
  %v4942 = vsub.f32 %v3922, %v4560
  %v4943 = vsub.f32 %v3927, %v4562
  %v4944 = vsub.f32 %v3930, %v4564
  %v4945 = vsub.f32 %v3935, %v4566
  %v4946 = vsub.f32 %v3938, %v4568
  %v4947 = vsub.f32 %v3943, %v4570
  %v4948 = vsub.f32 %v3946, %v4572
  %v4949 = vsub.f32 %v3951, %v4574
  %v4950 = vsub.f32 %v3954, %v4576
  %v4951 = vsub.f32 %v3959, %v4578
  %v4952 = vsub.f32 %v3962, %v4580
  %v4953 = vsub.f32 %v3967, %v4582
  %v4954 = vsub.f32 %v3970, %v4584
  %v4955 = vsub.f32 %v3975, %v4586
  %v4956 = vsub.f32 %v3978, %v4588
  %v4957 = vsub.f32 %v3983, %v4590
  %v4958 = vsub.f32 %v3986, %v4592
  %v4959 = vsub.f32 %v3991, %v4594
  %v4960 = vsub.f32 %v3994, %v4596
  %v4961 = vsub.f32 %v3999, %v4598
  %v4962 = vsub.f32 %v4002, %v4600
  %v4963 = vsub.f32 %v4007, %v4602
  %v4964 = vsub.f32 %v4010, %v4604
  %v4965 = vsub.f32 %v4015, %v4606
  %v4966 = vsub.f32 %v4018, %v4608
  %v4967 = vsub.f32 %v4023, %v4610
  %v4968 = vsub.f32 %v4026, %v4612
  %v4969 = vsub.f32 %v4031, %v4614
  %v4970 = vsub.f32 %v4034, %v4616
  %v4971 = vsub.f32 %v4039, %v4618
  %v4972 = vsub.f32 %v4042, %v4620
  %v4973 = vsub.f32 %v4047, %v4622
  %v4974 = vsub.f32 %v4050, %v4624
  %v4975 = vsub.f32 %v4055, %v4626
  %v4976 = vsub.f32 %v4058, %v4628
  %v4977 = vsub.f32 %v4063, %v4630
  %v4978 = vsub.f32 %v4066, %v4632
  %v4979 = vsub.f32 %v4071, %v4634
  %v4980 = vsub.f32 %v4074, %v4636
  %v4981 = vsub.f32 %v4079, %v4638
  %v4982 = vsub.f32 %v4082, %v4640
  %v4983 = vsub.f32 %v4087, %v4642
  %v4984 = vsub.f32 %v4090, %v4644
  %v4985 = vsub.f32 %v4095, %v4646
  %v4986 = vsub.f32 %v4098, %v4648
  %v4987 = vsub.f32 %v4103, %v4650
  %v4988 = vsub.f32 %v4106, %v4652
  %v4989 = vsub.f32 %v4111, %v4654
  %v4990 = vsub.f32 %v4114, %v4656
  %v4991 = vsub.f32 %v4119, %v4658
  %v4992 = vsub.f32 %v4122, %v4660
  %v4993 = vsub.f32 %v4127, %v4662
  %v4994 = vsub.f32 %v4130, %v4664
  %v4995 = vsub.f32 %v4135, %v4666
  %v4996 = vsub.f32 %v4138, %v4668
  %v4997 = vsub.f32 %v4143, %v4670
  %v4998 = vsub.f32 %v4146, %v4672
  %v4999 = vsub.f32 %v4151, %v4674
  %v5000 = vsub.f32 %v4154, %v4676
  %v5001 = vsub.f32 %v4159, %v4678
  %v5002 = vsub.f32 %v4162, %v4680
  %v5003 = vsub.f32 %v4167, %v4682
  %v5004 = vsub.f32 %v4170, %v4684
  %v5005 = vsub.f32 %v4175, %v4686
  %v5006 = vsub.f32 %v4178, %v4688
  %v5007 = vsub.f32 %v4183, %v4690
  %v5008 = vsub.f32 %v4186, %v4692
  %v5009 = vsub.f32 %v4191, %v4694
  %v5010 = vsub.f32 %v4194, %v4696
  %v5011 = vsub.f32 %v4199, %v4698
  %v5012 = vsub.f32 %v4202, %v4700
  %v5013 = vsub.f32 %v4207, %v4702
  %v5014 = vsub.f32 %v4210, %v4704
  %v5015 = vsub.f32 %v4215, %v4706
  %v5016 = vsub.f32 %v4218, %v4708
  %v5017 = vsub.f32 %v4223, %v4710
  %v5018 = vsub.f32 %v4226, %v4712
  %v5019 = vsub.f32 %v4231, %v4714
  %v5020 = vsub.f32 %v4234, %v4716
  %v5021 = vsub.f32 %v4239, %v4718
  %v5022 = vsub.f32 %v4242, %v4720
  %v5023 = vsub.f32 %v4247, %v4722
  %v5024 = vsub.f32 %v4250, %v4724
  %v5025 = vsub.f32 %v4255, %v4726
  %v5026 = vsub.f32 %v4258, %v4728
  %v5027 = vsub.f32 %v4263, %v4730
  %v5028 = vsub.f32 %v4266, %v4732
  %v5029 = vsub.f32 %v4271, %v4734
  %v5030 = vsub.f32 %v4274, %v4736
  %v5031 = vsub.f32 %v4279, %v4738
  %v5032 = vsub.f32 %v4282, %v4740
  %v5033 = vsub.f32 %v4287, %v4742
  %v5034 = vsub.f32 %v4290, %v4744
  %v5035 = vsub.f32 %v4295, %v4746
  %v5036 = vsub.f32 %v4298, %v4748
  %v5037 = vsub.f32 %v4303, %v4750
  %v5038 = vsub.f32 %v4306, %v4752
  %v5039 = vsub.f32 %v4311, %v4754
  %v5040 = vsub.f32 %v4314, %v4756
  %v5041 = vsub.f32 %v4319, %v4758
  %v5042 = vsub.f32 %v4322, %v4760
  %v5043 = vsub.f32 %v4327, %v4762
  %v5044 = vsub.f32 %v4330, %v4764
  %v5045 = vsub.f32 %v4335, %v4766
  %v5046 = vsub.f32 %v4338, %v4768
  %v5047 = vsub.f32 %v4343, %v4770
  %v5048 = vsub.f32 %v4346, %v4772
  %v5049 = vsub.f32 %v4351, %v4774
  %v5050 = vsub.f32 %v4354, %v4776
  %v5051 = vsub.f32 %v4359, %v4778
  %v5052 = vsub.f32 %v4362, %v4780
  %v5053 = vsub.f32 %v4367, %v4782
  %v5054 = vsub.f32 %v4370, %v4784
  %v5055 = vsub.f32 %v4375, %v4786
  %v5056 = vsub.f32 %v4378, %v4788
  %v5057 = vsub.f32 %v4383, %v4790
  %v5058 = vsub.f32 %v4386, %v4792
  %v5059 = vsub.f32 %v4391, %v4794
  %v5060 = vsub.f32 %v4394, %v4796
  %v5061 = vsub.f32 %v4399, %v4798
  %v5062 = vsub.f32 %v4402, %v4800
  %v5063 = vsub.f32 %v4407, %v4802
  %v5064 = vsub.f32 %v4410, %v4804
  %v5065 = vsub.f32 %v4415, %v4806
  %v5066 = vsub.f32 %v4418, %v4808
  %v5067 = vsub.f32 %v4423, %v4810
  %v5068 = vsub.f32 %v4426, %v4812
  %v5069 = vmul.f32 %v4941, 2.0
  %v5070 = vmul.f32 %v4942, 2.0
  %v5071 = vmul.f32 %v4943, 2.0
  %v5072 = vmul.f32 %v4944, 2.0
  %v5073 = vmul.f32 %v4945, 2.0
  %v5074 = vmul.f32 %v4946, 2.0
  %v5075 = vmul.f32 %v4947, 2.0
  %v5076 = vmul.f32 %v4948, 2.0
  %v5077 = vmul.f32 %v4949, 2.0
  %v5078 = vmul.f32 %v4950, 2.0
  %v5079 = vmul.f32 %v4951, 2.0
  %v5080 = vmul.f32 %v4952, 2.0
  %v5081 = vmul.f32 %v4953, 2.0
  %v5082 = vmul.f32 %v4954, 2.0
  %v5083 = vmul.f32 %v4955, 2.0
  %v5084 = vmul.f32 %v4956, 2.0
  %v5085 = vmul.f32 %v4957, 2.0
  %v5086 = vmul.f32 %v4958, 2.0
  %v5087 = vmul.f32 %v4959, 2.0
  %v5088 = vmul.f32 %v4960, 2.0
  %v5089 = vmul.f32 %v4961, 2.0
  %v5090 = vmul.f32 %v4962, 2.0
  %v5091 = vmul.f32 %v4963, 2.0
  %v5092 = vmul.f32 %v4964, 2.0
  %v5093 = vmul.f32 %v4965, 2.0
  %v5094 = vmul.f32 %v4966, 2.0
  %v5095 = vmul.f32 %v4967, 2.0
  %v5096 = vmul.f32 %v4968, 2.0
  %v5097 = vmul.f32 %v4969, 2.0
  %v5098 = vmul.f32 %v4970, 2.0
  %v5099 = vmul.f32 %v4971, 2.0
  %v5100 = vmul.f32 %v4972, 2.0
  %v5101 = vmul.f32 %v4973, 2.0
  %v5102 = vmul.f32 %v4974, 2.0
  %v5103 = vmul.f32 %v4975, 2.0
  %v5104 = vmul.f32 %v4976, 2.0
  %v5105 = vmul.f32 %v4977, 2.0
  %v5106 = vmul.f32 %v4978, 2.0
  %v5107 = vmul.f32 %v4979, 2.0
  %v5108 = vmul.f32 %v4980, 2.0
  %v5109 = vmul.f32 %v4981, 2.0
  %v5110 = vmul.f32 %v4982, 2.0
  %v5111 = vmul.f32 %v4983, 2.0
  %v5112 = vmul.f32 %v4984, 2.0
  %v5113 = vmul.f32 %v4985, 2.0
  %v5114 = vmul.f32 %v4986, 2.0
  %v5115 = vmul.f32 %v4987, 2.0
  %v5116 = vmul.f32 %v4988, 2.0
  %v5117 = vmul.f32 %v4989, 2.0
  %v5118 = vmul.f32 %v4990, 2.0
  %v5119 = vmul.f32 %v4991, 2.0
  %v5120 = vmul.f32 %v4992, 2.0
  %v5121 = vmul.f32 %v4993, 2.0
  %v5122 = vmul.f32 %v4994, 2.0
  %v5123 = vmul.f32 %v4995, 2.0
  %v5124 = vmul.f32 %v4996, 2.0
  %v5125 = vmul.f32 %v4997, 2.0
  %v5126 = vmul.f32 %v4998, 2.0
  %v5127 = vmul.f32 %v4999, 2.0
  %v5128 = vmul.f32 %v5000, 2.0
  %v5129 = vmul.f32 %v5001, 2.0
  %v5130 = vmul.f32 %v5002, 2.0
  %v5131 = vmul.f32 %v5003, 2.0
  %v5132 = vmul.f32 %v5004, 2.0
  %v5133 = vmul.f32 %v5005, 2.0
  %v5134 = vmul.f32 %v5006, 2.0
  %v5135 = vmul.f32 %v5007, 2.0
  %v5136 = vmul.f32 %v5008, 2.0
  %v5137 = vmul.f32 %v5009, 2.0
  %v5138 = vmul.f32 %v5010, 2.0
  %v5139 = vmul.f32 %v5011, 2.0
  %v5140 = vmul.f32 %v5012, 2.0
  %v5141 = vmul.f32 %v5013, 2.0
  %v5142 = vmul.f32 %v5014, 2.0
  %v5143 = vmul.f32 %v5015, 2.0
  %v5144 = vmul.f32 %v5016, 2.0
  %v5145 = vmul.f32 %v5017, 2.0
  %v5146 = vmul.f32 %v5018, 2.0
  %v5147 = vmul.f32 %v5019, 2.0
  %v5148 = vmul.f32 %v5020, 2.0
  %v5149 = vmul.f32 %v5021, 2.0
  %v5150 = vmul.f32 %v5022, 2.0
  %v5151 = vmul.f32 %v5023, 2.0
  %v5152 = vmul.f32 %v5024, 2.0
  %v5153 = vmul.f32 %v5025, 2.0
  %v5154 = vmul.f32 %v5026, 2.0
  %v5155 = vmul.f32 %v5027, 2.0
  %v5156 = vmul.f32 %v5028, 2.0
  %v5157 = vmul.f32 %v5029, 2.0
  %v5158 = vmul.f32 %v5030, 2.0
  %v5159 = vmul.f32 %v5031, 2.0
  %v5160 = vmul.f32 %v5032, 2.0
  %v5161 = vmul.f32 %v5033, 2.0
  %v5162 = vmul.f32 %v5034, 2.0
  %v5163 = vmul.f32 %v5035, 2.0
  %v5164 = vmul.f32 %v5036, 2.0
  %v5165 = vmul.f32 %v5037, 2.0
  %v5166 = vmul.f32 %v5038, 2.0
  %v5167 = vmul.f32 %v5039, 2.0
  %v5168 = vmul.f32 %v5040, 2.0
  %v5169 = vmul.f32 %v5041, 2.0
  %v5170 = vmul.f32 %v5042, 2.0
  %v5171 = vmul.f32 %v5043, 2.0
  %v5172 = vmul.f32 %v5044, 2.0
  %v5173 = vmul.f32 %v5045, 2.0
  %v5174 = vmul.f32 %v5046, 2.0
  %v5175 = vmul.f32 %v5047, 2.0
  %v5176 = vmul.f32 %v5048, 2.0
  %v5177 = vmul.f32 %v5049, 2.0
  %v5178 = vmul.f32 %v5050, 2.0
  %v5179 = vmul.f32 %v5051, 2.0
  %v5180 = vmul.f32 %v5052, 2.0
  %v5181 = vmul.f32 %v5053, 2.0
  %v5182 = vmul.f32 %v5054, 2.0
  %v5183 = vmul.f32 %v5055, 2.0
  %v5184 = vmul.f32 %v5056, 2.0
  %v5185 = vmul.f32 %v5057, 2.0
  %v5186 = vmul.f32 %v5058, 2.0
  %v5187 = vmul.f32 %v5059, 2.0
  %v5188 = vmul.f32 %v5060, 2.0
  %v5189 = vmul.f32 %v5061, 2.0
  %v5190 = vmul.f32 %v5062, 2.0
  %v5191 = vmul.f32 %v5063, 2.0
  %v5192 = vmul.f32 %v5064, 2.0
  %v5193 = vmul.f32 %v5065, 2.0
  %v5194 = vmul.f32 %v5066, 2.0
  %v5195 = vmul.f32 %v5067, 2.0
  %v5196 = vmul.f32 %v5068, 2.0
  %vm5197 = vcmask 523264
  %v5198 = vsel %vm5197, %v5069, -inf
  %5199 = vmax.xlane.f32.xlu0 %v5198
  %v5200 = vpop.xlane.xlu0 %5199
  %v5201 = vsel %vm5197, %v5070, -inf
  %5202 = vmax.xlane.f32.xlu0 %v5201
  %v5203 = vpop.xlane.xlu0 %5202
  %v5204 = vsel %vm5197, %v5071, -inf
  %5205 = vmax.xlane.f32.xlu0 %v5204
  %v5206 = vpop.xlane.xlu0 %5205
  %v5207 = vsel %vm5197, %v5072, -inf
  %5208 = vmax.xlane.f32.xlu0 %v5207
  %v5209 = vpop.xlane.xlu0 %5208
  %v5210 = vsel %vm5197, %v5073, -inf
  %5211 = vmax.xlane.f32.xlu0 %v5210
  %v5212 = vpop.xlane.xlu0 %5211
  %v5213 = vsel %vm5197, %v5074, -inf
  %5214 = vmax.xlane.f32.xlu0 %v5213
  %v5215 = vpop.xlane.xlu0 %5214
  %v5216 = vsel %vm5197, %v5075, -inf
  %5217 = vmax.xlane.f32.xlu0 %v5216
  %v5218 = vpop.xlane.xlu0 %5217
  %v5219 = vsel %vm5197, %v5076, -inf
  %5220 = vmax.xlane.f32.xlu0 %v5219
  %v5221 = vpop.xlane.xlu0 %5220
  %v5222 = vsel %vm5197, %v5077, -inf
  %5223 = vmax.xlane.f32.xlu0 %v5222
  %v5224 = vpop.xlane.xlu0 %5223
  %v5225 = vsel %vm5197, %v5078, -inf
  %5226 = vmax.xlane.f32.xlu0 %v5225
  %v5227 = vpop.xlane.xlu0 %5226
  %v5228 = vsel %vm5197, %v5079, -inf
  %5229 = vmax.xlane.f32.xlu0 %v5228
  %v5230 = vpop.xlane.xlu0 %5229
  %v5231 = vsel %vm5197, %v5080, -inf
  %5232 = vmax.xlane.f32.xlu0 %v5231
  %v5233 = vpop.xlane.xlu0 %5232
  %v5234 = vsel %vm5197, %v5081, -inf
  %5235 = vmax.xlane.f32.xlu0 %v5234
  %v5236 = vpop.xlane.xlu0 %5235
  %v5237 = vsel %vm5197, %v5082, -inf
  %5238 = vmax.xlane.f32.xlu0 %v5237
  %v5239 = vpop.xlane.xlu0 %5238
  %v5240 = vsel %vm5197, %v5083, -inf
  %5241 = vmax.xlane.f32.xlu0 %v5240
  %v5242 = vpop.xlane.xlu0 %5241
  %v5243 = vsel %vm5197, %v5084, -inf
  %5244 = vmax.xlane.f32.xlu0 %v5243
  %v5245 = vpop.xlane.xlu0 %5244
  %v5246 = vsel %vm5197, %v5085, -inf
  %5247 = vmax.xlane.f32.xlu0 %v5246
  %v5248 = vpop.xlane.xlu0 %5247
  %v5249 = vsel %vm5197, %v5086, -inf
  %5250 = vmax.xlane.f32.xlu0 %v5249
  %v5251 = vpop.xlane.xlu0 %5250
  %v5252 = vsel %vm5197, %v5087, -inf
  %5253 = vmax.xlane.f32.xlu0 %v5252
  %v5254 = vpop.xlane.xlu0 %5253
  %v5255 = vsel %vm5197, %v5088, -inf
  %5256 = vmax.xlane.f32.xlu0 %v5255
  %v5257 = vpop.xlane.xlu0 %5256
  %v5258 = vsel %vm5197, %v5089, -inf
  %5259 = vmax.xlane.f32.xlu0 %v5258
  %v5260 = vpop.xlane.xlu0 %5259
  %v5261 = vsel %vm5197, %v5090, -inf
  %5262 = vmax.xlane.f32.xlu0 %v5261
  %v5263 = vpop.xlane.xlu0 %5262
  %v5264 = vsel %vm5197, %v5091, -inf
  %5265 = vmax.xlane.f32.xlu0 %v5264
  %v5266 = vpop.xlane.xlu0 %5265
  %v5267 = vsel %vm5197, %v5092, -inf
  %5268 = vmax.xlane.f32.xlu0 %v5267
  %v5269 = vpop.xlane.xlu0 %5268
  %v5270 = vsel %vm5197, %v5093, -inf
  %5271 = vmax.xlane.f32.xlu0 %v5270
  %v5272 = vpop.xlane.xlu0 %5271
  %v5273 = vsel %vm5197, %v5094, -inf
  %5274 = vmax.xlane.f32.xlu0 %v5273
  %v5275 = vpop.xlane.xlu0 %5274
  %v5276 = vsel %vm5197, %v5095, -inf
  %5277 = vmax.xlane.f32.xlu0 %v5276
  %v5278 = vpop.xlane.xlu0 %5277
  %v5279 = vsel %vm5197, %v5096, -inf
  %5280 = vmax.xlane.f32.xlu0 %v5279
  %v5281 = vpop.xlane.xlu0 %5280
  %v5282 = vsel %vm5197, %v5097, -inf
  %5283 = vmax.xlane.f32.xlu0 %v5282
  %v5284 = vpop.xlane.xlu0 %5283
  %v5285 = vsel %vm5197, %v5098, -inf
  %5286 = vmax.xlane.f32.xlu0 %v5285
  %v5287 = vpop.xlane.xlu0 %5286
  %v5288 = vsel %vm5197, %v5099, -inf
  %5289 = vmax.xlane.f32.xlu0 %v5288
  %v5290 = vpop.xlane.xlu0 %5289
  %v5291 = vsel %vm5197, %v5100, -inf
  %5292 = vmax.xlane.f32.xlu0 %v5291
  %v5293 = vpop.xlane.xlu0 %5292
  %v5294 = vsel %vm5197, %v5101, -inf
  %5295 = vmax.xlane.f32.xlu0 %v5294
  %v5296 = vpop.xlane.xlu0 %5295
  %v5297 = vsel %vm5197, %v5102, -inf
  %5298 = vmax.xlane.f32.xlu0 %v5297
  %v5299 = vpop.xlane.xlu0 %5298
  %v5300 = vsel %vm5197, %v5103, -inf
  %5301 = vmax.xlane.f32.xlu0 %v5300
  %v5302 = vpop.xlane.xlu0 %5301
  %v5303 = vsel %vm5197, %v5104, -inf
  %5304 = vmax.xlane.f32.xlu0 %v5303
  %v5305 = vpop.xlane.xlu0 %5304
  %v5306 = vsel %vm5197, %v5105, -inf
  %5307 = vmax.xlane.f32.xlu0 %v5306
  %v5308 = vpop.xlane.xlu0 %5307
  %v5309 = vsel %vm5197, %v5106, -inf
  %5310 = vmax.xlane.f32.xlu0 %v5309
  %v5311 = vpop.xlane.xlu0 %5310
  %v5312 = vsel %vm5197, %v5107, -inf
  %5313 = vmax.xlane.f32.xlu0 %v5312
  %v5314 = vpop.xlane.xlu0 %5313
  %v5315 = vsel %vm5197, %v5108, -inf
  %5316 = vmax.xlane.f32.xlu0 %v5315
  %v5317 = vpop.xlane.xlu0 %5316
  %v5318 = vsel %vm5197, %v5109, -inf
  %5319 = vmax.xlane.f32.xlu0 %v5318
  %v5320 = vpop.xlane.xlu0 %5319
  %v5321 = vsel %vm5197, %v5110, -inf
  %5322 = vmax.xlane.f32.xlu0 %v5321
  %v5323 = vpop.xlane.xlu0 %5322
  %v5324 = vsel %vm5197, %v5111, -inf
  %5325 = vmax.xlane.f32.xlu0 %v5324
  %v5326 = vpop.xlane.xlu0 %5325
  %v5327 = vsel %vm5197, %v5112, -inf
  %5328 = vmax.xlane.f32.xlu0 %v5327
  %v5329 = vpop.xlane.xlu0 %5328
  %v5330 = vsel %vm5197, %v5113, -inf
  %5331 = vmax.xlane.f32.xlu0 %v5330
  %v5332 = vpop.xlane.xlu0 %5331
  %v5333 = vsel %vm5197, %v5114, -inf
  %5334 = vmax.xlane.f32.xlu0 %v5333
  %v5335 = vpop.xlane.xlu0 %5334
  %v5336 = vsel %vm5197, %v5115, -inf
  %5337 = vmax.xlane.f32.xlu0 %v5336
  %v5338 = vpop.xlane.xlu0 %5337
  %v5339 = vsel %vm5197, %v5116, -inf
  %5340 = vmax.xlane.f32.xlu0 %v5339
  %v5341 = vpop.xlane.xlu0 %5340
  %v5342 = vsel %vm5197, %v5117, -inf
  %5343 = vmax.xlane.f32.xlu0 %v5342
  %v5344 = vpop.xlane.xlu0 %5343
  %v5345 = vsel %vm5197, %v5118, -inf
  %5346 = vmax.xlane.f32.xlu0 %v5345
  %v5347 = vpop.xlane.xlu0 %5346
  %v5348 = vsel %vm5197, %v5119, -inf
  %5349 = vmax.xlane.f32.xlu0 %v5348
  %v5350 = vpop.xlane.xlu0 %5349
  %v5351 = vsel %vm5197, %v5120, -inf
  %5352 = vmax.xlane.f32.xlu0 %v5351
  %v5353 = vpop.xlane.xlu0 %5352
  %v5354 = vsel %vm5197, %v5121, -inf
  %5355 = vmax.xlane.f32.xlu0 %v5354
  %v5356 = vpop.xlane.xlu0 %5355
  %v5357 = vsel %vm5197, %v5122, -inf
  %5358 = vmax.xlane.f32.xlu0 %v5357
  %v5359 = vpop.xlane.xlu0 %5358
  %v5360 = vsel %vm5197, %v5123, -inf
  %5361 = vmax.xlane.f32.xlu0 %v5360
  %v5362 = vpop.xlane.xlu0 %5361
  %v5363 = vsel %vm5197, %v5124, -inf
  %5364 = vmax.xlane.f32.xlu0 %v5363
  %v5365 = vpop.xlane.xlu0 %5364
  %v5366 = vsel %vm5197, %v5125, -inf
  %5367 = vmax.xlane.f32.xlu0 %v5366
  %v5368 = vpop.xlane.xlu0 %5367
  %v5369 = vsel %vm5197, %v5126, -inf
  %5370 = vmax.xlane.f32.xlu0 %v5369
  %v5371 = vpop.xlane.xlu0 %5370
  %v5372 = vsel %vm5197, %v5127, -inf
  %5373 = vmax.xlane.f32.xlu0 %v5372
  %v5374 = vpop.xlane.xlu0 %5373
  %v5375 = vsel %vm5197, %v5128, -inf
  %5376 = vmax.xlane.f32.xlu0 %v5375
  %v5377 = vpop.xlane.xlu0 %5376
  %v5378 = vsel %vm5197, %v5129, -inf
  %5379 = vmax.xlane.f32.xlu0 %v5378
  %v5380 = vpop.xlane.xlu0 %5379
  %v5381 = vsel %vm5197, %v5130, -inf
  %5382 = vmax.xlane.f32.xlu0 %v5381
  %v5383 = vpop.xlane.xlu0 %5382
  %v5384 = vsel %vm5197, %v5131, -inf
  %5385 = vmax.xlane.f32.xlu0 %v5384
  %v5386 = vpop.xlane.xlu0 %5385
  %v5387 = vsel %vm5197, %v5132, -inf
  %5388 = vmax.xlane.f32.xlu0 %v5387
  %v5389 = vpop.xlane.xlu0 %5388
  %v5390 = vsel %vm5197, %v5133, -inf
  %5391 = vmax.xlane.f32.xlu0 %v5390
  %v5392 = vpop.xlane.xlu0 %5391
  %v5393 = vsel %vm5197, %v5134, -inf
  %5394 = vmax.xlane.f32.xlu0 %v5393
  %v5395 = vpop.xlane.xlu0 %5394
  %v5396 = vsel %vm5197, %v5135, -inf
  %5397 = vmax.xlane.f32.xlu0 %v5396
  %v5398 = vpop.xlane.xlu0 %5397
  %v5399 = vsel %vm5197, %v5136, -inf
  %5400 = vmax.xlane.f32.xlu0 %v5399
  %v5401 = vpop.xlane.xlu0 %5400
  %v5402 = vsel %vm5197, %v5137, -inf
  %5403 = vmax.xlane.f32.xlu0 %v5402
  %v5404 = vpop.xlane.xlu0 %5403
  %v5405 = vsel %vm5197, %v5138, -inf
  %5406 = vmax.xlane.f32.xlu0 %v5405
  %v5407 = vpop.xlane.xlu0 %5406
  %v5408 = vsel %vm5197, %v5139, -inf
  %5409 = vmax.xlane.f32.xlu0 %v5408
  %v5410 = vpop.xlane.xlu0 %5409
  %v5411 = vsel %vm5197, %v5140, -inf
  %5412 = vmax.xlane.f32.xlu0 %v5411
  %v5413 = vpop.xlane.xlu0 %5412
  %v5414 = vsel %vm5197, %v5141, -inf
  %5415 = vmax.xlane.f32.xlu0 %v5414
  %v5416 = vpop.xlane.xlu0 %5415
  %v5417 = vsel %vm5197, %v5142, -inf
  %5418 = vmax.xlane.f32.xlu0 %v5417
  %v5419 = vpop.xlane.xlu0 %5418
  %v5420 = vsel %vm5197, %v5143, -inf
  %5421 = vmax.xlane.f32.xlu0 %v5420
  %v5422 = vpop.xlane.xlu0 %5421
  %v5423 = vsel %vm5197, %v5144, -inf
  %5424 = vmax.xlane.f32.xlu0 %v5423
  %v5425 = vpop.xlane.xlu0 %5424
  %v5426 = vsel %vm5197, %v5145, -inf
  %5427 = vmax.xlane.f32.xlu0 %v5426
  %v5428 = vpop.xlane.xlu0 %5427
  %v5429 = vsel %vm5197, %v5146, -inf
  %5430 = vmax.xlane.f32.xlu0 %v5429
  %v5431 = vpop.xlane.xlu0 %5430
  %v5432 = vsel %vm5197, %v5147, -inf
  %5433 = vmax.xlane.f32.xlu0 %v5432
  %v5434 = vpop.xlane.xlu0 %5433
  %v5435 = vsel %vm5197, %v5148, -inf
  %5436 = vmax.xlane.f32.xlu0 %v5435
  %v5437 = vpop.xlane.xlu0 %5436
  %v5438 = vsel %vm5197, %v5149, -inf
  %5439 = vmax.xlane.f32.xlu0 %v5438
  %v5440 = vpop.xlane.xlu0 %5439
  %v5441 = vsel %vm5197, %v5150, -inf
  %5442 = vmax.xlane.f32.xlu0 %v5441
  %v5443 = vpop.xlane.xlu0 %5442
  %v5444 = vsel %vm5197, %v5151, -inf
  %5445 = vmax.xlane.f32.xlu0 %v5444
  %v5446 = vpop.xlane.xlu0 %5445
  %v5447 = vsel %vm5197, %v5152, -inf
  %5448 = vmax.xlane.f32.xlu0 %v5447
  %v5449 = vpop.xlane.xlu0 %5448
  %v5450 = vsel %vm5197, %v5153, -inf
  %5451 = vmax.xlane.f32.xlu0 %v5450
  %v5452 = vpop.xlane.xlu0 %5451
  %v5453 = vsel %vm5197, %v5154, -inf
  %5454 = vmax.xlane.f32.xlu0 %v5453
  %v5455 = vpop.xlane.xlu0 %5454
  %v5456 = vsel %vm5197, %v5155, -inf
  %5457 = vmax.xlane.f32.xlu0 %v5456
  %v5458 = vpop.xlane.xlu0 %5457
  %v5459 = vsel %vm5197, %v5156, -inf
  %5460 = vmax.xlane.f32.xlu0 %v5459
  %v5461 = vpop.xlane.xlu0 %5460
  %v5462 = vsel %vm5197, %v5157, -inf
  %5463 = vmax.xlane.f32.xlu0 %v5462
  %v5464 = vpop.xlane.xlu0 %5463
  %v5465 = vsel %vm5197, %v5158, -inf
  %5466 = vmax.xlane.f32.xlu0 %v5465
  %v5467 = vpop.xlane.xlu0 %5466
  %v5468 = vsel %vm5197, %v5159, -inf
  %5469 = vmax.xlane.f32.xlu0 %v5468
  %v5470 = vpop.xlane.xlu0 %5469
  %v5471 = vsel %vm5197, %v5160, -inf
  %5472 = vmax.xlane.f32.xlu0 %v5471
  %v5473 = vpop.xlane.xlu0 %5472
  %v5474 = vsel %vm5197, %v5161, -inf
  %5475 = vmax.xlane.f32.xlu0 %v5474
  %v5476 = vpop.xlane.xlu0 %5475
  %v5477 = vsel %vm5197, %v5162, -inf
  %5478 = vmax.xlane.f32.xlu0 %v5477
  %v5479 = vpop.xlane.xlu0 %5478
  %v5480 = vsel %vm5197, %v5163, -inf
  %5481 = vmax.xlane.f32.xlu0 %v5480
  %v5482 = vpop.xlane.xlu0 %5481
  %v5483 = vsel %vm5197, %v5164, -inf
  %5484 = vmax.xlane.f32.xlu0 %v5483
  %v5485 = vpop.xlane.xlu0 %5484
  %v5486 = vsel %vm5197, %v5165, -inf
  %5487 = vmax.xlane.f32.xlu0 %v5486
  %v5488 = vpop.xlane.xlu0 %5487
  %v5489 = vsel %vm5197, %v5166, -inf
  %5490 = vmax.xlane.f32.xlu0 %v5489
  %v5491 = vpop.xlane.xlu0 %5490
  %v5492 = vsel %vm5197, %v5167, -inf
  %5493 = vmax.xlane.f32.xlu0 %v5492
  %v5494 = vpop.xlane.xlu0 %5493
  %v5495 = vsel %vm5197, %v5168, -inf
  %5496 = vmax.xlane.f32.xlu0 %v5495
  %v5497 = vpop.xlane.xlu0 %5496
  %v5498 = vsel %vm5197, %v5169, -inf
  %5499 = vmax.xlane.f32.xlu0 %v5498
  %v5500 = vpop.xlane.xlu0 %5499
  %v5501 = vsel %vm5197, %v5170, -inf
  %5502 = vmax.xlane.f32.xlu0 %v5501
  %v5503 = vpop.xlane.xlu0 %5502
  %v5504 = vsel %vm5197, %v5171, -inf
  %5505 = vmax.xlane.f32.xlu0 %v5504
  %v5506 = vpop.xlane.xlu0 %5505
  %v5507 = vsel %vm5197, %v5172, -inf
  %5508 = vmax.xlane.f32.xlu0 %v5507
  %v5509 = vpop.xlane.xlu0 %5508
  %v5510 = vsel %vm5197, %v5173, -inf
  %5511 = vmax.xlane.f32.xlu0 %v5510
  %v5512 = vpop.xlane.xlu0 %5511
  %v5513 = vsel %vm5197, %v5174, -inf
  %5514 = vmax.xlane.f32.xlu0 %v5513
  %v5515 = vpop.xlane.xlu0 %5514
  %v5516 = vsel %vm5197, %v5175, -inf
  %5517 = vmax.xlane.f32.xlu0 %v5516
  %v5518 = vpop.xlane.xlu0 %5517
  %v5519 = vsel %vm5197, %v5176, -inf
  %5520 = vmax.xlane.f32.xlu0 %v5519
  %v5521 = vpop.xlane.xlu0 %5520
  %v5522 = vsel %vm5197, %v5177, -inf
  %5523 = vmax.xlane.f32.xlu0 %v5522
  %v5524 = vpop.xlane.xlu0 %5523
  %v5525 = vsel %vm5197, %v5178, -inf
  %5526 = vmax.xlane.f32.xlu0 %v5525
  %v5527 = vpop.xlane.xlu0 %5526
  %v5528 = vsel %vm5197, %v5179, -inf
  %5529 = vmax.xlane.f32.xlu0 %v5528
  %v5530 = vpop.xlane.xlu0 %5529
  %v5531 = vsel %vm5197, %v5180, -inf
  %5532 = vmax.xlane.f32.xlu0 %v5531
  %v5533 = vpop.xlane.xlu0 %5532
  %v5534 = vsel %vm5197, %v5181, -inf
  %5535 = vmax.xlane.f32.xlu0 %v5534
  %v5536 = vpop.xlane.xlu0 %5535
  %v5537 = vsel %vm5197, %v5182, -inf
  %5538 = vmax.xlane.f32.xlu0 %v5537
  %v5539 = vpop.xlane.xlu0 %5538
  %v5540 = vsel %vm5197, %v5183, -inf
  %5541 = vmax.xlane.f32.xlu0 %v5540
  %v5542 = vpop.xlane.xlu0 %5541
  %v5543 = vsel %vm5197, %v5184, -inf
  %5544 = vmax.xlane.f32.xlu0 %v5543
  %v5545 = vpop.xlane.xlu0 %5544
  %v5546 = vsel %vm5197, %v5185, -inf
  %5547 = vmax.xlane.f32.xlu0 %v5546
  %v5548 = vpop.xlane.xlu0 %5547
  %v5549 = vsel %vm5197, %v5186, -inf
  %5550 = vmax.xlane.f32.xlu0 %v5549
  %v5551 = vpop.xlane.xlu0 %5550
  %v5552 = vsel %vm5197, %v5187, -inf
  %5553 = vmax.xlane.f32.xlu0 %v5552
  %v5554 = vpop.xlane.xlu0 %5553
  %v5555 = vsel %vm5197, %v5188, -inf
  %5556 = vmax.xlane.f32.xlu0 %v5555
  %v5557 = vpop.xlane.xlu0 %5556
  %v5558 = vsel %vm5197, %v5189, -inf
  %5559 = vmax.xlane.f32.xlu0 %v5558
  %v5560 = vpop.xlane.xlu0 %5559
  %v5561 = vsel %vm5197, %v5190, -inf
  %5562 = vmax.xlane.f32.xlu0 %v5561
  %v5563 = vpop.xlane.xlu0 %5562
  %v5564 = vsel %vm5197, %v5191, -inf
  %5565 = vmax.xlane.f32.xlu0 %v5564
  %v5566 = vpop.xlane.xlu0 %5565
  %v5567 = vsel %vm5197, %v5192, -inf
  %5568 = vmax.xlane.f32.xlu0 %v5567
  %v5569 = vpop.xlane.xlu0 %5568
  %v5570 = vsel %vm5197, %v5193, -inf
  %5571 = vmax.xlane.f32.xlu0 %v5570
  %v5572 = vpop.xlane.xlu0 %5571
  %v5573 = vsel %vm5197, %v5194, -inf
  %5574 = vmax.xlane.f32.xlu0 %v5573
  %v5575 = vpop.xlane.xlu0 %5574
  %v5576 = vsel %vm5197, %v5195, -inf
  %5577 = vmax.xlane.f32.xlu0 %v5576
  %v5578 = vpop.xlane.xlu0 %5577
  %v5579 = vsel %vm5197, %v5196, -inf
  %5580 = vmax.xlane.f32.xlu0 %v5579
  %v5581 = vpop.xlane.xlu0 %5580
  %v5582 = vsel %vm5197, %v5069, 0.0
  %5583 = vadd.xlane.f32.xlu0 %v5582
  %v5584 = vpop.xlane.xlu0 %5583
  %v5585 = vsel %vm5197, %v5070, 0.0
  %5586 = vadd.xlane.f32.xlu0 %v5585
  %v5587 = vpop.xlane.xlu0 %5586
  %v5588 = vsel %vm5197, %v5071, 0.0
  %5589 = vadd.xlane.f32.xlu0 %v5588
  %v5590 = vpop.xlane.xlu0 %5589
  %v5591 = vsel %vm5197, %v5072, 0.0
  %5592 = vadd.xlane.f32.xlu0 %v5591
  %v5593 = vpop.xlane.xlu0 %5592
  %v5594 = vsel %vm5197, %v5073, 0.0
  %5595 = vadd.xlane.f32.xlu0 %v5594
  %v5596 = vpop.xlane.xlu0 %5595
  %v5597 = vsel %vm5197, %v5074, 0.0
  %5598 = vadd.xlane.f32.xlu0 %v5597
  %v5599 = vpop.xlane.xlu0 %5598
  %v5600 = vsel %vm5197, %v5075, 0.0
  %5601 = vadd.xlane.f32.xlu0 %v5600
  %v5602 = vpop.xlane.xlu0 %5601
  %v5603 = vsel %vm5197, %v5076, 0.0
  %5604 = vadd.xlane.f32.xlu0 %v5603
  %v5605 = vpop.xlane.xlu0 %5604
  %v5606 = vsel %vm5197, %v5077, 0.0
  %5607 = vadd.xlane.f32.xlu0 %v5606
  %v5608 = vpop.xlane.xlu0 %5607
  %v5609 = vsel %vm5197, %v5078, 0.0
  %5610 = vadd.xlane.f32.xlu0 %v5609
  %v5611 = vpop.xlane.xlu0 %5610
  %v5612 = vsel %vm5197, %v5079, 0.0
  %5613 = vadd.xlane.f32.xlu0 %v5612
  %v5614 = vpop.xlane.xlu0 %5613
  %v5615 = vsel %vm5197, %v5080, 0.0
  %5616 = vadd.xlane.f32.xlu0 %v5615
  %v5617 = vpop.xlane.xlu0 %5616
  %v5618 = vsel %vm5197, %v5081, 0.0
  %5619 = vadd.xlane.f32.xlu0 %v5618
  %v5620 = vpop.xlane.xlu0 %5619
  %v5621 = vsel %vm5197, %v5082, 0.0
  %5622 = vadd.xlane.f32.xlu0 %v5621
  %v5623 = vpop.xlane.xlu0 %5622
  %v5624 = vsel %vm5197, %v5083, 0.0
  %5625 = vadd.xlane.f32.xlu0 %v5624
  %v5626 = vpop.xlane.xlu0 %5625
  %v5627 = vsel %vm5197, %v5084, 0.0
  %5628 = vadd.xlane.f32.xlu0 %v5627
  %v5629 = vpop.xlane.xlu0 %5628
  %v5630 = vsel %vm5197, %v5085, 0.0
  %5631 = vadd.xlane.f32.xlu0 %v5630
  %v5632 = vpop.xlane.xlu0 %5631
  %v5633 = vsel %vm5197, %v5086, 0.0
  %5634 = vadd.xlane.f32.xlu0 %v5633
  %v5635 = vpop.xlane.xlu0 %5634
  %v5636 = vsel %vm5197, %v5087, 0.0
  %5637 = vadd.xlane.f32.xlu0 %v5636
  %v5638 = vpop.xlane.xlu0 %5637
  %v5639 = vsel %vm5197, %v5088, 0.0
  %5640 = vadd.xlane.f32.xlu0 %v5639
  %v5641 = vpop.xlane.xlu0 %5640
  %v5642 = vsel %vm5197, %v5089, 0.0
  %5643 = vadd.xlane.f32.xlu0 %v5642
  %v5644 = vpop.xlane.xlu0 %5643
  %v5645 = vsel %vm5197, %v5090, 0.0
  %5646 = vadd.xlane.f32.xlu0 %v5645
  %v5647 = vpop.xlane.xlu0 %5646
  %v5648 = vsel %vm5197, %v5091, 0.0
  %5649 = vadd.xlane.f32.xlu0 %v5648
  %v5650 = vpop.xlane.xlu0 %5649
  %v5651 = vsel %vm5197, %v5092, 0.0
  %5652 = vadd.xlane.f32.xlu0 %v5651
  %v5653 = vpop.xlane.xlu0 %5652
  %v5654 = vsel %vm5197, %v5093, 0.0
  %5655 = vadd.xlane.f32.xlu0 %v5654
  %v5656 = vpop.xlane.xlu0 %5655
  %v5657 = vsel %vm5197, %v5094, 0.0
  %5658 = vadd.xlane.f32.xlu0 %v5657
  %v5659 = vpop.xlane.xlu0 %5658
  %v5660 = vsel %vm5197, %v5095, 0.0
  %5661 = vadd.xlane.f32.xlu0 %v5660
  %v5662 = vpop.xlane.xlu0 %5661
  %v5663 = vsel %vm5197, %v5096, 0.0
  %5664 = vadd.xlane.f32.xlu0 %v5663
  %v5665 = vpop.xlane.xlu0 %5664
  %v5666 = vsel %vm5197, %v5097, 0.0
  %5667 = vadd.xlane.f32.xlu0 %v5666
  %v5668 = vpop.xlane.xlu0 %5667
  %v5669 = vsel %vm5197, %v5098, 0.0
  %5670 = vadd.xlane.f32.xlu0 %v5669
  %v5671 = vpop.xlane.xlu0 %5670
  %v5672 = vsel %vm5197, %v5099, 0.0
  %5673 = vadd.xlane.f32.xlu0 %v5672
  %v5674 = vpop.xlane.xlu0 %5673
  %v5675 = vsel %vm5197, %v5100, 0.0
  %5676 = vadd.xlane.f32.xlu0 %v5675
  %v5677 = vpop.xlane.xlu0 %5676
  %v5678 = vsel %vm5197, %v5101, 0.0
  %5679 = vadd.xlane.f32.xlu0 %v5678
  %v5680 = vpop.xlane.xlu0 %5679
  %v5681 = vsel %vm5197, %v5102, 0.0
  %5682 = vadd.xlane.f32.xlu0 %v5681
  %v5683 = vpop.xlane.xlu0 %5682
  %v5684 = vsel %vm5197, %v5103, 0.0
  %5685 = vadd.xlane.f32.xlu0 %v5684
  %v5686 = vpop.xlane.xlu0 %5685
  %v5687 = vsel %vm5197, %v5104, 0.0
  %5688 = vadd.xlane.f32.xlu0 %v5687
  %v5689 = vpop.xlane.xlu0 %5688
  %v5690 = vsel %vm5197, %v5105, 0.0
  %5691 = vadd.xlane.f32.xlu0 %v5690
  %v5692 = vpop.xlane.xlu0 %5691
  %v5693 = vsel %vm5197, %v5106, 0.0
  %5694 = vadd.xlane.f32.xlu0 %v5693
  %v5695 = vpop.xlane.xlu0 %5694
  %v5696 = vsel %vm5197, %v5107, 0.0
  %5697 = vadd.xlane.f32.xlu0 %v5696
  %v5698 = vpop.xlane.xlu0 %5697
  %v5699 = vsel %vm5197, %v5108, 0.0
  %5700 = vadd.xlane.f32.xlu0 %v5699
  %v5701 = vpop.xlane.xlu0 %5700
  %v5702 = vsel %vm5197, %v5109, 0.0
  %5703 = vadd.xlane.f32.xlu0 %v5702
  %v5704 = vpop.xlane.xlu0 %5703
  %v5705 = vsel %vm5197, %v5110, 0.0
  %5706 = vadd.xlane.f32.xlu0 %v5705
  %v5707 = vpop.xlane.xlu0 %5706
  %v5708 = vsel %vm5197, %v5111, 0.0
  %5709 = vadd.xlane.f32.xlu0 %v5708
  %v5710 = vpop.xlane.xlu0 %5709
  %v5711 = vsel %vm5197, %v5112, 0.0
  %5712 = vadd.xlane.f32.xlu0 %v5711
  %v5713 = vpop.xlane.xlu0 %5712
  %v5714 = vsel %vm5197, %v5113, 0.0
  %5715 = vadd.xlane.f32.xlu0 %v5714
  %v5716 = vpop.xlane.xlu0 %5715
  %v5717 = vsel %vm5197, %v5114, 0.0
  %5718 = vadd.xlane.f32.xlu0 %v5717
  %v5719 = vpop.xlane.xlu0 %5718
  %v5720 = vsel %vm5197, %v5115, 0.0
  %5721 = vadd.xlane.f32.xlu0 %v5720
  %v5722 = vpop.xlane.xlu0 %5721
  %v5723 = vsel %vm5197, %v5116, 0.0
  %5724 = vadd.xlane.f32.xlu0 %v5723
  %v5725 = vpop.xlane.xlu0 %5724
  %v5726 = vsel %vm5197, %v5117, 0.0
  %5727 = vadd.xlane.f32.xlu0 %v5726
  %v5728 = vpop.xlane.xlu0 %5727
  %v5729 = vsel %vm5197, %v5118, 0.0
  %5730 = vadd.xlane.f32.xlu0 %v5729
  %v5731 = vpop.xlane.xlu0 %5730
  %v5732 = vsel %vm5197, %v5119, 0.0
  %5733 = vadd.xlane.f32.xlu0 %v5732
  %v5734 = vpop.xlane.xlu0 %5733
  %v5735 = vsel %vm5197, %v5120, 0.0
  %5736 = vadd.xlane.f32.xlu0 %v5735
  %v5737 = vpop.xlane.xlu0 %5736
  %v5738 = vsel %vm5197, %v5121, 0.0
  %5739 = vadd.xlane.f32.xlu0 %v5738
  %v5740 = vpop.xlane.xlu0 %5739
  %v5741 = vsel %vm5197, %v5122, 0.0
  %5742 = vadd.xlane.f32.xlu0 %v5741
  %v5743 = vpop.xlane.xlu0 %5742
  %v5744 = vsel %vm5197, %v5123, 0.0
  %5745 = vadd.xlane.f32.xlu0 %v5744
  %v5746 = vpop.xlane.xlu0 %5745
  %v5747 = vsel %vm5197, %v5124, 0.0
  %5748 = vadd.xlane.f32.xlu0 %v5747
  %v5749 = vpop.xlane.xlu0 %5748
  %v5750 = vsel %vm5197, %v5125, 0.0
  %5751 = vadd.xlane.f32.xlu0 %v5750
  %v5752 = vpop.xlane.xlu0 %5751
  %v5753 = vsel %vm5197, %v5126, 0.0
  %5754 = vadd.xlane.f32.xlu0 %v5753
  %v5755 = vpop.xlane.xlu0 %5754
  %v5756 = vsel %vm5197, %v5127, 0.0
  %5757 = vadd.xlane.f32.xlu0 %v5756
  %v5758 = vpop.xlane.xlu0 %5757
  %v5759 = vsel %vm5197, %v5128, 0.0
  %5760 = vadd.xlane.f32.xlu0 %v5759
  %v5761 = vpop.xlane.xlu0 %5760
  %v5762 = vsel %vm5197, %v5129, 0.0
  %5763 = vadd.xlane.f32.xlu0 %v5762
  %v5764 = vpop.xlane.xlu0 %5763
  %v5765 = vsel %vm5197, %v5130, 0.0
  %5766 = vadd.xlane.f32.xlu0 %v5765
  %v5767 = vpop.xlane.xlu0 %5766
  %v5768 = vsel %vm5197, %v5131, 0.0
  %5769 = vadd.xlane.f32.xlu0 %v5768
  %v5770 = vpop.xlane.xlu0 %5769
  %v5771 = vsel %vm5197, %v5132, 0.0
  %5772 = vadd.xlane.f32.xlu0 %v5771
  %v5773 = vpop.xlane.xlu0 %5772
  %v5774 = vsel %vm5197, %v5133, 0.0
  %5775 = vadd.xlane.f32.xlu0 %v5774
  %v5776 = vpop.xlane.xlu0 %5775
  %v5777 = vsel %vm5197, %v5134, 0.0
  %5778 = vadd.xlane.f32.xlu0 %v5777
  %v5779 = vpop.xlane.xlu0 %5778
  %v5780 = vsel %vm5197, %v5135, 0.0
  %5781 = vadd.xlane.f32.xlu0 %v5780
  %v5782 = vpop.xlane.xlu0 %5781
  %v5783 = vsel %vm5197, %v5136, 0.0
  %5784 = vadd.xlane.f32.xlu0 %v5783
  %v5785 = vpop.xlane.xlu0 %5784
  %v5786 = vsel %vm5197, %v5137, 0.0
  %5787 = vadd.xlane.f32.xlu0 %v5786
  %v5788 = vpop.xlane.xlu0 %5787
  %v5789 = vsel %vm5197, %v5138, 0.0
  %5790 = vadd.xlane.f32.xlu0 %v5789
  %v5791 = vpop.xlane.xlu0 %5790
  %v5792 = vsel %vm5197, %v5139, 0.0
  %5793 = vadd.xlane.f32.xlu0 %v5792
  %v5794 = vpop.xlane.xlu0 %5793
  %v5795 = vsel %vm5197, %v5140, 0.0
  %5796 = vadd.xlane.f32.xlu0 %v5795
  %v5797 = vpop.xlane.xlu0 %5796
  %v5798 = vsel %vm5197, %v5141, 0.0
  %5799 = vadd.xlane.f32.xlu0 %v5798
  %v5800 = vpop.xlane.xlu0 %5799
  %v5801 = vsel %vm5197, %v5142, 0.0
  %5802 = vadd.xlane.f32.xlu0 %v5801
  %v5803 = vpop.xlane.xlu0 %5802
  %v5804 = vsel %vm5197, %v5143, 0.0
  %5805 = vadd.xlane.f32.xlu0 %v5804
  %v5806 = vpop.xlane.xlu0 %5805
  %v5807 = vsel %vm5197, %v5144, 0.0
  %5808 = vadd.xlane.f32.xlu0 %v5807
  %v5809 = vpop.xlane.xlu0 %5808
  %v5810 = vsel %vm5197, %v5145, 0.0
  %5811 = vadd.xlane.f32.xlu0 %v5810
  %v5812 = vpop.xlane.xlu0 %5811
  %v5813 = vsel %vm5197, %v5146, 0.0
  %5814 = vadd.xlane.f32.xlu0 %v5813
  %v5815 = vpop.xlane.xlu0 %5814
  %v5816 = vsel %vm5197, %v5147, 0.0
  %5817 = vadd.xlane.f32.xlu0 %v5816
  %v5818 = vpop.xlane.xlu0 %5817
  %v5819 = vsel %vm5197, %v5148, 0.0
  %5820 = vadd.xlane.f32.xlu0 %v5819
  %v5821 = vpop.xlane.xlu0 %5820
  %v5822 = vsel %vm5197, %v5149, 0.0
  %5823 = vadd.xlane.f32.xlu0 %v5822
  %v5824 = vpop.xlane.xlu0 %5823
  %v5825 = vsel %vm5197, %v5150, 0.0
  %5826 = vadd.xlane.f32.xlu0 %v5825
  %v5827 = vpop.xlane.xlu0 %5826
  %v5828 = vsel %vm5197, %v5151, 0.0
  %5829 = vadd.xlane.f32.xlu0 %v5828
  %v5830 = vpop.xlane.xlu0 %5829
  %v5831 = vsel %vm5197, %v5152, 0.0
  %5832 = vadd.xlane.f32.xlu0 %v5831
  %v5833 = vpop.xlane.xlu0 %5832
  %v5834 = vsel %vm5197, %v5153, 0.0
  %5835 = vadd.xlane.f32.xlu0 %v5834
  %v5836 = vpop.xlane.xlu0 %5835
  %v5837 = vsel %vm5197, %v5154, 0.0
  %5838 = vadd.xlane.f32.xlu0 %v5837
  %v5839 = vpop.xlane.xlu0 %5838
  %v5840 = vsel %vm5197, %v5155, 0.0
  %5841 = vadd.xlane.f32.xlu0 %v5840
  %v5842 = vpop.xlane.xlu0 %5841
  %v5843 = vsel %vm5197, %v5156, 0.0
  %5844 = vadd.xlane.f32.xlu0 %v5843
  %v5845 = vpop.xlane.xlu0 %5844
  %v5846 = vsel %vm5197, %v5157, 0.0
  %5847 = vadd.xlane.f32.xlu0 %v5846
  %v5848 = vpop.xlane.xlu0 %5847
  %v5849 = vsel %vm5197, %v5158, 0.0
  %5850 = vadd.xlane.f32.xlu0 %v5849
  %v5851 = vpop.xlane.xlu0 %5850
  %v5852 = vsel %vm5197, %v5159, 0.0
  %5853 = vadd.xlane.f32.xlu0 %v5852
  %v5854 = vpop.xlane.xlu0 %5853
  %v5855 = vsel %vm5197, %v5160, 0.0
  %5856 = vadd.xlane.f32.xlu0 %v5855
  %v5857 = vpop.xlane.xlu0 %5856
  %v5858 = vsel %vm5197, %v5161, 0.0
  %5859 = vadd.xlane.f32.xlu0 %v5858
  %v5860 = vpop.xlane.xlu0 %5859
  %v5861 = vsel %vm5197, %v5162, 0.0
  %5862 = vadd.xlane.f32.xlu0 %v5861
  %v5863 = vpop.xlane.xlu0 %5862
  %v5864 = vsel %vm5197, %v5163, 0.0
  %5865 = vadd.xlane.f32.xlu0 %v5864
  %v5866 = vpop.xlane.xlu0 %5865
  %v5867 = vsel %vm5197, %v5164, 0.0
  %5868 = vadd.xlane.f32.xlu0 %v5867
  %v5869 = vpop.xlane.xlu0 %5868
  %v5870 = vsel %vm5197, %v5165, 0.0
  %5871 = vadd.xlane.f32.xlu0 %v5870
  %v5872 = vpop.xlane.xlu0 %5871
  %v5873 = vsel %vm5197, %v5166, 0.0
  %5874 = vadd.xlane.f32.xlu0 %v5873
  %v5875 = vpop.xlane.xlu0 %5874
  %v5876 = vsel %vm5197, %v5167, 0.0
  %5877 = vadd.xlane.f32.xlu0 %v5876
  %v5878 = vpop.xlane.xlu0 %5877
  %v5879 = vsel %vm5197, %v5168, 0.0
  %5880 = vadd.xlane.f32.xlu0 %v5879
  %v5881 = vpop.xlane.xlu0 %5880
  %v5882 = vsel %vm5197, %v5169, 0.0
  %5883 = vadd.xlane.f32.xlu0 %v5882
  %v5884 = vpop.xlane.xlu0 %5883
  %v5885 = vsel %vm5197, %v5170, 0.0
  %5886 = vadd.xlane.f32.xlu0 %v5885
  %v5887 = vpop.xlane.xlu0 %5886
  %v5888 = vsel %vm5197, %v5171, 0.0
  %5889 = vadd.xlane.f32.xlu0 %v5888
  %v5890 = vpop.xlane.xlu0 %5889
  %v5891 = vsel %vm5197, %v5172, 0.0
  %5892 = vadd.xlane.f32.xlu0 %v5891
  %v5893 = vpop.xlane.xlu0 %5892
  %v5894 = vsel %vm5197, %v5173, 0.0
  %5895 = vadd.xlane.f32.xlu0 %v5894
  %v5896 = vpop.xlane.xlu0 %5895
  %v5897 = vsel %vm5197, %v5174, 0.0
  %5898 = vadd.xlane.f32.xlu0 %v5897
  %v5899 = vpop.xlane.xlu0 %5898
  %v5900 = vsel %vm5197, %v5175, 0.0
  %5901 = vadd.xlane.f32.xlu0 %v5900
  %v5902 = vpop.xlane.xlu0 %5901
  %v5903 = vsel %vm5197, %v5176, 0.0
  %5904 = vadd.xlane.f32.xlu0 %v5903
  %v5905 = vpop.xlane.xlu0 %5904
  %v5906 = vsel %vm5197, %v5177, 0.0
  %5907 = vadd.xlane.f32.xlu0 %v5906
  %v5908 = vpop.xlane.xlu0 %5907
  %v5909 = vsel %vm5197, %v5178, 0.0
  %5910 = vadd.xlane.f32.xlu0 %v5909
  %v5911 = vpop.xlane.xlu0 %5910
  %v5912 = vsel %vm5197, %v5179, 0.0
  %5913 = vadd.xlane.f32.xlu0 %v5912
  %v5914 = vpop.xlane.xlu0 %5913
  %v5915 = vsel %vm5197, %v5180, 0.0
  %5916 = vadd.xlane.f32.xlu0 %v5915
  %v5917 = vpop.xlane.xlu0 %5916
  %v5918 = vsel %vm5197, %v5181, 0.0
  %5919 = vadd.xlane.f32.xlu0 %v5918
  %v5920 = vpop.xlane.xlu0 %5919
  %v5921 = vsel %vm5197, %v5182, 0.0
  %5922 = vadd.xlane.f32.xlu0 %v5921
  %v5923 = vpop.xlane.xlu0 %5922
  %v5924 = vsel %vm5197, %v5183, 0.0
  %5925 = vadd.xlane.f32.xlu0 %v5924
  %v5926 = vpop.xlane.xlu0 %5925
  %v5927 = vsel %vm5197, %v5184, 0.0
  %5928 = vadd.xlane.f32.xlu0 %v5927
  %v5929 = vpop.xlane.xlu0 %5928
  %v5930 = vsel %vm5197, %v5185, 0.0
  %5931 = vadd.xlane.f32.xlu0 %v5930
  %v5932 = vpop.xlane.xlu0 %5931
  %v5933 = vsel %vm5197, %v5186, 0.0
  %5934 = vadd.xlane.f32.xlu0 %v5933
  %v5935 = vpop.xlane.xlu0 %5934
  %v5936 = vsel %vm5197, %v5187, 0.0
  %5937 = vadd.xlane.f32.xlu0 %v5936
  %v5938 = vpop.xlane.xlu0 %5937
  %v5939 = vsel %vm5197, %v5188, 0.0
  %5940 = vadd.xlane.f32.xlu0 %v5939
  %v5941 = vpop.xlane.xlu0 %5940
  %v5942 = vsel %vm5197, %v5189, 0.0
  %5943 = vadd.xlane.f32.xlu0 %v5942
  %v5944 = vpop.xlane.xlu0 %5943
  %v5945 = vsel %vm5197, %v5190, 0.0
  %5946 = vadd.xlane.f32.xlu0 %v5945
  %v5947 = vpop.xlane.xlu0 %5946
  %v5948 = vsel %vm5197, %v5191, 0.0
  %5949 = vadd.xlane.f32.xlu0 %v5948
  %v5950 = vpop.xlane.xlu0 %5949
  %v5951 = vsel %vm5197, %v5192, 0.0
  %5952 = vadd.xlane.f32.xlu0 %v5951
  %v5953 = vpop.xlane.xlu0 %5952
  %v5954 = vsel %vm5197, %v5193, 0.0
  %5955 = vadd.xlane.f32.xlu0 %v5954
  %v5956 = vpop.xlane.xlu0 %5955
  %v5957 = vsel %vm5197, %v5194, 0.0
  %5958 = vadd.xlane.f32.xlu0 %v5957
  %v5959 = vpop.xlane.xlu0 %5958
  %v5960 = vsel %vm5197, %v5195, 0.0
  %5961 = vadd.xlane.f32.xlu0 %v5960
  %v5962 = vpop.xlane.xlu0 %5961
  %v5963 = vsel %vm5197, %v5196, 0.0
  %5964 = vadd.xlane.f32.xlu0 %v5963
  %v5965 = vpop.xlane.xlu0 %5964
  %v5966 = vrcp.pop 64.0
  %v5967 = vmul.f32 %v5584, %v5966
  %v5968 = vmul.f32 %v5587, %v5966
  %v5969 = vmul.f32 %v5590, %v5966
  %v5970 = vmul.f32 %v5593, %v5966
  %v5971 = vmul.f32 %v5596, %v5966
  %v5972 = vmul.f32 %v5599, %v5966
  %v5973 = vmul.f32 %v5602, %v5966
  %v5974 = vmul.f32 %v5605, %v5966
  %v5975 = vmul.f32 %v5608, %v5966
  %v5976 = vmul.f32 %v5611, %v5966
  %v5977 = vmul.f32 %v5614, %v5966
  %v5978 = vmul.f32 %v5617, %v5966
  %v5979 = vmul.f32 %v5620, %v5966
  %v5980 = vmul.f32 %v5623, %v5966
  %v5981 = vmul.f32 %v5626, %v5966
  %v5982 = vmul.f32 %v5629, %v5966
  %v5983 = vmul.f32 %v5632, %v5966
  %v5984 = vmul.f32 %v5635, %v5966
  %v5985 = vmul.f32 %v5638, %v5966
  %v5986 = vmul.f32 %v5641, %v5966
  %v5987 = vmul.f32 %v5644, %v5966
  %v5988 = vmul.f32 %v5647, %v5966
  %v5989 = vmul.f32 %v5650, %v5966
  %v5990 = vmul.f32 %v5653, %v5966
  %v5991 = vmul.f32 %v5656, %v5966
  %v5992 = vmul.f32 %v5659, %v5966
  %v5993 = vmul.f32 %v5662, %v5966
  %v5994 = vmul.f32 %v5665, %v5966
  %v5995 = vmul.f32 %v5668, %v5966
  %v5996 = vmul.f32 %v5671, %v5966
  %v5997 = vmul.f32 %v5674, %v5966
  %v5998 = vmul.f32 %v5677, %v5966
  %v5999 = vmul.f32 %v5680, %v5966
  %v6000 = vmul.f32 %v5683, %v5966
  %v6001 = vmul.f32 %v5686, %v5966
  %v6002 = vmul.f32 %v5689, %v5966
  %v6003 = vmul.f32 %v5692, %v5966
  %v6004 = vmul.f32 %v5695, %v5966
  %v6005 = vmul.f32 %v5698, %v5966
  %v6006 = vmul.f32 %v5701, %v5966
  %v6007 = vmul.f32 %v5704, %v5966
  %v6008 = vmul.f32 %v5707, %v5966
  %v6009 = vmul.f32 %v5710, %v5966
  %v6010 = vmul.f32 %v5713, %v5966
  %v6011 = vmul.f32 %v5716, %v5966
  %v6012 = vmul.f32 %v5719, %v5966
  %v6013 = vmul.f32 %v5722, %v5966
  %v6014 = vmul.f32 %v5725, %v5966
  %v6015 = vmul.f32 %v5728, %v5966
  %v6016 = vmul.f32 %v5731, %v5966
  %v6017 = vmul.f32 %v5734, %v5966
  %v6018 = vmul.f32 %v5737, %v5966
  %v6019 = vmul.f32 %v5740, %v5966
  %v6020 = vmul.f32 %v5743, %v5966
  %v6021 = vmul.f32 %v5746, %v5966
  %v6022 = vmul.f32 %v5749, %v5966
  %v6023 = vmul.f32 %v5752, %v5966
  %v6024 = vmul.f32 %v5755, %v5966
  %v6025 = vmul.f32 %v5758, %v5966
  %v6026 = vmul.f32 %v5761, %v5966
  %v6027 = vmul.f32 %v5764, %v5966
  %v6028 = vmul.f32 %v5767, %v5966
  %v6029 = vmul.f32 %v5770, %v5966
  %v6030 = vmul.f32 %v5773, %v5966
  %v6031 = vmul.f32 %v5776, %v5966
  %v6032 = vmul.f32 %v5779, %v5966
  %v6033 = vmul.f32 %v5782, %v5966
  %v6034 = vmul.f32 %v5785, %v5966
  %v6035 = vmul.f32 %v5788, %v5966
  %v6036 = vmul.f32 %v5791, %v5966
  %v6037 = vmul.f32 %v5794, %v5966
  %v6038 = vmul.f32 %v5797, %v5966
  %v6039 = vmul.f32 %v5800, %v5966
  %v6040 = vmul.f32 %v5803, %v5966
  %v6041 = vmul.f32 %v5806, %v5966
  %v6042 = vmul.f32 %v5809, %v5966
  %v6043 = vmul.f32 %v5812, %v5966
  %v6044 = vmul.f32 %v5815, %v5966
  %v6045 = vmul.f32 %v5818, %v5966
  %v6046 = vmul.f32 %v5821, %v5966
  %v6047 = vmul.f32 %v5824, %v5966
  %v6048 = vmul.f32 %v5827, %v5966
  %v6049 = vmul.f32 %v5830, %v5966
  %v6050 = vmul.f32 %v5833, %v5966
  %v6051 = vmul.f32 %v5836, %v5966
  %v6052 = vmul.f32 %v5839, %v5966
  %v6053 = vmul.f32 %v5842, %v5966
  %v6054 = vmul.f32 %v5845, %v5966
  %v6055 = vmul.f32 %v5848, %v5966
  %v6056 = vmul.f32 %v5851, %v5966
  %v6057 = vmul.f32 %v5854, %v5966
  %v6058 = vmul.f32 %v5857, %v5966
  %v6059 = vmul.f32 %v5860, %v5966
  %v6060 = vmul.f32 %v5863, %v5966
  %v6061 = vmul.f32 %v5866, %v5966
  %v6062 = vmul.f32 %v5869, %v5966
  %v6063 = vmul.f32 %v5872, %v5966
  %v6064 = vmul.f32 %v5875, %v5966
  %v6065 = vmul.f32 %v5878, %v5966
  %v6066 = vmul.f32 %v5881, %v5966
  %v6067 = vmul.f32 %v5884, %v5966
  %v6068 = vmul.f32 %v5887, %v5966
  %v6069 = vmul.f32 %v5890, %v5966
  %v6070 = vmul.f32 %v5893, %v5966
  %v6071 = vmul.f32 %v5896, %v5966
  %v6072 = vmul.f32 %v5899, %v5966
  %v6073 = vmul.f32 %v5902, %v5966
  %v6074 = vmul.f32 %v5905, %v5966
  %v6075 = vmul.f32 %v5908, %v5966
  %v6076 = vmul.f32 %v5911, %v5966
  %v6077 = vmul.f32 %v5914, %v5966
  %v6078 = vmul.f32 %v5917, %v5966
  %v6079 = vmul.f32 %v5920, %v5966
  %v6080 = vmul.f32 %v5923, %v5966
  %v6081 = vmul.f32 %v5926, %v5966
  %v6082 = vmul.f32 %v5929, %v5966
  %v6083 = vmul.f32 %v5932, %v5966
  %v6084 = vmul.f32 %v5935, %v5966
  %v6085 = vmul.f32 %v5938, %v5966
  %v6086 = vmul.f32 %v5941, %v5966
  %v6087 = vmul.f32 %v5944, %v5966
  %v6088 = vmul.f32 %v5947, %v5966
  %v6089 = vmul.f32 %v5950, %v5966
  %v6090 = vmul.f32 %v5953, %v5966
  %v6091 = vmul.f32 %v5956, %v5966
  %v6092 = vmul.f32 %v5959, %v5966
  %v6093 = vmul.f32 %v5962, %v5966
  %v6094 = vmul.f32 %v5965, %v5966
  %v6095 = vpack.c.bf16 %v3922, %v3919
  %v6096 = vpack.c.bf16 %v3930, %v3927
  %v6097 = vpack.c.bf16 %v3938, %v3935
  %v6098 = vpack.c.bf16 %v3946, %v3943
  %v6099 = vpack.c.bf16 %v3954, %v3951
  %v6100 = vpack.c.bf16 %v3962, %v3959
  %v6101 = vpack.c.bf16 %v3970, %v3967
  %v6102 = vpack.c.bf16 %v3978, %v3975
  %v6103 = vpack.c.bf16 %v3986, %v3983
  %v6104 = vpack.c.bf16 %v3994, %v3991
  %v6105 = vpack.c.bf16 %v4002, %v3999
  %v6106 = vpack.c.bf16 %v4010, %v4007
  %v6107 = vpack.c.bf16 %v4018, %v4015
  %v6108 = vpack.c.bf16 %v4026, %v4023
  %v6109 = vpack.c.bf16 %v4034, %v4031
  %v6110 = vpack.c.bf16 %v4042, %v4039
  %v6111 = vpack.c.bf16 %v4050, %v4047
  %v6112 = vpack.c.bf16 %v4058, %v4055
  %v6113 = vpack.c.bf16 %v4066, %v4063
  %v6114 = vpack.c.bf16 %v4074, %v4071
  %v6115 = vpack.c.bf16 %v4082, %v4079
  %v6116 = vpack.c.bf16 %v4090, %v4087
  %v6117 = vpack.c.bf16 %v4098, %v4095
  %v6118 = vpack.c.bf16 %v4106, %v4103
  %v6119 = vpack.c.bf16 %v4114, %v4111
  %v6120 = vpack.c.bf16 %v4122, %v4119
  %v6121 = vpack.c.bf16 %v4130, %v4127
  %v6122 = vpack.c.bf16 %v4138, %v4135
  %v6123 = vpack.c.bf16 %v4146, %v4143
  %v6124 = vpack.c.bf16 %v4154, %v4151
  %v6125 = vpack.c.bf16 %v4162, %v4159
  %v6126 = vpack.c.bf16 %v4170, %v4167
  %v6127 = vpack.c.bf16 %v4178, %v4175
  %v6128 = vpack.c.bf16 %v4186, %v4183
  %v6129 = vpack.c.bf16 %v4194, %v4191
  %v6130 = vpack.c.bf16 %v4202, %v4199
  %v6131 = vpack.c.bf16 %v4210, %v4207
  %v6132 = vpack.c.bf16 %v4218, %v4215
  %v6133 = vpack.c.bf16 %v4226, %v4223
  %v6134 = vpack.c.bf16 %v4234, %v4231
  %v6135 = vpack.c.bf16 %v4242, %v4239
  %v6136 = vpack.c.bf16 %v4250, %v4247
  %v6137 = vpack.c.bf16 %v4258, %v4255
  %v6138 = vpack.c.bf16 %v4266, %v4263
  %v6139 = vpack.c.bf16 %v4274, %v4271
  %v6140 = vpack.c.bf16 %v4282, %v4279
  %v6141 = vpack.c.bf16 %v4290, %v4287
  %v6142 = vpack.c.bf16 %v4298, %v4295
  %v6143 = vpack.c.bf16 %v4306, %v4303
  %v6144 = vpack.c.bf16 %v4314, %v4311
  %v6145 = vpack.c.bf16 %v4322, %v4319
  %v6146 = vpack.c.bf16 %v4330, %v4327
  %v6147 = vpack.c.bf16 %v4338, %v4335
  %v6148 = vpack.c.bf16 %v4346, %v4343
  %v6149 = vpack.c.bf16 %v4354, %v4351
  %v6150 = vpack.c.bf16 %v4362, %v4359
  %v6151 = vpack.c.bf16 %v4370, %v4367
  %v6152 = vpack.c.bf16 %v4378, %v4375
  %v6153 = vpack.c.bf16 %v4386, %v4383
  %v6154 = vpack.c.bf16 %v4394, %v4391
  %v6155 = vpack.c.bf16 %v4402, %v4399
  %v6156 = vpack.c.bf16 %v4410, %v4407
  %v6157 = vpack.c.bf16 %v4418, %v4415
  %v6158 = vpack.c.bf16 %v4426, %v4423
  %v6223 = vunpack.c.l.b16 %v6095
  %v6224 = vunpack.c.h.b16 %v6095
  %v6225 = vunpack.c.l.b16 %v6096
  %v6226 = vunpack.c.h.b16 %v6096
  %v6227 = vunpack.c.l.b16 %v6097
  %v6228 = vunpack.c.h.b16 %v6097
  %v6229 = vunpack.c.l.b16 %v6098
  %v6230 = vunpack.c.h.b16 %v6098
  %v6231 = vunpack.c.l.b16 %v6099
  %v6232 = vunpack.c.h.b16 %v6099
  %v6233 = vunpack.c.l.b16 %v6100
  %v6234 = vunpack.c.h.b16 %v6100
  %v6235 = vunpack.c.l.b16 %v6101
  %v6236 = vunpack.c.h.b16 %v6101
  %v6237 = vunpack.c.l.b16 %v6102
  %v6238 = vunpack.c.h.b16 %v6102
  %v6239 = vunpack.c.l.b16 %v6103
  %v6240 = vunpack.c.h.b16 %v6103
  %v6241 = vunpack.c.l.b16 %v6104
  %v6242 = vunpack.c.h.b16 %v6104
  %v6243 = vunpack.c.l.b16 %v6105
  %v6244 = vunpack.c.h.b16 %v6105
  %v6245 = vunpack.c.l.b16 %v6106
  %v6246 = vunpack.c.h.b16 %v6106
  %v6247 = vunpack.c.l.b16 %v6107
  %v6248 = vunpack.c.h.b16 %v6107
  %v6249 = vunpack.c.l.b16 %v6108
  %v6250 = vunpack.c.h.b16 %v6108
  %v6251 = vunpack.c.l.b16 %v6109
  %v6252 = vunpack.c.h.b16 %v6109
  %v6253 = vunpack.c.l.b16 %v6110
  %v6254 = vunpack.c.h.b16 %v6110
  %v6255 = vunpack.c.l.b16 %v6111
  %v6256 = vunpack.c.h.b16 %v6111
  %v6257 = vunpack.c.l.b16 %v6112
  %v6258 = vunpack.c.h.b16 %v6112
  %v6259 = vunpack.c.l.b16 %v6113
  %v6260 = vunpack.c.h.b16 %v6113
  %v6261 = vunpack.c.l.b16 %v6114
  %v6262 = vunpack.c.h.b16 %v6114
  %v6263 = vunpack.c.l.b16 %v6115
  %v6264 = vunpack.c.h.b16 %v6115
  %v6265 = vunpack.c.l.b16 %v6116
  %v6266 = vunpack.c.h.b16 %v6116
  %v6267 = vunpack.c.l.b16 %v6117
  %v6268 = vunpack.c.h.b16 %v6117
  %v6269 = vunpack.c.l.b16 %v6118
  %v6270 = vunpack.c.h.b16 %v6118
  %v6271 = vunpack.c.l.b16 %v6119
  %v6272 = vunpack.c.h.b16 %v6119
  %v6273 = vunpack.c.l.b16 %v6120
  %v6274 = vunpack.c.h.b16 %v6120
  %v6275 = vunpack.c.l.b16 %v6121
  %v6276 = vunpack.c.h.b16 %v6121
  %v6277 = vunpack.c.l.b16 %v6122
  %v6278 = vunpack.c.h.b16 %v6122
  %v6279 = vunpack.c.l.b16 %v6123
  %v6280 = vunpack.c.h.b16 %v6123
  %v6281 = vunpack.c.l.b16 %v6124
  %v6282 = vunpack.c.h.b16 %v6124
  %v6283 = vunpack.c.l.b16 %v6125
  %v6284 = vunpack.c.h.b16 %v6125
  %v6285 = vunpack.c.l.b16 %v6126
  %v6286 = vunpack.c.h.b16 %v6126
  %v6287 = vunpack.c.l.b16 %v6127
  %v6288 = vunpack.c.h.b16 %v6127
  %v6289 = vunpack.c.l.b16 %v6128
  %v6290 = vunpack.c.h.b16 %v6128
  %v6291 = vunpack.c.l.b16 %v6129
  %v6292 = vunpack.c.h.b16 %v6129
  %v6293 = vunpack.c.l.b16 %v6130
  %v6294 = vunpack.c.h.b16 %v6130
  %v6295 = vunpack.c.l.b16 %v6131
  %v6296 = vunpack.c.h.b16 %v6131
  %v6297 = vunpack.c.l.b16 %v6132
  %v6298 = vunpack.c.h.b16 %v6132
  %v6299 = vunpack.c.l.b16 %v6133
  %v6300 = vunpack.c.h.b16 %v6133
  %v6301 = vunpack.c.l.b16 %v6134
  %v6302 = vunpack.c.h.b16 %v6134
  %v6303 = vunpack.c.l.b16 %v6135
  %v6304 = vunpack.c.h.b16 %v6135
  %v6305 = vunpack.c.l.b16 %v6136
  %v6306 = vunpack.c.h.b16 %v6136
  %v6307 = vunpack.c.l.b16 %v6137
  %v6308 = vunpack.c.h.b16 %v6137
  %v6309 = vunpack.c.l.b16 %v6138
  %v6310 = vunpack.c.h.b16 %v6138
  %v6311 = vunpack.c.l.b16 %v6139
  %v6312 = vunpack.c.h.b16 %v6139
  %v6313 = vunpack.c.l.b16 %v6140
  %v6314 = vunpack.c.h.b16 %v6140
  %v6315 = vunpack.c.l.b16 %v6141
  %v6316 = vunpack.c.h.b16 %v6141
  %v6317 = vunpack.c.l.b16 %v6142
  %v6318 = vunpack.c.h.b16 %v6142
  %v6319 = vunpack.c.l.b16 %v6143
  %v6320 = vunpack.c.h.b16 %v6143
  %v6321 = vunpack.c.l.b16 %v6144
  %v6322 = vunpack.c.h.b16 %v6144
  %v6323 = vunpack.c.l.b16 %v6145
  %v6324 = vunpack.c.h.b16 %v6145
  %v6325 = vunpack.c.l.b16 %v6146
  %v6326 = vunpack.c.h.b16 %v6146
  %v6327 = vunpack.c.l.b16 %v6147
  %v6328 = vunpack.c.h.b16 %v6147
  %v6329 = vunpack.c.l.b16 %v6148
  %v6330 = vunpack.c.h.b16 %v6148
  %v6331 = vunpack.c.l.b16 %v6149
  %v6332 = vunpack.c.h.b16 %v6149
  %v6333 = vunpack.c.l.b16 %v6150
  %v6334 = vunpack.c.h.b16 %v6150
  %v6335 = vunpack.c.l.b16 %v6151
  %v6336 = vunpack.c.h.b16 %v6151
  %v6337 = vunpack.c.l.b16 %v6152
  %v6338 = vunpack.c.h.b16 %v6152
  %v6339 = vunpack.c.l.b16 %v6153
  %v6340 = vunpack.c.h.b16 %v6153
  %v6341 = vunpack.c.l.b16 %v6154
  %v6342 = vunpack.c.h.b16 %v6154
  %v6343 = vunpack.c.l.b16 %v6155
  %v6344 = vunpack.c.h.b16 %v6155
  %v6345 = vunpack.c.l.b16 %v6156
  %v6346 = vunpack.c.h.b16 %v6156
  %v6347 = vunpack.c.l.b16 %v6157
  %v6348 = vunpack.c.h.b16 %v6157
  %v6349 = vunpack.c.l.b16 %v6158
  %v6350 = vunpack.c.h.b16 %v6158
  %v6351 = vpack.c.b16 %v6223, %v6223
  %v6352 = vpack.c.b16 %v6224, %v6224
  %v6353 = vpack.c.b16 %v6225, %v6225
  %v6354 = vpack.c.b16 %v6226, %v6226
  %v6355 = vpack.c.b16 %v6227, %v6227
  %v6356 = vpack.c.b16 %v6228, %v6228
  %v6357 = vpack.c.b16 %v6229, %v6229
  %v6358 = vpack.c.b16 %v6230, %v6230
  %v6359 = vpack.c.b16 %v6231, %v6231
  %v6360 = vpack.c.b16 %v6232, %v6232
  %v6361 = vpack.c.b16 %v6233, %v6233
  %v6362 = vpack.c.b16 %v6234, %v6234
  %v6363 = vpack.c.b16 %v6235, %v6235
  %v6364 = vpack.c.b16 %v6236, %v6236
  %v6365 = vpack.c.b16 %v6237, %v6237
  %v6366 = vpack.c.b16 %v6238, %v6238
  %v6367 = vpack.c.b16 %v6239, %v6239
  %v6368 = vpack.c.b16 %v6240, %v6240
  %v6369 = vpack.c.b16 %v6241, %v6241
  %v6370 = vpack.c.b16 %v6242, %v6242
  %v6371 = vpack.c.b16 %v6243, %v6243
  %v6372 = vpack.c.b16 %v6244, %v6244
  %v6373 = vpack.c.b16 %v6245, %v6245
  %v6374 = vpack.c.b16 %v6246, %v6246
  %v6375 = vpack.c.b16 %v6247, %v6247
  %v6376 = vpack.c.b16 %v6248, %v6248
  %v6377 = vpack.c.b16 %v6249, %v6249
  %v6378 = vpack.c.b16 %v6250, %v6250
  %v6379 = vpack.c.b16 %v6251, %v6251
  %v6380 = vpack.c.b16 %v6252, %v6252
  %v6381 = vpack.c.b16 %v6253, %v6253
  %v6382 = vpack.c.b16 %v6254, %v6254
  %v6383 = vpack.c.b16 %v6255, %v6255
  %v6384 = vpack.c.b16 %v6256, %v6256
  %v6385 = vpack.c.b16 %v6257, %v6257
  %v6386 = vpack.c.b16 %v6258, %v6258
  %v6387 = vpack.c.b16 %v6259, %v6259
  %v6388 = vpack.c.b16 %v6260, %v6260
  %v6389 = vpack.c.b16 %v6261, %v6261
  %v6390 = vpack.c.b16 %v6262, %v6262
  %v6391 = vpack.c.b16 %v6263, %v6263
  %v6392 = vpack.c.b16 %v6264, %v6264
  %v6393 = vpack.c.b16 %v6265, %v6265
  %v6394 = vpack.c.b16 %v6266, %v6266
  %v6395 = vpack.c.b16 %v6267, %v6267
  %v6396 = vpack.c.b16 %v6268, %v6268
  %v6397 = vpack.c.b16 %v6269, %v6269
  %v6398 = vpack.c.b16 %v6270, %v6270
  %v6399 = vpack.c.b16 %v6271, %v6271
  %v6400 = vpack.c.b16 %v6272, %v6272
  %v6401 = vpack.c.b16 %v6273, %v6273
  %v6402 = vpack.c.b16 %v6274, %v6274
  %v6403 = vpack.c.b16 %v6275, %v6275
  %v6404 = vpack.c.b16 %v6276, %v6276
  %v6405 = vpack.c.b16 %v6277, %v6277
  %v6406 = vpack.c.b16 %v6278, %v6278
  %v6407 = vpack.c.b16 %v6279, %v6279
  %v6408 = vpack.c.b16 %v6280, %v6280
  %v6409 = vpack.c.b16 %v6281, %v6281
  %v6410 = vpack.c.b16 %v6282, %v6282
  %v6411 = vpack.c.b16 %v6283, %v6283
  %v6412 = vpack.c.b16 %v6284, %v6284
  %v6413 = vpack.c.b16 %v6285, %v6285
  %v6414 = vpack.c.b16 %v6286, %v6286
  %v6415 = vpack.c.b16 %v6287, %v6287
  %v6416 = vpack.c.b16 %v6288, %v6288
  %v6417 = vpack.c.b16 %v6289, %v6289
  %v6418 = vpack.c.b16 %v6290, %v6290
  %v6419 = vpack.c.b16 %v6291, %v6291
  %v6420 = vpack.c.b16 %v6292, %v6292
  %v6421 = vpack.c.b16 %v6293, %v6293
  %v6422 = vpack.c.b16 %v6294, %v6294
  %v6423 = vpack.c.b16 %v6295, %v6295
  %v6424 = vpack.c.b16 %v6296, %v6296
  %v6425 = vpack.c.b16 %v6297, %v6297
  %v6426 = vpack.c.b16 %v6298, %v6298
  %v6427 = vpack.c.b16 %v6299, %v6299
  %v6428 = vpack.c.b16 %v6300, %v6300
  %v6429 = vpack.c.b16 %v6301, %v6301
  %v6430 = vpack.c.b16 %v6302, %v6302
  %v6431 = vpack.c.b16 %v6303, %v6303
  %v6432 = vpack.c.b16 %v6304, %v6304
  %v6433 = vpack.c.b16 %v6305, %v6305
  %v6434 = vpack.c.b16 %v6306, %v6306
  %v6435 = vpack.c.b16 %v6307, %v6307
  %v6436 = vpack.c.b16 %v6308, %v6308
  %v6437 = vpack.c.b16 %v6309, %v6309
  %v6438 = vpack.c.b16 %v6310, %v6310
  %v6439 = vpack.c.b16 %v6311, %v6311
  %v6440 = vpack.c.b16 %v6312, %v6312
  %v6441 = vpack.c.b16 %v6313, %v6313
  %v6442 = vpack.c.b16 %v6314, %v6314
  %v6443 = vpack.c.b16 %v6315, %v6315
  %v6444 = vpack.c.b16 %v6316, %v6316
  %v6445 = vpack.c.b16 %v6317, %v6317
  %v6446 = vpack.c.b16 %v6318, %v6318
  %v6447 = vpack.c.b16 %v6319, %v6319
  %v6448 = vpack.c.b16 %v6320, %v6320
  %v6449 = vpack.c.b16 %v6321, %v6321
  %v6450 = vpack.c.b16 %v6322, %v6322
  %v6451 = vpack.c.b16 %v6323, %v6323
  %v6452 = vpack.c.b16 %v6324, %v6324
  %v6453 = vpack.c.b16 %v6325, %v6325
  %v6454 = vpack.c.b16 %v6326, %v6326
  %v6455 = vpack.c.b16 %v6327, %v6327
  %v6456 = vpack.c.b16 %v6328, %v6328
  %v6457 = vpack.c.b16 %v6329, %v6329
  %v6458 = vpack.c.b16 %v6330, %v6330
  %v6459 = vpack.c.b16 %v6331, %v6331
  %v6460 = vpack.c.b16 %v6332, %v6332
  %v6461 = vpack.c.b16 %v6333, %v6333
  %v6462 = vpack.c.b16 %v6334, %v6334
  %v6463 = vpack.c.b16 %v6335, %v6335
  %v6464 = vpack.c.b16 %v6336, %v6336
  %v6465 = vpack.c.b16 %v6337, %v6337
  %v6466 = vpack.c.b16 %v6338, %v6338
  %v6467 = vpack.c.b16 %v6339, %v6339
  %v6468 = vpack.c.b16 %v6340, %v6340
  %v6469 = vpack.c.b16 %v6341, %v6341
  %v6470 = vpack.c.b16 %v6342, %v6342
  %v6471 = vpack.c.b16 %v6343, %v6343
  %v6472 = vpack.c.b16 %v6344, %v6344
  %v6473 = vpack.c.b16 %v6345, %v6345
  %v6474 = vpack.c.b16 %v6346, %v6346
  %v6475 = vpack.c.b16 %v6347, %v6347
  %v6476 = vpack.c.b16 %v6348, %v6348
  %v6477 = vpack.c.b16 %v6349, %v6349
  %v6478 = vpack.c.b16 %v6350, %v6350
  %6607 = vst [vmem:[%s2] sm:$0xf] %v6351
  %6608 = vst [vmem:[%s2 + $0x4] sm:$0xf] %v6352
  %6609 = vst [vmem:[%s2 + $0x8] sm:$0xf] %v6353
  %6610 = vst [vmem:[%s2 + $0xc] sm:$0xf] %v6354
  %6611 = vst [vmem:[%s2 + $0x10] sm:$0xf] %v6355
  %6612 = vst [vmem:[%s2 + $0x14] sm:$0xf] %v6356
  %6613 = vst [vmem:[%s2 + $0x18] sm:$0xf] %v6357
  %6614 = vst [vmem:[%s2 + $0x1c] sm:$0xf] %v6358
  %6615 = vst [vmem:[%s2 + $0x20] sm:$0xf] %v6359
  %6616 = vst [vmem:[%s2 + $0x24] sm:$0xf] %v6360
  %6617 = vst [vmem:[%s2 + $0x28] sm:$0xf] %v6361
  %6618 = vst [vmem:[%s2 + $0x2c] sm:$0xf] %v6362
  %6619 = vst [vmem:[%s2 + $0x30] sm:$0xf] %v6363
  %6620 = vst [vmem:[%s2 + $0x34] sm:$0xf] %v6364
  %6621 = vst [vmem:[%s2 + $0x38] sm:$0xf] %v6365
  %6622 = vst [vmem:[%s2 + $0x3c] sm:$0xf] %v6366
  %6623 = vst [vmem:[%s2 + $0x40] sm:$0xf] %v6367
  %6624 = vst [vmem:[%s2 + $0x44] sm:$0xf] %v6368
  %6625 = vst [vmem:[%s2 + $0x48] sm:$0xf] %v6369
  %6626 = vst [vmem:[%s2 + $0x4c] sm:$0xf] %v6370
  %6627 = vst [vmem:[%s2 + $0x50] sm:$0xf] %v6371
  %6628 = vst [vmem:[%s2 + $0x54] sm:$0xf] %v6372
  %6629 = vst [vmem:[%s2 + $0x58] sm:$0xf] %v6373
  %6630 = vst [vmem:[%s2 + $0x5c] sm:$0xf] %v6374
  %6631 = vst [vmem:[%s2 + $0x60] sm:$0xf] %v6375
  %6632 = vst [vmem:[%s2 + $0x64] sm:$0xf] %v6376
  %6633 = vst [vmem:[%s2 + $0x68] sm:$0xf] %v6377
  %6634 = vst [vmem:[%s2 + $0x6c] sm:$0xf] %v6378
  %6635 = vst [vmem:[%s2 + $0x70] sm:$0xf] %v6379
  %6636 = vst [vmem:[%s2 + $0x74] sm:$0xf] %v6380
  %6637 = vst [vmem:[%s2 + $0x78] sm:$0xf] %v6381
  %6638 = vst [vmem:[%s2 + $0x7c] sm:$0xf] %v6382
  %6639 = vst [vmem:[%s2 + $0x80] sm:$0xf] %v6383
  %6640 = vst [vmem:[%s2 + $0x84] sm:$0xf] %v6384
  %6641 = vst [vmem:[%s2 + $0x88] sm:$0xf] %v6385
  %6642 = vst [vmem:[%s2 + $0x8c] sm:$0xf] %v6386
  %6643 = vst [vmem:[%s2 + $0x90] sm:$0xf] %v6387
  %6644 = vst [vmem:[%s2 + $0x94] sm:$0xf] %v6388
  %6645 = vst [vmem:[%s2 + $0x98] sm:$0xf] %v6389
  %6646 = vst [vmem:[%s2 + $0x9c] sm:$0xf] %v6390
  %6647 = vst [vmem:[%s2 + $0xa0] sm:$0xf] %v6391
  %6648 = vst [vmem:[%s2 + $0xa4] sm:$0xf] %v6392
  %6649 = vst [vmem:[%s2 + $0xa8] sm:$0xf] %v6393
  %6650 = vst [vmem:[%s2 + $0xac] sm:$0xf] %v6394
  %6651 = vst [vmem:[%s2 + $0xb0] sm:$0xf] %v6395
  %6652 = vst [vmem:[%s2 + $0xb4] sm:$0xf] %v6396
  %6653 = vst [vmem:[%s2 + $0xb8] sm:$0xf] %v6397
  %6654 = vst [vmem:[%s2 + $0xbc] sm:$0xf] %v6398
  %6655 = vst [vmem:[%s2 + $0xc0] sm:$0xf] %v6399
  %6656 = vst [vmem:[%s2 + $0xc4] sm:$0xf] %v6400
  %6657 = vst [vmem:[%s2 + $0xc8] sm:$0xf] %v6401
  %6658 = vst [vmem:[%s2 + $0xcc] sm:$0xf] %v6402
  %6659 = vst [vmem:[%s2 + $0xd0] sm:$0xf] %v6403
  %6660 = vst [vmem:[%s2 + $0xd4] sm:$0xf] %v6404
  %6661 = vst [vmem:[%s2 + $0xd8] sm:$0xf] %v6405
  %6662 = vst [vmem:[%s2 + $0xdc] sm:$0xf] %v6406
  %6663 = vst [vmem:[%s2 + $0xe0] sm:$0xf] %v6407
  %6664 = vst [vmem:[%s2 + $0xe4] sm:$0xf] %v6408
  %6665 = vst [vmem:[%s2 + $0xe8] sm:$0xf] %v6409
  %6666 = vst [vmem:[%s2 + $0xec] sm:$0xf] %v6410
  %6667 = vst [vmem:[%s2 + $0xf0] sm:$0xf] %v6411
  %6668 = vst [vmem:[%s2 + $0xf4] sm:$0xf] %v6412
  %6669 = vst [vmem:[%s2 + $0xf8] sm:$0xf] %v6413
  %6670 = vst [vmem:[%s2 + $0xfc] sm:$0xf] %v6414
  %6671 = vst [vmem:[%s2 + $0x100] sm:$0xf] %v6415
  %6672 = vst [vmem:[%s2 + $0x104] sm:$0xf] %v6416
  %6673 = vst [vmem:[%s2 + $0x108] sm:$0xf] %v6417
  %6674 = vst [vmem:[%s2 + $0x10c] sm:$0xf] %v6418
  %6675 = vst [vmem:[%s2 + $0x110] sm:$0xf] %v6419
  %6676 = vst [vmem:[%s2 + $0x114] sm:$0xf] %v6420
  %6677 = vst [vmem:[%s2 + $0x118] sm:$0xf] %v6421
  %6678 = vst [vmem:[%s2 + $0x11c] sm:$0xf] %v6422
  %6679 = vst [vmem:[%s2 + $0x120] sm:$0xf] %v6423
  %6680 = vst [vmem:[%s2 + $0x124] sm:$0xf] %v6424
  %6681 = vst [vmem:[%s2 + $0x128] sm:$0xf] %v6425
  %6682 = vst [vmem:[%s2 + $0x12c] sm:$0xf] %v6426
  %6683 = vst [vmem:[%s2 + $0x130] sm:$0xf] %v6427
  %6684 = vst [vmem:[%s2 + $0x134] sm:$0xf] %v6428
  %6685 = vst [vmem:[%s2 + $0x138] sm:$0xf] %v6429
  %6686 = vst [vmem:[%s2 + $0x13c] sm:$0xf] %v6430
  %6687 = vst [vmem:[%s2 + $0x140] sm:$0xf] %v6431
  %6688 = vst [vmem:[%s2 + $0x144] sm:$0xf] %v6432
  %6689 = vst [vmem:[%s2 + $0x148] sm:$0xf] %v6433
  %6690 = vst [vmem:[%s2 + $0x14c] sm:$0xf] %v6434
  %6691 = vst [vmem:[%s2 + $0x150] sm:$0xf] %v6435
  %6692 = vst [vmem:[%s2 + $0x154] sm:$0xf] %v6436
  %6693 = vst [vmem:[%s2 + $0x158] sm:$0xf] %v6437
  %6694 = vst [vmem:[%s2 + $0x15c] sm:$0xf] %v6438
  %6695 = vst [vmem:[%s2 + $0x160] sm:$0xf] %v6439
  %6696 = vst [vmem:[%s2 + $0x164] sm:$0xf] %v6440
  %6697 = vst [vmem:[%s2 + $0x168] sm:$0xf] %v6441
  %6698 = vst [vmem:[%s2 + $0x16c] sm:$0xf] %v6442
  %6699 = vst [vmem:[%s2 + $0x170] sm:$0xf] %v6443
  %6700 = vst [vmem:[%s2 + $0x174] sm:$0xf] %v6444
  %6701 = vst [vmem:[%s2 + $0x178] sm:$0xf] %v6445
  %6702 = vst [vmem:[%s2 + $0x17c] sm:$0xf] %v6446
  %6703 = vst [vmem:[%s2 + $0x180] sm:$0xf] %v6447
  %6704 = vst [vmem:[%s2 + $0x184] sm:$0xf] %v6448
  %6705 = vst [vmem:[%s2 + $0x188] sm:$0xf] %v6449
  %6706 = vst [vmem:[%s2 + $0x18c] sm:$0xf] %v6450
  %6707 = vst [vmem:[%s2 + $0x190] sm:$0xf] %v6451
  %6708 = vst [vmem:[%s2 + $0x194] sm:$0xf] %v6452
  %6709 = vst [vmem:[%s2 + $0x198] sm:$0xf] %v6453
  %6710 = vst [vmem:[%s2 + $0x19c] sm:$0xf] %v6454
  %6711 = vst [vmem:[%s2 + $0x1a0] sm:$0xf] %v6455
  %6712 = vst [vmem:[%s2 + $0x1a4] sm:$0xf] %v6456
  %6713 = vst [vmem:[%s2 + $0x1a8] sm:$0xf] %v6457
  %6714 = vst [vmem:[%s2 + $0x1ac] sm:$0xf] %v6458
  %6715 = vst [vmem:[%s2 + $0x1b0] sm:$0xf] %v6459
  %6716 = vst [vmem:[%s2 + $0x1b4] sm:$0xf] %v6460
  %6717 = vst [vmem:[%s2 + $0x1b8] sm:$0xf] %v6461
  %6718 = vst [vmem:[%s2 + $0x1bc] sm:$0xf] %v6462
  %6719 = vst [vmem:[%s2 + $0x1c0] sm:$0xf] %v6463
  %6720 = vst [vmem:[%s2 + $0x1c4] sm:$0xf] %v6464
  %6721 = vst [vmem:[%s2 + $0x1c8] sm:$0xf] %v6465
  %6722 = vst [vmem:[%s2 + $0x1cc] sm:$0xf] %v6466
  %6723 = vst [vmem:[%s2 + $0x1d0] sm:$0xf] %v6467
  %6724 = vst [vmem:[%s2 + $0x1d4] sm:$0xf] %v6468
  %6725 = vst [vmem:[%s2 + $0x1d8] sm:$0xf] %v6469
  %6726 = vst [vmem:[%s2 + $0x1dc] sm:$0xf] %v6470
  %6727 = vst [vmem:[%s2 + $0x1e0] sm:$0xf] %v6471
  %6728 = vst [vmem:[%s2 + $0x1e4] sm:$0xf] %v6472
  %6729 = vst [vmem:[%s2 + $0x1e8] sm:$0xf] %v6473
  %6730 = vst [vmem:[%s2 + $0x1ec] sm:$0xf] %v6474
  %6731 = vst [vmem:[%s2 + $0x1f0] sm:$0xf] %v6475
  %6732 = vst [vmem:[%s2 + $0x1f4] sm:$0xf] %v6476
  %6733 = vst [vmem:[%s2 + $0x1f8] sm:$0xf] %v6477
  %6734 = vst [vmem:[%s2 + $0x1fc] sm:$0xf] %v6478
  %vm6735 = vcmask 7168
  %v6736 = vsel %vm6735, %v5200, %v5967
  %v6737 = vsel %vm6735, %v5203, %v5968
  %v6738 = vsel %vm6735, %v5206, %v5969
  %v6739 = vsel %vm6735, %v5209, %v5970
  %v6740 = vsel %vm6735, %v5212, %v5971
  %v6741 = vsel %vm6735, %v5215, %v5972
  %v6742 = vsel %vm6735, %v5218, %v5973
  %v6743 = vsel %vm6735, %v5221, %v5974
  %v6744 = vsel %vm6735, %v5224, %v5975
  %v6745 = vsel %vm6735, %v5227, %v5976
  %v6746 = vsel %vm6735, %v5230, %v5977
  %v6747 = vsel %vm6735, %v5233, %v5978
  %v6748 = vsel %vm6735, %v5236, %v5979
  %v6749 = vsel %vm6735, %v5239, %v5980
  %v6750 = vsel %vm6735, %v5242, %v5981
  %v6751 = vsel %vm6735, %v5245, %v5982
  %v6752 = vsel %vm6735, %v5248, %v5983
  %v6753 = vsel %vm6735, %v5251, %v5984
  %v6754 = vsel %vm6735, %v5254, %v5985
  %v6755 = vsel %vm6735, %v5257, %v5986
  %v6756 = vsel %vm6735, %v5260, %v5987
  %v6757 = vsel %vm6735, %v5263, %v5988
  %v6758 = vsel %vm6735, %v5266, %v5989
  %v6759 = vsel %vm6735, %v5269, %v5990
  %v6760 = vsel %vm6735, %v5272, %v5991
  %v6761 = vsel %vm6735, %v5275, %v5992
  %v6762 = vsel %vm6735, %v5278, %v5993
  %v6763 = vsel %vm6735, %v5281, %v5994
  %v6764 = vsel %vm6735, %v5284, %v5995
  %v6765 = vsel %vm6735, %v5287, %v5996
  %v6766 = vsel %vm6735, %v5290, %v5997
  %v6767 = vsel %vm6735, %v5293, %v5998
  %v6768 = vsel %vm6735, %v5296, %v5999
  %v6769 = vsel %vm6735, %v5299, %v6000
  %v6770 = vsel %vm6735, %v5302, %v6001
  %v6771 = vsel %vm6735, %v5305, %v6002
  %v6772 = vsel %vm6735, %v5308, %v6003
  %v6773 = vsel %vm6735, %v5311, %v6004
  %v6774 = vsel %vm6735, %v5314, %v6005
  %v6775 = vsel %vm6735, %v5317, %v6006
  %v6776 = vsel %vm6735, %v5320, %v6007
  %v6777 = vsel %vm6735, %v5323, %v6008
  %v6778 = vsel %vm6735, %v5326, %v6009
  %v6779 = vsel %vm6735, %v5329, %v6010
  %v6780 = vsel %vm6735, %v5332, %v6011
  %v6781 = vsel %vm6735, %v5335, %v6012
  %v6782 = vsel %vm6735, %v5338, %v6013
  %v6783 = vsel %vm6735, %v5341, %v6014
  %v6784 = vsel %vm6735, %v5344, %v6015
  %v6785 = vsel %vm6735, %v5347, %v6016
  %v6786 = vsel %vm6735, %v5350, %v6017
  %v6787 = vsel %vm6735, %v5353, %v6018
  %v6788 = vsel %vm6735, %v5356, %v6019
  %v6789 = vsel %vm6735, %v5359, %v6020
  %v6790 = vsel %vm6735, %v5362, %v6021
  %v6791 = vsel %vm6735, %v5365, %v6022
  %v6792 = vsel %vm6735, %v5368, %v6023
  %v6793 = vsel %vm6735, %v5371, %v6024
  %v6794 = vsel %vm6735, %v5374, %v6025
  %v6795 = vsel %vm6735, %v5377, %v6026
  %v6796 = vsel %vm6735, %v5380, %v6027
  %v6797 = vsel %vm6735, %v5383, %v6028
  %v6798 = vsel %vm6735, %v5386, %v6029
  %v6799 = vsel %vm6735, %v5389, %v6030
  %v6800 = vsel %vm6735, %v5392, %v6031
  %v6801 = vsel %vm6735, %v5395, %v6032
  %v6802 = vsel %vm6735, %v5398, %v6033
  %v6803 = vsel %vm6735, %v5401, %v6034
  %v6804 = vsel %vm6735, %v5404, %v6035
  %v6805 = vsel %vm6735, %v5407, %v6036
  %v6806 = vsel %vm6735, %v5410, %v6037
  %v6807 = vsel %vm6735, %v5413, %v6038
  %v6808 = vsel %vm6735, %v5416, %v6039
  %v6809 = vsel %vm6735, %v5419, %v6040
  %v6810 = vsel %vm6735, %v5422, %v6041
  %v6811 = vsel %vm6735, %v5425, %v6042
  %v6812 = vsel %vm6735, %v5428, %v6043
  %v6813 = vsel %vm6735, %v5431, %v6044
  %v6814 = vsel %vm6735, %v5434, %v6045
  %v6815 = vsel %vm6735, %v5437, %v6046
  %v6816 = vsel %vm6735, %v5440, %v6047
  %v6817 = vsel %vm6735, %v5443, %v6048
  %v6818 = vsel %vm6735, %v5446, %v6049
  %v6819 = vsel %vm6735, %v5449, %v6050
  %v6820 = vsel %vm6735, %v5452, %v6051
  %v6821 = vsel %vm6735, %v5455, %v6052
  %v6822 = vsel %vm6735, %v5458, %v6053
  %v6823 = vsel %vm6735, %v5461, %v6054
  %v6824 = vsel %vm6735, %v5464, %v6055
  %v6825 = vsel %vm6735, %v5467, %v6056
  %v6826 = vsel %vm6735, %v5470, %v6057
  %v6827 = vsel %vm6735, %v5473, %v6058
  %v6828 = vsel %vm6735, %v5476, %v6059
  %v6829 = vsel %vm6735, %v5479, %v6060
  %v6830 = vsel %vm6735, %v5482, %v6061
  %v6831 = vsel %vm6735, %v5485, %v6062
  %v6832 = vsel %vm6735, %v5488, %v6063
  %v6833 = vsel %vm6735, %v5491, %v6064
  %v6834 = vsel %vm6735, %v5494, %v6065
  %v6835 = vsel %vm6735, %v5497, %v6066
  %v6836 = vsel %vm6735, %v5500, %v6067
  %v6837 = vsel %vm6735, %v5503, %v6068
  %v6838 = vsel %vm6735, %v5506, %v6069
  %v6839 = vsel %vm6735, %v5509, %v6070
  %v6840 = vsel %vm6735, %v5512, %v6071
  %v6841 = vsel %vm6735, %v5515, %v6072
  %v6842 = vsel %vm6735, %v5518, %v6073
  %v6843 = vsel %vm6735, %v5521, %v6074
  %v6844 = vsel %vm6735, %v5524, %v6075
  %v6845 = vsel %vm6735, %v5527, %v6076
  %v6846 = vsel %vm6735, %v5530, %v6077
  %v6847 = vsel %vm6735, %v5533, %v6078
  %v6848 = vsel %vm6735, %v5536, %v6079
  %v6849 = vsel %vm6735, %v5539, %v6080
  %v6850 = vsel %vm6735, %v5542, %v6081
  %v6851 = vsel %vm6735, %v5545, %v6082
  %v6852 = vsel %vm6735, %v5548, %v6083
  %v6853 = vsel %vm6735, %v5551, %v6084
  %v6854 = vsel %vm6735, %v5554, %v6085
  %v6855 = vsel %vm6735, %v5557, %v6086
  %v6856 = vsel %vm6735, %v5560, %v6087
  %v6857 = vsel %vm6735, %v5563, %v6088
  %v6858 = vsel %vm6735, %v5566, %v6089
  %v6859 = vsel %vm6735, %v5569, %v6090
  %v6860 = vsel %vm6735, %v5572, %v6091
  %v6861 = vsel %vm6735, %v5575, %v6092
  %v6862 = vsel %vm6735, %v5578, %v6093
  %v6863 = vsel %vm6735, %v5581, %v6094
  %vm6864 = vcmask 15360
  %6865 = vst.msk [vmem:[%s3] sm:$0xff] %vm6864, %v6736
  %6866 = vst.msk [vmem:[%s3 + $0x8] sm:$0xff] %vm6864, %v6737
  %6867 = vst.msk [vmem:[%s3 + $0x10] sm:$0xff] %vm6864, %v6738
  %6868 = vst.msk [vmem:[%s3 + $0x18] sm:$0xff] %vm6864, %v6739
  %6869 = vst.msk [vmem:[%s3 + $0x20] sm:$0xff] %vm6864, %v6740
  %6870 = vst.msk [vmem:[%s3 + $0x28] sm:$0xff] %vm6864, %v6741
  %6871 = vst.msk [vmem:[%s3 + $0x30] sm:$0xff] %vm6864, %v6742
  %6872 = vst.msk [vmem:[%s3 + $0x38] sm:$0xff] %vm6864, %v6743
  %6873 = vst.msk [vmem:[%s3 + $0x40] sm:$0xff] %vm6864, %v6744
  %6874 = vst.msk [vmem:[%s3 + $0x48] sm:$0xff] %vm6864, %v6745
  %6875 = vst.msk [vmem:[%s3 + $0x50] sm:$0xff] %vm6864, %v6746
  %6876 = vst.msk [vmem:[%s3 + $0x58] sm:$0xff] %vm6864, %v6747
  %6877 = vst.msk [vmem:[%s3 + $0x60] sm:$0xff] %vm6864, %v6748
  %6878 = vst.msk [vmem:[%s3 + $0x68] sm:$0xff] %vm6864, %v6749
  %6879 = vst.msk [vmem:[%s3 + $0x70] sm:$0xff] %vm6864, %v6750
  %6880 = vst.msk [vmem:[%s3 + $0x78] sm:$0xff] %vm6864, %v6751
  %6881 = vst.msk [vmem:[%s3 + $0x80] sm:$0xff] %vm6864, %v6752
  %6882 = vst.msk [vmem:[%s3 + $0x88] sm:$0xff] %vm6864, %v6753
  %6883 = vst.msk [vmem:[%s3 + $0x90] sm:$0xff] %vm6864, %v6754
  %6884 = vst.msk [vmem:[%s3 + $0x98] sm:$0xff] %vm6864, %v6755
  %6885 = vst.msk [vmem:[%s3 + $0xa0] sm:$0xff] %vm6864, %v6756
  %6886 = vst.msk [vmem:[%s3 + $0xa8] sm:$0xff] %vm6864, %v6757
  %6887 = vst.msk [vmem:[%s3 + $0xb0] sm:$0xff] %vm6864, %v6758
  %6888 = vst.msk [vmem:[%s3 + $0xb8] sm:$0xff] %vm6864, %v6759
  %6889 = vst.msk [vmem:[%s3 + $0xc0] sm:$0xff] %vm6864, %v6760
  %6890 = vst.msk [vmem:[%s3 + $0xc8] sm:$0xff] %vm6864, %v6761
  %6891 = vst.msk [vmem:[%s3 + $0xd0] sm:$0xff] %vm6864, %v6762
  %6892 = vst.msk [vmem:[%s3 + $0xd8] sm:$0xff] %vm6864, %v6763
  %6893 = vst.msk [vmem:[%s3 + $0xe0] sm:$0xff] %vm6864, %v6764
  %6894 = vst.msk [vmem:[%s3 + $0xe8] sm:$0xff] %vm6864, %v6765
  %6895 = vst.msk [vmem:[%s3 + $0xf0] sm:$0xff] %vm6864, %v6766
  %6896 = vst.msk [vmem:[%s3 + $0xf8] sm:$0xff] %vm6864, %v6767
  %6897 = vst.msk [vmem:[%s3 + $0x100] sm:$0xff] %vm6864, %v6768
  %6898 = vst.msk [vmem:[%s3 + $0x108] sm:$0xff] %vm6864, %v6769
  %6899 = vst.msk [vmem:[%s3 + $0x110] sm:$0xff] %vm6864, %v6770
  %6900 = vst.msk [vmem:[%s3 + $0x118] sm:$0xff] %vm6864, %v6771
  %6901 = vst.msk [vmem:[%s3 + $0x120] sm:$0xff] %vm6864, %v6772
  %6902 = vst.msk [vmem:[%s3 + $0x128] sm:$0xff] %vm6864, %v6773
  %6903 = vst.msk [vmem:[%s3 + $0x130] sm:$0xff] %vm6864, %v6774
  %6904 = vst.msk [vmem:[%s3 + $0x138] sm:$0xff] %vm6864, %v6775
  %6905 = vst.msk [vmem:[%s3 + $0x140] sm:$0xff] %vm6864, %v6776
  %6906 = vst.msk [vmem:[%s3 + $0x148] sm:$0xff] %vm6864, %v6777
  %6907 = vst.msk [vmem:[%s3 + $0x150] sm:$0xff] %vm6864, %v6778
  %6908 = vst.msk [vmem:[%s3 + $0x158] sm:$0xff] %vm6864, %v6779
  %6909 = vst.msk [vmem:[%s3 + $0x160] sm:$0xff] %vm6864, %v6780
  %6910 = vst.msk [vmem:[%s3 + $0x168] sm:$0xff] %vm6864, %v6781
  %6911 = vst.msk [vmem:[%s3 + $0x170] sm:$0xff] %vm6864, %v6782
  %6912 = vst.msk [vmem:[%s3 + $0x178] sm:$0xff] %vm6864, %v6783
  %6913 = vst.msk [vmem:[%s3 + $0x180] sm:$0xff] %vm6864, %v6784
  %6914 = vst.msk [vmem:[%s3 + $0x188] sm:$0xff] %vm6864, %v6785
  %6915 = vst.msk [vmem:[%s3 + $0x190] sm:$0xff] %vm6864, %v6786
  %6916 = vst.msk [vmem:[%s3 + $0x198] sm:$0xff] %vm6864, %v6787
  %6917 = vst.msk [vmem:[%s3 + $0x1a0] sm:$0xff] %vm6864, %v6788
  %6918 = vst.msk [vmem:[%s3 + $0x1a8] sm:$0xff] %vm6864, %v6789
  %6919 = vst.msk [vmem:[%s3 + $0x1b0] sm:$0xff] %vm6864, %v6790
  %6920 = vst.msk [vmem:[%s3 + $0x1b8] sm:$0xff] %vm6864, %v6791
  %6921 = vst.msk [vmem:[%s3 + $0x1c0] sm:$0xff] %vm6864, %v6792
  %6922 = vst.msk [vmem:[%s3 + $0x1c8] sm:$0xff] %vm6864, %v6793
  %6923 = vst.msk [vmem:[%s3 + $0x1d0] sm:$0xff] %vm6864, %v6794
  %6924 = vst.msk [vmem:[%s3 + $0x1d8] sm:$0xff] %vm6864, %v6795
  %6925 = vst.msk [vmem:[%s3 + $0x1e0] sm:$0xff] %vm6864, %v6796
  %6926 = vst.msk [vmem:[%s3 + $0x1e8] sm:$0xff] %vm6864, %v6797
  %6927 = vst.msk [vmem:[%s3 + $0x1f0] sm:$0xff] %vm6864, %v6798
  %6928 = vst.msk [vmem:[%s3 + $0x1f8] sm:$0xff] %vm6864, %v6799
  %6929 = vst.msk [vmem:[%s3 + $0x200] sm:$0xff] %vm6864, %v6800
  %6930 = vst.msk [vmem:[%s3 + $0x208] sm:$0xff] %vm6864, %v6801
  %6931 = vst.msk [vmem:[%s3 + $0x210] sm:$0xff] %vm6864, %v6802
  %6932 = vst.msk [vmem:[%s3 + $0x218] sm:$0xff] %vm6864, %v6803
  %6933 = vst.msk [vmem:[%s3 + $0x220] sm:$0xff] %vm6864, %v6804
  %6934 = vst.msk [vmem:[%s3 + $0x228] sm:$0xff] %vm6864, %v6805
  %6935 = vst.msk [vmem:[%s3 + $0x230] sm:$0xff] %vm6864, %v6806
  %6936 = vst.msk [vmem:[%s3 + $0x238] sm:$0xff] %vm6864, %v6807
  %6937 = vst.msk [vmem:[%s3 + $0x240] sm:$0xff] %vm6864, %v6808
  %6938 = vst.msk [vmem:[%s3 + $0x248] sm:$0xff] %vm6864, %v6809
  %6939 = vst.msk [vmem:[%s3 + $0x250] sm:$0xff] %vm6864, %v6810
  %6940 = vst.msk [vmem:[%s3 + $0x258] sm:$0xff] %vm6864, %v6811
  %6941 = vst.msk [vmem:[%s3 + $0x260] sm:$0xff] %vm6864, %v6812
  %6942 = vst.msk [vmem:[%s3 + $0x268] sm:$0xff] %vm6864, %v6813
  %6943 = vst.msk [vmem:[%s3 + $0x270] sm:$0xff] %vm6864, %v6814
  %6944 = vst.msk [vmem:[%s3 + $0x278] sm:$0xff] %vm6864, %v6815
  %6945 = vst.msk [vmem:[%s3 + $0x280] sm:$0xff] %vm6864, %v6816
  %6946 = vst.msk [vmem:[%s3 + $0x288] sm:$0xff] %vm6864, %v6817
  %6947 = vst.msk [vmem:[%s3 + $0x290] sm:$0xff] %vm6864, %v6818
  %6948 = vst.msk [vmem:[%s3 + $0x298] sm:$0xff] %vm6864, %v6819
  %6949 = vst.msk [vmem:[%s3 + $0x2a0] sm:$0xff] %vm6864, %v6820
  %6950 = vst.msk [vmem:[%s3 + $0x2a8] sm:$0xff] %vm6864, %v6821
  %6951 = vst.msk [vmem:[%s3 + $0x2b0] sm:$0xff] %vm6864, %v6822
  %6952 = vst.msk [vmem:[%s3 + $0x2b8] sm:$0xff] %vm6864, %v6823
  %6953 = vst.msk [vmem:[%s3 + $0x2c0] sm:$0xff] %vm6864, %v6824
  %6954 = vst.msk [vmem:[%s3 + $0x2c8] sm:$0xff] %vm6864, %v6825
  %6955 = vst.msk [vmem:[%s3 + $0x2d0] sm:$0xff] %vm6864, %v6826
  %6956 = vst.msk [vmem:[%s3 + $0x2d8] sm:$0xff] %vm6864, %v6827
  %6957 = vst.msk [vmem:[%s3 + $0x2e0] sm:$0xff] %vm6864, %v6828
  %6958 = vst.msk [vmem:[%s3 + $0x2e8] sm:$0xff] %vm6864, %v6829
  %6959 = vst.msk [vmem:[%s3 + $0x2f0] sm:$0xff] %vm6864, %v6830
  %6960 = vst.msk [vmem:[%s3 + $0x2f8] sm:$0xff] %vm6864, %v6831
  %6961 = vst.msk [vmem:[%s3 + $0x300] sm:$0xff] %vm6864, %v6832
  %6962 = vst.msk [vmem:[%s3 + $0x308] sm:$0xff] %vm6864, %v6833
  %6963 = vst.msk [vmem:[%s3 + $0x310] sm:$0xff] %vm6864, %v6834
  %6964 = vst.msk [vmem:[%s3 + $0x318] sm:$0xff] %vm6864, %v6835
  %6965 = vst.msk [vmem:[%s3 + $0x320] sm:$0xff] %vm6864, %v6836
  %6966 = vst.msk [vmem:[%s3 + $0x328] sm:$0xff] %vm6864, %v6837
  %6967 = vst.msk [vmem:[%s3 + $0x330] sm:$0xff] %vm6864, %v6838
  %6968 = vst.msk [vmem:[%s3 + $0x338] sm:$0xff] %vm6864, %v6839
  %6969 = vst.msk [vmem:[%s3 + $0x340] sm:$0xff] %vm6864, %v6840
  %6970 = vst.msk [vmem:[%s3 + $0x348] sm:$0xff] %vm6864, %v6841
  %6971 = vst.msk [vmem:[%s3 + $0x350] sm:$0xff] %vm6864, %v6842
  %6972 = vst.msk [vmem:[%s3 + $0x358] sm:$0xff] %vm6864, %v6843
  %6973 = vst.msk [vmem:[%s3 + $0x360] sm:$0xff] %vm6864, %v6844
  %6974 = vst.msk [vmem:[%s3 + $0x368] sm:$0xff] %vm6864, %v6845
  %6975 = vst.msk [vmem:[%s3 + $0x370] sm:$0xff] %vm6864, %v6846
  %6976 = vst.msk [vmem:[%s3 + $0x378] sm:$0xff] %vm6864, %v6847
  %6977 = vst.msk [vmem:[%s3 + $0x380] sm:$0xff] %vm6864, %v6848
  %6978 = vst.msk [vmem:[%s3 + $0x388] sm:$0xff] %vm6864, %v6849
  %6979 = vst.msk [vmem:[%s3 + $0x390] sm:$0xff] %vm6864, %v6850
  %6980 = vst.msk [vmem:[%s3 + $0x398] sm:$0xff] %vm6864, %v6851
  %6981 = vst.msk [vmem:[%s3 + $0x3a0] sm:$0xff] %vm6864, %v6852
  %6982 = vst.msk [vmem:[%s3 + $0x3a8] sm:$0xff] %vm6864, %v6853
  %6983 = vst.msk [vmem:[%s3 + $0x3b0] sm:$0xff] %vm6864, %v6854
  %6984 = vst.msk [vmem:[%s3 + $0x3b8] sm:$0xff] %vm6864, %v6855
  %6985 = vst.msk [vmem:[%s3 + $0x3c0] sm:$0xff] %vm6864, %v6856
  %6986 = vst.msk [vmem:[%s3 + $0x3c8] sm:$0xff] %vm6864, %v6857
  %6987 = vst.msk [vmem:[%s3 + $0x3d0] sm:$0xff] %vm6864, %v6858
  %6988 = vst.msk [vmem:[%s3 + $0x3d8] sm:$0xff] %vm6864, %v6859
  %6989 = vst.msk [vmem:[%s3 + $0x3e0] sm:$0xff] %vm6864, %v6860
  %6990 = vst.msk [vmem:[%s3 + $0x3e8] sm:$0xff] %vm6864, %v6861
  %6991 = vst.msk [vmem:[%s3 + $0x3f0] sm:$0xff] %vm6864, %v6862
  %6992 = vst.msk [vmem:[%s3 + $0x3f8] sm:$0xff] %vm6864, %v6863
  // Predicated region
  $region10: #{t2flair_3dfea.2} parent=0 // pred_check
    _
  $region11: #{t2flair_3dfea.2} parent=0 // pred_check_branch
    %6994 = sbr.rel (0) target = $region13
  $region12: #{t2flair_3dfea.2} parent=0 // pred_region
    _
  $region13: #{t2flair_3dfea.2} parent=0 // pred_fallthru
    _
  // Predicated region
  $region14: #{t2flair_3dfea.2} parent=0 // pred_check
    _
  $region15: #{t2flair_3dfea.2} parent=0 // pred_check_branch
    %6996 = sbr.rel (0) target = $region17
  $region16: #{t2flair_3dfea.2} parent=0 // pred_region
    _
  $region17: #{t2flair_3dfea.2} parent=0 // pred_fallthru
    _
  // Predicated region
  $region18: #{t2flair_3dfea.2} parent=0 // pred_check
    _
  $region19: #{t2flair_3dfea.2} parent=0 // pred_check_branch
    %6998 = sbr.rel (0) target = $region21
  $region20: #{t2flair_3dfea.2} parent=0 // pred_region
    _
  $region21: #{t2flair_3dfea.2} parent=0 // pred_fallthru
    _
  // Predicated region
  $region22: #{t2flair_3dfea.2} parent=0 // pred_check
    _
  $region23: #{t2flair_3dfea.2} parent=0 // pred_check_branch
    %7000 = sbr.rel (0) target = $region25
  $region24: #{t2flair_3dfea.2} parent=0 // pred_region
    _
  $region25: #{t2flair_3dfea.2} parent=0 // pred_fallthru
    _

// kernel: t2flair_3dfea.3
$region0: #{t2flair_3dfea.3}
  #allocation0 [shape = 'u32[]', space=smem, size = 0x4, offset = 0x4, fixed_abs, tag = 'smem constant byte address 0x4 - core index']
  #allocation1 [shape = 'u32[144,128]{1,0:T(1,128)}', space=vmem, size = 0x12000, scoped, tag = 'internal scratch']
  %s0 = inlined_call_operand.vmem [shape: f32[1024,54], index: 0, kind: input, shape index: {}]
  %s1 = inlined_call_operand.vmem [shape: f32[1,54], index: 1, kind: input, shape index: {}]
  %s2 = inlined_call_operand.vmem [shape: bf16[1024,128], index: 2, kind: input, shape index: {}]
  %s3 = inlined_call_operand.vmem [shape: f32[1024,128], index: 3, kind: output, shape index: {}]
  %s4 = sld [smem:[#allocation0]]
  $region22: #{t2flair_3dfea.3} parent=0
    _
  %s6 = ssub.s32 1, %s4
  %s7 = scalar_select 0, %s6, %s4
  // Predicated region
  $region2: #{t2flair_3dfea.3} parent=0 // pred_check
    _
  $region3: #{t2flair_3dfea.3} parent=0 // pred_check_branch
    %9 = sbr.rel (0) target = $region5
  $region4: #{t2flair_3dfea.3} parent=0 // pred_region
    _
  $region5: #{t2flair_3dfea.3} parent=0 // pred_fallthru
    _
  // Predicated region
  $region6: #{t2flair_3dfea.3} parent=0 // pred_check
    _
  $region7: #{t2flair_3dfea.3} parent=0 // pred_check_branch
    %11 = sbr.rel (0) target = $region9
  $region8: #{t2flair_3dfea.3} parent=0 // pred_region
    _
  $region9: #{t2flair_3dfea.3} parent=0 // pred_fallthru
    _
  // Predicated region
  $region10: #{t2flair_3dfea.3} parent=0 // pred_check
    _
  $region11: #{t2flair_3dfea.3} parent=0 // pred_check_branch
    %13 = sbr.rel (0) target = $region13
  $region12: #{t2flair_3dfea.3} parent=0 // pred_region
    _
  $region13: #{t2flair_3dfea.3} parent=0 // pred_fallthru
    _
  %v14 = vld [vmem:[%s0] sm:$0xff]
  %v15 = vld [vmem:[%s0 + $0x8] sm:$0xff]
  %v16 = vld [vmem:[%s0 + $0x10] sm:$0xff]
  %v17 = vld [vmem:[%s0 + $0x18] sm:$0xff]
  %v18 = vld [vmem:[%s0 + $0x20] sm:$0xff]
  %v19 = vld [vmem:[%s0 + $0x28] sm:$0xff]
  %v20 = vld [vmem:[%s0 + $0x30] sm:$0xff]
  %v21 = vld [vmem:[%s0 + $0x38] sm:$0xff]
  %v22 = vld [vmem:[%s0 + $0x40] sm:$0xff]
  %v23 = vld [vmem:[%s0 + $0x48] sm:$0xff]
  %v24 = vld [vmem:[%s0 + $0x50] sm:$0xff]
  %v25 = vld [vmem:[%s0 + $0x58] sm:$0xff]
  %v26 = vld [vmem:[%s0 + $0x60] sm:$0xff]
  %v27 = vld [vmem:[%s0 + $0x68] sm:$0xff]
  %v28 = vld [vmem:[%s0 + $0x70] sm:$0xff]
  %v29 = vld [vmem:[%s0 + $0x78] sm:$0xff]
  %v30 = vld [vmem:[%s0 + $0x80] sm:$0xff]
  %v31 = vld [vmem:[%s0 + $0x88] sm:$0xff]
  %v32 = vld [vmem:[%s0 + $0x90] sm:$0xff]
  %v33 = vld [vmem:[%s0 + $0x98] sm:$0xff]
  %v34 = vld [vmem:[%s0 + $0xa0] sm:$0xff]
  %v35 = vld [vmem:[%s0 + $0xa8] sm:$0xff]
  %v36 = vld [vmem:[%s0 + $0xb0] sm:$0xff]
  %v37 = vld [vmem:[%s0 + $0xb8] sm:$0xff]
  %v38 = vld [vmem:[%s0 + $0xc0] sm:$0xff]
  %v39 = vld [vmem:[%s0 + $0xc8] sm:$0xff]
  %v40 = vld [vmem:[%s0 + $0xd0] sm:$0xff]
  %v41 = vld [vmem:[%s0 + $0xd8] sm:$0xff]
  %v42 = vld [vmem:[%s0 + $0xe0] sm:$0xff]
  %v43 = vld [vmem:[%s0 + $0xe8] sm:$0xff]
  %v44 = vld [vmem:[%s0 + $0xf0] sm:$0xff]
  %v45 = vld [vmem:[%s0 + $0xf8] sm:$0xff]
  %v46 = vld [vmem:[%s0 + $0x100] sm:$0xff]
  %v47 = vld [vmem:[%s0 + $0x108] sm:$0xff]
  %v48 = vld [vmem:[%s0 + $0x110] sm:$0xff]
  %v49 = vld [vmem:[%s0 + $0x118] sm:$0xff]
  %v50 = vld [vmem:[%s0 + $0x120] sm:$0xff]
  %v51 = vld [vmem:[%s0 + $0x128] sm:$0xff]
  %v52 = vld [vmem:[%s0 + $0x130] sm:$0xff]
  %v53 = vld [vmem:[%s0 + $0x138] sm:$0xff]
  %v54 = vld [vmem:[%s0 + $0x140] sm:$0xff]
  %v55 = vld [vmem:[%s0 + $0x148] sm:$0xff]
  %v56 = vld [vmem:[%s0 + $0x150] sm:$0xff]
  %v57 = vld [vmem:[%s0 + $0x158] sm:$0xff]
  %v58 = vld [vmem:[%s0 + $0x160] sm:$0xff]
  %v59 = vld [vmem:[%s0 + $0x168] sm:$0xff]
  %v60 = vld [vmem:[%s0 + $0x170] sm:$0xff]
  %v61 = vld [vmem:[%s0 + $0x178] sm:$0xff]
  %v62 = vld [vmem:[%s0 + $0x180] sm:$0xff]
  %v63 = vld [vmem:[%s0 + $0x188] sm:$0xff]
  %v64 = vld [vmem:[%s0 + $0x190] sm:$0xff]
  %v65 = vld [vmem:[%s0 + $0x198] sm:$0xff]
  %v66 = vld [vmem:[%s0 + $0x1a0] sm:$0xff]
  %v67 = vld [vmem:[%s0 + $0x1a8] sm:$0xff]
  %v68 = vld [vmem:[%s0 + $0x1b0] sm:$0xff]
  %v69 = vld [vmem:[%s0 + $0x1b8] sm:$0xff]
  %v70 = vld [vmem:[%s0 + $0x1c0] sm:$0xff]
  %v71 = vld [vmem:[%s0 + $0x1c8] sm:$0xff]
  %v72 = vld [vmem:[%s0 + $0x1d0] sm:$0xff]
  %v73 = vld [vmem:[%s0 + $0x1d8] sm:$0xff]
  %v74 = vld [vmem:[%s0 + $0x1e0] sm:$0xff]
  %v75 = vld [vmem:[%s0 + $0x1e8] sm:$0xff]
  %v76 = vld [vmem:[%s0 + $0x1f0] sm:$0xff]
  %v77 = vld [vmem:[%s0 + $0x1f8] sm:$0xff]
  %v78 = vld [vmem:[%s0 + $0x200] sm:$0xff]
  %v79 = vld [vmem:[%s0 + $0x208] sm:$0xff]
  %v80 = vld [vmem:[%s0 + $0x210] sm:$0xff]
  %v81 = vld [vmem:[%s0 + $0x218] sm:$0xff]
  %v82 = vld [vmem:[%s0 + $0x220] sm:$0xff]
  %v83 = vld [vmem:[%s0 + $0x228] sm:$0xff]
  %v84 = vld [vmem:[%s0 + $0x230] sm:$0xff]
  %v85 = vld [vmem:[%s0 + $0x238] sm:$0xff]
  %v86 = vld [vmem:[%s0 + $0x240] sm:$0xff]
  %v87 = vld [vmem:[%s0 + $0x248] sm:$0xff]
  %v88 = vld [vmem:[%s0 + $0x250] sm:$0xff]
  %v89 = vld [vmem:[%s0 + $0x258] sm:$0xff]
  %v90 = vld [vmem:[%s0 + $0x260] sm:$0xff]
  %v91 = vld [vmem:[%s0 + $0x268] sm:$0xff]
  %v92 = vld [vmem:[%s0 + $0x270] sm:$0xff]
  %v93 = vld [vmem:[%s0 + $0x278] sm:$0xff]
  %v94 = vld [vmem:[%s0 + $0x280] sm:$0xff]
  %v95 = vld [vmem:[%s0 + $0x288] sm:$0xff]
  %v96 = vld [vmem:[%s0 + $0x290] sm:$0xff]
  %v97 = vld [vmem:[%s0 + $0x298] sm:$0xff]
  %v98 = vld [vmem:[%s0 + $0x2a0] sm:$0xff]
  %v99 = vld [vmem:[%s0 + $0x2a8] sm:$0xff]
  %v100 = vld [vmem:[%s0 + $0x2b0] sm:$0xff]
  %v101 = vld [vmem:[%s0 + $0x2b8] sm:$0xff]
  %v102 = vld [vmem:[%s0 + $0x2c0] sm:$0xff]
  %v103 = vld [vmem:[%s0 + $0x2c8] sm:$0xff]
  %v104 = vld [vmem:[%s0 + $0x2d0] sm:$0xff]
  %v105 = vld [vmem:[%s0 + $0x2d8] sm:$0xff]
  %v106 = vld [vmem:[%s0 + $0x2e0] sm:$0xff]
  %v107 = vld [vmem:[%s0 + $0x2e8] sm:$0xff]
  %v108 = vld [vmem:[%s0 + $0x2f0] sm:$0xff]
  %v109 = vld [vmem:[%s0 + $0x2f8] sm:$0xff]
  %v110 = vld [vmem:[%s0 + $0x300] sm:$0xff]
  %v111 = vld [vmem:[%s0 + $0x308] sm:$0xff]
  %v112 = vld [vmem:[%s0 + $0x310] sm:$0xff]
  %v113 = vld [vmem:[%s0 + $0x318] sm:$0xff]
  %v114 = vld [vmem:[%s0 + $0x320] sm:$0xff]
  %v115 = vld [vmem:[%s0 + $0x328] sm:$0xff]
  %v116 = vld [vmem:[%s0 + $0x330] sm:$0xff]
  %v117 = vld [vmem:[%s0 + $0x338] sm:$0xff]
  %v118 = vld [vmem:[%s0 + $0x340] sm:$0xff]
  %v119 = vld [vmem:[%s0 + $0x348] sm:$0xff]
  %v120 = vld [vmem:[%s0 + $0x350] sm:$0xff]
  %v121 = vld [vmem:[%s0 + $0x358] sm:$0xff]
  %v122 = vld [vmem:[%s0 + $0x360] sm:$0xff]
  %v123 = vld [vmem:[%s0 + $0x368] sm:$0xff]
  %v124 = vld [vmem:[%s0 + $0x370] sm:$0xff]
  %v125 = vld [vmem:[%s0 + $0x378] sm:$0xff]
  %v126 = vld [vmem:[%s0 + $0x380] sm:$0xff]
  %v127 = vld [vmem:[%s0 + $0x388] sm:$0xff]
  %v128 = vld [vmem:[%s0 + $0x390] sm:$0xff]
  %v129 = vld [vmem:[%s0 + $0x398] sm:$0xff]
  %v130 = vld [vmem:[%s0 + $0x3a0] sm:$0xff]
  %v131 = vld [vmem:[%s0 + $0x3a8] sm:$0xff]
  %v132 = vld [vmem:[%s0 + $0x3b0] sm:$0xff]
  %v133 = vld [vmem:[%s0 + $0x3b8] sm:$0xff]
  %v134 = vld [vmem:[%s0 + $0x3c0] sm:$0xff]
  %v135 = vld [vmem:[%s0 + $0x3c8] sm:$0xff]
  %v136 = vld [vmem:[%s0 + $0x3d0] sm:$0xff]
  %v137 = vld [vmem:[%s0 + $0x3d8] sm:$0xff]
  %v138 = vld [vmem:[%s0 + $0x3e0] sm:$0xff]
  %v139 = vld [vmem:[%s0 + $0x3e8] sm:$0xff]
  %v140 = vld [vmem:[%s0 + $0x3f0] sm:$0xff]
  %v141 = vld [vmem:[%s0 + $0x3f8] sm:$0xff]
  %v142 = vld [vmem:[%s1] sm:$0x1]
  %v144 = vlaneseq
  %v145 = vshrl.u32 %v144, 7
  %v146 = vsub.s32 0, %v145
  %v147 = vrot.slane %v142, %v146
  %v149 = vmul.f32 %v14, %v147
  %v150 = vmul.f32 %v15, %v147
  %v151 = vmul.f32 %v16, %v147
  %v152 = vmul.f32 %v17, %v147
  %v153 = vmul.f32 %v18, %v147
  %v154 = vmul.f32 %v19, %v147
  %v155 = vmul.f32 %v20, %v147
  %v156 = vmul.f32 %v21, %v147
  %v157 = vmul.f32 %v22, %v147
  %v158 = vmul.f32 %v23, %v147
  %v159 = vmul.f32 %v24, %v147
  %v160 = vmul.f32 %v25, %v147
  %v161 = vmul.f32 %v26, %v147
  %v162 = vmul.f32 %v27, %v147
  %v163 = vmul.f32 %v28, %v147
  %v164 = vmul.f32 %v29, %v147
  %v165 = vmul.f32 %v30, %v147
  %v166 = vmul.f32 %v31, %v147
  %v167 = vmul.f32 %v32, %v147
  %v168 = vmul.f32 %v33, %v147
  %v169 = vmul.f32 %v34, %v147
  %v170 = vmul.f32 %v35, %v147
  %v171 = vmul.f32 %v36, %v147
  %v172 = vmul.f32 %v37, %v147
  %v173 = vmul.f32 %v38, %v147
  %v174 = vmul.f32 %v39, %v147
  %v175 = vmul.f32 %v40, %v147
  %v176 = vmul.f32 %v41, %v147
  %v177 = vmul.f32 %v42, %v147
  %v178 = vmul.f32 %v43, %v147
  %v179 = vmul.f32 %v44, %v147
  %v180 = vmul.f32 %v45, %v147
  %v181 = vmul.f32 %v46, %v147
  %v182 = vmul.f32 %v47, %v147
  %v183 = vmul.f32 %v48, %v147
  %v184 = vmul.f32 %v49, %v147
  %v185 = vmul.f32 %v50, %v147
  %v186 = vmul.f32 %v51, %v147
  %v187 = vmul.f32 %v52, %v147
  %v188 = vmul.f32 %v53, %v147
  %v189 = vmul.f32 %v54, %v147
  %v190 = vmul.f32 %v55, %v147
  %v191 = vmul.f32 %v56, %v147
  %v192 = vmul.f32 %v57, %v147
  %v193 = vmul.f32 %v58, %v147
  %v194 = vmul.f32 %v59, %v147
  %v195 = vmul.f32 %v60, %v147
  %v196 = vmul.f32 %v61, %v147
  %v197 = vmul.f32 %v62, %v147
  %v198 = vmul.f32 %v63, %v147
  %v199 = vmul.f32 %v64, %v147
  %v200 = vmul.f32 %v65, %v147
  %v201 = vmul.f32 %v66, %v147
  %v202 = vmul.f32 %v67, %v147
  %v203 = vmul.f32 %v68, %v147
  %v204 = vmul.f32 %v69, %v147
  %v205 = vmul.f32 %v70, %v147
  %v206 = vmul.f32 %v71, %v147
  %v207 = vmul.f32 %v72, %v147
  %v208 = vmul.f32 %v73, %v147
  %v209 = vmul.f32 %v74, %v147
  %v210 = vmul.f32 %v75, %v147
  %v211 = vmul.f32 %v76, %v147
  %v212 = vmul.f32 %v77, %v147
  %v213 = vmul.f32 %v78, %v147
  %v214 = vmul.f32 %v79, %v147
  %v215 = vmul.f32 %v80, %v147
  %v216 = vmul.f32 %v81, %v147
  %v217 = vmul.f32 %v82, %v147
  %v218 = vmul.f32 %v83, %v147
  %v219 = vmul.f32 %v84, %v147
  %v220 = vmul.f32 %v85, %v147
  %v221 = vmul.f32 %v86, %v147
  %v222 = vmul.f32 %v87, %v147
  %v223 = vmul.f32 %v88, %v147
  %v224 = vmul.f32 %v89, %v147
  %v225 = vmul.f32 %v90, %v147
  %v226 = vmul.f32 %v91, %v147
  %v227 = vmul.f32 %v92, %v147
  %v228 = vmul.f32 %v93, %v147
  %v229 = vmul.f32 %v94, %v147
  %v230 = vmul.f32 %v95, %v147
  %v231 = vmul.f32 %v96, %v147
  %v232 = vmul.f32 %v97, %v147
  %v233 = vmul.f32 %v98, %v147
  %v234 = vmul.f32 %v99, %v147
  %v235 = vmul.f32 %v100, %v147
  %v236 = vmul.f32 %v101, %v147
  %v237 = vmul.f32 %v102, %v147
  %v238 = vmul.f32 %v103, %v147
  %v239 = vmul.f32 %v104, %v147
  %v240 = vmul.f32 %v105, %v147
  %v241 = vmul.f32 %v106, %v147
  %v242 = vmul.f32 %v107, %v147
  %v243 = vmul.f32 %v108, %v147
  %v244 = vmul.f32 %v109, %v147
  %v245 = vmul.f32 %v110, %v147
  %v246 = vmul.f32 %v111, %v147
  %v247 = vmul.f32 %v112, %v147
  %v248 = vmul.f32 %v113, %v147
  %v249 = vmul.f32 %v114, %v147
  %v250 = vmul.f32 %v115, %v147
  %v251 = vmul.f32 %v116, %v147
  %v252 = vmul.f32 %v117, %v147
  %v253 = vmul.f32 %v118, %v147
  %v254 = vmul.f32 %v119, %v147
  %v255 = vmul.f32 %v120, %v147
  %v256 = vmul.f32 %v121, %v147
  %v257 = vmul.f32 %v122, %v147
  %v258 = vmul.f32 %v123, %v147
  %v259 = vmul.f32 %v124, %v147
  %v260 = vmul.f32 %v125, %v147
  %v261 = vmul.f32 %v126, %v147
  %v262 = vmul.f32 %v127, %v147
  %v263 = vmul.f32 %v128, %v147
  %v264 = vmul.f32 %v129, %v147
  %v265 = vmul.f32 %v130, %v147
  %v266 = vmul.f32 %v131, %v147
  %v267 = vmul.f32 %v132, %v147
  %v268 = vmul.f32 %v133, %v147
  %v269 = vmul.f32 %v134, %v147
  %v270 = vmul.f32 %v135, %v147
  %v271 = vmul.f32 %v136, %v147
  %v272 = vmul.f32 %v137, %v147
  %v273 = vmul.f32 %v138, %v147
  %v274 = vmul.f32 %v139, %v147
  %v275 = vmul.f32 %v140, %v147
  %v276 = vmul.f32 %v141, %v147
  %vm277 = vcmask 441344
  %v278 = vsel %vm277, %v149, 0.0
  %279 = vadd.xlane.f32.xlu0 %v278
  %v280 = vpop.xlane.xlu0 %279
  %v281 = vsel %vm277, %v150, 0.0
  %282 = vadd.xlane.f32.xlu0 %v281
  %v283 = vpop.xlane.xlu0 %282
  %v284 = vsel %vm277, %v151, 0.0
  %285 = vadd.xlane.f32.xlu0 %v284
  %v286 = vpop.xlane.xlu0 %285
  %v287 = vsel %vm277, %v152, 0.0
  %288 = vadd.xlane.f32.xlu0 %v287
  %v289 = vpop.xlane.xlu0 %288
  %v290 = vsel %vm277, %v153, 0.0
  %291 = vadd.xlane.f32.xlu0 %v290
  %v292 = vpop.xlane.xlu0 %291
  %v293 = vsel %vm277, %v154, 0.0
  %294 = vadd.xlane.f32.xlu0 %v293
  %v295 = vpop.xlane.xlu0 %294
  %v296 = vsel %vm277, %v155, 0.0
  %297 = vadd.xlane.f32.xlu0 %v296
  %v298 = vpop.xlane.xlu0 %297
  %v299 = vsel %vm277, %v156, 0.0
  %300 = vadd.xlane.f32.xlu0 %v299
  %v301 = vpop.xlane.xlu0 %300
  %v302 = vsel %vm277, %v157, 0.0
  %303 = vadd.xlane.f32.xlu0 %v302
  %v304 = vpop.xlane.xlu0 %303
  %v305 = vsel %vm277, %v158, 0.0
  %306 = vadd.xlane.f32.xlu0 %v305
  %v307 = vpop.xlane.xlu0 %306
  %v308 = vsel %vm277, %v159, 0.0
  %309 = vadd.xlane.f32.xlu0 %v308
  %v310 = vpop.xlane.xlu0 %309
  %v311 = vsel %vm277, %v160, 0.0
  %312 = vadd.xlane.f32.xlu0 %v311
  %v313 = vpop.xlane.xlu0 %312
  %v314 = vsel %vm277, %v161, 0.0
  %315 = vadd.xlane.f32.xlu0 %v314
  %v316 = vpop.xlane.xlu0 %315
  %v317 = vsel %vm277, %v162, 0.0
  %318 = vadd.xlane.f32.xlu0 %v317
  %v319 = vpop.xlane.xlu0 %318
  %v320 = vsel %vm277, %v163, 0.0
  %321 = vadd.xlane.f32.xlu0 %v320
  %v322 = vpop.xlane.xlu0 %321
  %v323 = vsel %vm277, %v164, 0.0
  %324 = vadd.xlane.f32.xlu0 %v323
  %v325 = vpop.xlane.xlu0 %324
  %v326 = vsel %vm277, %v165, 0.0
  %327 = vadd.xlane.f32.xlu0 %v326
  %v328 = vpop.xlane.xlu0 %327
  %v329 = vsel %vm277, %v166, 0.0
  %330 = vadd.xlane.f32.xlu0 %v329
  %v331 = vpop.xlane.xlu0 %330
  %v332 = vsel %vm277, %v167, 0.0
  %333 = vadd.xlane.f32.xlu0 %v332
  %v334 = vpop.xlane.xlu0 %333
  %v335 = vsel %vm277, %v168, 0.0
  %336 = vadd.xlane.f32.xlu0 %v335
  %v337 = vpop.xlane.xlu0 %336
  %v338 = vsel %vm277, %v169, 0.0
  %339 = vadd.xlane.f32.xlu0 %v338
  %v340 = vpop.xlane.xlu0 %339
  %v341 = vsel %vm277, %v170, 0.0
  %342 = vadd.xlane.f32.xlu0 %v341
  %v343 = vpop.xlane.xlu0 %342
  %v344 = vsel %vm277, %v171, 0.0
  %345 = vadd.xlane.f32.xlu0 %v344
  %v346 = vpop.xlane.xlu0 %345
  %v347 = vsel %vm277, %v172, 0.0
  %348 = vadd.xlane.f32.xlu0 %v347
  %v349 = vpop.xlane.xlu0 %348
  %v350 = vsel %vm277, %v173, 0.0
  %351 = vadd.xlane.f32.xlu0 %v350
  %v352 = vpop.xlane.xlu0 %351
  %v353 = vsel %vm277, %v174, 0.0
  %354 = vadd.xlane.f32.xlu0 %v353
  %v355 = vpop.xlane.xlu0 %354
  %v356 = vsel %vm277, %v175, 0.0
  %357 = vadd.xlane.f32.xlu0 %v356
  %v358 = vpop.xlane.xlu0 %357
  %v359 = vsel %vm277, %v176, 0.0
  %360 = vadd.xlane.f32.xlu0 %v359
  %v361 = vpop.xlane.xlu0 %360
  %v362 = vsel %vm277, %v177, 0.0
  %363 = vadd.xlane.f32.xlu0 %v362
  %v364 = vpop.xlane.xlu0 %363
  %v365 = vsel %vm277, %v178, 0.0
  %366 = vadd.xlane.f32.xlu0 %v365
  %v367 = vpop.xlane.xlu0 %366
  %v368 = vsel %vm277, %v179, 0.0
  %369 = vadd.xlane.f32.xlu0 %v368
  %v370 = vpop.xlane.xlu0 %369
  %v371 = vsel %vm277, %v180, 0.0
  %372 = vadd.xlane.f32.xlu0 %v371
  %v373 = vpop.xlane.xlu0 %372
  %v374 = vsel %vm277, %v181, 0.0
  %375 = vadd.xlane.f32.xlu0 %v374
  %v376 = vpop.xlane.xlu0 %375
  %v377 = vsel %vm277, %v182, 0.0
  %378 = vadd.xlane.f32.xlu0 %v377
  %v379 = vpop.xlane.xlu0 %378
  %v380 = vsel %vm277, %v183, 0.0
  %381 = vadd.xlane.f32.xlu0 %v380
  %v382 = vpop.xlane.xlu0 %381
  %v383 = vsel %vm277, %v184, 0.0
  %384 = vadd.xlane.f32.xlu0 %v383
  %v385 = vpop.xlane.xlu0 %384
  %v386 = vsel %vm277, %v185, 0.0
  %387 = vadd.xlane.f32.xlu0 %v386
  %v388 = vpop.xlane.xlu0 %387
  %v389 = vsel %vm277, %v186, 0.0
  %390 = vadd.xlane.f32.xlu0 %v389
  %v391 = vpop.xlane.xlu0 %390
  %v392 = vsel %vm277, %v187, 0.0
  %393 = vadd.xlane.f32.xlu0 %v392
  %v394 = vpop.xlane.xlu0 %393
  %v395 = vsel %vm277, %v188, 0.0
  %396 = vadd.xlane.f32.xlu0 %v395
  %v397 = vpop.xlane.xlu0 %396
  %v398 = vsel %vm277, %v189, 0.0
  %399 = vadd.xlane.f32.xlu0 %v398
  %v400 = vpop.xlane.xlu0 %399
  %v401 = vsel %vm277, %v190, 0.0
  %402 = vadd.xlane.f32.xlu0 %v401
  %v403 = vpop.xlane.xlu0 %402
  %v404 = vsel %vm277, %v191, 0.0
  %405 = vadd.xlane.f32.xlu0 %v404
  %v406 = vpop.xlane.xlu0 %405
  %v407 = vsel %vm277, %v192, 0.0
  %408 = vadd.xlane.f32.xlu0 %v407
  %v409 = vpop.xlane.xlu0 %408
  %v410 = vsel %vm277, %v193, 0.0
  %411 = vadd.xlane.f32.xlu0 %v410
  %v412 = vpop.xlane.xlu0 %411
  %v413 = vsel %vm277, %v194, 0.0
  %414 = vadd.xlane.f32.xlu0 %v413
  %v415 = vpop.xlane.xlu0 %414
  %v416 = vsel %vm277, %v195, 0.0
  %417 = vadd.xlane.f32.xlu0 %v416
  %v418 = vpop.xlane.xlu0 %417
  %v419 = vsel %vm277, %v196, 0.0
  %420 = vadd.xlane.f32.xlu0 %v419
  %v421 = vpop.xlane.xlu0 %420
  %v422 = vsel %vm277, %v197, 0.0
  %423 = vadd.xlane.f32.xlu0 %v422
  %v424 = vpop.xlane.xlu0 %423
  %v425 = vsel %vm277, %v198, 0.0
  %426 = vadd.xlane.f32.xlu0 %v425
  %v427 = vpop.xlane.xlu0 %426
  %v428 = vsel %vm277, %v199, 0.0
  %429 = vadd.xlane.f32.xlu0 %v428
  %v430 = vpop.xlane.xlu0 %429
  %v431 = vsel %vm277, %v200, 0.0
  %432 = vadd.xlane.f32.xlu0 %v431
  %v433 = vpop.xlane.xlu0 %432
  %v434 = vsel %vm277, %v201, 0.0
  %435 = vadd.xlane.f32.xlu0 %v434
  %v436 = vpop.xlane.xlu0 %435
  %v437 = vsel %vm277, %v202, 0.0
  %438 = vadd.xlane.f32.xlu0 %v437
  %v439 = vpop.xlane.xlu0 %438
  %v440 = vsel %vm277, %v203, 0.0
  %441 = vadd.xlane.f32.xlu0 %v440
  %v442 = vpop.xlane.xlu0 %441
  %v443 = vsel %vm277, %v204, 0.0
  %444 = vadd.xlane.f32.xlu0 %v443
  %v445 = vpop.xlane.xlu0 %444
  %v446 = vsel %vm277, %v205, 0.0
  %447 = vadd.xlane.f32.xlu0 %v446
  %v448 = vpop.xlane.xlu0 %447
  %v449 = vsel %vm277, %v206, 0.0
  %450 = vadd.xlane.f32.xlu0 %v449
  %v451 = vpop.xlane.xlu0 %450
  %v452 = vsel %vm277, %v207, 0.0
  %453 = vadd.xlane.f32.xlu0 %v452
  %v454 = vpop.xlane.xlu0 %453
  %v455 = vsel %vm277, %v208, 0.0
  %456 = vadd.xlane.f32.xlu0 %v455
  %v457 = vpop.xlane.xlu0 %456
  %v458 = vsel %vm277, %v209, 0.0
  %459 = vadd.xlane.f32.xlu0 %v458
  %v460 = vpop.xlane.xlu0 %459
  %v461 = vsel %vm277, %v210, 0.0
  %462 = vadd.xlane.f32.xlu0 %v461
  %v463 = vpop.xlane.xlu0 %462
  %v464 = vsel %vm277, %v211, 0.0
  %465 = vadd.xlane.f32.xlu0 %v464
  %v466 = vpop.xlane.xlu0 %465
  %v467 = vsel %vm277, %v212, 0.0
  %468 = vadd.xlane.f32.xlu0 %v467
  %v469 = vpop.xlane.xlu0 %468
  %v470 = vsel %vm277, %v213, 0.0
  %471 = vadd.xlane.f32.xlu0 %v470
  %v472 = vpop.xlane.xlu0 %471
  %v473 = vsel %vm277, %v214, 0.0
  %474 = vadd.xlane.f32.xlu0 %v473
  %v475 = vpop.xlane.xlu0 %474
  %v476 = vsel %vm277, %v215, 0.0
  %477 = vadd.xlane.f32.xlu0 %v476
  %v478 = vpop.xlane.xlu0 %477
  %v479 = vsel %vm277, %v216, 0.0
  %480 = vadd.xlane.f32.xlu0 %v479
  %v481 = vpop.xlane.xlu0 %480
  %v482 = vsel %vm277, %v217, 0.0
  %483 = vadd.xlane.f32.xlu0 %v482
  %v484 = vpop.xlane.xlu0 %483
  %v485 = vsel %vm277, %v218, 0.0
  %486 = vadd.xlane.f32.xlu0 %v485
  %v487 = vpop.xlane.xlu0 %486
  %v488 = vsel %vm277, %v219, 0.0
  %489 = vadd.xlane.f32.xlu0 %v488
  %v490 = vpop.xlane.xlu0 %489
  %v491 = vsel %vm277, %v220, 0.0
  %492 = vadd.xlane.f32.xlu0 %v491
  %v493 = vpop.xlane.xlu0 %492
  %v494 = vsel %vm277, %v221, 0.0
  %495 = vadd.xlane.f32.xlu0 %v494
  %v496 = vpop.xlane.xlu0 %495
  %v497 = vsel %vm277, %v222, 0.0
  %498 = vadd.xlane.f32.xlu0 %v497
  %v499 = vpop.xlane.xlu0 %498
  %v500 = vsel %vm277, %v223, 0.0
  %501 = vadd.xlane.f32.xlu0 %v500
  %v502 = vpop.xlane.xlu0 %501
  %v503 = vsel %vm277, %v224, 0.0
  %504 = vadd.xlane.f32.xlu0 %v503
  %v505 = vpop.xlane.xlu0 %504
  %v506 = vsel %vm277, %v225, 0.0
  %507 = vadd.xlane.f32.xlu0 %v506
  %v508 = vpop.xlane.xlu0 %507
  %v509 = vsel %vm277, %v226, 0.0
  %510 = vadd.xlane.f32.xlu0 %v509
  %v511 = vpop.xlane.xlu0 %510
  %v512 = vsel %vm277, %v227, 0.0
  %513 = vadd.xlane.f32.xlu0 %v512
  %v514 = vpop.xlane.xlu0 %513
  %v515 = vsel %vm277, %v228, 0.0
  %516 = vadd.xlane.f32.xlu0 %v515
  %v517 = vpop.xlane.xlu0 %516
  %v518 = vsel %vm277, %v229, 0.0
  %519 = vadd.xlane.f32.xlu0 %v518
  %v520 = vpop.xlane.xlu0 %519
  %v521 = vsel %vm277, %v230, 0.0
  %522 = vadd.xlane.f32.xlu0 %v521
  %v523 = vpop.xlane.xlu0 %522
  %v524 = vsel %vm277, %v231, 0.0
  %525 = vadd.xlane.f32.xlu0 %v524
  %v526 = vpop.xlane.xlu0 %525
  %v527 = vsel %vm277, %v232, 0.0
  %528 = vadd.xlane.f32.xlu0 %v527
  %v529 = vpop.xlane.xlu0 %528
  %v530 = vsel %vm277, %v233, 0.0
  %531 = vadd.xlane.f32.xlu0 %v530
  %v532 = vpop.xlane.xlu0 %531
  %v533 = vsel %vm277, %v234, 0.0
  %534 = vadd.xlane.f32.xlu0 %v533
  %v535 = vpop.xlane.xlu0 %534
  %v536 = vsel %vm277, %v235, 0.0
  %537 = vadd.xlane.f32.xlu0 %v536
  %v538 = vpop.xlane.xlu0 %537
  %v539 = vsel %vm277, %v236, 0.0
  %540 = vadd.xlane.f32.xlu0 %v539
  %v541 = vpop.xlane.xlu0 %540
  %v542 = vsel %vm277, %v237, 0.0
  %543 = vadd.xlane.f32.xlu0 %v542
  %v544 = vpop.xlane.xlu0 %543
  %v545 = vsel %vm277, %v238, 0.0
  %546 = vadd.xlane.f32.xlu0 %v545
  %v547 = vpop.xlane.xlu0 %546
  %v548 = vsel %vm277, %v239, 0.0
  %549 = vadd.xlane.f32.xlu0 %v548
  %v550 = vpop.xlane.xlu0 %549
  %v551 = vsel %vm277, %v240, 0.0
  %552 = vadd.xlane.f32.xlu0 %v551
  %v553 = vpop.xlane.xlu0 %552
  %v554 = vsel %vm277, %v241, 0.0
  %555 = vadd.xlane.f32.xlu0 %v554
  %v556 = vpop.xlane.xlu0 %555
  %v557 = vsel %vm277, %v242, 0.0
  %558 = vadd.xlane.f32.xlu0 %v557
  %v559 = vpop.xlane.xlu0 %558
  %v560 = vsel %vm277, %v243, 0.0
  %561 = vadd.xlane.f32.xlu0 %v560
  %v562 = vpop.xlane.xlu0 %561
  %v563 = vsel %vm277, %v244, 0.0
  %564 = vadd.xlane.f32.xlu0 %v563
  %v565 = vpop.xlane.xlu0 %564
  %v566 = vsel %vm277, %v245, 0.0
  %567 = vadd.xlane.f32.xlu0 %v566
  %v568 = vpop.xlane.xlu0 %567
  %v569 = vsel %vm277, %v246, 0.0
  %570 = vadd.xlane.f32.xlu0 %v569
  %v571 = vpop.xlane.xlu0 %570
  %v572 = vsel %vm277, %v247, 0.0
  %573 = vadd.xlane.f32.xlu0 %v572
  %v574 = vpop.xlane.xlu0 %573
  %v575 = vsel %vm277, %v248, 0.0
  %576 = vadd.xlane.f32.xlu0 %v575
  %v577 = vpop.xlane.xlu0 %576
  %v578 = vsel %vm277, %v249, 0.0
  %579 = vadd.xlane.f32.xlu0 %v578
  %v580 = vpop.xlane.xlu0 %579
  %v581 = vsel %vm277, %v250, 0.0
  %582 = vadd.xlane.f32.xlu0 %v581
  %v583 = vpop.xlane.xlu0 %582
  %v584 = vsel %vm277, %v251, 0.0
  %585 = vadd.xlane.f32.xlu0 %v584
  %v586 = vpop.xlane.xlu0 %585
  %v587 = vsel %vm277, %v252, 0.0
  %588 = vadd.xlane.f32.xlu0 %v587
  %v589 = vpop.xlane.xlu0 %588
  %v590 = vsel %vm277, %v253, 0.0
  %591 = vadd.xlane.f32.xlu0 %v590
  %v592 = vpop.xlane.xlu0 %591
  %v593 = vsel %vm277, %v254, 0.0
  %594 = vadd.xlane.f32.xlu0 %v593
  %v595 = vpop.xlane.xlu0 %594
  %v596 = vsel %vm277, %v255, 0.0
  %597 = vadd.xlane.f32.xlu0 %v596
  %v598 = vpop.xlane.xlu0 %597
  %v599 = vsel %vm277, %v256, 0.0
  %600 = vadd.xlane.f32.xlu0 %v599
  %v601 = vpop.xlane.xlu0 %600
  %v602 = vsel %vm277, %v257, 0.0
  %603 = vadd.xlane.f32.xlu0 %v602
  %v604 = vpop.xlane.xlu0 %603
  %v605 = vsel %vm277, %v258, 0.0
  %606 = vadd.xlane.f32.xlu0 %v605
  %v607 = vpop.xlane.xlu0 %606
  %v608 = vsel %vm277, %v259, 0.0
  %609 = vadd.xlane.f32.xlu0 %v608
  %v610 = vpop.xlane.xlu0 %609
  %v611 = vsel %vm277, %v260, 0.0
  %612 = vadd.xlane.f32.xlu0 %v611
  %v613 = vpop.xlane.xlu0 %612
  %v614 = vsel %vm277, %v261, 0.0
  %615 = vadd.xlane.f32.xlu0 %v614
  %v616 = vpop.xlane.xlu0 %615
  %v617 = vsel %vm277, %v262, 0.0
  %618 = vadd.xlane.f32.xlu0 %v617
  %v619 = vpop.xlane.xlu0 %618
  %v620 = vsel %vm277, %v263, 0.0
  %621 = vadd.xlane.f32.xlu0 %v620
  %v622 = vpop.xlane.xlu0 %621
  %v623 = vsel %vm277, %v264, 0.0
  %624 = vadd.xlane.f32.xlu0 %v623
  %v625 = vpop.xlane.xlu0 %624
  %v626 = vsel %vm277, %v265, 0.0
  %627 = vadd.xlane.f32.xlu0 %v626
  %v628 = vpop.xlane.xlu0 %627
  %v629 = vsel %vm277, %v266, 0.0
  %630 = vadd.xlane.f32.xlu0 %v629
  %v631 = vpop.xlane.xlu0 %630
  %v632 = vsel %vm277, %v267, 0.0
  %633 = vadd.xlane.f32.xlu0 %v632
  %v634 = vpop.xlane.xlu0 %633
  %v635 = vsel %vm277, %v268, 0.0
  %636 = vadd.xlane.f32.xlu0 %v635
  %v637 = vpop.xlane.xlu0 %636
  %v638 = vsel %vm277, %v269, 0.0
  %639 = vadd.xlane.f32.xlu0 %v638
  %v640 = vpop.xlane.xlu0 %639
  %v641 = vsel %vm277, %v270, 0.0
  %642 = vadd.xlane.f32.xlu0 %v641
  %v643 = vpop.xlane.xlu0 %642
  %v644 = vsel %vm277, %v271, 0.0
  %645 = vadd.xlane.f32.xlu0 %v644
  %v646 = vpop.xlane.xlu0 %645
  %v647 = vsel %vm277, %v272, 0.0
  %648 = vadd.xlane.f32.xlu0 %v647
  %v649 = vpop.xlane.xlu0 %648
  %v650 = vsel %vm277, %v273, 0.0
  %651 = vadd.xlane.f32.xlu0 %v650
  %v652 = vpop.xlane.xlu0 %651
  %v653 = vsel %vm277, %v274, 0.0
  %654 = vadd.xlane.f32.xlu0 %v653
  %v655 = vpop.xlane.xlu0 %654
  %v656 = vsel %vm277, %v275, 0.0
  %657 = vadd.xlane.f32.xlu0 %v656
  %v658 = vpop.xlane.xlu0 %657
  %v659 = vsel %vm277, %v276, 0.0
  %660 = vadd.xlane.f32.xlu0 %v659
  %v661 = vpop.xlane.xlu0 %660
  %v662 = vmax.f32 %v280, 0.0
  %v663 = vmax.f32 %v283, 0.0
  %v664 = vmax.f32 %v286, 0.0
  %v665 = vmax.f32 %v289, 0.0
  %v666 = vmax.f32 %v292, 0.0
  %v667 = vmax.f32 %v295, 0.0
  %v668 = vmax.f32 %v298, 0.0
  %v669 = vmax.f32 %v301, 0.0
  %v670 = vmax.f32 %v304, 0.0
  %v671 = vmax.f32 %v307, 0.0
  %v672 = vmax.f32 %v310, 0.0
  %v673 = vmax.f32 %v313, 0.0
  %v674 = vmax.f32 %v316, 0.0
  %v675 = vmax.f32 %v319, 0.0
  %v676 = vmax.f32 %v322, 0.0
  %v677 = vmax.f32 %v325, 0.0
  %v678 = vmax.f32 %v328, 0.0
  %v679 = vmax.f32 %v331, 0.0
  %v680 = vmax.f32 %v334, 0.0
  %v681 = vmax.f32 %v337, 0.0
  %v682 = vmax.f32 %v340, 0.0
  %v683 = vmax.f32 %v343, 0.0
  %v684 = vmax.f32 %v346, 0.0
  %v685 = vmax.f32 %v349, 0.0
  %v686 = vmax.f32 %v352, 0.0
  %v687 = vmax.f32 %v355, 0.0
  %v688 = vmax.f32 %v358, 0.0
  %v689 = vmax.f32 %v361, 0.0
  %v690 = vmax.f32 %v364, 0.0
  %v691 = vmax.f32 %v367, 0.0
  %v692 = vmax.f32 %v370, 0.0
  %v693 = vmax.f32 %v373, 0.0
  %v694 = vmax.f32 %v376, 0.0
  %v695 = vmax.f32 %v379, 0.0
  %v696 = vmax.f32 %v382, 0.0
  %v697 = vmax.f32 %v385, 0.0
  %v698 = vmax.f32 %v388, 0.0
  %v699 = vmax.f32 %v391, 0.0
  %v700 = vmax.f32 %v394, 0.0
  %v701 = vmax.f32 %v397, 0.0
  %v702 = vmax.f32 %v400, 0.0
  %v703 = vmax.f32 %v403, 0.0
  %v704 = vmax.f32 %v406, 0.0
  %v705 = vmax.f32 %v409, 0.0
  %v706 = vmax.f32 %v412, 0.0
  %v707 = vmax.f32 %v415, 0.0
  %v708 = vmax.f32 %v418, 0.0
  %v709 = vmax.f32 %v421, 0.0
  %v710 = vmax.f32 %v424, 0.0
  %v711 = vmax.f32 %v427, 0.0
  %v712 = vmax.f32 %v430, 0.0
  %v713 = vmax.f32 %v433, 0.0
  %v714 = vmax.f32 %v436, 0.0
  %v715 = vmax.f32 %v439, 0.0
  %v716 = vmax.f32 %v442, 0.0
  %v717 = vmax.f32 %v445, 0.0
  %v718 = vmax.f32 %v448, 0.0
  %v719 = vmax.f32 %v451, 0.0
  %v720 = vmax.f32 %v454, 0.0
  %v721 = vmax.f32 %v457, 0.0
  %v722 = vmax.f32 %v460, 0.0
  %v723 = vmax.f32 %v463, 0.0
  %v724 = vmax.f32 %v466, 0.0
  %v725 = vmax.f32 %v469, 0.0
  %v726 = vmax.f32 %v472, 0.0
  %v727 = vmax.f32 %v475, 0.0
  %v728 = vmax.f32 %v478, 0.0
  %v729 = vmax.f32 %v481, 0.0
  %v730 = vmax.f32 %v484, 0.0
  %v731 = vmax.f32 %v487, 0.0
  %v732 = vmax.f32 %v490, 0.0
  %v733 = vmax.f32 %v493, 0.0
  %v734 = vmax.f32 %v496, 0.0
  %v735 = vmax.f32 %v499, 0.0
  %v736 = vmax.f32 %v502, 0.0
  %v737 = vmax.f32 %v505, 0.0
  %v738 = vmax.f32 %v508, 0.0
  %v739 = vmax.f32 %v511, 0.0
  %v740 = vmax.f32 %v514, 0.0
  %v741 = vmax.f32 %v517, 0.0
  %v742 = vmax.f32 %v520, 0.0
  %v743 = vmax.f32 %v523, 0.0
  %v744 = vmax.f32 %v526, 0.0
  %v745 = vmax.f32 %v529, 0.0
  %v746 = vmax.f32 %v532, 0.0
  %v747 = vmax.f32 %v535, 0.0
  %v748 = vmax.f32 %v538, 0.0
  %v749 = vmax.f32 %v541, 0.0
  %v750 = vmax.f32 %v544, 0.0
  %v751 = vmax.f32 %v547, 0.0
  %v752 = vmax.f32 %v550, 0.0
  %v753 = vmax.f32 %v553, 0.0
  %v754 = vmax.f32 %v556, 0.0
  %v755 = vmax.f32 %v559, 0.0
  %v756 = vmax.f32 %v562, 0.0
  %v757 = vmax.f32 %v565, 0.0
  %v758 = vmax.f32 %v568, 0.0
  %v759 = vmax.f32 %v571, 0.0
  %v760 = vmax.f32 %v574, 0.0
  %v761 = vmax.f32 %v577, 0.0
  %v762 = vmax.f32 %v580, 0.0
  %v763 = vmax.f32 %v583, 0.0
  %v764 = vmax.f32 %v586, 0.0
  %v765 = vmax.f32 %v589, 0.0
  %v766 = vmax.f32 %v592, 0.0
  %v767 = vmax.f32 %v595, 0.0
  %v768 = vmax.f32 %v598, 0.0
  %v769 = vmax.f32 %v601, 0.0
  %v770 = vmax.f32 %v604, 0.0
  %v771 = vmax.f32 %v607, 0.0
  %v772 = vmax.f32 %v610, 0.0
  %v773 = vmax.f32 %v613, 0.0
  %v774 = vmax.f32 %v616, 0.0
  %v775 = vmax.f32 %v619, 0.0
  %v776 = vmax.f32 %v622, 0.0
  %v777 = vmax.f32 %v625, 0.0
  %v778 = vmax.f32 %v628, 0.0
  %v779 = vmax.f32 %v631, 0.0
  %v780 = vmax.f32 %v634, 0.0
  %v781 = vmax.f32 %v637, 0.0
  %v782 = vmax.f32 %v640, 0.0
  %v783 = vmax.f32 %v643, 0.0
  %v784 = vmax.f32 %v646, 0.0
  %v785 = vmax.f32 %v649, 0.0
  %v786 = vmax.f32 %v652, 0.0
  %v787 = vmax.f32 %v655, 0.0
  %v788 = vmax.f32 %v658, 0.0
  %v789 = vmax.f32 %v661, 0.0
  %v790 = vxor.u32 %v662, 2147483648
  %v791 = vxor.u32 %v663, 2147483648
  %v792 = vxor.u32 %v664, 2147483648
  %v793 = vxor.u32 %v665, 2147483648
  %v794 = vxor.u32 %v666, 2147483648
  %v795 = vxor.u32 %v667, 2147483648
  %v796 = vxor.u32 %v668, 2147483648
  %v797 = vxor.u32 %v669, 2147483648
  %v798 = vxor.u32 %v670, 2147483648
  %v799 = vxor.u32 %v671, 2147483648
  %v800 = vxor.u32 %v672, 2147483648
  %v801 = vxor.u32 %v673, 2147483648
  %v802 = vxor.u32 %v674, 2147483648
  %v803 = vxor.u32 %v675, 2147483648
  %v804 = vxor.u32 %v676, 2147483648
  %v805 = vxor.u32 %v677, 2147483648
  %v806 = vxor.u32 %v678, 2147483648
  %v807 = vxor.u32 %v679, 2147483648
  %v808 = vxor.u32 %v680, 2147483648
  %v809 = vxor.u32 %v681, 2147483648
  %v810 = vxor.u32 %v682, 2147483648
  %v811 = vxor.u32 %v683, 2147483648
  %v812 = vxor.u32 %v684, 2147483648
  %v813 = vxor.u32 %v685, 2147483648
  %v814 = vxor.u32 %v686, 2147483648
  %v815 = vxor.u32 %v687, 2147483648
  %v816 = vxor.u32 %v688, 2147483648
  %v817 = vxor.u32 %v689, 2147483648
  %v818 = vxor.u32 %v690, 2147483648
  %v819 = vxor.u32 %v691, 2147483648
  %v820 = vxor.u32 %v692, 2147483648
  %v821 = vxor.u32 %v693, 2147483648
  %v822 = vxor.u32 %v694, 2147483648
  %v823 = vxor.u32 %v695, 2147483648
  %v824 = vxor.u32 %v696, 2147483648
  %v825 = vxor.u32 %v697, 2147483648
  %v826 = vxor.u32 %v698, 2147483648
  %v827 = vxor.u32 %v699, 2147483648
  %v828 = vxor.u32 %v700, 2147483648
  %v829 = vxor.u32 %v701, 2147483648
  %v830 = vxor.u32 %v702, 2147483648
  %v831 = vxor.u32 %v703, 2147483648
  %v832 = vxor.u32 %v704, 2147483648
  %v833 = vxor.u32 %v705, 2147483648
  %v834 = vxor.u32 %v706, 2147483648
  %v835 = vxor.u32 %v707, 2147483648
  %v836 = vxor.u32 %v708, 2147483648
  %v837 = vxor.u32 %v709, 2147483648
  %v838 = vxor.u32 %v710, 2147483648
  %v839 = vxor.u32 %v711, 2147483648
  %v840 = vxor.u32 %v712, 2147483648
  %v841 = vxor.u32 %v713, 2147483648
  %v842 = vxor.u32 %v714, 2147483648
  %v843 = vxor.u32 %v715, 2147483648
  %v844 = vxor.u32 %v716, 2147483648
  %v845 = vxor.u32 %v717, 2147483648
  %v846 = vxor.u32 %v718, 2147483648
  %v847 = vxor.u32 %v719, 2147483648
  %v848 = vxor.u32 %v720, 2147483648
  %v849 = vxor.u32 %v721, 2147483648
  %v850 = vxor.u32 %v722, 2147483648
  %v851 = vxor.u32 %v723, 2147483648
  %v852 = vxor.u32 %v724, 2147483648
  %v853 = vxor.u32 %v725, 2147483648
  %v854 = vxor.u32 %v726, 2147483648
  %v855 = vxor.u32 %v727, 2147483648
  %v856 = vxor.u32 %v728, 2147483648
  %v857 = vxor.u32 %v729, 2147483648
  %v858 = vxor.u32 %v730, 2147483648
  %v859 = vxor.u32 %v731, 2147483648
  %v860 = vxor.u32 %v732, 2147483648
  %v861 = vxor.u32 %v733, 2147483648
  %v862 = vxor.u32 %v734, 2147483648
  %v863 = vxor.u32 %v735, 2147483648
  %v864 = vxor.u32 %v736, 2147483648
  %v865 = vxor.u32 %v737, 2147483648
  %v866 = vxor.u32 %v738, 2147483648
  %v867 = vxor.u32 %v739, 2147483648
  %v868 = vxor.u32 %v740, 2147483648
  %v869 = vxor.u32 %v741, 2147483648
  %v870 = vxor.u32 %v742, 2147483648
  %v871 = vxor.u32 %v743, 2147483648
  %v872 = vxor.u32 %v744, 2147483648
  %v873 = vxor.u32 %v745, 2147483648
  %v874 = vxor.u32 %v746, 2147483648
  %v875 = vxor.u32 %v747, 2147483648
  %v876 = vxor.u32 %v748, 2147483648
  %v877 = vxor.u32 %v749, 2147483648
  %v878 = vxor.u32 %v750, 2147483648
  %v879 = vxor.u32 %v751, 2147483648
  %v880 = vxor.u32 %v752, 2147483648
  %v881 = vxor.u32 %v753, 2147483648
  %v882 = vxor.u32 %v754, 2147483648
  %v883 = vxor.u32 %v755, 2147483648
  %v884 = vxor.u32 %v756, 2147483648
  %v885 = vxor.u32 %v757, 2147483648
  %v886 = vxor.u32 %v758, 2147483648
  %v887 = vxor.u32 %v759, 2147483648
  %v888 = vxor.u32 %v760, 2147483648
  %v889 = vxor.u32 %v761, 2147483648
  %v890 = vxor.u32 %v762, 2147483648
  %v891 = vxor.u32 %v763, 2147483648
  %v892 = vxor.u32 %v764, 2147483648
  %v893 = vxor.u32 %v765, 2147483648
  %v894 = vxor.u32 %v766, 2147483648
  %v895 = vxor.u32 %v767, 2147483648
  %v896 = vxor.u32 %v768, 2147483648
  %v897 = vxor.u32 %v769, 2147483648
  %v898 = vxor.u32 %v770, 2147483648
  %v899 = vxor.u32 %v771, 2147483648
  %v900 = vxor.u32 %v772, 2147483648
  %v901 = vxor.u32 %v773, 2147483648
  %v902 = vxor.u32 %v774, 2147483648
  %v903 = vxor.u32 %v775, 2147483648
  %v904 = vxor.u32 %v776, 2147483648
  %v905 = vxor.u32 %v777, 2147483648
  %v906 = vxor.u32 %v778, 2147483648
  %v907 = vxor.u32 %v779, 2147483648
  %v908 = vxor.u32 %v780, 2147483648
  %v909 = vxor.u32 %v781, 2147483648
  %v910 = vxor.u32 %v782, 2147483648
  %v911 = vxor.u32 %v783, 2147483648
  %v912 = vxor.u32 %v784, 2147483648
  %v913 = vxor.u32 %v785, 2147483648
  %v914 = vxor.u32 %v786, 2147483648
  %v915 = vxor.u32 %v787, 2147483648
  %v916 = vxor.u32 %v788, 2147483648
  %v917 = vxor.u32 %v789, 2147483648
  %v918 = vmul.f32 %v790, 1.442695
  %v919 = vpow.pop %v918
  %v920 = vmul.f32 %v791, 1.442695
  %v921 = vpow.pop %v920
  %v922 = vmul.f32 %v792, 1.442695
  %v923 = vpow.pop %v922
  %v924 = vmul.f32 %v793, 1.442695
  %v925 = vpow.pop %v924
  %v926 = vmul.f32 %v794, 1.442695
  %v927 = vpow.pop %v926
  %v928 = vmul.f32 %v795, 1.442695
  %v929 = vpow.pop %v928
  %v930 = vmul.f32 %v796, 1.442695
  %v931 = vpow.pop %v930
  %v932 = vmul.f32 %v797, 1.442695
  %v933 = vpow.pop %v932
  %v934 = vmul.f32 %v798, 1.442695
  %v935 = vpow.pop %v934
  %v936 = vmul.f32 %v799, 1.442695
  %v937 = vpow.pop %v936
  %v938 = vmul.f32 %v800, 1.442695
  %v939 = vpow.pop %v938
  %v940 = vmul.f32 %v801, 1.442695
  %v941 = vpow.pop %v940
  %v942 = vmul.f32 %v802, 1.442695
  %v943 = vpow.pop %v942
  %v944 = vmul.f32 %v803, 1.442695
  %v945 = vpow.pop %v944
  %v946 = vmul.f32 %v804, 1.442695
  %v947 = vpow.pop %v946
  %v948 = vmul.f32 %v805, 1.442695
  %v949 = vpow.pop %v948
  %v950 = vmul.f32 %v806, 1.442695
  %v951 = vpow.pop %v950
  %v952 = vmul.f32 %v807, 1.442695
  %v953 = vpow.pop %v952
  %v954 = vmul.f32 %v808, 1.442695
  %v955 = vpow.pop %v954
  %v956 = vmul.f32 %v809, 1.442695
  %v957 = vpow.pop %v956
  %v958 = vmul.f32 %v810, 1.442695
  %v959 = vpow.pop %v958
  %v960 = vmul.f32 %v811, 1.442695
  %v961 = vpow.pop %v960
  %v962 = vmul.f32 %v812, 1.442695
  %v963 = vpow.pop %v962
  %v964 = vmul.f32 %v813, 1.442695
  %v965 = vpow.pop %v964
  %v966 = vmul.f32 %v814, 1.442695
  %v967 = vpow.pop %v966
  %v968 = vmul.f32 %v815, 1.442695
  %v969 = vpow.pop %v968
  %v970 = vmul.f32 %v816, 1.442695
  %v971 = vpow.pop %v970
  %v972 = vmul.f32 %v817, 1.442695
  %v973 = vpow.pop %v972
  %v974 = vmul.f32 %v818, 1.442695
  %v975 = vpow.pop %v974
  %v976 = vmul.f32 %v819, 1.442695
  %v977 = vpow.pop %v976
  %v978 = vmul.f32 %v820, 1.442695
  %v979 = vpow.pop %v978
  %v980 = vmul.f32 %v821, 1.442695
  %v981 = vpow.pop %v980
  %v982 = vmul.f32 %v822, 1.442695
  %v983 = vpow.pop %v982
  %v984 = vmul.f32 %v823, 1.442695
  %v985 = vpow.pop %v984
  %v986 = vmul.f32 %v824, 1.442695
  %v987 = vpow.pop %v986
  %v988 = vmul.f32 %v825, 1.442695
  %v989 = vpow.pop %v988
  %v990 = vmul.f32 %v826, 1.442695
  %v991 = vpow.pop %v990
  %v992 = vmul.f32 %v827, 1.442695
  %v993 = vpow.pop %v992
  %v994 = vmul.f32 %v828, 1.442695
  %v995 = vpow.pop %v994
  %v996 = vmul.f32 %v829, 1.442695
  %v997 = vpow.pop %v996
  %v998 = vmul.f32 %v830, 1.442695
  %v999 = vpow.pop %v998
  %v1000 = vmul.f32 %v831, 1.442695
  %v1001 = vpow.pop %v1000
  %v1002 = vmul.f32 %v832, 1.442695
  %v1003 = vpow.pop %v1002
  %v1004 = vmul.f32 %v833, 1.442695
  %v1005 = vpow.pop %v1004
  %v1006 = vmul.f32 %v834, 1.442695
  %v1007 = vpow.pop %v1006
  %v1008 = vmul.f32 %v835, 1.442695
  %v1009 = vpow.pop %v1008
  %v1010 = vmul.f32 %v836, 1.442695
  %v1011 = vpow.pop %v1010
  %v1012 = vmul.f32 %v837, 1.442695
  %v1013 = vpow.pop %v1012
  %v1014 = vmul.f32 %v838, 1.442695
  %v1015 = vpow.pop %v1014
  %v1016 = vmul.f32 %v839, 1.442695
  %v1017 = vpow.pop %v1016
  %v1018 = vmul.f32 %v840, 1.442695
  %v1019 = vpow.pop %v1018
  %v1020 = vmul.f32 %v841, 1.442695
  %v1021 = vpow.pop %v1020
  %v1022 = vmul.f32 %v842, 1.442695
  %v1023 = vpow.pop %v1022
  %v1024 = vmul.f32 %v843, 1.442695
  %v1025 = vpow.pop %v1024
  %v1026 = vmul.f32 %v844, 1.442695
  %v1027 = vpow.pop %v1026
  %v1028 = vmul.f32 %v845, 1.442695
  %v1029 = vpow.pop %v1028
  %v1030 = vmul.f32 %v846, 1.442695
  %v1031 = vpow.pop %v1030
  %v1032 = vmul.f32 %v847, 1.442695
  %v1033 = vpow.pop %v1032
  %v1034 = vmul.f32 %v848, 1.442695
  %v1035 = vpow.pop %v1034
  %v1036 = vmul.f32 %v849, 1.442695
  %v1037 = vpow.pop %v1036
  %v1038 = vmul.f32 %v850, 1.442695
  %v1039 = vpow.pop %v1038
  %v1040 = vmul.f32 %v851, 1.442695
  %v1041 = vpow.pop %v1040
  %v1042 = vmul.f32 %v852, 1.442695
  %v1043 = vpow.pop %v1042
  %v1044 = vmul.f32 %v853, 1.442695
  %v1045 = vpow.pop %v1044
  %v1046 = vmul.f32 %v854, 1.442695
  %v1047 = vpow.pop %v1046
  %v1048 = vmul.f32 %v855, 1.442695
  %v1049 = vpow.pop %v1048
  %v1050 = vmul.f32 %v856, 1.442695
  %v1051 = vpow.pop %v1050
  %v1052 = vmul.f32 %v857, 1.442695
  %v1053 = vpow.pop %v1052
  %v1054 = vmul.f32 %v858, 1.442695
  %v1055 = vpow.pop %v1054
  %v1056 = vmul.f32 %v859, 1.442695
  %v1057 = vpow.pop %v1056
  %v1058 = vmul.f32 %v860, 1.442695
  %v1059 = vpow.pop %v1058
  %v1060 = vmul.f32 %v861, 1.442695
  %v1061 = vpow.pop %v1060
  %v1062 = vmul.f32 %v862, 1.442695
  %v1063 = vpow.pop %v1062
  %v1064 = vmul.f32 %v863, 1.442695
  %v1065 = vpow.pop %v1064
  %v1066 = vmul.f32 %v864, 1.442695
  %v1067 = vpow.pop %v1066
  %v1068 = vmul.f32 %v865, 1.442695
  %v1069 = vpow.pop %v1068
  %v1070 = vmul.f32 %v866, 1.442695
  %v1071 = vpow.pop %v1070
  %v1072 = vmul.f32 %v867, 1.442695
  %v1073 = vpow.pop %v1072
  %v1074 = vmul.f32 %v868, 1.442695
  %v1075 = vpow.pop %v1074
  %v1076 = vmul.f32 %v869, 1.442695
  %v1077 = vpow.pop %v1076
  %v1078 = vmul.f32 %v870, 1.442695
  %v1079 = vpow.pop %v1078
  %v1080 = vmul.f32 %v871, 1.442695
  %v1081 = vpow.pop %v1080
  %v1082 = vmul.f32 %v872, 1.442695
  %v1083 = vpow.pop %v1082
  %v1084 = vmul.f32 %v873, 1.442695
  %v1085 = vpow.pop %v1084
  %v1086 = vmul.f32 %v874, 1.442695
  %v1087 = vpow.pop %v1086
  %v1088 = vmul.f32 %v875, 1.442695
  %v1089 = vpow.pop %v1088
  %v1090 = vmul.f32 %v876, 1.442695
  %v1091 = vpow.pop %v1090
  %v1092 = vmul.f32 %v877, 1.442695
  %v1093 = vpow.pop %v1092
  %v1094 = vmul.f32 %v878, 1.442695
  %v1095 = vpow.pop %v1094
  %v1096 = vmul.f32 %v879, 1.442695
  %v1097 = vpow.pop %v1096
  %v1098 = vmul.f32 %v880, 1.442695
  %v1099 = vpow.pop %v1098
  %v1100 = vmul.f32 %v881, 1.442695
  %v1101 = vpow.pop %v1100
  %v1102 = vmul.f32 %v882, 1.442695
  %v1103 = vpow.pop %v1102
  %v1104 = vmul.f32 %v883, 1.442695
  %v1105 = vpow.pop %v1104
  %v1106 = vmul.f32 %v884, 1.442695
  %v1107 = vpow.pop %v1106
  %v1108 = vmul.f32 %v885, 1.442695
  %v1109 = vpow.pop %v1108
  %v1110 = vmul.f32 %v886, 1.442695
  %v1111 = vpow.pop %v1110
  %v1112 = vmul.f32 %v887, 1.442695
  %v1113 = vpow.pop %v1112
  %v1114 = vmul.f32 %v888, 1.442695
  %v1115 = vpow.pop %v1114
  %v1116 = vmul.f32 %v889, 1.442695
  %v1117 = vpow.pop %v1116
  %v1118 = vmul.f32 %v890, 1.442695
  %v1119 = vpow.pop %v1118
  %v1120 = vmul.f32 %v891, 1.442695
  %v1121 = vpow.pop %v1120
  %v1122 = vmul.f32 %v892, 1.442695
  %v1123 = vpow.pop %v1122
  %v1124 = vmul.f32 %v893, 1.442695
  %v1125 = vpow.pop %v1124
  %v1126 = vmul.f32 %v894, 1.442695
  %v1127 = vpow.pop %v1126
  %v1128 = vmul.f32 %v895, 1.442695
  %v1129 = vpow.pop %v1128
  %v1130 = vmul.f32 %v896, 1.442695
  %v1131 = vpow.pop %v1130
  %v1132 = vmul.f32 %v897, 1.442695
  %v1133 = vpow.pop %v1132
  %v1134 = vmul.f32 %v898, 1.442695
  %v1135 = vpow.pop %v1134
  %v1136 = vmul.f32 %v899, 1.442695
  %v1137 = vpow.pop %v1136
  %v1138 = vmul.f32 %v900, 1.442695
  %v1139 = vpow.pop %v1138
  %v1140 = vmul.f32 %v901, 1.442695
  %v1141 = vpow.pop %v1140
  %v1142 = vmul.f32 %v902, 1.442695
  %v1143 = vpow.pop %v1142
  %v1144 = vmul.f32 %v903, 1.442695
  %v1145 = vpow.pop %v1144
  %v1146 = vmul.f32 %v904, 1.442695
  %v1147 = vpow.pop %v1146
  %v1148 = vmul.f32 %v905, 1.442695
  %v1149 = vpow.pop %v1148
  %v1150 = vmul.f32 %v906, 1.442695
  %v1151 = vpow.pop %v1150
  %v1152 = vmul.f32 %v907, 1.442695
  %v1153 = vpow.pop %v1152
  %v1154 = vmul.f32 %v908, 1.442695
  %v1155 = vpow.pop %v1154
  %v1156 = vmul.f32 %v909, 1.442695
  %v1157 = vpow.pop %v1156
  %v1158 = vmul.f32 %v910, 1.442695
  %v1159 = vpow.pop %v1158
  %v1160 = vmul.f32 %v911, 1.442695
  %v1161 = vpow.pop %v1160
  %v1162 = vmul.f32 %v912, 1.442695
  %v1163 = vpow.pop %v1162
  %v1164 = vmul.f32 %v913, 1.442695
  %v1165 = vpow.pop %v1164
  %v1166 = vmul.f32 %v914, 1.442695
  %v1167 = vpow.pop %v1166
  %v1168 = vmul.f32 %v915, 1.442695
  %v1169 = vpow.pop %v1168
  %v1170 = vmul.f32 %v916, 1.442695
  %v1171 = vpow.pop %v1170
  %v1172 = vmul.f32 %v917, 1.442695
  %v1173 = vpow.pop %v1172
  %v1174 = vadd.f32 %v919, 1.0
  %v1175 = vadd.f32 %v921, 1.0
  %v1176 = vadd.f32 %v923, 1.0
  %v1177 = vadd.f32 %v925, 1.0
  %v1178 = vadd.f32 %v927, 1.0
  %v1179 = vadd.f32 %v929, 1.0
  %v1180 = vadd.f32 %v931, 1.0
  %v1181 = vadd.f32 %v933, 1.0
  %v1182 = vadd.f32 %v935, 1.0
  %v1183 = vadd.f32 %v937, 1.0
  %v1184 = vadd.f32 %v939, 1.0
  %v1185 = vadd.f32 %v941, 1.0
  %v1186 = vadd.f32 %v943, 1.0
  %v1187 = vadd.f32 %v945, 1.0
  %v1188 = vadd.f32 %v947, 1.0
  %v1189 = vadd.f32 %v949, 1.0
  %v1190 = vadd.f32 %v951, 1.0
  %v1191 = vadd.f32 %v953, 1.0
  %v1192 = vadd.f32 %v955, 1.0
  %v1193 = vadd.f32 %v957, 1.0
  %v1194 = vadd.f32 %v959, 1.0
  %v1195 = vadd.f32 %v961, 1.0
  %v1196 = vadd.f32 %v963, 1.0
  %v1197 = vadd.f32 %v965, 1.0
  %v1198 = vadd.f32 %v967, 1.0
  %v1199 = vadd.f32 %v969, 1.0
  %v1200 = vadd.f32 %v971, 1.0
  %v1201 = vadd.f32 %v973, 1.0
  %v1202 = vadd.f32 %v975, 1.0
  %v1203 = vadd.f32 %v977, 1.0
  %v1204 = vadd.f32 %v979, 1.0
  %v1205 = vadd.f32 %v981, 1.0
  %v1206 = vadd.f32 %v983, 1.0
  %v1207 = vadd.f32 %v985, 1.0
  %v1208 = vadd.f32 %v987, 1.0
  %v1209 = vadd.f32 %v989, 1.0
  %v1210 = vadd.f32 %v991, 1.0
  %v1211 = vadd.f32 %v993, 1.0
  %v1212 = vadd.f32 %v995, 1.0
  %v1213 = vadd.f32 %v997, 1.0
  %v1214 = vadd.f32 %v999, 1.0
  %v1215 = vadd.f32 %v1001, 1.0
  %v1216 = vadd.f32 %v1003, 1.0
  %v1217 = vadd.f32 %v1005, 1.0
  %v1218 = vadd.f32 %v1007, 1.0
  %v1219 = vadd.f32 %v1009, 1.0
  %v1220 = vadd.f32 %v1011, 1.0
  %v1221 = vadd.f32 %v1013, 1.0
  %v1222 = vadd.f32 %v1015, 1.0
  %v1223 = vadd.f32 %v1017, 1.0
  %v1224 = vadd.f32 %v1019, 1.0
  %v1225 = vadd.f32 %v1021, 1.0
  %v1226 = vadd.f32 %v1023, 1.0
  %v1227 = vadd.f32 %v1025, 1.0
  %v1228 = vadd.f32 %v1027, 1.0
  %v1229 = vadd.f32 %v1029, 1.0
  %v1230 = vadd.f32 %v1031, 1.0
  %v1231 = vadd.f32 %v1033, 1.0
  %v1232 = vadd.f32 %v1035, 1.0
  %v1233 = vadd.f32 %v1037, 1.0
  %v1234 = vadd.f32 %v1039, 1.0
  %v1235 = vadd.f32 %v1041, 1.0
  %v1236 = vadd.f32 %v1043, 1.0
  %v1237 = vadd.f32 %v1045, 1.0
  %v1238 = vadd.f32 %v1047, 1.0
  %v1239 = vadd.f32 %v1049, 1.0
  %v1240 = vadd.f32 %v1051, 1.0
  %v1241 = vadd.f32 %v1053, 1.0
  %v1242 = vadd.f32 %v1055, 1.0
  %v1243 = vadd.f32 %v1057, 1.0
  %v1244 = vadd.f32 %v1059, 1.0
  %v1245 = vadd.f32 %v1061, 1.0
  %v1246 = vadd.f32 %v1063, 1.0
  %v1247 = vadd.f32 %v1065, 1.0
  %v1248 = vadd.f32 %v1067, 1.0
  %v1249 = vadd.f32 %v1069, 1.0
  %v1250 = vadd.f32 %v1071, 1.0
  %v1251 = vadd.f32 %v1073, 1.0
  %v1252 = vadd.f32 %v1075, 1.0
  %v1253 = vadd.f32 %v1077, 1.0
  %v1254 = vadd.f32 %v1079, 1.0
  %v1255 = vadd.f32 %v1081, 1.0
  %v1256 = vadd.f32 %v1083, 1.0
  %v1257 = vadd.f32 %v1085, 1.0
  %v1258 = vadd.f32 %v1087, 1.0
  %v1259 = vadd.f32 %v1089, 1.0
  %v1260 = vadd.f32 %v1091, 1.0
  %v1261 = vadd.f32 %v1093, 1.0
  %v1262 = vadd.f32 %v1095, 1.0
  %v1263 = vadd.f32 %v1097, 1.0
  %v1264 = vadd.f32 %v1099, 1.0
  %v1265 = vadd.f32 %v1101, 1.0
  %v1266 = vadd.f32 %v1103, 1.0
  %v1267 = vadd.f32 %v1105, 1.0
  %v1268 = vadd.f32 %v1107, 1.0
  %v1269 = vadd.f32 %v1109, 1.0
  %v1270 = vadd.f32 %v1111, 1.0
  %v1271 = vadd.f32 %v1113, 1.0
  %v1272 = vadd.f32 %v1115, 1.0
  %v1273 = vadd.f32 %v1117, 1.0
  %v1274 = vadd.f32 %v1119, 1.0
  %v1275 = vadd.f32 %v1121, 1.0
  %v1276 = vadd.f32 %v1123, 1.0
  %v1277 = vadd.f32 %v1125, 1.0
  %v1278 = vadd.f32 %v1127, 1.0
  %v1279 = vadd.f32 %v1129, 1.0
  %v1280 = vadd.f32 %v1131, 1.0
  %v1281 = vadd.f32 %v1133, 1.0
  %v1282 = vadd.f32 %v1135, 1.0
  %v1283 = vadd.f32 %v1137, 1.0
  %v1284 = vadd.f32 %v1139, 1.0
  %v1285 = vadd.f32 %v1141, 1.0
  %v1286 = vadd.f32 %v1143, 1.0
  %v1287 = vadd.f32 %v1145, 1.0
  %v1288 = vadd.f32 %v1147, 1.0
  %v1289 = vadd.f32 %v1149, 1.0
  %v1290 = vadd.f32 %v1151, 1.0
  %v1291 = vadd.f32 %v1153, 1.0
  %v1292 = vadd.f32 %v1155, 1.0
  %v1293 = vadd.f32 %v1157, 1.0
  %v1294 = vadd.f32 %v1159, 1.0
  %v1295 = vadd.f32 %v1161, 1.0
  %v1296 = vadd.f32 %v1163, 1.0
  %v1297 = vadd.f32 %v1165, 1.0
  %v1298 = vadd.f32 %v1167, 1.0
  %v1299 = vadd.f32 %v1169, 1.0
  %v1300 = vadd.f32 %v1171, 1.0
  %v1301 = vadd.f32 %v1173, 1.0
  %v1302 = vrcp.pop %v1174
  %v1303 = vmul.f32 1.0, %v1302
  %v1304 = vrcp.pop %v1175
  %v1305 = vmul.f32 1.0, %v1304
  %v1306 = vrcp.pop %v1176
  %v1307 = vmul.f32 1.0, %v1306
  %v1308 = vrcp.pop %v1177
  %v1309 = vmul.f32 1.0, %v1308
  %v1310 = vrcp.pop %v1178
  %v1311 = vmul.f32 1.0, %v1310
  %v1312 = vrcp.pop %v1179
  %v1313 = vmul.f32 1.0, %v1312
  %v1314 = vrcp.pop %v1180
  %v1315 = vmul.f32 1.0, %v1314
  %v1316 = vrcp.pop %v1181
  %v1317 = vmul.f32 1.0, %v1316
  %v1318 = vrcp.pop %v1182
  %v1319 = vmul.f32 1.0, %v1318
  %v1320 = vrcp.pop %v1183
  %v1321 = vmul.f32 1.0, %v1320
  %v1322 = vrcp.pop %v1184
  %v1323 = vmul.f32 1.0, %v1322
  %v1324 = vrcp.pop %v1185
  %v1325 = vmul.f32 1.0, %v1324
  %v1326 = vrcp.pop %v1186
  %v1327 = vmul.f32 1.0, %v1326
  %v1328 = vrcp.pop %v1187
  %v1329 = vmul.f32 1.0, %v1328
  %v1330 = vrcp.pop %v1188
  %v1331 = vmul.f32 1.0, %v1330
  %v1332 = vrcp.pop %v1189
  %v1333 = vmul.f32 1.0, %v1332
  %v1334 = vrcp.pop %v1190
  %v1335 = vmul.f32 1.0, %v1334
  %v1336 = vrcp.pop %v1191
  %v1337 = vmul.f32 1.0, %v1336
  %v1338 = vrcp.pop %v1192
  %v1339 = vmul.f32 1.0, %v1338
  %v1340 = vrcp.pop %v1193
  %v1341 = vmul.f32 1.0, %v1340
  %v1342 = vrcp.pop %v1194
  %v1343 = vmul.f32 1.0, %v1342
  %v1344 = vrcp.pop %v1195
  %v1345 = vmul.f32 1.0, %v1344
  %v1346 = vrcp.pop %v1196
  %v1347 = vmul.f32 1.0, %v1346
  %v1348 = vrcp.pop %v1197
  %v1349 = vmul.f32 1.0, %v1348
  %v1350 = vrcp.pop %v1198
  %v1351 = vmul.f32 1.0, %v1350
  %v1352 = vrcp.pop %v1199
  %v1353 = vmul.f32 1.0, %v1352
  %v1354 = vrcp.pop %v1200
  %v1355 = vmul.f32 1.0, %v1354
  %v1356 = vrcp.pop %v1201
  %v1357 = vmul.f32 1.0, %v1356
  %v1358 = vrcp.pop %v1202
  %v1359 = vmul.f32 1.0, %v1358
  %v1360 = vrcp.pop %v1203
  %v1361 = vmul.f32 1.0, %v1360
  %v1362 = vrcp.pop %v1204
  %v1363 = vmul.f32 1.0, %v1362
  %v1364 = vrcp.pop %v1205
  %v1365 = vmul.f32 1.0, %v1364
  %v1366 = vrcp.pop %v1206
  %v1367 = vmul.f32 1.0, %v1366
  %v1368 = vrcp.pop %v1207
  %v1369 = vmul.f32 1.0, %v1368
  %v1370 = vrcp.pop %v1208
  %v1371 = vmul.f32 1.0, %v1370
  %v1372 = vrcp.pop %v1209
  %v1373 = vmul.f32 1.0, %v1372
  %v1374 = vrcp.pop %v1210
  %v1375 = vmul.f32 1.0, %v1374
  %v1376 = vrcp.pop %v1211
  %v1377 = vmul.f32 1.0, %v1376
  %v1378 = vrcp.pop %v1212
  %v1379 = vmul.f32 1.0, %v1378
  %v1380 = vrcp.pop %v1213
  %v1381 = vmul.f32 1.0, %v1380
  %v1382 = vrcp.pop %v1214
  %v1383 = vmul.f32 1.0, %v1382
  %v1384 = vrcp.pop %v1215
  %v1385 = vmul.f32 1.0, %v1384
  %v1386 = vrcp.pop %v1216
  %v1387 = vmul.f32 1.0, %v1386
  %v1388 = vrcp.pop %v1217
  %v1389 = vmul.f32 1.0, %v1388
  %v1390 = vrcp.pop %v1218
  %v1391 = vmul.f32 1.0, %v1390
  %v1392 = vrcp.pop %v1219
  %v1393 = vmul.f32 1.0, %v1392
  %v1394 = vrcp.pop %v1220
  %v1395 = vmul.f32 1.0, %v1394
  %v1396 = vrcp.pop %v1221
  %v1397 = vmul.f32 1.0, %v1396
  %v1398 = vrcp.pop %v1222
  %v1399 = vmul.f32 1.0, %v1398
  %v1400 = vrcp.pop %v1223
  %v1401 = vmul.f32 1.0, %v1400
  %v1402 = vrcp.pop %v1224
  %v1403 = vmul.f32 1.0, %v1402
  %v1404 = vrcp.pop %v1225
  %v1405 = vmul.f32 1.0, %v1404
  %v1406 = vrcp.pop %v1226
  %v1407 = vmul.f32 1.0, %v1406
  %v1408 = vrcp.pop %v1227
  %v1409 = vmul.f32 1.0, %v1408
  %v1410 = vrcp.pop %v1228
  %v1411 = vmul.f32 1.0, %v1410
  %v1412 = vrcp.pop %v1229
  %v1413 = vmul.f32 1.0, %v1412
  %v1414 = vrcp.pop %v1230
  %v1415 = vmul.f32 1.0, %v1414
  %v1416 = vrcp.pop %v1231
  %v1417 = vmul.f32 1.0, %v1416
  %v1418 = vrcp.pop %v1232
  %v1419 = vmul.f32 1.0, %v1418
  %v1420 = vrcp.pop %v1233
  %v1421 = vmul.f32 1.0, %v1420
  %v1422 = vrcp.pop %v1234
  %v1423 = vmul.f32 1.0, %v1422
  %v1424 = vrcp.pop %v1235
  %v1425 = vmul.f32 1.0, %v1424
  %v1426 = vrcp.pop %v1236
  %v1427 = vmul.f32 1.0, %v1426
  %v1428 = vrcp.pop %v1237
  %v1429 = vmul.f32 1.0, %v1428
  %v1430 = vrcp.pop %v1238
  %v1431 = vmul.f32 1.0, %v1430
  %v1432 = vrcp.pop %v1239
  %v1433 = vmul.f32 1.0, %v1432
  %v1434 = vrcp.pop %v1240
  %v1435 = vmul.f32 1.0, %v1434
  %v1436 = vrcp.pop %v1241
  %v1437 = vmul.f32 1.0, %v1436
  %v1438 = vrcp.pop %v1242
  %v1439 = vmul.f32 1.0, %v1438
  %v1440 = vrcp.pop %v1243
  %v1441 = vmul.f32 1.0, %v1440
  %v1442 = vrcp.pop %v1244
  %v1443 = vmul.f32 1.0, %v1442
  %v1444 = vrcp.pop %v1245
  %v1445 = vmul.f32 1.0, %v1444
  %v1446 = vrcp.pop %v1246
  %v1447 = vmul.f32 1.0, %v1446
  %v1448 = vrcp.pop %v1247
  %v1449 = vmul.f32 1.0, %v1448
  %v1450 = vrcp.pop %v1248
  %v1451 = vmul.f32 1.0, %v1450
  %v1452 = vrcp.pop %v1249
  %v1453 = vmul.f32 1.0, %v1452
  %v1454 = vrcp.pop %v1250
  %v1455 = vmul.f32 1.0, %v1454
  %v1456 = vrcp.pop %v1251
  %v1457 = vmul.f32 1.0, %v1456
  %v1458 = vrcp.pop %v1252
  %v1459 = vmul.f32 1.0, %v1458
  %v1460 = vrcp.pop %v1253
  %v1461 = vmul.f32 1.0, %v1460
  %v1462 = vrcp.pop %v1254
  %v1463 = vmul.f32 1.0, %v1462
  %v1464 = vrcp.pop %v1255
  %v1465 = vmul.f32 1.0, %v1464
  %v1466 = vrcp.pop %v1256
  %v1467 = vmul.f32 1.0, %v1466
  %v1468 = vrcp.pop %v1257
  %v1469 = vmul.f32 1.0, %v1468
  %v1470 = vrcp.pop %v1258
  %v1471 = vmul.f32 1.0, %v1470
  %v1472 = vrcp.pop %v1259
  %v1473 = vmul.f32 1.0, %v1472
  %v1474 = vrcp.pop %v1260
  %v1475 = vmul.f32 1.0, %v1474
  %v1476 = vrcp.pop %v1261
  %v1477 = vmul.f32 1.0, %v1476
  %v1478 = vrcp.pop %v1262
  %v1479 = vmul.f32 1.0, %v1478
  %v1480 = vrcp.pop %v1263
  %v1481 = vmul.f32 1.0, %v1480
  %v1482 = vrcp.pop %v1264
  %v1483 = vmul.f32 1.0, %v1482
  %v1484 = vrcp.pop %v1265
  %v1485 = vmul.f32 1.0, %v1484
  %v1486 = vrcp.pop %v1266
  %v1487 = vmul.f32 1.0, %v1486
  %v1488 = vrcp.pop %v1267
  %v1489 = vmul.f32 1.0, %v1488
  %v1490 = vrcp.pop %v1268
  %v1491 = vmul.f32 1.0, %v1490
  %v1492 = vrcp.pop %v1269
  %v1493 = vmul.f32 1.0, %v1492
  %v1494 = vrcp.pop %v1270
  %v1495 = vmul.f32 1.0, %v1494
  %v1496 = vrcp.pop %v1271
  %v1497 = vmul.f32 1.0, %v1496
  %v1498 = vrcp.pop %v1272
  %v1499 = vmul.f32 1.0, %v1498
  %v1500 = vrcp.pop %v1273
  %v1501 = vmul.f32 1.0, %v1500
  %v1502 = vrcp.pop %v1274
  %v1503 = vmul.f32 1.0, %v1502
  %v1504 = vrcp.pop %v1275
  %v1505 = vmul.f32 1.0, %v1504
  %v1506 = vrcp.pop %v1276
  %v1507 = vmul.f32 1.0, %v1506
  %v1508 = vrcp.pop %v1277
  %v1509 = vmul.f32 1.0, %v1508
  %v1510 = vrcp.pop %v1278
  %v1511 = vmul.f32 1.0, %v1510
  %v1512 = vrcp.pop %v1279
  %v1513 = vmul.f32 1.0, %v1512
  %v1514 = vrcp.pop %v1280
  %v1515 = vmul.f32 1.0, %v1514
  %v1516 = vrcp.pop %v1281
  %v1517 = vmul.f32 1.0, %v1516
  %v1518 = vrcp.pop %v1282
  %v1519 = vmul.f32 1.0, %v1518
  %v1520 = vrcp.pop %v1283
  %v1521 = vmul.f32 1.0, %v1520
  %v1522 = vrcp.pop %v1284
  %v1523 = vmul.f32 1.0, %v1522
  %v1524 = vrcp.pop %v1285
  %v1525 = vmul.f32 1.0, %v1524
  %v1526 = vrcp.pop %v1286
  %v1527 = vmul.f32 1.0, %v1526
  %v1528 = vrcp.pop %v1287
  %v1529 = vmul.f32 1.0, %v1528
  %v1530 = vrcp.pop %v1288
  %v1531 = vmul.f32 1.0, %v1530
  %v1532 = vrcp.pop %v1289
  %v1533 = vmul.f32 1.0, %v1532
  %v1534 = vrcp.pop %v1290
  %v1535 = vmul.f32 1.0, %v1534
  %v1536 = vrcp.pop %v1291
  %v1537 = vmul.f32 1.0, %v1536
  %v1538 = vrcp.pop %v1292
  %v1539 = vmul.f32 1.0, %v1538
  %v1540 = vrcp.pop %v1293
  %v1541 = vmul.f32 1.0, %v1540
  %v1542 = vrcp.pop %v1294
  %v1543 = vmul.f32 1.0, %v1542
  %v1544 = vrcp.pop %v1295
  %v1545 = vmul.f32 1.0, %v1544
  %v1546 = vrcp.pop %v1296
  %v1547 = vmul.f32 1.0, %v1546
  %v1548 = vrcp.pop %v1297
  %v1549 = vmul.f32 1.0, %v1548
  %v1550 = vrcp.pop %v1298
  %v1551 = vmul.f32 1.0, %v1550
  %v1552 = vrcp.pop %v1299
  %v1553 = vmul.f32 1.0, %v1552
  %v1554 = vrcp.pop %v1300
  %v1555 = vmul.f32 1.0, %v1554
  %v1556 = vrcp.pop %v1301
  %v1557 = vmul.f32 1.0, %v1556
  %v1558 = vld [vmem:[%s2] sm:$0xf]
  %v1559 = vld [vmem:[%s2 + $0x4] sm:$0xf]
  %v1560 = vld [vmem:[%s2 + $0x8] sm:$0xf]
  %v1561 = vld [vmem:[%s2 + $0xc] sm:$0xf]
  %v1562 = vld [vmem:[%s2 + $0x10] sm:$0xf]
  %v1563 = vld [vmem:[%s2 + $0x14] sm:$0xf]
  %v1564 = vld [vmem:[%s2 + $0x18] sm:$0xf]
  %v1565 = vld [vmem:[%s2 + $0x1c] sm:$0xf]
  %v1566 = vld [vmem:[%s2 + $0x20] sm:$0xf]
  %v1567 = vld [vmem:[%s2 + $0x24] sm:$0xf]
  %v1568 = vld [vmem:[%s2 + $0x28] sm:$0xf]
  %v1569 = vld [vmem:[%s2 + $0x2c] sm:$0xf]
  %v1570 = vld [vmem:[%s2 + $0x30] sm:$0xf]
  %v1571 = vld [vmem:[%s2 + $0x34] sm:$0xf]
  %v1572 = vld [vmem:[%s2 + $0x38] sm:$0xf]
  %v1573 = vld [vmem:[%s2 + $0x3c] sm:$0xf]
  %v1574 = vld [vmem:[%s2 + $0x40] sm:$0xf]
  %v1575 = vld [vmem:[%s2 + $0x44] sm:$0xf]
  %v1576 = vld [vmem:[%s2 + $0x48] sm:$0xf]
  %v1577 = vld [vmem:[%s2 + $0x4c] sm:$0xf]
  %v1578 = vld [vmem:[%s2 + $0x50] sm:$0xf]
  %v1579 = vld [vmem:[%s2 + $0x54] sm:$0xf]
  %v1580 = vld [vmem:[%s2 + $0x58] sm:$0xf]
  %v1581 = vld [vmem:[%s2 + $0x5c] sm:$0xf]
  %v1582 = vld [vmem:[%s2 + $0x60] sm:$0xf]
  %v1583 = vld [vmem:[%s2 + $0x64] sm:$0xf]
  %v1584 = vld [vmem:[%s2 + $0x68] sm:$0xf]
  %v1585 = vld [vmem:[%s2 + $0x6c] sm:$0xf]
  %v1586 = vld [vmem:[%s2 + $0x70] sm:$0xf]
  %v1587 = vld [vmem:[%s2 + $0x74] sm:$0xf]
  %v1588 = vld [vmem:[%s2 + $0x78] sm:$0xf]
  %v1589 = vld [vmem:[%s2 + $0x7c] sm:$0xf]
  %v1590 = vld [vmem:[%s2 + $0x80] sm:$0xf]
  %v1591 = vld [vmem:[%s2 + $0x84] sm:$0xf]
  %v1592 = vld [vmem:[%s2 + $0x88] sm:$0xf]
  %v1593 = vld [vmem:[%s2 + $0x8c] sm:$0xf]
  %v1594 = vld [vmem:[%s2 + $0x90] sm:$0xf]
  %v1595 = vld [vmem:[%s2 + $0x94] sm:$0xf]
  %v1596 = vld [vmem:[%s2 + $0x98] sm:$0xf]
  %v1597 = vld [vmem:[%s2 + $0x9c] sm:$0xf]
  %v1598 = vld [vmem:[%s2 + $0xa0] sm:$0xf]
  %v1599 = vld [vmem:[%s2 + $0xa4] sm:$0xf]
  %v1600 = vld [vmem:[%s2 + $0xa8] sm:$0xf]
  %v1601 = vld [vmem:[%s2 + $0xac] sm:$0xf]
  %v1602 = vld [vmem:[%s2 + $0xb0] sm:$0xf]
  %v1603 = vld [vmem:[%s2 + $0xb4] sm:$0xf]
  %v1604 = vld [vmem:[%s2 + $0xb8] sm:$0xf]
  %v1605 = vld [vmem:[%s2 + $0xbc] sm:$0xf]
  %v1606 = vld [vmem:[%s2 + $0xc0] sm:$0xf]
  %v1607 = vld [vmem:[%s2 + $0xc4] sm:$0xf]
  %v1608 = vld [vmem:[%s2 + $0xc8] sm:$0xf]
  %v1609 = vld [vmem:[%s2 + $0xcc] sm:$0xf]
  %v1610 = vld [vmem:[%s2 + $0xd0] sm:$0xf]
  %v1611 = vld [vmem:[%s2 + $0xd4] sm:$0xf]
  %v1612 = vld [vmem:[%s2 + $0xd8] sm:$0xf]
  %v1613 = vld [vmem:[%s2 + $0xdc] sm:$0xf]
  %v1614 = vld [vmem:[%s2 + $0xe0] sm:$0xf]
  %v1615 = vld [vmem:[%s2 + $0xe4] sm:$0xf]
  %v1616 = vld [vmem:[%s2 + $0xe8] sm:$0xf]
  %v1617 = vld [vmem:[%s2 + $0xec] sm:$0xf]
  %v1618 = vld [vmem:[%s2 + $0xf0] sm:$0xf]
  %v1619 = vld [vmem:[%s2 + $0xf4] sm:$0xf]
  %v1620 = vld [vmem:[%s2 + $0xf8] sm:$0xf]
  %v1621 = vld [vmem:[%s2 + $0xfc] sm:$0xf]
  %v1622 = vld [vmem:[%s2 + $0x100] sm:$0xf]
  %v1623 = vld [vmem:[%s2 + $0x104] sm:$0xf]
  %v1624 = vld [vmem:[%s2 + $0x108] sm:$0xf]
  %v1625 = vld [vmem:[%s2 + $0x10c] sm:$0xf]
  %v1626 = vld [vmem:[%s2 + $0x110] sm:$0xf]
  %v1627 = vld [vmem:[%s2 + $0x114] sm:$0xf]
  %v1628 = vld [vmem:[%s2 + $0x118] sm:$0xf]
  %v1629 = vld [vmem:[%s2 + $0x11c] sm:$0xf]
  %v1630 = vld [vmem:[%s2 + $0x120] sm:$0xf]
  %v1631 = vld [vmem:[%s2 + $0x124] sm:$0xf]
  %v1632 = vld [vmem:[%s2 + $0x128] sm:$0xf]
  %v1633 = vld [vmem:[%s2 + $0x12c] sm:$0xf]
  %v1634 = vld [vmem:[%s2 + $0x130] sm:$0xf]
  %v1635 = vld [vmem:[%s2 + $0x134] sm:$0xf]
  %v1636 = vld [vmem:[%s2 + $0x138] sm:$0xf]
  %v1637 = vld [vmem:[%s2 + $0x13c] sm:$0xf]
  %v1638 = vld [vmem:[%s2 + $0x140] sm:$0xf]
  %v1639 = vld [vmem:[%s2 + $0x144] sm:$0xf]
  %v1640 = vld [vmem:[%s2 + $0x148] sm:$0xf]
  %v1641 = vld [vmem:[%s2 + $0x14c] sm:$0xf]
  %v1642 = vld [vmem:[%s2 + $0x150] sm:$0xf]
  %v1643 = vld [vmem:[%s2 + $0x154] sm:$0xf]
  %v1644 = vld [vmem:[%s2 + $0x158] sm:$0xf]
  %v1645 = vld [vmem:[%s2 + $0x15c] sm:$0xf]
  %v1646 = vld [vmem:[%s2 + $0x160] sm:$0xf]
  %v1647 = vld [vmem:[%s2 + $0x164] sm:$0xf]
  %v1648 = vld [vmem:[%s2 + $0x168] sm:$0xf]
  %v1649 = vld [vmem:[%s2 + $0x16c] sm:$0xf]
  %v1650 = vld [vmem:[%s2 + $0x170] sm:$0xf]
  %v1651 = vld [vmem:[%s2 + $0x174] sm:$0xf]
  %v1652 = vld [vmem:[%s2 + $0x178] sm:$0xf]
  %v1653 = vld [vmem:[%s2 + $0x17c] sm:$0xf]
  %v1654 = vld [vmem:[%s2 + $0x180] sm:$0xf]
  %v1655 = vld [vmem:[%s2 + $0x184] sm:$0xf]
  %v1656 = vld [vmem:[%s2 + $0x188] sm:$0xf]
  %v1657 = vld [vmem:[%s2 + $0x18c] sm:$0xf]
  %v1658 = vld [vmem:[%s2 + $0x190] sm:$0xf]
  %v1659 = vld [vmem:[%s2 + $0x194] sm:$0xf]
  %v1660 = vld [vmem:[%s2 + $0x198] sm:$0xf]
  %v1661 = vld [vmem:[%s2 + $0x19c] sm:$0xf]
  %v1662 = vld [vmem:[%s2 + $0x1a0] sm:$0xf]
  %v1663 = vld [vmem:[%s2 + $0x1a4] sm:$0xf]
  %v1664 = vld [vmem:[%s2 + $0x1a8] sm:$0xf]
  %v1665 = vld [vmem:[%s2 + $0x1ac] sm:$0xf]
  %v1666 = vld [vmem:[%s2 + $0x1b0] sm:$0xf]
  %v1667 = vld [vmem:[%s2 + $0x1b4] sm:$0xf]
  %v1668 = vld [vmem:[%s2 + $0x1b8] sm:$0xf]
  %v1669 = vld [vmem:[%s2 + $0x1bc] sm:$0xf]
  %v1670 = vld [vmem:[%s2 + $0x1c0] sm:$0xf]
  %v1671 = vld [vmem:[%s2 + $0x1c4] sm:$0xf]
  %v1672 = vld [vmem:[%s2 + $0x1c8] sm:$0xf]
  %v1673 = vld [vmem:[%s2 + $0x1cc] sm:$0xf]
  %v1674 = vld [vmem:[%s2 + $0x1d0] sm:$0xf]
  %v1675 = vld [vmem:[%s2 + $0x1d4] sm:$0xf]
  %v1676 = vld [vmem:[%s2 + $0x1d8] sm:$0xf]
  %v1677 = vld [vmem:[%s2 + $0x1dc] sm:$0xf]
  %v1678 = vld [vmem:[%s2 + $0x1e0] sm:$0xf]
  %v1679 = vld [vmem:[%s2 + $0x1e4] sm:$0xf]
  %v1680 = vld [vmem:[%s2 + $0x1e8] sm:$0xf]
  %v1681 = vld [vmem:[%s2 + $0x1ec] sm:$0xf]
  %v1682 = vld [vmem:[%s2 + $0x1f0] sm:$0xf]
  %v1683 = vld [vmem:[%s2 + $0x1f4] sm:$0xf]
  %v1684 = vld [vmem:[%s2 + $0x1f8] sm:$0xf]
  %v1685 = vld [vmem:[%s2 + $0x1fc] sm:$0xf]
  %v1686 = vunpack.c.l.bf16 %v1558
  %v1687 = vunpack.c.l.bf16 %v1559
  %v1688 = vunpack.c.l.bf16 %v1560
  %v1689 = vunpack.c.l.bf16 %v1561
  %v1690 = vunpack.c.l.bf16 %v1562
  %v1691 = vunpack.c.l.bf16 %v1563
  %v1692 = vunpack.c.l.bf16 %v1564
  %v1693 = vunpack.c.l.bf16 %v1565
  %v1694 = vunpack.c.l.bf16 %v1566
  %v1695 = vunpack.c.l.bf16 %v1567
  %v1696 = vunpack.c.l.bf16 %v1568
  %v1697 = vunpack.c.l.bf16 %v1569
  %v1698 = vunpack.c.l.bf16 %v1570
  %v1699 = vunpack.c.l.bf16 %v1571
  %v1700 = vunpack.c.l.bf16 %v1572
  %v1701 = vunpack.c.l.bf16 %v1573
  %v1702 = vunpack.c.l.bf16 %v1574
  %v1703 = vunpack.c.l.bf16 %v1575
  %v1704 = vunpack.c.l.bf16 %v1576
  %v1705 = vunpack.c.l.bf16 %v1577
  %v1706 = vunpack.c.l.bf16 %v1578
  %v1707 = vunpack.c.l.bf16 %v1579
  %v1708 = vunpack.c.l.bf16 %v1580
  %v1709 = vunpack.c.l.bf16 %v1581
  %v1710 = vunpack.c.l.bf16 %v1582
  %v1711 = vunpack.c.l.bf16 %v1583
  %v1712 = vunpack.c.l.bf16 %v1584
  %v1713 = vunpack.c.l.bf16 %v1585
  %v1714 = vunpack.c.l.bf16 %v1586
  %v1715 = vunpack.c.l.bf16 %v1587
  %v1716 = vunpack.c.l.bf16 %v1588
  %v1717 = vunpack.c.l.bf16 %v1589
  %v1718 = vunpack.c.l.bf16 %v1590
  %v1719 = vunpack.c.l.bf16 %v1591
  %v1720 = vunpack.c.l.bf16 %v1592
  %v1721 = vunpack.c.l.bf16 %v1593
  %v1722 = vunpack.c.l.bf16 %v1594
  %v1723 = vunpack.c.l.bf16 %v1595
  %v1724 = vunpack.c.l.bf16 %v1596
  %v1725 = vunpack.c.l.bf16 %v1597
  %v1726 = vunpack.c.l.bf16 %v1598
  %v1727 = vunpack.c.l.bf16 %v1599
  %v1728 = vunpack.c.l.bf16 %v1600
  %v1729 = vunpack.c.l.bf16 %v1601
  %v1730 = vunpack.c.l.bf16 %v1602
  %v1731 = vunpack.c.l.bf16 %v1603
  %v1732 = vunpack.c.l.bf16 %v1604
  %v1733 = vunpack.c.l.bf16 %v1605
  %v1734 = vunpack.c.l.bf16 %v1606
  %v1735 = vunpack.c.l.bf16 %v1607
  %v1736 = vunpack.c.l.bf16 %v1608
  %v1737 = vunpack.c.l.bf16 %v1609
  %v1738 = vunpack.c.l.bf16 %v1610
  %v1739 = vunpack.c.l.bf16 %v1611
  %v1740 = vunpack.c.l.bf16 %v1612
  %v1741 = vunpack.c.l.bf16 %v1613
  %v1742 = vunpack.c.l.bf16 %v1614
  %v1743 = vunpack.c.l.bf16 %v1615
  %v1744 = vunpack.c.l.bf16 %v1616
  %v1745 = vunpack.c.l.bf16 %v1617
  %v1746 = vunpack.c.l.bf16 %v1618
  %v1747 = vunpack.c.l.bf16 %v1619
  %v1748 = vunpack.c.l.bf16 %v1620
  %v1749 = vunpack.c.l.bf16 %v1621
  %v1750 = vunpack.c.l.bf16 %v1622
  %v1751 = vunpack.c.l.bf16 %v1623
  %v1752 = vunpack.c.l.bf16 %v1624
  %v1753 = vunpack.c.l.bf16 %v1625
  %v1754 = vunpack.c.l.bf16 %v1626
  %v1755 = vunpack.c.l.bf16 %v1627
  %v1756 = vunpack.c.l.bf16 %v1628
  %v1757 = vunpack.c.l.bf16 %v1629
  %v1758 = vunpack.c.l.bf16 %v1630
  %v1759 = vunpack.c.l.bf16 %v1631
  %v1760 = vunpack.c.l.bf16 %v1632
  %v1761 = vunpack.c.l.bf16 %v1633
  %v1762 = vunpack.c.l.bf16 %v1634
  %v1763 = vunpack.c.l.bf16 %v1635
  %v1764 = vunpack.c.l.bf16 %v1636
  %v1765 = vunpack.c.l.bf16 %v1637
  %v1766 = vunpack.c.l.bf16 %v1638
  %v1767 = vunpack.c.l.bf16 %v1639
  %v1768 = vunpack.c.l.bf16 %v1640
  %v1769 = vunpack.c.l.bf16 %v1641
  %v1770 = vunpack.c.l.bf16 %v1642
  %v1771 = vunpack.c.l.bf16 %v1643
  %v1772 = vunpack.c.l.bf16 %v1644
  %v1773 = vunpack.c.l.bf16 %v1645
  %v1774 = vunpack.c.l.bf16 %v1646
  %v1775 = vunpack.c.l.bf16 %v1647
  %v1776 = vunpack.c.l.bf16 %v1648
  %v1777 = vunpack.c.l.bf16 %v1649
  %v1778 = vunpack.c.l.bf16 %v1650
  %v1779 = vunpack.c.l.bf16 %v1651
  %v1780 = vunpack.c.l.bf16 %v1652
  %v1781 = vunpack.c.l.bf16 %v1653
  %v1782 = vunpack.c.l.bf16 %v1654
  %v1783 = vunpack.c.l.bf16 %v1655
  %v1784 = vunpack.c.l.bf16 %v1656
  %v1785 = vunpack.c.l.bf16 %v1657
  %v1786 = vunpack.c.l.bf16 %v1658
  %v1787 = vunpack.c.l.bf16 %v1659
  %v1788 = vunpack.c.l.bf16 %v1660
  %v1789 = vunpack.c.l.bf16 %v1661
  %v1790 = vunpack.c.l.bf16 %v1662
  %v1791 = vunpack.c.l.bf16 %v1663
  %v1792 = vunpack.c.l.bf16 %v1664
  %v1793 = vunpack.c.l.bf16 %v1665
  %v1794 = vunpack.c.l.bf16 %v1666
  %v1795 = vunpack.c.l.bf16 %v1667
  %v1796 = vunpack.c.l.bf16 %v1668
  %v1797 = vunpack.c.l.bf16 %v1669
  %v1798 = vunpack.c.l.bf16 %v1670
  %v1799 = vunpack.c.l.bf16 %v1671
  %v1800 = vunpack.c.l.bf16 %v1672
  %v1801 = vunpack.c.l.bf16 %v1673
  %v1802 = vunpack.c.l.bf16 %v1674
  %v1803 = vunpack.c.l.bf16 %v1675
  %v1804 = vunpack.c.l.bf16 %v1676
  %v1805 = vunpack.c.l.bf16 %v1677
  %v1806 = vunpack.c.l.bf16 %v1678
  %v1807 = vunpack.c.l.bf16 %v1679
  %v1808 = vunpack.c.l.bf16 %v1680
  %v1809 = vunpack.c.l.bf16 %v1681
  %v1810 = vunpack.c.l.bf16 %v1682
  %v1811 = vunpack.c.l.bf16 %v1683
  %v1812 = vunpack.c.l.bf16 %v1684
  %v1813 = vunpack.c.l.bf16 %v1685
  %v1814 = vadd.f32 %v1303, 1.0
  %v1815 = vadd.f32 %v1305, 1.0
  %v1816 = vadd.f32 %v1307, 1.0
  %v1817 = vadd.f32 %v1309, 1.0
  %v1818 = vadd.f32 %v1311, 1.0
  %v1819 = vadd.f32 %v1313, 1.0
  %v1820 = vadd.f32 %v1315, 1.0
  %v1821 = vadd.f32 %v1317, 1.0
  %v1822 = vadd.f32 %v1319, 1.0
  %v1823 = vadd.f32 %v1321, 1.0
  %v1824 = vadd.f32 %v1323, 1.0
  %v1825 = vadd.f32 %v1325, 1.0
  %v1826 = vadd.f32 %v1327, 1.0
  %v1827 = vadd.f32 %v1329, 1.0
  %v1828 = vadd.f32 %v1331, 1.0
  %v1829 = vadd.f32 %v1333, 1.0
  %v1830 = vadd.f32 %v1335, 1.0
  %v1831 = vadd.f32 %v1337, 1.0
  %v1832 = vadd.f32 %v1339, 1.0
  %v1833 = vadd.f32 %v1341, 1.0
  %v1834 = vadd.f32 %v1343, 1.0
  %v1835 = vadd.f32 %v1345, 1.0
  %v1836 = vadd.f32 %v1347, 1.0
  %v1837 = vadd.f32 %v1349, 1.0
  %v1838 = vadd.f32 %v1351, 1.0
  %v1839 = vadd.f32 %v1353, 1.0
  %v1840 = vadd.f32 %v1355, 1.0
  %v1841 = vadd.f32 %v1357, 1.0
  %v1842 = vadd.f32 %v1359, 1.0
  %v1843 = vadd.f32 %v1361, 1.0
  %v1844 = vadd.f32 %v1363, 1.0
  %v1845 = vadd.f32 %v1365, 1.0
  %v1846 = vadd.f32 %v1367, 1.0
  %v1847 = vadd.f32 %v1369, 1.0
  %v1848 = vadd.f32 %v1371, 1.0
  %v1849 = vadd.f32 %v1373, 1.0
  %v1850 = vadd.f32 %v1375, 1.0
  %v1851 = vadd.f32 %v1377, 1.0
  %v1852 = vadd.f32 %v1379, 1.0
  %v1853 = vadd.f32 %v1381, 1.0
  %v1854 = vadd.f32 %v1383, 1.0
  %v1855 = vadd.f32 %v1385, 1.0
  %v1856 = vadd.f32 %v1387, 1.0
  %v1857 = vadd.f32 %v1389, 1.0
  %v1858 = vadd.f32 %v1391, 1.0
  %v1859 = vadd.f32 %v1393, 1.0
  %v1860 = vadd.f32 %v1395, 1.0
  %v1861 = vadd.f32 %v1397, 1.0
  %v1862 = vadd.f32 %v1399, 1.0
  %v1863 = vadd.f32 %v1401, 1.0
  %v1864 = vadd.f32 %v1403, 1.0
  %v1865 = vadd.f32 %v1405, 1.0
  %v1866 = vadd.f32 %v1407, 1.0
  %v1867 = vadd.f32 %v1409, 1.0
  %v1868 = vadd.f32 %v1411, 1.0
  %v1869 = vadd.f32 %v1413, 1.0
  %v1870 = vadd.f32 %v1415, 1.0
  %v1871 = vadd.f32 %v1417, 1.0
  %v1872 = vadd.f32 %v1419, 1.0
  %v1873 = vadd.f32 %v1421, 1.0
  %v1874 = vadd.f32 %v1423, 1.0
  %v1875 = vadd.f32 %v1425, 1.0
  %v1876 = vadd.f32 %v1427, 1.0
  %v1877 = vadd.f32 %v1429, 1.0
  %v1878 = vadd.f32 %v1431, 1.0
  %v1879 = vadd.f32 %v1433, 1.0
  %v1880 = vadd.f32 %v1435, 1.0
  %v1881 = vadd.f32 %v1437, 1.0
  %v1882 = vadd.f32 %v1439, 1.0
  %v1883 = vadd.f32 %v1441, 1.0
  %v1884 = vadd.f32 %v1443, 1.0
  %v1885 = vadd.f32 %v1445, 1.0
  %v1886 = vadd.f32 %v1447, 1.0
  %v1887 = vadd.f32 %v1449, 1.0
  %v1888 = vadd.f32 %v1451, 1.0
  %v1889 = vadd.f32 %v1453, 1.0
  %v1890 = vadd.f32 %v1455, 1.0
  %v1891 = vadd.f32 %v1457, 1.0
  %v1892 = vadd.f32 %v1459, 1.0
  %v1893 = vadd.f32 %v1461, 1.0
  %v1894 = vadd.f32 %v1463, 1.0
  %v1895 = vadd.f32 %v1465, 1.0
  %v1896 = vadd.f32 %v1467, 1.0
  %v1897 = vadd.f32 %v1469, 1.0
  %v1898 = vadd.f32 %v1471, 1.0
  %v1899 = vadd.f32 %v1473, 1.0
  %v1900 = vadd.f32 %v1475, 1.0
  %v1901 = vadd.f32 %v1477, 1.0
  %v1902 = vadd.f32 %v1479, 1.0
  %v1903 = vadd.f32 %v1481, 1.0
  %v1904 = vadd.f32 %v1483, 1.0
  %v1905 = vadd.f32 %v1485, 1.0
  %v1906 = vadd.f32 %v1487, 1.0
  %v1907 = vadd.f32 %v1489, 1.0
  %v1908 = vadd.f32 %v1491, 1.0
  %v1909 = vadd.f32 %v1493, 1.0
  %v1910 = vadd.f32 %v1495, 1.0
  %v1911 = vadd.f32 %v1497, 1.0
  %v1912 = vadd.f32 %v1499, 1.0
  %v1913 = vadd.f32 %v1501, 1.0
  %v1914 = vadd.f32 %v1503, 1.0
  %v1915 = vadd.f32 %v1505, 1.0
  %v1916 = vadd.f32 %v1507, 1.0
  %v1917 = vadd.f32 %v1509, 1.0
  %v1918 = vadd.f32 %v1511, 1.0
  %v1919 = vadd.f32 %v1513, 1.0
  %v1920 = vadd.f32 %v1515, 1.0
  %v1921 = vadd.f32 %v1517, 1.0
  %v1922 = vadd.f32 %v1519, 1.0
  %v1923 = vadd.f32 %v1521, 1.0
  %v1924 = vadd.f32 %v1523, 1.0
  %v1925 = vadd.f32 %v1525, 1.0
  %v1926 = vadd.f32 %v1527, 1.0
  %v1927 = vadd.f32 %v1529, 1.0
  %v1928 = vadd.f32 %v1531, 1.0
  %v1929 = vadd.f32 %v1533, 1.0
  %v1930 = vadd.f32 %v1535, 1.0
  %v1931 = vadd.f32 %v1537, 1.0
  %v1932 = vadd.f32 %v1539, 1.0
  %v1933 = vadd.f32 %v1541, 1.0
  %v1934 = vadd.f32 %v1543, 1.0
  %v1935 = vadd.f32 %v1545, 1.0
  %v1936 = vadd.f32 %v1547, 1.0
  %v1937 = vadd.f32 %v1549, 1.0
  %v1938 = vadd.f32 %v1551, 1.0
  %v1939 = vadd.f32 %v1553, 1.0
  %v1940 = vadd.f32 %v1555, 1.0
  %v1941 = vadd.f32 %v1557, 1.0
  %v1942 = vmul.f32 %v1686, %v1814
  %v1943 = vmul.f32 %v1687, %v1815
  %v1944 = vmul.f32 %v1688, %v1816
  %v1945 = vmul.f32 %v1689, %v1817
  %v1946 = vmul.f32 %v1690, %v1818
  %v1947 = vmul.f32 %v1691, %v1819
  %v1948 = vmul.f32 %v1692, %v1820
  %v1949 = vmul.f32 %v1693, %v1821
  %v1950 = vmul.f32 %v1694, %v1822
  %v1951 = vmul.f32 %v1695, %v1823
  %v1952 = vmul.f32 %v1696, %v1824
  %v1953 = vmul.f32 %v1697, %v1825
  %v1954 = vmul.f32 %v1698, %v1826
  %v1955 = vmul.f32 %v1699, %v1827
  %v1956 = vmul.f32 %v1700, %v1828
  %v1957 = vmul.f32 %v1701, %v1829
  %v1958 = vmul.f32 %v1702, %v1830
  %v1959 = vmul.f32 %v1703, %v1831
  %v1960 = vmul.f32 %v1704, %v1832
  %v1961 = vmul.f32 %v1705, %v1833
  %v1962 = vmul.f32 %v1706, %v1834
  %v1963 = vmul.f32 %v1707, %v1835
  %v1964 = vmul.f32 %v1708, %v1836
  %v1965 = vmul.f32 %v1709, %v1837
  %v1966 = vmul.f32 %v1710, %v1838
  %v1967 = vmul.f32 %v1711, %v1839
  %v1968 = vmul.f32 %v1712, %v1840
  %v1969 = vmul.f32 %v1713, %v1841
  %v1970 = vmul.f32 %v1714, %v1842
  %v1971 = vmul.f32 %v1715, %v1843
  %v1972 = vmul.f32 %v1716, %v1844
  %v1973 = vmul.f32 %v1717, %v1845
  %v1974 = vmul.f32 %v1718, %v1846
  %v1975 = vmul.f32 %v1719, %v1847
  %v1976 = vmul.f32 %v1720, %v1848
  %v1977 = vmul.f32 %v1721, %v1849
  %v1978 = vmul.f32 %v1722, %v1850
  %v1979 = vmul.f32 %v1723, %v1851
  %v1980 = vmul.f32 %v1724, %v1852
  %v1981 = vmul.f32 %v1725, %v1853
  %v1982 = vmul.f32 %v1726, %v1854
  %v1983 = vmul.f32 %v1727, %v1855
  %v1984 = vmul.f32 %v1728, %v1856
  %v1985 = vmul.f32 %v1729, %v1857
  %v1986 = vmul.f32 %v1730, %v1858
  %v1987 = vmul.f32 %v1731, %v1859
  %v1988 = vmul.f32 %v1732, %v1860
  %v1989 = vmul.f32 %v1733, %v1861
  %v1990 = vmul.f32 %v1734, %v1862
  %v1991 = vmul.f32 %v1735, %v1863
  %v1992 = vmul.f32 %v1736, %v1864
  %v1993 = vmul.f32 %v1737, %v1865
  %v1994 = vmul.f32 %v1738, %v1866
  %v1995 = vmul.f32 %v1739, %v1867
  %v1996 = vmul.f32 %v1740, %v1868
  %v1997 = vmul.f32 %v1741, %v1869
  %v1998 = vmul.f32 %v1742, %v1870
  %v1999 = vmul.f32 %v1743, %v1871
  %v2000 = vmul.f32 %v1744, %v1872
  %v2001 = vmul.f32 %v1745, %v1873
  %v2002 = vmul.f32 %v1746, %v1874
  %v2003 = vmul.f32 %v1747, %v1875
  %v2004 = vmul.f32 %v1748, %v1876
  %v2005 = vmul.f32 %v1749, %v1877
  %v2006 = vmul.f32 %v1750, %v1878
  %v2007 = vmul.f32 %v1751, %v1879
  %v2008 = vmul.f32 %v1752, %v1880
  %v2009 = vmul.f32 %v1753, %v1881
  %v2010 = vmul.f32 %v1754, %v1882
  %v2011 = vmul.f32 %v1755, %v1883
  %v2012 = vmul.f32 %v1756, %v1884
  %v2013 = vmul.f32 %v1757, %v1885
  %v2014 = vmul.f32 %v1758, %v1886
  %v2015 = vmul.f32 %v1759, %v1887
  %v2016 = vmul.f32 %v1760, %v1888
  %v2017 = vmul.f32 %v1761, %v1889
  %v2018 = vmul.f32 %v1762, %v1890
  %v2019 = vmul.f32 %v1763, %v1891
  %v2020 = vmul.f32 %v1764, %v1892
  %v2021 = vmul.f32 %v1765, %v1893
  %v2022 = vmul.f32 %v1766, %v1894
  %v2023 = vmul.f32 %v1767, %v1895
  %v2024 = vmul.f32 %v1768, %v1896
  %v2025 = vmul.f32 %v1769, %v1897
  %v2026 = vmul.f32 %v1770, %v1898
  %v2027 = vmul.f32 %v1771, %v1899
  %v2028 = vmul.f32 %v1772, %v1900
  %v2029 = vmul.f32 %v1773, %v1901
  %v2030 = vmul.f32 %v1774, %v1902
  %v2031 = vmul.f32 %v1775, %v1903
  %v2032 = vmul.f32 %v1776, %v1904
  %v2033 = vmul.f32 %v1777, %v1905
  %v2034 = vmul.f32 %v1778, %v1906
  %v2035 = vmul.f32 %v1779, %v1907
  %v2036 = vmul.f32 %v1780, %v1908
  %v2037 = vmul.f32 %v1781, %v1909
  %v2038 = vmul.f32 %v1782, %v1910
  %v2039 = vmul.f32 %v1783, %v1911
  %v2040 = vmul.f32 %v1784, %v1912
  %v2041 = vmul.f32 %v1785, %v1913
  %v2042 = vmul.f32 %v1786, %v1914
  %v2043 = vmul.f32 %v1787, %v1915
  %v2044 = vmul.f32 %v1788, %v1916
  %v2045 = vmul.f32 %v1789, %v1917
  %v2046 = vmul.f32 %v1790, %v1918
  %v2047 = vmul.f32 %v1791, %v1919
  %v2048 = vmul.f32 %v1792, %v1920
  %v2049 = vmul.f32 %v1793, %v1921
  %v2050 = vmul.f32 %v1794, %v1922
  %v2051 = vmul.f32 %v1795, %v1923
  %v2052 = vmul.f32 %v1796, %v1924
  %v2053 = vmul.f32 %v1797, %v1925
  %v2054 = vmul.f32 %v1798, %v1926
  %v2055 = vmul.f32 %v1799, %v1927
  %v2056 = vmul.f32 %v1800, %v1928
  %v2057 = vmul.f32 %v1801, %v1929
  %v2058 = vmul.f32 %v1802, %v1930
  %v2059 = vmul.f32 %v1803, %v1931
  %v2060 = vmul.f32 %v1804, %v1932
  %v2061 = vmul.f32 %v1805, %v1933
  %v2062 = vmul.f32 %v1806, %v1934
  %v2063 = vmul.f32 %v1807, %v1935
  %v2064 = vmul.f32 %v1808, %v1936
  %v2065 = vmul.f32 %v1809, %v1937
  %v2066 = vmul.f32 %v1810, %v1938
  %v2067 = vmul.f32 %v1811, %v1939
  %v2068 = vmul.f32 %v1812, %v1940
  %v2069 = vmul.f32 %v1813, %v1941
  %2070 = vst [vmem:[%s3] sm:$0xff] %v1942
  %2071 = vst [vmem:[%s3 + $0x8] sm:$0xff] %v1943
  %2072 = vst [vmem:[%s3 + $0x10] sm:$0xff] %v1944
  %2073 = vst [vmem:[%s3 + $0x18] sm:$0xff] %v1945
  %2074 = vst [vmem:[%s3 + $0x20] sm:$0xff] %v1946
  %2075 = vst [vmem:[%s3 + $0x28] sm:$0xff] %v1947
  %2076 = vst [vmem:[%s3 + $0x30] sm:$0xff] %v1948
  %2077 = vst [vmem:[%s3 + $0x38] sm:$0xff] %v1949
  %2078 = vst [vmem:[%s3 + $0x40] sm:$0xff] %v1950
  %2079 = vst [vmem:[%s3 + $0x48] sm:$0xff] %v1951
  %2080 = vst [vmem:[%s3 + $0x50] sm:$0xff] %v1952
  %2081 = vst [vmem:[%s3 + $0x58] sm:$0xff] %v1953
  %2082 = vst [vmem:[%s3 + $0x60] sm:$0xff] %v1954
  %2083 = vst [vmem:[%s3 + $0x68] sm:$0xff] %v1955
  %2084 = vst [vmem:[%s3 + $0x70] sm:$0xff] %v1956
  %2085 = vst [vmem:[%s3 + $0x78] sm:$0xff] %v1957
  %2086 = vst [vmem:[%s3 + $0x80] sm:$0xff] %v1958
  %2087 = vst [vmem:[%s3 + $0x88] sm:$0xff] %v1959
  %2088 = vst [vmem:[%s3 + $0x90] sm:$0xff] %v1960
  %2089 = vst [vmem:[%s3 + $0x98] sm:$0xff] %v1961
  %2090 = vst [vmem:[%s3 + $0xa0] sm:$0xff] %v1962
  %2091 = vst [vmem:[%s3 + $0xa8] sm:$0xff] %v1963
  %2092 = vst [vmem:[%s3 + $0xb0] sm:$0xff] %v1964
  %2093 = vst [vmem:[%s3 + $0xb8] sm:$0xff] %v1965
  %2094 = vst [vmem:[%s3 + $0xc0] sm:$0xff] %v1966
  %2095 = vst [vmem:[%s3 + $0xc8] sm:$0xff] %v1967
  %2096 = vst [vmem:[%s3 + $0xd0] sm:$0xff] %v1968
  %2097 = vst [vmem:[%s3 + $0xd8] sm:$0xff] %v1969
  %2098 = vst [vmem:[%s3 + $0xe0] sm:$0xff] %v1970
  %2099 = vst [vmem:[%s3 + $0xe8] sm:$0xff] %v1971
  %2100 = vst [vmem:[%s3 + $0xf0] sm:$0xff] %v1972
  %2101 = vst [vmem:[%s3 + $0xf8] sm:$0xff] %v1973
  %2102 = vst [vmem:[%s3 + $0x100] sm:$0xff] %v1974
  %2103 = vst [vmem:[%s3 + $0x108] sm:$0xff] %v1975
  %2104 = vst [vmem:[%s3 + $0x110] sm:$0xff] %v1976
  %2105 = vst [vmem:[%s3 + $0x118] sm:$0xff] %v1977
  %2106 = vst [vmem:[%s3 + $0x120] sm:$0xff] %v1978
  %2107 = vst [vmem:[%s3 + $0x128] sm:$0xff] %v1979
  %2108 = vst [vmem:[%s3 + $0x130] sm:$0xff] %v1980
  %2109 = vst [vmem:[%s3 + $0x138] sm:$0xff] %v1981
  %2110 = vst [vmem:[%s3 + $0x140] sm:$0xff] %v1982
  %2111 = vst [vmem:[%s3 + $0x148] sm:$0xff] %v1983
  %2112 = vst [vmem:[%s3 + $0x150] sm:$0xff] %v1984
  %2113 = vst [vmem:[%s3 + $0x158] sm:$0xff] %v1985
  %2114 = vst [vmem:[%s3 + $0x160] sm:$0xff] %v1986
  %2115 = vst [vmem:[%s3 + $0x168] sm:$0xff] %v1987
  %2116 = vst [vmem:[%s3 + $0x170] sm:$0xff] %v1988
  %2117 = vst [vmem:[%s3 + $0x178] sm:$0xff] %v1989
  %2118 = vst [vmem:[%s3 + $0x180] sm:$0xff] %v1990
  %2119 = vst [vmem:[%s3 + $0x188] sm:$0xff] %v1991
  %2120 = vst [vmem:[%s3 + $0x190] sm:$0xff] %v1992
  %2121 = vst [vmem:[%s3 + $0x198] sm:$0xff] %v1993
  %2122 = vst [vmem:[%s3 + $0x1a0] sm:$0xff] %v1994
  %2123 = vst [vmem:[%s3 + $0x1a8] sm:$0xff] %v1995
  %2124 = vst [vmem:[%s3 + $0x1b0] sm:$0xff] %v1996
  %2125 = vst [vmem:[%s3 + $0x1b8] sm:$0xff] %v1997
  %2126 = vst [vmem:[%s3 + $0x1c0] sm:$0xff] %v1998
  %2127 = vst [vmem:[%s3 + $0x1c8] sm:$0xff] %v1999
  %2128 = vst [vmem:[%s3 + $0x1d0] sm:$0xff] %v2000
  %2129 = vst [vmem:[%s3 + $0x1d8] sm:$0xff] %v2001
  %2130 = vst [vmem:[%s3 + $0x1e0] sm:$0xff] %v2002
  %2131 = vst [vmem:[%s3 + $0x1e8] sm:$0xff] %v2003
  %2132 = vst [vmem:[%s3 + $0x1f0] sm:$0xff] %v2004
  %2133 = vst [vmem:[%s3 + $0x1f8] sm:$0xff] %v2005
  %2134 = vst [vmem:[%s3 + $0x200] sm:$0xff] %v2006
  %2135 = vst [vmem:[%s3 + $0x208] sm:$0xff] %v2007
  %2136 = vst [vmem:[%s3 + $0x210] sm:$0xff] %v2008
  %2137 = vst [vmem:[%s3 + $0x218] sm:$0xff] %v2009
  %2138 = vst [vmem:[%s3 + $0x220] sm:$0xff] %v2010
  %2139 = vst [vmem:[%s3 + $0x228] sm:$0xff] %v2011
  %2140 = vst [vmem:[%s3 + $0x230] sm:$0xff] %v2012
  %2141 = vst [vmem:[%s3 + $0x238] sm:$0xff] %v2013
  %2142 = vst [vmem:[%s3 + $0x240] sm:$0xff] %v2014
  %2143 = vst [vmem:[%s3 + $0x248] sm:$0xff] %v2015
  %2144 = vst [vmem:[%s3 + $0x250] sm:$0xff] %v2016
  %2145 = vst [vmem:[%s3 + $0x258] sm:$0xff] %v2017
  %2146 = vst [vmem:[%s3 + $0x260] sm:$0xff] %v2018
  %2147 = vst [vmem:[%s3 + $0x268] sm:$0xff] %v2019
  %2148 = vst [vmem:[%s3 + $0x270] sm:$0xff] %v2020
  %2149 = vst [vmem:[%s3 + $0x278] sm:$0xff] %v2021
  %2150 = vst [vmem:[%s3 + $0x280] sm:$0xff] %v2022
  %2151 = vst [vmem:[%s3 + $0x288] sm:$0xff] %v2023
  %2152 = vst [vmem:[%s3 + $0x290] sm:$0xff] %v2024
  %2153 = vst [vmem:[%s3 + $0x298] sm:$0xff] %v2025
  %2154 = vst [vmem:[%s3 + $0x2a0] sm:$0xff] %v2026
  %2155 = vst [vmem:[%s3 + $0x2a8] sm:$0xff] %v2027
  %2156 = vst [vmem:[%s3 + $0x2b0] sm:$0xff] %v2028
  %2157 = vst [vmem:[%s3 + $0x2b8] sm:$0xff] %v2029
  %2158 = vst [vmem:[%s3 + $0x2c0] sm:$0xff] %v2030
  %2159 = vst [vmem:[%s3 + $0x2c8] sm:$0xff] %v2031
  %2160 = vst [vmem:[%s3 + $0x2d0] sm:$0xff] %v2032
  %2161 = vst [vmem:[%s3 + $0x2d8] sm:$0xff] %v2033
  %2162 = vst [vmem:[%s3 + $0x2e0] sm:$0xff] %v2034
  %2163 = vst [vmem:[%s3 + $0x2e8] sm:$0xff] %v2035
  %2164 = vst [vmem:[%s3 + $0x2f0] sm:$0xff] %v2036
  %2165 = vst [vmem:[%s3 + $0x2f8] sm:$0xff] %v2037
  %2166 = vst [vmem:[%s3 + $0x300] sm:$0xff] %v2038
  %2167 = vst [vmem:[%s3 + $0x308] sm:$0xff] %v2039
  %2168 = vst [vmem:[%s3 + $0x310] sm:$0xff] %v2040
  %2169 = vst [vmem:[%s3 + $0x318] sm:$0xff] %v2041
  %2170 = vst [vmem:[%s3 + $0x320] sm:$0xff] %v2042
  %2171 = vst [vmem:[%s3 + $0x328] sm:$0xff] %v2043
  %2172 = vst [vmem:[%s3 + $0x330] sm:$0xff] %v2044
  %2173 = vst [vmem:[%s3 + $0x338] sm:$0xff] %v2045
  %2174 = vst [vmem:[%s3 + $0x340] sm:$0xff] %v2046
  %2175 = vst [vmem:[%s3 + $0x348] sm:$0xff] %v2047
  %2176 = vst [vmem:[%s3 + $0x350] sm:$0xff] %v2048
  %2177 = vst [vmem:[%s3 + $0x358] sm:$0xff] %v2049
  %2178 = vst [vmem:[%s3 + $0x360] sm:$0xff] %v2050
  %2179 = vst [vmem:[%s3 + $0x368] sm:$0xff] %v2051
  %2180 = vst [vmem:[%s3 + $0x370] sm:$0xff] %v2052
  %2181 = vst [vmem:[%s3 + $0x378] sm:$0xff] %v2053
  %2182 = vst [vmem:[%s3 + $0x380] sm:$0xff] %v2054
  %2183 = vst [vmem:[%s3 + $0x388] sm:$0xff] %v2055
  %2184 = vst [vmem:[%s3 + $0x390] sm:$0xff] %v2056
  %2185 = vst [vmem:[%s3 + $0x398] sm:$0xff] %v2057
  %2186 = vst [vmem:[%s3 + $0x3a0] sm:$0xff] %v2058
  %2187 = vst [vmem:[%s3 + $0x3a8] sm:$0xff] %v2059
  %2188 = vst [vmem:[%s3 + $0x3b0] sm:$0xff] %v2060
  %2189 = vst [vmem:[%s3 + $0x3b8] sm:$0xff] %v2061
  %2190 = vst [vmem:[%s3 + $0x3c0] sm:$0xff] %v2062
  %2191 = vst [vmem:[%s3 + $0x3c8] sm:$0xff] %v2063
  %2192 = vst [vmem:[%s3 + $0x3d0] sm:$0xff] %v2064
  %2193 = vst [vmem:[%s3 + $0x3d8] sm:$0xff] %v2065
  %2194 = vst [vmem:[%s3 + $0x3e0] sm:$0xff] %v2066
  %2195 = vst [vmem:[%s3 + $0x3e8] sm:$0xff] %v2067
  %2196 = vst [vmem:[%s3 + $0x3f0] sm:$0xff] %v2068
  %2197 = vst [vmem:[%s3 + $0x3f8] sm:$0xff] %v2069
  // Predicated region
  $region14: #{t2flair_3dfea.3} parent=0 // pred_check
    _
  $region15: #{t2flair_3dfea.3} parent=0 // pred_check_branch
    %2199 = sbr.rel (0) target = $region17
  $region16: #{t2flair_3dfea.3} parent=0 // pred_region
    _
  $region17: #{t2flair_3dfea.3} parent=0 // pred_fallthru
    _
  // Predicated region
  $region18: #{t2flair_3dfea.3} parent=0 // pred_check
    _
  $region19: #{t2flair_3dfea.3} parent=0 // pred_check_branch
    %2201 = sbr.rel (0) target = $region21
  $region20: #{t2flair_3dfea.3} parent=0 // pred_region
    _
  $region21: #{t2flair_3dfea.3} parent=0 // pred_fallthru
    _

</llo_original>
